<compile_context>
chip_gen: v7x
topology: tpu7x:2x2x1
jax: 0.10.0
libtpu: 0.0.40
codegen_flags: <defaults>
</compile_context>

<pallas_src>
import functools

import jax
import jax.numpy as jnp
import numpy as np
from jax import lax
from jax.experimental import pallas as pl
from jax.experimental.pallas import tpu as pltpu

LANE = 128  # lane-dense width for the padded logits output


# ---------------------------------------------------------------------------
# In-kernel helpers (operate on VMEM-resident values / refs)
# ---------------------------------------------------------------------------
def _conv3x3_bn_relu(x, w_ref, s, b, N, H, W, Cin, Cout):
    """3x3 SAME conv + folded BN + ReLU.  x:(N,H,W,Cin) value, w_ref:(9,Cin,Cout) ref."""
    # zero-pad H and W by 1 on each side, entirely in VMEM
    zr = jnp.zeros((N, 1, W, Cin), jnp.float32)
    xh = jnp.concatenate([zr, x, zr], axis=1)                 # (N, H+2, W, Cin)
    zc = jnp.zeros((N, H + 2, 1, Cin), jnp.float32)
    xp = jnp.concatenate([zc, xh, zc], axis=2)                # (N, H+2, W+2, Cin)
    # 9 shifted-slab matmuls (batched over all images and rows) into one f32 accumulator
    acc = jnp.zeros((N * H * W, Cout), jnp.float32)
    for ky in range(3):
        for kx in range(3):
            slab = xp[:, ky:ky + H, kx:kx + W, :].reshape(N * H * W, Cin)
            acc = acc + jnp.dot(slab, w_ref[3 * ky + kx],
                                preferred_element_type=jnp.float32)
    y = jnp.maximum(acc * s + b, 0.0)                         # folded BN + ReLU
    return y.reshape(N, H, W, Cout)


def _maxpool2x2(y, hp_ref, N, H, W, C):
    """2x2 / stride-2 max pool, vectorized.  y:(N,H,W,C); hp_ref:(N,H//2,W,C) VMEM scratch."""
    Hh, Wh = H // 2, W // 2
    y5 = y.reshape(N, Hh, 2, W, C)                            # leading-dim split only
    a = jnp.maximum(y5[:, :, 0], y5[:, :, 1])                 # row pairs     (N, Hh, W, C)
    hp_ref[...] = a
    even = hp_ref[:, :, pl.ds(0, Wh, stride=2), :]            # sublane-strided loads
    odd = hp_ref[:, :, pl.ds(1, Wh, stride=2), :]
    return jnp.maximum(even, odd)                             # column pairs  (N, Hh, Wh, C)


# ---------------------------------------------------------------------------
# Fused forward kernel (one batch sample per grid step)
# ---------------------------------------------------------------------------
def _fusion_vgg_kernel(x_ref, we_ref, se_ref, be_ref, wa_ref, sf_ref, bf_ref,
                       wm_ref, sm_ref, bm_ref, w1_ref, b1_ref, wh_ref, bh_ref,
                       o_ref, hp1_ref, hp2_ref, *, H, W, Cin, C1, C2):
    Hh, Wh = H // 2, W // 2
    Hq, Wq = Hh // 2, Wh // 2

    # ---- early block (shared weights); cc & mlo stacked on the leading dim ----
    x = x_ref[0]                                              # (2, H, W, Cin)
    y = _conv3x3_bn_relu(x, we_ref, se_ref[...], be_ref[...], 2, H, W, Cin, C1)
    f = _maxpool2x2(y, hp1_ref, 2, H, W, C1)                  # (2, Hh, Wh, C1)
    f_cc = f[0].reshape(Hh * Wh, C1)
    f_mlo = f[1].reshape(Hh * Wh, C1)

    # ---- 'avg' fusion: 1x1 conv (no bias) + BN + ReLU + residual(f_mlo) ----
    g = jnp.dot((f_cc + f_mlo) * 0.5, wa_ref[...], preferred_element_type=jnp.float32)
    g = jnp.maximum(g * sf_ref[...] + bf_ref[...], 0.0) + f_mlo
    g = g.reshape(1, Hh, Wh, C1)

    # ---- mid block ----
    z = _conv3x3_bn_relu(g, wm_ref, sm_ref[...], bm_ref[...], 1, Hh, Wh, C1, C2)
    z = _maxpool2x2(z, hp2_ref, 1, Hh, Wh, C2)                # (1, Hq, Wq, C2)

    # ---- head: global avg pool -> Linear+ReLU -> folded (Linear ; fc) ----
    t = jnp.sum(z, axis=1)                                    # (1, Wq, C2)
    pooled = jnp.sum(t, axis=1) * (1.0 / (Hq * Wq))           # (1, C2)
    h1 = jnp.maximum(jnp.dot(pooled, w1_ref[...], preferred_element_type=jnp.float32)
                     + b1_ref[...], 0.0)
    # TODO(synk): nn.Dropout between the classifier Linears is an eval-mode identity, omitted.
    logits = jnp.dot(h1, wh_ref[...], preferred_element_type=jnp.float32) + bh_ref[...]
    o_ref[0] = logits                                         # (1, LANE) lane-dense store


def fusion_vgg_forward(cc_nchw, mlo_nchw, p, num_classes=2):
    B, Cin, H, W = cc_nchw.shape
    C1 = p['w_early_k'].shape[2]
    C2 = p['w_mid_k'].shape[2]
    Hd = p['w1_t'].shape[1]

    cc = jnp.transpose(cc_nchw, (0, 2, 3, 1))                 # NCHW -> NHWC (glue)
    mlo = jnp.transpose(mlo_nchw, (0, 2, 3, 1))
    x = jnp.stack([cc, mlo], axis=1)                          # (B, 2, H, W, Cin)

    kern = functools.partial(_fusion_vgg_kernel, H=H, W=W, Cin=Cin, C1=C1, C2=C2)
    out = pl.pallas_call(
        kern,
        out_shape=jax.ShapeDtypeStruct((B, 1, LANE), jnp.float32),
        grid=(B,),
        in_specs=[
            pl.BlockSpec((1, 2, H, W, Cin), lambda b: (b, 0, 0, 0, 0)),
            pl.BlockSpec((9, Cin, C1), lambda b: (0, 0, 0)),
            pl.BlockSpec((1, C1), lambda b: (0, 0)),
            pl.BlockSpec((1, C1), lambda b: (0, 0)),
            pl.BlockSpec((C1, C1), lambda b: (0, 0)),
            pl.BlockSpec((1, C1), lambda b: (0, 0)),
            pl.BlockSpec((1, C1), lambda b: (0, 0)),
            pl.BlockSpec((9, C1, C2), lambda b: (0, 0, 0)),
            pl.BlockSpec((1, C2), lambda b: (0, 0)),
            pl.BlockSpec((1, C2), lambda b: (0, 0)),
            pl.BlockSpec((C2, Hd), lambda b: (0, 0)),
            pl.BlockSpec((1, Hd), lambda b: (0, 0)),
            pl.BlockSpec((Hd, LANE), lambda b: (0, 0)),
            pl.BlockSpec((1, LANE), lambda b: (0, 0)),
        ],
        out_specs=pl.BlockSpec((1, 1, LANE), lambda b: (b, 0, 0)),
        scratch_shapes=[
            pltpu.VMEM((2, H // 2, W, C1), jnp.float32),      # early-block H-pooled rows
            pltpu.VMEM((1, H // 4, W // 2, C2), jnp.float32), # mid-block   H-pooled rows
        ],
        compiler_params=pltpu.CompilerParams(dimension_semantics=("parallel",)),
    )(x, p['w_early_k'], p['s_early'], p['b_early'],
      p['w_avg_mat'], p['s_fuse'], p['b_fuse'],
      p['w_mid_k'], p['s_mid'], p['b_mid'],
      p['w1_t'], p['b1_r'], p['w_head_pad'], p['b_head_pad'])
    return out[:, 0, :num_classes]


# ---------------------------------------------------------------------------
# Parameter setup (deterministic, synthetic) — BN folded for inference
# ---------------------------------------------------------------------------
def _fold_bn(k, c, eps=1e-5):
    k1, k2, k3, k4 = jax.random.split(k, 4)
    gamma = 1.0 + 0.1 * jax.random.normal(k1, (c,), jnp.float32)
    beta = 0.1 * jax.random.normal(k2, (c,), jnp.float32)
    mean = 0.1 * jax.random.normal(k3, (c,), jnp.float32)
    var = 1.0 + 0.1 * jnp.abs(jax.random.normal(k4, (c,), jnp.float32))
    scale = gamma / jnp.sqrt(var + eps)
    bias = beta - mean * scale
    return scale.reshape(1, c), bias.reshape(1, c)


def init_params(key, Cin=3, C1=8, C2=16, Hd=32, Fout=16, num_classes=2):
    ks = jax.random.split(key, 12)

    def conv_w(k, cout, cin, kh, kw):
        return jax.random.normal(k, (cout, cin, kh, kw), jnp.float32) / np.sqrt(cin * kh * kw)

    def lin_w(k, cout, cin):
        return jax.random.normal(k, (cout, cin), jnp.float32) / np.sqrt(cin)

    p = {}
    p['w_early'] = conv_w(ks[0], C1, Cin, 3, 3)
    p['s_early'], p['b_early'] = _fold_bn(ks[1], C1)
    p['w_avg'] = conv_w(ks[2], C1, C1, 1, 1)                  # conv_avg (1x1, no bias)
    p['s_fuse'], p['b_fuse'] = _fold_bn(ks[3], C1)            # the module's fusion BN
    p['w_mid'] = conv_w(ks[4], C2, C1, 3, 3)
    p['s_mid'], p['b_mid'] = _fold_bn(ks[5], C2)
    w1 = lin_w(ks[6], Hd, C2); b1 = 0.1 * jax.random.normal(ks[7], (Hd,), jnp.float32)
    w2 = lin_w(ks[8], Fout, Hd); b2 = 0.1 * jax.random.normal(ks[9], (Fout,), jnp.float32)
    wfc = lin_w(ks[10], num_classes, Fout)
    bfc = 0.1 * jax.random.normal(ks[11], (num_classes,), jnp.float32)

    # kernel-friendly forms
    p['w_early_k'] = jnp.transpose(p['w_early'], (2, 3, 1, 0)).reshape(9, Cin, C1)
    p['w_mid_k'] = jnp.transpose(p['w_mid'], (2, 3, 1, 0)).reshape(9, C1, C2)
    p['w_avg_mat'] = p['w_avg'][:, :, 0, 0].T                 # (C1_in, C1_out)
    p['w1_t'], p['b1_r'] = w1.T, b1.reshape(1, -1)
    p['w2_t'], p['b2_r'] = w2.T, b2.reshape(1, -1)
    p['wfc_t'], p['bfc_r'] = wfc.T, bfc.reshape(1, -1)
    # fold classifier Linear(Hd->Fout) with fc Linear(Fout->num_classes), pad lane-dense (128)
    w_head = p['w2_t'] @ p['wfc_t']                           # (Hd, num_classes)
    b_head = p['b2_r'] @ p['wfc_t'] + p['bfc_r']              # (1, num_classes)
    p['w_head_pad'] = jnp.zeros((Hd, LANE), jnp.float32).at[:, :num_classes].set(w_head)
    p['b_head_pad'] = jnp.zeros((1, LANE), jnp.float32).at[:, :num_classes].set(b_head)
    return p


# ---------------------------------------------------------------------------
# Pure-JAX reference (unfused / unfolded head) for validation
# ---------------------------------------------------------------------------
def ref_forward(cc_nchw, mlo_nchw, p):
    def conv_block(x, w_oihw, s, b):
        filt = jnp.transpose(w_oihw, (2, 3, 1, 0))
        y = lax.conv_general_dilated(x, filt, (1, 1), 'SAME',
                                     dimension_numbers=('NHWC', 'HWIO', 'NHWC'))
        y = jnp.maximum(y * s[0] + b[0], 0.0)
        return lax.reduce_window(y, -jnp.inf, lax.max, (1, 2, 2, 1), (1, 2, 2, 1), 'VALID')

    cc = jnp.transpose(cc_nchw, (0, 2, 3, 1))
    mlo = jnp.transpose(mlo_nchw, (0, 2, 3, 1))
    fcc = conv_block(cc, p['w_early'], p['s_early'], p['b_early'])
    fmlo = conv_block(mlo, p['w_early'], p['s_early'], p['b_early'])
    x = (fcc + fmlo) * 0.5
    y = jnp.einsum('bhwc,cd->bhwd', x, p['w_avg_mat'])
    y = jnp.maximum(y * p['s_fuse'][0] + p['b_fuse'][0], 0.0) + fmlo
    z = conv_block(y, p['w_mid'], p['s_mid'], p['b_mid'])
    pooled = jnp.mean(z, axis=(1, 2))
    h1 = jnp.maximum(pooled @ p['w1_t'] + p['b1_r'][0], 0.0)
    feat = h1 @ p['w2_t'] + p['b2_r'][0]
    return feat @ p['wfc_t'] + p['bfc_r'][0]


if __name__ == "__main__":
    key = jax.random.PRNGKey(0)
    kcc, kmlo, kp = jax.random.split(key, 3)
    B, Cin, H, W = 2, 3, 16, 16
    cc = jax.random.normal(kcc, (B, Cin, H, W), jnp.float32)   # PyTorch NCHW inputs
    mlo = jax.random.normal(kmlo, (B, Cin, H, W), jnp.float32)
    params = init_params(kp, Cin=Cin)

    logits = jax.block_until_ready(fusion_vgg_forward(cc, mlo, params))
    ref = jax.block_until_ready(ref_forward(cc, mlo, params))

    assert logits.shape == (B, 2) and logits.dtype == jnp.float32
    np.testing.assert_allclose(np.asarray(logits), np.asarray(ref), rtol=2e-2, atol=2e-2)

    print("KERNEL_OK")
</pallas_src>

<mosaic_0001>
module attributes {stable_mosaic.version = 11 : i64} {
  func.func @_fusion_vgg_kernel(%arg0: i32, %arg1: memref<1x2x16x16x3xf32, #tpu.memory_space<vmem>>, %arg2: memref<9x3x8xf32, #tpu.memory_space<vmem>>, %arg3: memref<1x8xf32, #tpu.memory_space<vmem>>, %arg4: memref<1x8xf32, #tpu.memory_space<vmem>>, %arg5: memref<8x8xf32, #tpu.memory_space<vmem>>, %arg6: memref<1x8xf32, #tpu.memory_space<vmem>>, %arg7: memref<1x8xf32, #tpu.memory_space<vmem>>, %arg8: memref<9x8x16xf32, #tpu.memory_space<vmem>>, %arg9: memref<1x16xf32, #tpu.memory_space<vmem>>, %arg10: memref<1x16xf32, #tpu.memory_space<vmem>>, %arg11: memref<16x32xf32, #tpu.memory_space<vmem>>, %arg12: memref<1x32xf32, #tpu.memory_space<vmem>>, %arg13: memref<32x128xf32, #tpu.memory_space<vmem>>, %arg14: memref<1x128xf32, #tpu.memory_space<vmem>>, %arg15: memref<1x1x128xf32, #tpu.memory_space<vmem>>, %arg16: memref<2x8x16x8xf32, #tpu.memory_space<vmem>>, %arg17: memref<1x4x8x16xf32, #tpu.memory_space<vmem>>) attributes {dimension_semantics = [#tpu.dimension_semantics<parallel>], iteration_bounds = array<i64: 2>, scalar_prefetch = 0 : i64, scratch_operands = 2 : i64, tpu.core_type = #tpu.core_type<tc>, window_params = [{transform_indices = @transform_0, window_bounds = array<i64: 1, 2, 16, 16, 3>}, {pipeline_mode = #tpu.pipeline_mode<synchronous>, transform_indices = @transform_1, window_bounds = array<i64: 9, 3, 8>}, {pipeline_mode = #tpu.pipeline_mode<synchronous>, transform_indices = @transform_2, window_bounds = array<i64: 1, 8>}, {pipeline_mode = #tpu.pipeline_mode<synchronous>, transform_indices = @transform_3, window_bounds = array<i64: 1, 8>}, {pipeline_mode = #tpu.pipeline_mode<synchronous>, transform_indices = @transform_4, window_bounds = array<i64: 8, 8>}, {pipeline_mode = #tpu.pipeline_mode<synchronous>, transform_indices = @transform_5, window_bounds = array<i64: 1, 8>}, {pipeline_mode = #tpu.pipeline_mode<synchronous>, transform_indices = @transform_6, window_bounds = array<i64: 1, 8>}, {pipeline_mode = #tpu.pipeline_mode<synchronous>, transform_indices = @transform_7, window_bounds = array<i64: 9, 8, 16>}, {pipeline_mode = #tpu.pipeline_mode<synchronous>, transform_indices = @transform_8, window_bounds = array<i64: 1, 16>}, {pipeline_mode = #tpu.pipeline_mode<synchronous>, transform_indices = @transform_9, window_bounds = array<i64: 1, 16>}, {pipeline_mode = #tpu.pipeline_mode<synchronous>, transform_indices = @transform_10, window_bounds = array<i64: 16, 32>}, {pipeline_mode = #tpu.pipeline_mode<synchronous>, transform_indices = @transform_11, window_bounds = array<i64: 1, 32>}, {pipeline_mode = #tpu.pipeline_mode<synchronous>, transform_indices = @transform_12, window_bounds = array<i64: 32, 128>}, {pipeline_mode = #tpu.pipeline_mode<synchronous>, transform_indices = @transform_13, window_bounds = array<i64: 1, 128>}, {transform_indices = @transform_14, window_bounds = array<i64: 1, 1, 128>}]} {
    %c0 = arith.constant 0 : index
    %c0_0 = arith.constant 0 : index
    %c0_1 = arith.constant 0 : index
    %c0_2 = arith.constant 0 : index
    %c0_3 = arith.constant 0 : index
    %0 = vector.load %arg1[%c0, %c0_0, %c0_1, %c0_2, %c0_3] : memref<1x2x16x16x3xf32, #tpu.memory_space<vmem>>, vector<1x2x16x16x3xf32>
    %1 = vector.shape_cast %0 : vector<1x2x16x16x3xf32> to vector<2x16x16x3xf32>
    %c0_4 = arith.constant 0 : index
    %c0_5 = arith.constant 0 : index
    %2 = vector.load %arg3[%c0_4, %c0_5] : memref<1x8xf32, #tpu.memory_space<vmem>>, vector<1x8xf32>
    %c0_6 = arith.constant 0 : index
    %c0_7 = arith.constant 0 : index
    %3 = vector.load %arg4[%c0_6, %c0_7] : memref<1x8xf32, #tpu.memory_space<vmem>>, vector<1x8xf32>
    %cst = arith.constant 0.000000e+00 : f32
    %4 = vector.broadcast %cst : f32 to vector<2x1x16x3xf32>
    %5 = tpu.concatenate %4, %1, %4 in 1 : vector<2x1x16x3xf32>, vector<2x16x16x3xf32>, vector<2x1x16x3xf32> -> vector<2x18x16x3xf32>
    %cst_8 = arith.constant 0.000000e+00 : f32
    %6 = vector.broadcast %cst_8 : f32 to vector<2x18x1x3xf32>
    %7 = tpu.concatenate %6, %5, %6 in 2 : vector<2x18x1x3xf32>, vector<2x18x16x3xf32>, vector<2x18x1x3xf32> -> vector<2x18x18x3xf32>
    %cst_9 = arith.constant 0.000000e+00 : f32
    %8 = vector.broadcast %cst_9 : f32 to vector<512x8xf32>
    %9 = vector.extract_strided_slice %7 {offsets = [0, 0, 0, 0], sizes = [2, 16, 16, 3], strides = [1, 1, 1, 1]} : vector<2x18x18x3xf32> to vector<2x16x16x3xf32>
    %10 = vector.shape_cast %9 : vector<2x16x16x3xf32> to vector<512x3xf32>
    %c0_10 = arith.constant 0 : index
    %c0_11 = arith.constant 0 : index
    %c0_12 = arith.constant 0 : index
    %11 = vector.load %arg2[%c0_10, %c0_11, %c0_12] : memref<9x3x8xf32, #tpu.memory_space<vmem>>, vector<1x3x8xf32>
    %12 = vector.shape_cast %11 : vector<1x3x8xf32> to vector<3x8xf32>
    %cst_13 = arith.constant dense<0.000000e+00> : vector<512x8xf32>
    %13 = tpu.matmul %10, %12, %cst_13 {dimension_numbers = #tpu.dot_dimension_numbers<[1], [0], [0], [1], [0, 0, 1, 1], [], []>} : vector<512x3xf32>, vector<3x8xf32>, vector<512x8xf32> -> vector<512x8xf32>
    %14 = arith.addf %8, %13 : vector<512x8xf32>
    %15 = vector.extract_strided_slice %7 {offsets = [0, 0, 1, 0], sizes = [2, 16, 16, 3], strides = [1, 1, 1, 1]} : vector<2x18x18x3xf32> to vector<2x16x16x3xf32>
    %16 = vector.shape_cast %15 : vector<2x16x16x3xf32> to vector<512x3xf32>
    %c1 = arith.constant 1 : index
    %c0_14 = arith.constant 0 : index
    %c0_15 = arith.constant 0 : index
    %17 = vector.load %arg2[%c1, %c0_14, %c0_15] : memref<9x3x8xf32, #tpu.memory_space<vmem>>, vector<1x3x8xf32>
    %18 = vector.shape_cast %17 : vector<1x3x8xf32> to vector<3x8xf32>
    %cst_16 = arith.constant dense<0.000000e+00> : vector<512x8xf32>
    %19 = tpu.matmul %16, %18, %cst_16 {dimension_numbers = #tpu.dot_dimension_numbers<[1], [0], [0], [1], [0, 0, 1, 1], [], []>} : vector<512x3xf32>, vector<3x8xf32>, vector<512x8xf32> -> vector<512x8xf32>
    %20 = arith.addf %14, %19 : vector<512x8xf32>
    %21 = vector.extract_strided_slice %7 {offsets = [0, 0, 2, 0], sizes = [2, 16, 16, 3], strides = [1, 1, 1, 1]} : vector<2x18x18x3xf32> to vector<2x16x16x3xf32>
    %22 = vector.shape_cast %21 : vector<2x16x16x3xf32> to vector<512x3xf32>
    %c2 = arith.constant 2 : index
    %c0_17 = arith.constant 0 : index
    %c0_18 = arith.constant 0 : index
    %23 = vector.load %arg2[%c2, %c0_17, %c0_18] : memref<9x3x8xf32, #tpu.memory_space<vmem>>, vector<1x3x8xf32>
    %24 = vector.shape_cast %23 : vector<1x3x8xf32> to vector<3x8xf32>
    %cst_19 = arith.constant dense<0.000000e+00> : vector<512x8xf32>
    %25 = tpu.matmul %22, %24, %cst_19 {dimension_numbers = #tpu.dot_dimension_numbers<[1], [0], [0], [1], [0, 0, 1, 1], [], []>} : vector<512x3xf32>, vector<3x8xf32>, vector<512x8xf32> -> vector<512x8xf32>
    %26 = arith.addf %20, %25 : vector<512x8xf32>
    %27 = vector.extract_strided_slice %7 {offsets = [0, 1, 0, 0], sizes = [2, 16, 16, 3], strides = [1, 1, 1, 1]} : vector<2x18x18x3xf32> to vector<2x16x16x3xf32>
    %28 = vector.shape_cast %27 : vector<2x16x16x3xf32> to vector<512x3xf32>
    %c3 = arith.constant 3 : index
    %c0_20 = arith.constant 0 : index
    %c0_21 = arith.constant 0 : index
    %29 = vector.load %arg2[%c3, %c0_20, %c0_21] : memref<9x3x8xf32, #tpu.memory_space<vmem>>, vector<1x3x8xf32>
    %30 = vector.shape_cast %29 : vector<1x3x8xf32> to vector<3x8xf32>
    %cst_22 = arith.constant dense<0.000000e+00> : vector<512x8xf32>
    %31 = tpu.matmul %28, %30, %cst_22 {dimension_numbers = #tpu.dot_dimension_numbers<[1], [0], [0], [1], [0, 0, 1, 1], [], []>} : vector<512x3xf32>, vector<3x8xf32>, vector<512x8xf32> -> vector<512x8xf32>
    %32 = arith.addf %26, %31 : vector<512x8xf32>
    %33 = vector.extract_strided_slice %7 {offsets = [0, 1, 1, 0], sizes = [2, 16, 16, 3], strides = [1, 1, 1, 1]} : vector<2x18x18x3xf32> to vector<2x16x16x3xf32>
    %34 = vector.shape_cast %33 : vector<2x16x16x3xf32> to vector<512x3xf32>
    %c4 = arith.constant 4 : index
    %c0_23 = arith.constant 0 : index
    %c0_24 = arith.constant 0 : index
    %35 = vector.load %arg2[%c4, %c0_23, %c0_24] : memref<9x3x8xf32, #tpu.memory_space<vmem>>, vector<1x3x8xf32>
    %36 = vector.shape_cast %35 : vector<1x3x8xf32> to vector<3x8xf32>
    %cst_25 = arith.constant dense<0.000000e+00> : vector<512x8xf32>
    %37 = tpu.matmul %34, %36, %cst_25 {dimension_numbers = #tpu.dot_dimension_numbers<[1], [0], [0], [1], [0, 0, 1, 1], [], []>} : vector<512x3xf32>, vector<3x8xf32>, vector<512x8xf32> -> vector<512x8xf32>
    %38 = arith.addf %32, %37 : vector<512x8xf32>
    %39 = vector.extract_strided_slice %7 {offsets = [0, 1, 2, 0], sizes = [2, 16, 16, 3], strides = [1, 1, 1, 1]} : vector<2x18x18x3xf32> to vector<2x16x16x3xf32>
    %40 = vector.shape_cast %39 : vector<2x16x16x3xf32> to vector<512x3xf32>
    %c5 = arith.constant 5 : index
    %c0_26 = arith.constant 0 : index
    %c0_27 = arith.constant 0 : index
    %41 = vector.load %arg2[%c5, %c0_26, %c0_27] : memref<9x3x8xf32, #tpu.memory_space<vmem>>, vector<1x3x8xf32>
    %42 = vector.shape_cast %41 : vector<1x3x8xf32> to vector<3x8xf32>
    %cst_28 = arith.constant dense<0.000000e+00> : vector<512x8xf32>
    %43 = tpu.matmul %40, %42, %cst_28 {dimension_numbers = #tpu.dot_dimension_numbers<[1], [0], [0], [1], [0, 0, 1, 1], [], []>} : vector<512x3xf32>, vector<3x8xf32>, vector<512x8xf32> -> vector<512x8xf32>
    %44 = arith.addf %38, %43 : vector<512x8xf32>
    %45 = vector.extract_strided_slice %7 {offsets = [0, 2, 0, 0], sizes = [2, 16, 16, 3], strides = [1, 1, 1, 1]} : vector<2x18x18x3xf32> to vector<2x16x16x3xf32>
    %46 = vector.shape_cast %45 : vector<2x16x16x3xf32> to vector<512x3xf32>
    %c6 = arith.constant 6 : index
    %c0_29 = arith.constant 0 : index
    %c0_30 = arith.constant 0 : index
    %47 = vector.load %arg2[%c6, %c0_29, %c0_30] : memref<9x3x8xf32, #tpu.memory_space<vmem>>, vector<1x3x8xf32>
    %48 = vector.shape_cast %47 : vector<1x3x8xf32> to vector<3x8xf32>
    %cst_31 = arith.constant dense<0.000000e+00> : vector<512x8xf32>
    %49 = tpu.matmul %46, %48, %cst_31 {dimension_numbers = #tpu.dot_dimension_numbers<[1], [0], [0], [1], [0, 0, 1, 1], [], []>} : vector<512x3xf32>, vector<3x8xf32>, vector<512x8xf32> -> vector<512x8xf32>
    %50 = arith.addf %44, %49 : vector<512x8xf32>
    %51 = vector.extract_strided_slice %7 {offsets = [0, 2, 1, 0], sizes = [2, 16, 16, 3], strides = [1, 1, 1, 1]} : vector<2x18x18x3xf32> to vector<2x16x16x3xf32>
    %52 = vector.shape_cast %51 : vector<2x16x16x3xf32> to vector<512x3xf32>
    %c7 = arith.constant 7 : index
    %c0_32 = arith.constant 0 : index
    %c0_33 = arith.constant 0 : index
    %53 = vector.load %arg2[%c7, %c0_32, %c0_33] : memref<9x3x8xf32, #tpu.memory_space<vmem>>, vector<1x3x8xf32>
    %54 = vector.shape_cast %53 : vector<1x3x8xf32> to vector<3x8xf32>
    %cst_34 = arith.constant dense<0.000000e+00> : vector<512x8xf32>
    %55 = tpu.matmul %52, %54, %cst_34 {dimension_numbers = #tpu.dot_dimension_numbers<[1], [0], [0], [1], [0, 0, 1, 1], [], []>} : vector<512x3xf32>, vector<3x8xf32>, vector<512x8xf32> -> vector<512x8xf32>
    %56 = arith.addf %50, %55 : vector<512x8xf32>
    %57 = vector.extract_strided_slice %7 {offsets = [0, 2, 2, 0], sizes = [2, 16, 16, 3], strides = [1, 1, 1, 1]} : vector<2x18x18x3xf32> to vector<2x16x16x3xf32>
    %58 = vector.shape_cast %57 : vector<2x16x16x3xf32> to vector<512x3xf32>
    %c8 = arith.constant 8 : index
    %c0_35 = arith.constant 0 : index
    %c0_36 = arith.constant 0 : index
    %59 = vector.load %arg2[%c8, %c0_35, %c0_36] : memref<9x3x8xf32, #tpu.memory_space<vmem>>, vector<1x3x8xf32>
    %60 = vector.shape_cast %59 : vector<1x3x8xf32> to vector<3x8xf32>
    %cst_37 = arith.constant dense<0.000000e+00> : vector<512x8xf32>
    %61 = tpu.matmul %58, %60, %cst_37 {dimension_numbers = #tpu.dot_dimension_numbers<[1], [0], [0], [1], [0, 0, 1, 1], [], []>} : vector<512x3xf32>, vector<3x8xf32>, vector<512x8xf32> -> vector<512x8xf32>
    %62 = arith.addf %56, %61 : vector<512x8xf32>
    %63 = vector.broadcast %2 : vector<1x8xf32> to vector<512x8xf32>
    %64 = arith.mulf %62, %63 : vector<512x8xf32>
    %65 = vector.broadcast %3 : vector<1x8xf32> to vector<512x8xf32>
    %66 = arith.addf %64, %65 : vector<512x8xf32>
    %cst_38 = arith.constant 0.000000e+00 : f32
    %67 = vector.broadcast %cst_38 : f32 to vector<512x8xf32>
    %68 = arith.maximumf %66, %67 : vector<512x8xf32>
    %69 = vector.shape_cast %68 : vector<512x8xf32> to vector<2x16x16x8xf32>
    %70 = vector.shape_cast %69 : vector<2x16x16x8xf32> to vector<2x8x2x16x8xf32>
    %71 = vector.extract_strided_slice %70 {offsets = [0, 0, 0, 0, 0], sizes = [2, 8, 1, 16, 8], strides = [1, 1, 1, 1, 1]} : vector<2x8x2x16x8xf32> to vector<2x8x1x16x8xf32>
    %72 = vector.shape_cast %71 : vector<2x8x1x16x8xf32> to vector<2x8x16x8xf32>
    %73 = vector.extract_strided_slice %70 {offsets = [0, 0, 1, 0, 0], sizes = [2, 8, 1, 16, 8], strides = [1, 1, 1, 1, 1]} : vector<2x8x2x16x8xf32> to vector<2x8x1x16x8xf32>
    %74 = vector.shape_cast %73 : vector<2x8x1x16x8xf32> to vector<2x8x16x8xf32>
    %75 = arith.maximumf %72, %74 : vector<2x8x16x8xf32>
    %c0_39 = arith.constant 0 : index
    %c0_40 = arith.constant 0 : index
    %c0_41 = arith.constant 0 : index
    %c0_42 = arith.constant 0 : index
    %76 = vector.load %arg16[%c0_39, %c0_40, %c0_41, %c0_42] : memref<2x8x16x8xf32, #tpu.memory_space<vmem>>, vector<2x8x16x8xf32>
    tpu.vector_store %arg16[%c0_39, %c0_40, %c0_41, %c0_42], %75 {strides = array<i32>} : memref<2x8x16x8xf32, #tpu.memory_space<vmem>>, vector<2x8x16x8xf32>,
    %c0_43 = arith.constant 0 : index
    %c0_44 = arith.constant 0 : index
    %c0_45 = arith.constant 0 : index
    %c0_46 = arith.constant 0 : index
    %77 = tpu.strided_load %arg16[%c0_43, %c0_44, %c0_45, %c0_46] {strides = array<i32: 1, 1, 2, 1>} : memref<2x8x16x8xf32, #tpu.memory_space<vmem>>, vector<2x8x8x8xf32>
    %c0_47 = arith.constant 0 : index
    %c0_48 = arith.constant 0 : index
    %c1_49 = arith.constant 1 : index
    %c0_50 = arith.constant 0 : index
    %78 = tpu.strided_load %arg16[%c0_47, %c0_48, %c1_49, %c0_50] {strides = array<i32: 1, 1, 2, 1>} : memref<2x8x16x8xf32, #tpu.memory_space<vmem>>, vector<2x8x8x8xf32>
    %79 = arith.maximumf %77, %78 : vector<2x8x8x8xf32>
    %80 = vector.extract_strided_slice %79 {offsets = [0, 0, 0, 0], sizes = [1, 8, 8, 8], strides = [1, 1, 1, 1]} : vector<2x8x8x8xf32> to vector<1x8x8x8xf32>
    %81 = vector.shape_cast %80 : vector<1x8x8x8xf32> to vector<8x8x8xf32>
    %82 = vector.shape_cast %81 : vector<8x8x8xf32> to vector<64x8xf32>
    %83 = vector.extract_strided_slice %79 {offsets = [1, 0, 0, 0], sizes = [1, 8, 8, 8], strides = [1, 1, 1, 1]} : vector<2x8x8x8xf32> to vector<1x8x8x8xf32>
    %84 = vector.shape_cast %83 : vector<1x8x8x8xf32> to vector<8x8x8xf32>
    %85 = vector.shape_cast %84 : vector<8x8x8xf32> to vector<64x8xf32>
    %86 = arith.addf %82, %85 : vector<64x8xf32>
    %cst_51 = arith.constant 5.000000e-01 : f32
    %87 = vector.broadcast %cst_51 : f32 to vector<64x8xf32>
    %88 = arith.mulf %86, %87 : vector<64x8xf32>
    %c0_52 = arith.constant 0 : index
    %c0_53 = arith.constant 0 : index
    %89 = vector.load %arg5[%c0_52, %c0_53] : memref<8x8xf32, #tpu.memory_space<vmem>>, vector<8x8xf32>
    %cst_54 = arith.constant dense<0.000000e+00> : vector<64x8xf32>
    %90 = tpu.matmul %88, %89, %cst_54 {dimension_numbers = #tpu.dot_dimension_numbers<[1], [0], [0], [1], [0, 0, 1, 1], [], []>} : vector<64x8xf32>, vector<8x8xf32>, vector<64x8xf32> -> vector<64x8xf32>
    %c0_55 = arith.constant 0 : index
    %c0_56 = arith.constant 0 : index
    %91 = vector.load %arg6[%c0_55, %c0_56] : memref<1x8xf32, #tpu.memory_space<vmem>>, vector<1x8xf32>
    %92 = vector.broadcast %91 : vector<1x8xf32> to vector<64x8xf32>
    %93 = arith.mulf %90, %92 : vector<64x8xf32>
    %c0_57 = arith.constant 0 : index
    %c0_58 = arith.constant 0 : index
    %94 = vector.load %arg7[%c0_57, %c0_58] : memref<1x8xf32, #tpu.memory_space<vmem>>, vector<1x8xf32>
    %95 = vector.broadcast %94 : vector<1x8xf32> to vector<64x8xf32>
    %96 = arith.addf %93, %95 : vector<64x8xf32>
    %cst_59 = arith.constant 0.000000e+00 : f32
    %97 = vector.broadcast %cst_59 : f32 to vector<64x8xf32>
    %98 = arith.maximumf %96, %97 : vector<64x8xf32>
    %99 = arith.addf %98, %85 : vector<64x8xf32>
    %100 = vector.shape_cast %99 : vector<64x8xf32> to vector<1x8x8x8xf32>
    %c0_60 = arith.constant 0 : index
    %c0_61 = arith.constant 0 : index
    %101 = vector.load %arg9[%c0_60, %c0_61] : memref<1x16xf32, #tpu.memory_space<vmem>>, vector<1x16xf32>
    %c0_62 = arith.constant 0 : index
    %c0_63 = arith.constant 0 : index
    %102 = vector.load %arg10[%c0_62, %c0_63] : memref<1x16xf32, #tpu.memory_space<vmem>>, vector<1x16xf32>
    %cst_64 = arith.constant 0.000000e+00 : f32
    %103 = vector.broadcast %cst_64 : f32 to vector<1x1x8x8xf32>
    %104 = tpu.concatenate %103, %100, %103 in 1 : vector<1x1x8x8xf32>, vector<1x8x8x8xf32>, vector<1x1x8x8xf32> -> vector<1x10x8x8xf32>
    %cst_65 = arith.constant 0.000000e+00 : f32
    %105 = vector.broadcast %cst_65 : f32 to vector<1x10x1x8xf32>
    %106 = tpu.concatenate %105, %104, %105 in 2 : vector<1x10x1x8xf32>, vector<1x10x8x8xf32>, vector<1x10x1x8xf32> -> vector<1x10x10x8xf32>
    %cst_66 = arith.constant 0.000000e+00 : f32
    %107 = vector.broadcast %cst_66 : f32 to vector<64x16xf32>
    %108 = vector.extract_strided_slice %106 {offsets = [0, 0, 0, 0], sizes = [1, 8, 8, 8], strides = [1, 1, 1, 1]} : vector<1x10x10x8xf32> to vector<1x8x8x8xf32>
    %109 = vector.shape_cast %108 : vector<1x8x8x8xf32> to vector<64x8xf32>
    %c0_67 = arith.constant 0 : index
    %c0_68 = arith.constant 0 : index
    %c0_69 = arith.constant 0 : index
    %110 = vector.load %arg8[%c0_67, %c0_68, %c0_69] : memref<9x8x16xf32, #tpu.memory_space<vmem>>, vector<1x8x16xf32>
    %111 = vector.shape_cast %110 : vector<1x8x16xf32> to vector<8x16xf32>
    %cst_70 = arith.constant dense<0.000000e+00> : vector<64x16xf32>
    %112 = tpu.matmul %109, %111, %cst_70 {dimension_numbers = #tpu.dot_dimension_numbers<[1], [0], [0], [1], [0, 0, 1, 1], [], []>} : vector<64x8xf32>, vector<8x16xf32>, vector<64x16xf32> -> vector<64x16xf32>
    %113 = arith.addf %107, %112 : vector<64x16xf32>
    %114 = vector.extract_strided_slice %106 {offsets = [0, 0, 1, 0], sizes = [1, 8, 8, 8], strides = [1, 1, 1, 1]} : vector<1x10x10x8xf32> to vector<1x8x8x8xf32>
    %115 = vector.shape_cast %114 : vector<1x8x8x8xf32> to vector<64x8xf32>
    %c1_71 = arith.constant 1 : index
    %c0_72 = arith.constant 0 : index
    %c0_73 = arith.constant 0 : index
    %116 = vector.load %arg8[%c1_71, %c0_72, %c0_73] : memref<9x8x16xf32, #tpu.memory_space<vmem>>, vector<1x8x16xf32>
    %117 = vector.shape_cast %116 : vector<1x8x16xf32> to vector<8x16xf32>
    %cst_74 = arith.constant dense<0.000000e+00> : vector<64x16xf32>
    %118 = tpu.matmul %115, %117, %cst_74 {dimension_numbers = #tpu.dot_dimension_numbers<[1], [0], [0], [1], [0, 0, 1, 1], [], []>} : vector<64x8xf32>, vector<8x16xf32>, vector<64x16xf32> -> vector<64x16xf32>
    %119 = arith.addf %113, %118 : vector<64x16xf32>
    %120 = vector.extract_strided_slice %106 {offsets = [0, 0, 2, 0], sizes = [1, 8, 8, 8], strides = [1, 1, 1, 1]} : vector<1x10x10x8xf32> to vector<1x8x8x8xf32>
    %121 = vector.shape_cast %120 : vector<1x8x8x8xf32> to vector<64x8xf32>
    %c2_75 = arith.constant 2 : index
    %c0_76 = arith.constant 0 : index
    %c0_77 = arith.constant 0 : index
    %122 = vector.load %arg8[%c2_75, %c0_76, %c0_77] : memref<9x8x16xf32, #tpu.memory_space<vmem>>, vector<1x8x16xf32>
    %123 = vector.shape_cast %122 : vector<1x8x16xf32> to vector<8x16xf32>
    %cst_78 = arith.constant dense<0.000000e+00> : vector<64x16xf32>
    %124 = tpu.matmul %121, %123, %cst_78 {dimension_numbers = #tpu.dot_dimension_numbers<[1], [0], [0], [1], [0, 0, 1, 1], [], []>} : vector<64x8xf32>, vector<8x16xf32>, vector<64x16xf32> -> vector<64x16xf32>
    %125 = arith.addf %119, %124 : vector<64x16xf32>
    %126 = vector.extract_strided_slice %106 {offsets = [0, 1, 0, 0], sizes = [1, 8, 8, 8], strides = [1, 1, 1, 1]} : vector<1x10x10x8xf32> to vector<1x8x8x8xf32>
    %127 = vector.shape_cast %126 : vector<1x8x8x8xf32> to vector<64x8xf32>
    %c3_79 = arith.constant 3 : index
    %c0_80 = arith.constant 0 : index
    %c0_81 = arith.constant 0 : index
    %128 = vector.load %arg8[%c3_79, %c0_80, %c0_81] : memref<9x8x16xf32, #tpu.memory_space<vmem>>, vector<1x8x16xf32>
    %129 = vector.shape_cast %128 : vector<1x8x16xf32> to vector<8x16xf32>
    %cst_82 = arith.constant dense<0.000000e+00> : vector<64x16xf32>
    %130 = tpu.matmul %127, %129, %cst_82 {dimension_numbers = #tpu.dot_dimension_numbers<[1], [0], [0], [1], [0, 0, 1, 1], [], []>} : vector<64x8xf32>, vector<8x16xf32>, vector<64x16xf32> -> vector<64x16xf32>
    %131 = arith.addf %125, %130 : vector<64x16xf32>
    %132 = vector.extract_strided_slice %106 {offsets = [0, 1, 1, 0], sizes = [1, 8, 8, 8], strides = [1, 1, 1, 1]} : vector<1x10x10x8xf32> to vector<1x8x8x8xf32>
    %133 = vector.shape_cast %132 : vector<1x8x8x8xf32> to vector<64x8xf32>
    %c4_83 = arith.constant 4 : index
    %c0_84 = arith.constant 0 : index
    %c0_85 = arith.constant 0 : index
    %134 = vector.load %arg8[%c4_83, %c0_84, %c0_85] : memref<9x8x16xf32, #tpu.memory_space<vmem>>, vector<1x8x16xf32>
    %135 = vector.shape_cast %134 : vector<1x8x16xf32> to vector<8x16xf32>
    %cst_86 = arith.constant dense<0.000000e+00> : vector<64x16xf32>
    %136 = tpu.matmul %133, %135, %cst_86 {dimension_numbers = #tpu.dot_dimension_numbers<[1], [0], [0], [1], [0, 0, 1, 1], [], []>} : vector<64x8xf32>, vector<8x16xf32>, vector<64x16xf32> -> vector<64x16xf32>
    %137 = arith.addf %131, %136 : vector<64x16xf32>
    %138 = vector.extract_strided_slice %106 {offsets = [0, 1, 2, 0], sizes = [1, 8, 8, 8], strides = [1, 1, 1, 1]} : vector<1x10x10x8xf32> to vector<1x8x8x8xf32>
    %139 = vector.shape_cast %138 : vector<1x8x8x8xf32> to vector<64x8xf32>
    %c5_87 = arith.constant 5 : index
    %c0_88 = arith.constant 0 : index
    %c0_89 = arith.constant 0 : index
    %140 = vector.load %arg8[%c5_87, %c0_88, %c0_89] : memref<9x8x16xf32, #tpu.memory_space<vmem>>, vector<1x8x16xf32>
    %141 = vector.shape_cast %140 : vector<1x8x16xf32> to vector<8x16xf32>
    %cst_90 = arith.constant dense<0.000000e+00> : vector<64x16xf32>
    %142 = tpu.matmul %139, %141, %cst_90 {dimension_numbers = #tpu.dot_dimension_numbers<[1], [0], [0], [1], [0, 0, 1, 1], [], []>} : vector<64x8xf32>, vector<8x16xf32>, vector<64x16xf32> -> vector<64x16xf32>
    %143 = arith.addf %137, %142 : vector<64x16xf32>
    %144 = vector.extract_strided_slice %106 {offsets = [0, 2, 0, 0], sizes = [1, 8, 8, 8], strides = [1, 1, 1, 1]} : vector<1x10x10x8xf32> to vector<1x8x8x8xf32>
    %145 = vector.shape_cast %144 : vector<1x8x8x8xf32> to vector<64x8xf32>
    %c6_91 = arith.constant 6 : index
    %c0_92 = arith.constant 0 : index
    %c0_93 = arith.constant 0 : index
    %146 = vector.load %arg8[%c6_91, %c0_92, %c0_93] : memref<9x8x16xf32, #tpu.memory_space<vmem>>, vector<1x8x16xf32>
    %147 = vector.shape_cast %146 : vector<1x8x16xf32> to vector<8x16xf32>
    %cst_94 = arith.constant dense<0.000000e+00> : vector<64x16xf32>
    %148 = tpu.matmul %145, %147, %cst_94 {dimension_numbers = #tpu.dot_dimension_numbers<[1], [0], [0], [1], [0, 0, 1, 1], [], []>} : vector<64x8xf32>, vector<8x16xf32>, vector<64x16xf32> -> vector<64x16xf32>
    %149 = arith.addf %143, %148 : vector<64x16xf32>
    %150 = vector.extract_strided_slice %106 {offsets = [0, 2, 1, 0], sizes = [1, 8, 8, 8], strides = [1, 1, 1, 1]} : vector<1x10x10x8xf32> to vector<1x8x8x8xf32>
    %151 = vector.shape_cast %150 : vector<1x8x8x8xf32> to vector<64x8xf32>
    %c7_95 = arith.constant 7 : index
    %c0_96 = arith.constant 0 : index
    %c0_97 = arith.constant 0 : index
    %152 = vector.load %arg8[%c7_95, %c0_96, %c0_97] : memref<9x8x16xf32, #tpu.memory_space<vmem>>, vector<1x8x16xf32>
    %153 = vector.shape_cast %152 : vector<1x8x16xf32> to vector<8x16xf32>
    %cst_98 = arith.constant dense<0.000000e+00> : vector<64x16xf32>
    %154 = tpu.matmul %151, %153, %cst_98 {dimension_numbers = #tpu.dot_dimension_numbers<[1], [0], [0], [1], [0, 0, 1, 1], [], []>} : vector<64x8xf32>, vector<8x16xf32>, vector<64x16xf32> -> vector<64x16xf32>
    %155 = arith.addf %149, %154 : vector<64x16xf32>
    %156 = vector.extract_strided_slice %106 {offsets = [0, 2, 2, 0], sizes = [1, 8, 8, 8], strides = [1, 1, 1, 1]} : vector<1x10x10x8xf32> to vector<1x8x8x8xf32>
    %157 = vector.shape_cast %156 : vector<1x8x8x8xf32> to vector<64x8xf32>
    %c8_99 = arith.constant 8 : index
    %c0_100 = arith.constant 0 : index
    %c0_101 = arith.constant 0 : index
    %158 = vector.load %arg8[%c8_99, %c0_100, %c0_101] : memref<9x8x16xf32, #tpu.memory_space<vmem>>, vector<1x8x16xf32>
    %159 = vector.shape_cast %158 : vector<1x8x16xf32> to vector<8x16xf32>
    %cst_102 = arith.constant dense<0.000000e+00> : vector<64x16xf32>
    %160 = tpu.matmul %157, %159, %cst_102 {dimension_numbers = #tpu.dot_dimension_numbers<[1], [0], [0], [1], [0, 0, 1, 1], [], []>} : vector<64x8xf32>, vector<8x16xf32>, vector<64x16xf32> -> vector<64x16xf32>
    %161 = arith.addf %155, %160 : vector<64x16xf32>
    %162 = vector.broadcast %101 : vector<1x16xf32> to vector<64x16xf32>
    %163 = arith.mulf %161, %162 : vector<64x16xf32>
    %164 = vector.broadcast %102 : vector<1x16xf32> to vector<64x16xf32>
    %165 = arith.addf %163, %164 : vector<64x16xf32>
    %cst_103 = arith.constant 0.000000e+00 : f32
    %166 = vector.broadcast %cst_103 : f32 to vector<64x16xf32>
    %167 = arith.maximumf %165, %166 : vector<64x16xf32>
    %168 = vector.shape_cast %167 : vector<64x16xf32> to vector<1x8x8x16xf32>
    %169 = vector.shape_cast %168 : vector<1x8x8x16xf32> to vector<1x4x2x8x16xf32>
    %170 = vector.extract_strided_slice %169 {offsets = [0, 0, 0, 0, 0], sizes = [1, 4, 1, 8, 16], strides = [1, 1, 1, 1, 1]} : vector<1x4x2x8x16xf32> to vector<1x4x1x8x16xf32>
    %171 = vector.shape_cast %170 : vector<1x4x1x8x16xf32> to vector<1x4x8x16xf32>
    %172 = vector.extract_strided_slice %169 {offsets = [0, 0, 1, 0, 0], sizes = [1, 4, 1, 8, 16], strides = [1, 1, 1, 1, 1]} : vector<1x4x2x8x16xf32> to vector<1x4x1x8x16xf32>
    %173 = vector.shape_cast %172 : vector<1x4x1x8x16xf32> to vector<1x4x8x16xf32>
    %174 = arith.maximumf %171, %173 : vector<1x4x8x16xf32>
    %c0_104 = arith.constant 0 : index
    %c0_105 = arith.constant 0 : index
    %c0_106 = arith.constant 0 : index
    %c0_107 = arith.constant 0 : index
    %175 = vector.load %arg17[%c0_104, %c0_105, %c0_106, %c0_107] : memref<1x4x8x16xf32, #tpu.memory_space<vmem>>, vector<1x4x8x16xf32>
    tpu.vector_store %arg17[%c0_104, %c0_105, %c0_106, %c0_107], %174 {strides = array<i32>} : memref<1x4x8x16xf32, #tpu.memory_space<vmem>>, vector<1x4x8x16xf32>,
    %c0_108 = arith.constant 0 : index
    %c0_109 = arith.constant 0 : index
    %c0_110 = arith.constant 0 : index
    %c0_111 = arith.constant 0 : index
    %176 = tpu.strided_load %arg17[%c0_108, %c0_109, %c0_110, %c0_111] {strides = array<i32: 1, 1, 2, 1>} : memref<1x4x8x16xf32, #tpu.memory_space<vmem>>, vector<1x4x4x16xf32>
    %c0_112 = arith.constant 0 : index
    %c0_113 = arith.constant 0 : index
    %c1_114 = arith.constant 1 : index
    %c0_115 = arith.constant 0 : index
    %177 = tpu.strided_load %arg17[%c0_112, %c0_113, %c1_114, %c0_115] {strides = array<i32: 1, 1, 2, 1>} : memref<1x4x8x16xf32, #tpu.memory_space<vmem>>, vector<1x4x4x16xf32>
    %178 = arith.maximumf %176, %177 : vector<1x4x4x16xf32>
    %cst_116 = arith.constant dense<0.000000e+00> : vector<1x4x16xf32>
    %179 = vector.multi_reduction <add>, %178, %cst_116 [1] : vector<1x4x4x16xf32> to vector<1x4x16xf32>
    %cst_117 = arith.constant dense<0.000000e+00> : vector<1x16xf32>
    %180 = vector.multi_reduction <add>, %179, %cst_117 [1] : vector<1x4x16xf32> to vector<1x16xf32>
    %cst_118 = arith.constant 6.250000e-02 : f32
    %181 = vector.broadcast %cst_118 : f32 to vector<1x16xf32>
    %182 = arith.mulf %180, %181 : vector<1x16xf32>
    %c0_119 = arith.constant 0 : index
    %c0_120 = arith.constant 0 : index
    %183 = vector.load %arg11[%c0_119, %c0_120] : memref<16x32xf32, #tpu.memory_space<vmem>>, vector<16x32xf32>
    %cst_121 = arith.constant dense<0.000000e+00> : vector<1x32xf32>
    %184 = tpu.matmul %182, %183, %cst_121 {dimension_numbers = #tpu.dot_dimension_numbers<[1], [0], [0], [1], [0, 0, 1, 1], [], []>} : vector<1x16xf32>, vector<16x32xf32>, vector<1x32xf32> -> vector<1x32xf32>
    %c0_122 = arith.constant 0 : index
    %c0_123 = arith.constant 0 : index
    %185 = vector.load %arg12[%c0_122, %c0_123] : memref<1x32xf32, #tpu.memory_space<vmem>>, vector<1x32xf32>
    %186 = arith.addf %184, %185 : vector<1x32xf32>
    %cst_124 = arith.constant 0.000000e+00 : f32
    %187 = vector.broadcast %cst_124 : f32 to vector<1x32xf32>
    %188 = arith.maximumf %186, %187 : vector<1x32xf32>
    %c0_125 = arith.constant 0 : index
    %c0_126 = arith.constant 0 : index
    %189 = vector.load %arg13[%c0_125, %c0_126] : memref<32x128xf32, #tpu.memory_space<vmem>>, vector<32x128xf32>
    %cst_127 = arith.constant dense<0.000000e+00> : vector<1x128xf32>
    %190 = tpu.matmul %188, %189, %cst_127 {dimension_numbers = #tpu.dot_dimension_numbers<[1], [0], [0], [1], [0, 0, 1, 1], [], []>} : vector<1x32xf32>, vector<32x128xf32>, vector<1x128xf32> -> vector<1x128xf32>
    %c0_128 = arith.constant 0 : index
    %c0_129 = arith.constant 0 : index
    %191 = vector.load %arg14[%c0_128, %c0_129] : memref<1x128xf32, #tpu.memory_space<vmem>>, vector<1x128xf32>
    %192 = arith.addf %190, %191 : vector<1x128xf32>
    %c0_130 = arith.constant 0 : index
    %c0_131 = arith.constant 0 : index
    %c0_132 = arith.constant 0 : index
    %193 = vector.load %arg15[%c0_130, %c0_131, %c0_132] : memref<1x1x128xf32, #tpu.memory_space<vmem>>, vector<1x1x128xf32>
    %194 = vector.shape_cast %193 : vector<1x1x128xf32> to vector<1x128xf32>
    %195 = vector.shape_cast %192 : vector<1x128xf32> to vector<1x1x128xf32>
    tpu.vector_store %arg15[%c0_130, %c0_131, %c0_132], %195 {strides = array<i32>} : memref<1x1x128xf32, #tpu.memory_space<vmem>>, vector<1x1x128xf32>,
    return
  }
  func.func @transform_0(%arg0: i32) -> (i32, i32, i32, i32, i32) {
    %c0_i32 = arith.constant 0 : i32
    %c0_i32_0 = arith.constant 0 : i32
    %c0_i32_1 = arith.constant 0 : i32
    %c0_i32_2 = arith.constant 0 : i32
    %c0_i32_3 = arith.constant 0 : i32
    return %arg0, %c0_i32, %c0_i32_0, %c0_i32_1, %c0_i32_2 : i32, i32, i32, i32, i32
  }
  func.func @transform_1(%arg0: i32) -> (i32, i32, i32) {
    %c0_i32 = arith.constant 0 : i32
    %c0_i32_0 = arith.constant 0 : i32
    %c0_i32_1 = arith.constant 0 : i32
    %c0_i32_2 = arith.constant 0 : i32
    return %c0_i32, %c0_i32_0, %c0_i32_1 : i32, i32, i32
  }
  func.func @transform_2(%arg0: i32) -> (i32, i32) {
    %c0_i32 = arith.constant 0 : i32
    %c0_i32_0 = arith.constant 0 : i32
    %c0_i32_1 = arith.constant 0 : i32
    return %c0_i32, %c0_i32_0 : i32, i32
  }
  func.func @transform_3(%arg0: i32) -> (i32, i32) {
    %c0_i32 = arith.constant 0 : i32
    %c0_i32_0 = arith.constant 0 : i32
    %c0_i32_1 = arith.constant 0 : i32
    return %c0_i32, %c0_i32_0 : i32, i32
  }
  func.func @transform_4(%arg0: i32) -> (i32, i32) {
    %c0_i32 = arith.constant 0 : i32
    %c0_i32_0 = arith.constant 0 : i32
    %c0_i32_1 = arith.constant 0 : i32
    return %c0_i32, %c0_i32_0 : i32, i32
  }
  func.func @transform_5(%arg0: i32) -> (i32, i32) {
    %c0_i32 = arith.constant 0 : i32
    %c0_i32_0 = arith.constant 0 : i32
    %c0_i32_1 = arith.constant 0 : i32
    return %c0_i32, %c0_i32_0 : i32, i32
  }
  func.func @transform_6(%arg0: i32) -> (i32, i32) {
    %c0_i32 = arith.constant 0 : i32
    %c0_i32_0 = arith.constant 0 : i32
    %c0_i32_1 = arith.constant 0 : i32
    return %c0_i32, %c0_i32_0 : i32, i32
  }
  func.func @transform_7(%arg0: i32) -> (i32, i32, i32) {
    %c0_i32 = arith.constant 0 : i32
    %c0_i32_0 = arith.constant 0 : i32
    %c0_i32_1 = arith.constant 0 : i32
    %c0_i32_2 = arith.constant 0 : i32
    return %c0_i32, %c0_i32_0, %c0_i32_1 : i32, i32, i32
  }
  func.func @transform_8(%arg0: i32) -> (i32, i32) {
    %c0_i32 = arith.constant 0 : i32
    %c0_i32_0 = arith.constant 0 : i32
    %c0_i32_1 = arith.constant 0 : i32
    return %c0_i32, %c0_i32_0 : i32, i32
  }
  func.func @transform_9(%arg0: i32) -> (i32, i32) {
    %c0_i32 = arith.constant 0 : i32
    %c0_i32_0 = arith.constant 0 : i32
    %c0_i32_1 = arith.constant 0 : i32
    return %c0_i32, %c0_i32_0 : i32, i32
  }
  func.func @transform_10(%arg0: i32) -> (i32, i32) {
    %c0_i32 = arith.constant 0 : i32
    %c0_i32_0 = arith.constant 0 : i32
    %c0_i32_1 = arith.constant 0 : i32
    return %c0_i32, %c0_i32_0 : i32, i32
  }
  func.func @transform_11(%arg0: i32) -> (i32, i32) {
    %c0_i32 = arith.constant 0 : i32
    %c0_i32_0 = arith.constant 0 : i32
    %c0_i32_1 = arith.constant 0 : i32
    return %c0_i32, %c0_i32_0 : i32, i32
  }
  func.func @transform_12(%arg0: i32) -> (i32, i32) {
    %c0_i32 = arith.constant 0 : i32
    %c0_i32_0 = arith.constant 0 : i32
    %c0_i32_1 = arith.constant 0 : i32
    return %c0_i32, %c0_i32_0 : i32, i32
  }
  func.func @transform_13(%arg0: i32) -> (i32, i32) {
    %c0_i32 = arith.constant 0 : i32
    %c0_i32_0 = arith.constant 0 : i32
    %c0_i32_1 = arith.constant 0 : i32
    return %c0_i32, %c0_i32_0 : i32, i32
  }
  func.func @transform_14(%arg0: i32) -> (i32, i32, i32) {
    %c0_i32 = arith.constant 0 : i32
    %c0_i32_0 = arith.constant 0 : i32
    %c0_i32_1 = arith.constant 0 : i32
    return %arg0, %c0_i32, %c0_i32_0 : i32, i32, i32
  }
}

</mosaic_0001>

<llo_original>
// kernel: tpu_custom_call.1
$region0: #{tpu_custom_call.1}
  #allocation0 [shape = 'u32[]', space=smem, size = 0x4, offset = 0x4, fixed_abs, tag = 'smem constant byte address 0x4 - core index']
  #allocation1 [shape = 'u32[144,128]{1,0:T(1,128)}', space=vmem, size = 0x12000, scoped, tag = 'internal scratch']
  #allocation2 [shape = 'f32[2,8,16,8]{3,2,1,0:T(8,128)}', space=vmem, size = 0x20000, scoped, tag = 'scratch operand']
  #allocation3 [shape = 'f32[1,4,8,16]{3,2,1,0:T(8,128)}', space=vmem, size = 0x4000, scoped, tag = 'scratch operand']
  %s0 = inlined_call_operand.vmem [shape: f32[2,2,16,16,3], index: 0, kind: input, shape index: {}]
  %s1 = inlined_call_operand.vmem [shape: f32[9,3,8], index: 1, kind: input, shape index: {}]
  %s2 = inlined_call_operand.vmem [shape: f32[1,8], index: 2, kind: input, shape index: {}]
  %s3 = inlined_call_operand.vmem [shape: f32[1,8], index: 3, kind: input, shape index: {}]
  %s4 = inlined_call_operand.vmem [shape: f32[8,8], index: 4, kind: input, shape index: {}]
  %s5 = inlined_call_operand.vmem [shape: f32[1,8], index: 5, kind: input, shape index: {}]
  %s6 = inlined_call_operand.vmem [shape: f32[1,8], index: 6, kind: input, shape index: {}]
  %s7 = inlined_call_operand.vmem [shape: f32[9,8,16], index: 7, kind: input, shape index: {}]
  %s8 = inlined_call_operand.vmem [shape: f32[1,16], index: 8, kind: input, shape index: {}]
  %s9 = inlined_call_operand.vmem [shape: f32[1,16], index: 9, kind: input, shape index: {}]
  %s10 = inlined_call_operand.vmem [shape: f32[16,32], index: 10, kind: input, shape index: {}]
  %s11 = inlined_call_operand.vmem [shape: f32[1,32], index: 11, kind: input, shape index: {}]
  %s12 = inlined_call_operand.vmem [shape: f32[32,128], index: 12, kind: input, shape index: {}]
  %s13 = inlined_call_operand.vmem [shape: f32[1,128], index: 13, kind: input, shape index: {}]
  %s14 = inlined_call_operand.hbm [shape: f32[2,1,128], index: 14, kind: output, shape index: {}]
  %s15 = sld [smem:[#allocation0]]
  $region89: #{tpu_custom_call.1} parent=0
    _
  %s17 = ssub.s32 1, %s15
  %s18 = scalar_select 0, %s17, %s15
  $region1: #{tpu_custom_call.1} parent=0
    #allocation4 [shape = 'u8[1024]{0}', space=vmem, size = 0x400, scoped, tag = 'output window, operand 0']
    #allocation5 [shape = 's32[2]{0}', space=sflag, size = 0x8, scoped, tag = 'scoped memory for tpu_custom_call.1']
    %19 = vsyncpa [#allocation5], 0
    %s20 = scalar_lea.sflag [#allocation5], 1
    %21 = vsyncpa %s20, 0
    loop: start=0, step=1, limit=4
    $region2: #{tpu_custom_call.1} parent=1 // loop_pre_header
      _
    $region3: #{tpu_custom_call.1} parent=1 // loop_header
      %s23 = sphi 0, %s27
      %p24 = scmp.ge.s32.totalorder %s23, 4
      %s33 = sphi 0, %s35
      %s36 = sphi 0, %s33
      %s37 = sphi 0, %s36
      %s53 = sphi 0, %s37
      %s57 = sphi 0, %s57
      %s59 = sphi 0, %s57
      %s60 = sphi 0, %s59
      %s74 = sphi 0, %s60
      %s78 = sphi 0, %s78
      %s80 = sphi 0, %s78
      %s81 = sphi 0, %s80
      %s95 = sphi 0, %s81
      %s99 = sphi 0, %s99
      %s101 = sphi 0, %s99
      %s102 = sphi 0, %s101
      %s116 = sphi 0, %s102
      %s120 = sphi 0, %s120
      %s122 = sphi 0, %s120
      %s123 = sphi 0, %s122
      %s137 = sphi 0, %s123
      %s141 = sphi 0, %s141
      %s143 = sphi 0, %s141
      %s144 = sphi 0, %s143
      %s158 = sphi 0, %s144
      %s162 = sphi 0, %s162
      %s164 = sphi 0, %s162
      %s165 = sphi 0, %s164
      %s179 = sphi 0, %s165
      %s183 = sphi 0, %s183
      %s185 = sphi 0, %s183
      %s186 = sphi 0, %s185
      %s200 = sphi 0, %s186
      %s204 = sphi 0, %s204
      %s206 = sphi 0, %s204
      %s207 = sphi 0, %s206
      %s221 = sphi 0, %s207
      %s225 = sphi 0, %s225
      %s227 = sphi 0, %s225
      %s228 = sphi 0, %s227
      %s242 = sphi 0, %s228
      %s246 = sphi 0, %s246
      %s248 = sphi 0, %s246
      %s249 = sphi 0, %s248
      %s263 = sphi 0, %s249
      %s267 = sphi 0, %s267
      %s269 = sphi 0, %s267
      %s270 = sphi 0, %s269
      %s284 = sphi 0, %s270
      %s288 = sphi 0, %s288
      %s290 = sphi 0, %s288
      %s291 = sphi 0, %s290
      %s305 = sphi 0, %s291
      %s309 = sphi 0, %s309
      %s311 = sphi 0, %s309
      %s312 = sphi 0, %s311
      %s326 = sphi 0, %s312
      %s332 = sphi 0, %s334
      %s335 = sphi 0, %s332
      %s336 = sphi 0, %s335
      %s352 = sphi 0, %s336
    $region4: #{tpu_custom_call.1} parent=1 // loop_header_branch
      %26 = sbr.rel (%p24) target = $region8
    $region5: #{tpu_custom_call.1} parent=1 // loop_body
      %s28 = ssub.s32 %s23, 1
      %s29 = ssub.s32 %s23, 2
      %s30 = sadd.s32 %s23, 1
      %s31 = ssub.s32 %s23, %s30
      %p32 = scmp.eq.s32.totalorder %s31, 0
      %s34 = sadd.s32 %s33, 1
      %s35 = scalar_select %p32, %s33, %s34
      %p38 = pneg %p32
      %p39 = scmp.eq.s32.totalorder %s23, 1
      %p40 = por %p38, %p39
      %p41 = scmp.ne.s32.totalorder %s33, %s36
      %p42 = scmp.eq.s32.totalorder %s23, 0
      %p43 = por %p41, %p42
      %p44 = scmp.ne.s32.totalorder %s33, %s36
      %p45 = scmp.eq.s32.totalorder %s28, 1
      %p46 = por %p44, %p45
      %p47 = scmp.ne.s32.totalorder %s36, %s37
      %p48 = scmp.eq.s32.totalorder %s28, 0
      %p49 = por %p47, %p48
      %p50 = scmp.ne.s32.totalorder %s36, %s37
      %p51 = scmp.eq.s32.totalorder %s29, 1
      %p52 = por %p50, %p51
      %p54 = scmp.ne.s32.totalorder %s37, %s53
      %p55 = scmp.eq.s32.totalorder %s29, 0
      %p56 = por %p54, %p55
      %s58 = sadd.s32 %s57, 1
      %p61 = scmp.eq.s32.totalorder %s23, 1
      %p62 = scmp.ne.s32.totalorder %s57, %s59
      %p63 = scmp.eq.s32.totalorder %s23, 0
      %p64 = por %p62, %p63
      %p65 = scmp.ne.s32.totalorder %s57, %s59
      %p66 = scmp.eq.s32.totalorder %s28, 1
      %p67 = por %p65, %p66
      %p68 = scmp.ne.s32.totalorder %s59, %s60
      %p69 = scmp.eq.s32.totalorder %s28, 0
      %p70 = por %p68, %p69
      %p71 = scmp.ne.s32.totalorder %s59, %s60
      %p72 = scmp.eq.s32.totalorder %s29, 1
      %p73 = por %p71, %p72
      %p75 = scmp.ne.s32.totalorder %s60, %s74
      %p76 = scmp.eq.s32.totalorder %s29, 0
      %p77 = por %p75, %p76
      %s79 = sadd.s32 %s78, 1
      %p82 = scmp.eq.s32.totalorder %s23, 1
      %p83 = scmp.ne.s32.totalorder %s78, %s80
      %p84 = scmp.eq.s32.totalorder %s23, 0
      %p85 = por %p83, %p84
      %p86 = scmp.ne.s32.totalorder %s78, %s80
      %p87 = scmp.eq.s32.totalorder %s28, 1
      %p88 = por %p86, %p87
      %p89 = scmp.ne.s32.totalorder %s80, %s81
      %p90 = scmp.eq.s32.totalorder %s28, 0
      %p91 = por %p89, %p90
      %p92 = scmp.ne.s32.totalorder %s80, %s81
      %p93 = scmp.eq.s32.totalorder %s29, 1
      %p94 = por %p92, %p93
      %p96 = scmp.ne.s32.totalorder %s81, %s95
      %p97 = scmp.eq.s32.totalorder %s29, 0
      %p98 = por %p96, %p97
      %s100 = sadd.s32 %s99, 1
      %p103 = scmp.eq.s32.totalorder %s23, 1
      %p104 = scmp.ne.s32.totalorder %s99, %s101
      %p105 = scmp.eq.s32.totalorder %s23, 0
      %p106 = por %p104, %p105
      %p107 = scmp.ne.s32.totalorder %s99, %s101
      %p108 = scmp.eq.s32.totalorder %s28, 1
      %p109 = por %p107, %p108
      %p110 = scmp.ne.s32.totalorder %s101, %s102
      %p111 = scmp.eq.s32.totalorder %s28, 0
      %p112 = por %p110, %p111
      %p113 = scmp.ne.s32.totalorder %s101, %s102
      %p114 = scmp.eq.s32.totalorder %s29, 1
      %p115 = por %p113, %p114
      %p117 = scmp.ne.s32.totalorder %s102, %s116
      %p118 = scmp.eq.s32.totalorder %s29, 0
      %p119 = por %p117, %p118
      %s121 = sadd.s32 %s120, 1
      %p124 = scmp.eq.s32.totalorder %s23, 1
      %p125 = scmp.ne.s32.totalorder %s120, %s122
      %p126 = scmp.eq.s32.totalorder %s23, 0
      %p127 = por %p125, %p126
      %p128 = scmp.ne.s32.totalorder %s120, %s122
      %p129 = scmp.eq.s32.totalorder %s28, 1
      %p130 = por %p128, %p129
      %p131 = scmp.ne.s32.totalorder %s122, %s123
      %p132 = scmp.eq.s32.totalorder %s28, 0
      %p133 = por %p131, %p132
      %p134 = scmp.ne.s32.totalorder %s122, %s123
      %p135 = scmp.eq.s32.totalorder %s29, 1
      %p136 = por %p134, %p135
      %p138 = scmp.ne.s32.totalorder %s123, %s137
      %p139 = scmp.eq.s32.totalorder %s29, 0
      %p140 = por %p138, %p139
      %s142 = sadd.s32 %s141, 1
      %p145 = scmp.eq.s32.totalorder %s23, 1
      %p146 = scmp.ne.s32.totalorder %s141, %s143
      %p147 = scmp.eq.s32.totalorder %s23, 0
      %p148 = por %p146, %p147
      %p149 = scmp.ne.s32.totalorder %s141, %s143
      %p150 = scmp.eq.s32.totalorder %s28, 1
      %p151 = por %p149, %p150
      %p152 = scmp.ne.s32.totalorder %s143, %s144
      %p153 = scmp.eq.s32.totalorder %s28, 0
      %p154 = por %p152, %p153
      %p155 = scmp.ne.s32.totalorder %s143, %s144
      %p156 = scmp.eq.s32.totalorder %s29, 1
      %p157 = por %p155, %p156
      %p159 = scmp.ne.s32.totalorder %s144, %s158
      %p160 = scmp.eq.s32.totalorder %s29, 0
      %p161 = por %p159, %p160
      %s163 = sadd.s32 %s162, 1
      %p166 = scmp.eq.s32.totalorder %s23, 1
      %p167 = scmp.ne.s32.totalorder %s162, %s164
      %p168 = scmp.eq.s32.totalorder %s23, 0
      %p169 = por %p167, %p168
      %p170 = scmp.ne.s32.totalorder %s162, %s164
      %p171 = scmp.eq.s32.totalorder %s28, 1
      %p172 = por %p170, %p171
      %p173 = scmp.ne.s32.totalorder %s164, %s165
      %p174 = scmp.eq.s32.totalorder %s28, 0
      %p175 = por %p173, %p174
      %p176 = scmp.ne.s32.totalorder %s164, %s165
      %p177 = scmp.eq.s32.totalorder %s29, 1
      %p178 = por %p176, %p177
      %p180 = scmp.ne.s32.totalorder %s165, %s179
      %p181 = scmp.eq.s32.totalorder %s29, 0
      %p182 = por %p180, %p181
      %s184 = sadd.s32 %s183, 1
      %p187 = scmp.eq.s32.totalorder %s23, 1
      %p188 = scmp.ne.s32.totalorder %s183, %s185
      %p189 = scmp.eq.s32.totalorder %s23, 0
      %p190 = por %p188, %p189
      %p191 = scmp.ne.s32.totalorder %s183, %s185
      %p192 = scmp.eq.s32.totalorder %s28, 1
      %p193 = por %p191, %p192
      %p194 = scmp.ne.s32.totalorder %s185, %s186
      %p195 = scmp.eq.s32.totalorder %s28, 0
      %p196 = por %p194, %p195
      %p197 = scmp.ne.s32.totalorder %s185, %s186
      %p198 = scmp.eq.s32.totalorder %s29, 1
      %p199 = por %p197, %p198
      %p201 = scmp.ne.s32.totalorder %s186, %s200
      %p202 = scmp.eq.s32.totalorder %s29, 0
      %p203 = por %p201, %p202
      %s205 = sadd.s32 %s204, 1
      %p208 = scmp.eq.s32.totalorder %s23, 1
      %p209 = scmp.ne.s32.totalorder %s204, %s206
      %p210 = scmp.eq.s32.totalorder %s23, 0
      %p211 = por %p209, %p210
      %p212 = scmp.ne.s32.totalorder %s204, %s206
      %p213 = scmp.eq.s32.totalorder %s28, 1
      %p214 = por %p212, %p213
      %p215 = scmp.ne.s32.totalorder %s206, %s207
      %p216 = scmp.eq.s32.totalorder %s28, 0
      %p217 = por %p215, %p216
      %p218 = scmp.ne.s32.totalorder %s206, %s207
      %p219 = scmp.eq.s32.totalorder %s29, 1
      %p220 = por %p218, %p219
      %p222 = scmp.ne.s32.totalorder %s207, %s221
      %p223 = scmp.eq.s32.totalorder %s29, 0
      %p224 = por %p222, %p223
      %s226 = sadd.s32 %s225, 1
      %p229 = scmp.eq.s32.totalorder %s23, 1
      %p230 = scmp.ne.s32.totalorder %s225, %s227
      %p231 = scmp.eq.s32.totalorder %s23, 0
      %p232 = por %p230, %p231
      %p233 = scmp.ne.s32.totalorder %s225, %s227
      %p234 = scmp.eq.s32.totalorder %s28, 1
      %p235 = por %p233, %p234
      %p236 = scmp.ne.s32.totalorder %s227, %s228
      %p237 = scmp.eq.s32.totalorder %s28, 0
      %p238 = por %p236, %p237
      %p239 = scmp.ne.s32.totalorder %s227, %s228
      %p240 = scmp.eq.s32.totalorder %s29, 1
      %p241 = por %p239, %p240
      %p243 = scmp.ne.s32.totalorder %s228, %s242
      %p244 = scmp.eq.s32.totalorder %s29, 0
      %p245 = por %p243, %p244
      %s247 = sadd.s32 %s246, 1
      %p250 = scmp.eq.s32.totalorder %s23, 1
      %p251 = scmp.ne.s32.totalorder %s246, %s248
      %p252 = scmp.eq.s32.totalorder %s23, 0
      %p253 = por %p251, %p252
      %p254 = scmp.ne.s32.totalorder %s246, %s248
      %p255 = scmp.eq.s32.totalorder %s28, 1
      %p256 = por %p254, %p255
      %p257 = scmp.ne.s32.totalorder %s248, %s249
      %p258 = scmp.eq.s32.totalorder %s28, 0
      %p259 = por %p257, %p258
      %p260 = scmp.ne.s32.totalorder %s248, %s249
      %p261 = scmp.eq.s32.totalorder %s29, 1
      %p262 = por %p260, %p261
      %p264 = scmp.ne.s32.totalorder %s249, %s263
      %p265 = scmp.eq.s32.totalorder %s29, 0
      %p266 = por %p264, %p265
      %s268 = sadd.s32 %s267, 1
      %p271 = scmp.eq.s32.totalorder %s23, 1
      %p272 = scmp.ne.s32.totalorder %s267, %s269
      %p273 = scmp.eq.s32.totalorder %s23, 0
      %p274 = por %p272, %p273
      %p275 = scmp.ne.s32.totalorder %s267, %s269
      %p276 = scmp.eq.s32.totalorder %s28, 1
      %p277 = por %p275, %p276
      %p278 = scmp.ne.s32.totalorder %s269, %s270
      %p279 = scmp.eq.s32.totalorder %s28, 0
      %p280 = por %p278, %p279
      %p281 = scmp.ne.s32.totalorder %s269, %s270
      %p282 = scmp.eq.s32.totalorder %s29, 1
      %p283 = por %p281, %p282
      %p285 = scmp.ne.s32.totalorder %s270, %s284
      %p286 = scmp.eq.s32.totalorder %s29, 0
      %p287 = por %p285, %p286
      %s289 = sadd.s32 %s288, 1
      %p292 = scmp.eq.s32.totalorder %s23, 1
      %p293 = scmp.ne.s32.totalorder %s288, %s290
      %p294 = scmp.eq.s32.totalorder %s23, 0
      %p295 = por %p293, %p294
      %p296 = scmp.ne.s32.totalorder %s288, %s290
      %p297 = scmp.eq.s32.totalorder %s28, 1
      %p298 = por %p296, %p297
      %p299 = scmp.ne.s32.totalorder %s290, %s291
      %p300 = scmp.eq.s32.totalorder %s28, 0
      %p301 = por %p299, %p300
      %p302 = scmp.ne.s32.totalorder %s290, %s291
      %p303 = scmp.eq.s32.totalorder %s29, 1
      %p304 = por %p302, %p303
      %p306 = scmp.ne.s32.totalorder %s291, %s305
      %p307 = scmp.eq.s32.totalorder %s29, 0
      %p308 = por %p306, %p307
      %s310 = sadd.s32 %s309, 1
      %p313 = scmp.eq.s32.totalorder %s23, 1
      %p314 = scmp.ne.s32.totalorder %s309, %s311
      %p315 = scmp.eq.s32.totalorder %s23, 0
      %p316 = por %p314, %p315
      %p317 = scmp.ne.s32.totalorder %s309, %s311
      %p318 = scmp.eq.s32.totalorder %s28, 1
      %p319 = por %p317, %p318
      %p320 = scmp.ne.s32.totalorder %s311, %s312
      %p321 = scmp.eq.s32.totalorder %s28, 0
      %p322 = por %p320, %p321
      %p323 = scmp.ne.s32.totalorder %s311, %s312
      %p324 = scmp.eq.s32.totalorder %s29, 1
      %p325 = por %p323, %p324
      %p327 = scmp.ne.s32.totalorder %s312, %s326
      %p328 = scmp.eq.s32.totalorder %s29, 0
      %p329 = por %p327, %p328
      %s330 = ssub.s32 %s23, %s30
      %p331 = scmp.eq.s32.totalorder %s330, 0
      %s333 = sadd.s32 %s332, 1
      %s334 = scalar_select %p331, %s332, %s333
      %p337 = pneg %p331
      %p338 = scmp.eq.s32.totalorder %s23, 1
      %p339 = por %p337, %p338
      %p340 = scmp.ne.s32.totalorder %s332, %s335
      %p341 = scmp.eq.s32.totalorder %s23, 0
      %p342 = por %p340, %p341
      %p343 = scmp.ne.s32.totalorder %s332, %s335
      %p344 = scmp.eq.s32.totalorder %s28, 1
      %p345 = por %p343, %p344
      %p346 = scmp.ne.s32.totalorder %s335, %s336
      %p347 = scmp.eq.s32.totalorder %s28, 0
      %p348 = por %p346, %p347
      %p349 = scmp.ne.s32.totalorder %s335, %s336
      %p350 = scmp.eq.s32.totalorder %s29, 1
      %p351 = por %p349, %p350
      %p353 = scmp.ne.s32.totalorder %s336, %s352
      %p354 = scmp.eq.s32.totalorder %s29, 0
      %p355 = por %p353, %p354
      %p356 = scmp.le.s32.totalorder 1, %s23
      %p357 = scmp.lt.s32.totalorder %s23, 3
      %p358 = pnand %p356, %p357
      %p359 = pneg %p358
      // Predicated region
      $region9: #{tpu_custom_call.1} parent=5 // pred_check
        _
      $region10: #{tpu_custom_call.1} parent=5 // pred_check_branch
        %361 = sbr.rel (%p358) target = $region12
      $region11: #{tpu_custom_call.1} parent=5 // pred_region
        %s362 = ssub.s32 %s23, 1
        // Predicated region
        $region13: #{tpu_custom_call.1} parent=11 // pred_check
          %p363 = pneg %p70
        $region14: #{tpu_custom_call.1} parent=11 // pred_check_branch
          %365 = sbr.rel (%p363) target = $region16
        $region15: #{tpu_custom_call.1} parent=11 // pred_region
          _
        $region16: #{tpu_custom_call.1} parent=11 // pred_fallthru
          _
        // Predicated region
        $region17: #{tpu_custom_call.1} parent=11 // pred_check
          %p366 = pneg %p91
        $region18: #{tpu_custom_call.1} parent=11 // pred_check_branch
          %368 = sbr.rel (%p366) target = $region20
        $region19: #{tpu_custom_call.1} parent=11 // pred_region
          _
        $region20: #{tpu_custom_call.1} parent=11 // pred_fallthru
          _
        // Predicated region
        $region21: #{tpu_custom_call.1} parent=11 // pred_check
          %p369 = pneg %p112
        $region22: #{tpu_custom_call.1} parent=11 // pred_check_branch
          %371 = sbr.rel (%p369) target = $region24
        $region23: #{tpu_custom_call.1} parent=11 // pred_region
          _
        $region24: #{tpu_custom_call.1} parent=11 // pred_fallthru
          _
        // Predicated region
        $region25: #{tpu_custom_call.1} parent=11 // pred_check
          %p372 = pneg %p133
        $region26: #{tpu_custom_call.1} parent=11 // pred_check_branch
          %374 = sbr.rel (%p372) target = $region28
        $region27: #{tpu_custom_call.1} parent=11 // pred_region
          _
        $region28: #{tpu_custom_call.1} parent=11 // pred_fallthru
          _
        // Predicated region
        $region29: #{tpu_custom_call.1} parent=11 // pred_check
          %p375 = pneg %p154
        $region30: #{tpu_custom_call.1} parent=11 // pred_check_branch
          %377 = sbr.rel (%p375) target = $region32
        $region31: #{tpu_custom_call.1} parent=11 // pred_region
          _
        $region32: #{tpu_custom_call.1} parent=11 // pred_fallthru
          _
        // Predicated region
        $region33: #{tpu_custom_call.1} parent=11 // pred_check
          %p378 = pneg %p175
        $region34: #{tpu_custom_call.1} parent=11 // pred_check_branch
          %380 = sbr.rel (%p378) target = $region36
        $region35: #{tpu_custom_call.1} parent=11 // pred_region
          _
        $region36: #{tpu_custom_call.1} parent=11 // pred_fallthru
          _
        // Predicated region
        $region37: #{tpu_custom_call.1} parent=11 // pred_check
          %p381 = pneg %p196
        $region38: #{tpu_custom_call.1} parent=11 // pred_check_branch
          %383 = sbr.rel (%p381) target = $region40
        $region39: #{tpu_custom_call.1} parent=11 // pred_region
          _
        $region40: #{tpu_custom_call.1} parent=11 // pred_fallthru
          _
        // Predicated region
        $region41: #{tpu_custom_call.1} parent=11 // pred_check
          %p384 = pneg %p217
        $region42: #{tpu_custom_call.1} parent=11 // pred_check_branch
          %386 = sbr.rel (%p384) target = $region44
        $region43: #{tpu_custom_call.1} parent=11 // pred_region
          _
        $region44: #{tpu_custom_call.1} parent=11 // pred_fallthru
          _
        // Predicated region
        $region45: #{tpu_custom_call.1} parent=11 // pred_check
          %p387 = pneg %p238
        $region46: #{tpu_custom_call.1} parent=11 // pred_check_branch
          %389 = sbr.rel (%p387) target = $region48
        $region47: #{tpu_custom_call.1} parent=11 // pred_region
          _
        $region48: #{tpu_custom_call.1} parent=11 // pred_fallthru
          _
        // Predicated region
        $region49: #{tpu_custom_call.1} parent=11 // pred_check
          %p390 = pneg %p259
        $region50: #{tpu_custom_call.1} parent=11 // pred_check_branch
          %392 = sbr.rel (%p390) target = $region52
        $region51: #{tpu_custom_call.1} parent=11 // pred_region
          _
        $region52: #{tpu_custom_call.1} parent=11 // pred_fallthru
          _
        // Predicated region
        $region53: #{tpu_custom_call.1} parent=11 // pred_check
          %p393 = pneg %p280
        $region54: #{tpu_custom_call.1} parent=11 // pred_check_branch
          %395 = sbr.rel (%p393) target = $region56
        $region55: #{tpu_custom_call.1} parent=11 // pred_region
          _
        $region56: #{tpu_custom_call.1} parent=11 // pred_fallthru
          _
        // Predicated region
        $region57: #{tpu_custom_call.1} parent=11 // pred_check
          %p396 = pneg %p301
        $region58: #{tpu_custom_call.1} parent=11 // pred_check_branch
          %398 = sbr.rel (%p396) target = $region60
        $region59: #{tpu_custom_call.1} parent=11 // pred_region
          _
        $region60: #{tpu_custom_call.1} parent=11 // pred_fallthru
          _
        // Predicated region
        $region61: #{tpu_custom_call.1} parent=11 // pred_check
          %p399 = pneg %p322
        $region62: #{tpu_custom_call.1} parent=11 // pred_check_branch
          %401 = sbr.rel (%p399) target = $region64
        $region63: #{tpu_custom_call.1} parent=11 // pred_region
          _
        $region64: #{tpu_custom_call.1} parent=11 // pred_fallthru
          _
      $region12: #{tpu_custom_call.1} parent=5 // pred_fallthru
        _
      %p402 = scmp.lt.s32.totalorder %s23, 2
      // Predicated region
      $region65: #{tpu_custom_call.1} parent=5 // pred_check
        %p403 = pneg %p402
      $region66: #{tpu_custom_call.1} parent=5 // pred_check_branch
        %405 = sbr.rel (%p403) target = $region68
      $region67: #{tpu_custom_call.1} parent=5 // pred_region
        // Predicated region
        $region69: #{tpu_custom_call.1} parent=67 // pred_check
          %p406 = pneg %p43
        $region70: #{tpu_custom_call.1} parent=67 // pred_check_branch
          %408 = sbr.rel (%p406) target = $region72
        $region71: #{tpu_custom_call.1} parent=67 // pred_region
          %p409 = scmp.lt.s32.totalorder %s23, 1
          %s410 = scalar_select %p409, %s23, 1
          %s411 = smul.addr %s410, 64
          %s412 = smul.addr %s411, 8
          %s413 = scalar_lea.vmem %s0, %s412
        $region72: #{tpu_custom_call.1} parent=67 // pred_fallthru
          _
      $region68: #{tpu_custom_call.1} parent=5 // pred_fallthru
        _
      %p414 = scmp.le.s32.totalorder 1, %s23
      %p415 = scmp.lt.s32.totalorder %s23, 3
      %p416 = pnand %p414, %p415
      %p417 = pneg %p416
      // Predicated region
      $region73: #{tpu_custom_call.1} parent=5 // pred_check
        _
      $region74: #{tpu_custom_call.1} parent=5 // pred_check_branch
        %419 = sbr.rel (%p416) target = $region76
      $region75: #{tpu_custom_call.1} parent=5 // pred_region
        %s420 = ssub.s32 %s23, 1
        %p421 = scmp.lt.s32.totalorder %s28, 1
        %s422 = scalar_select %p421, %s28, 1
        %s423 = smul.addr %s422, 64
        %s424 = smul.addr %s423, 8
        %s425 = scalar_lea.vmem %s0, %s424
        %p426 = pneg %p49
        %p427 = pneg %p46
        %p428 = pneg %p70
        %p429 = pneg %p67
        %p430 = pneg %p91
        %p431 = pneg %p88
        %p432 = pneg %p112
        %p433 = pneg %p109
        %p434 = pneg %p133
        %p435 = pneg %p130
        %p436 = pneg %p154
        %p437 = pneg %p151
        %p438 = pneg %p175
        %p439 = pneg %p172
        %p440 = pneg %p196
        %p441 = pneg %p193
        %p442 = pneg %p217
        %p443 = pneg %p214
        %p444 = pneg %p238
        %p445 = pneg %p235
        %p446 = pneg %p259
        %p447 = pneg %p256
        %p448 = pneg %p280
        %p449 = pneg %p277
        %p450 = pneg %p301
        %p451 = pneg %p298
        %p452 = pneg %p322
        %p453 = pneg %p319
        %p454 = pneg %p348
        %p455 = pneg %p345
        %s456 = sand.u32 %s335, 1
        %s457 = scalar_lea.sflag [#allocation5], %s456
        %s458 = sand.u32 %s335, 1
        %s459 = scalar_lea.vmem [#allocation4], %s458
        %p460 = scmp.lt.s32.totalorder %s28, 1
        %s461 = scalar_select %p460, %s28, 1
        %s462 = smul.addr %s461, 64
        %s463 = smul.addr %s462, 8
        %s464 = scalar_lea.vmem %s0, %s463
        %v465 = vld [vmem:[%s464] sm:$0xff]
        %v466 = vld [vmem:[%s464 + $0x8] sm:$0xff]
        %v467 = vld [vmem:[%s464 + $0x10] sm:$0xff]
        %v468 = vld [vmem:[%s464 + $0x18] sm:$0xff]
        %v469 = vld [vmem:[%s464 + $0x20] sm:$0xff]
        %v470 = vld [vmem:[%s464 + $0x28] sm:$0xff]
        %v471 = vld [vmem:[%s464 + $0x30] sm:$0xff]
        %v472 = vld [vmem:[%s464 + $0x38] sm:$0xff]
        %v473 = vld [vmem:[%s464 + $0x40] sm:$0xff]
        %v474 = vld [vmem:[%s464 + $0x48] sm:$0xff]
        %v475 = vld [vmem:[%s464 + $0x50] sm:$0xff]
        %v476 = vld [vmem:[%s464 + $0x58] sm:$0xff]
        %v477 = vld [vmem:[%s464 + $0x60] sm:$0xff]
        %v478 = vld [vmem:[%s464 + $0x68] sm:$0xff]
        %v479 = vld [vmem:[%s464 + $0x70] sm:$0xff]
        %v480 = vld [vmem:[%s464 + $0x78] sm:$0xff]
        %v481 = vld [vmem:[%s464 + $0x80] sm:$0xff]
        %v482 = vld [vmem:[%s464 + $0x88] sm:$0xff]
        %v483 = vld [vmem:[%s464 + $0x90] sm:$0xff]
        %v484 = vld [vmem:[%s464 + $0x98] sm:$0xff]
        %v485 = vld [vmem:[%s464 + $0xa0] sm:$0xff]
        %v486 = vld [vmem:[%s464 + $0xa8] sm:$0xff]
        %v487 = vld [vmem:[%s464 + $0xb0] sm:$0xff]
        %v488 = vld [vmem:[%s464 + $0xb8] sm:$0xff]
        %v489 = vld [vmem:[%s464 + $0xc0] sm:$0xff]
        %v490 = vld [vmem:[%s464 + $0xc8] sm:$0xff]
        %v491 = vld [vmem:[%s464 + $0xd0] sm:$0xff]
        %v492 = vld [vmem:[%s464 + $0xd8] sm:$0xff]
        %v493 = vld [vmem:[%s464 + $0xe0] sm:$0xff]
        %v494 = vld [vmem:[%s464 + $0xe8] sm:$0xff]
        %v495 = vld [vmem:[%s464 + $0xf0] sm:$0xff]
        %v496 = vld [vmem:[%s464 + $0xf8] sm:$0xff]
        %v497 = vld [vmem:[%s464 + $0x100] sm:$0xff]
        %v498 = vld [vmem:[%s464 + $0x108] sm:$0xff]
        %v499 = vld [vmem:[%s464 + $0x110] sm:$0xff]
        %v500 = vld [vmem:[%s464 + $0x118] sm:$0xff]
        %v501 = vld [vmem:[%s464 + $0x120] sm:$0xff]
        %v502 = vld [vmem:[%s464 + $0x128] sm:$0xff]
        %v503 = vld [vmem:[%s464 + $0x130] sm:$0xff]
        %v504 = vld [vmem:[%s464 + $0x138] sm:$0xff]
        %v505 = vld [vmem:[%s464 + $0x140] sm:$0xff]
        %v506 = vld [vmem:[%s464 + $0x148] sm:$0xff]
        %v507 = vld [vmem:[%s464 + $0x150] sm:$0xff]
        %v508 = vld [vmem:[%s464 + $0x158] sm:$0xff]
        %v509 = vld [vmem:[%s464 + $0x160] sm:$0xff]
        %v510 = vld [vmem:[%s464 + $0x168] sm:$0xff]
        %v511 = vld [vmem:[%s464 + $0x170] sm:$0xff]
        %v512 = vld [vmem:[%s464 + $0x178] sm:$0xff]
        %v513 = vld [vmem:[%s464 + $0x180] sm:$0xff]
        %v514 = vld [vmem:[%s464 + $0x188] sm:$0xff]
        %v515 = vld [vmem:[%s464 + $0x190] sm:$0xff]
        %v516 = vld [vmem:[%s464 + $0x198] sm:$0xff]
        %v517 = vld [vmem:[%s464 + $0x1a0] sm:$0xff]
        %v518 = vld [vmem:[%s464 + $0x1a8] sm:$0xff]
        %v519 = vld [vmem:[%s464 + $0x1b0] sm:$0xff]
        %v520 = vld [vmem:[%s464 + $0x1b8] sm:$0xff]
        %v521 = vld [vmem:[%s464 + $0x1c0] sm:$0xff]
        %v522 = vld [vmem:[%s464 + $0x1c8] sm:$0xff]
        %v523 = vld [vmem:[%s464 + $0x1d0] sm:$0xff]
        %v524 = vld [vmem:[%s464 + $0x1d8] sm:$0xff]
        %v525 = vld [vmem:[%s464 + $0x1e0] sm:$0xff]
        %v526 = vld [vmem:[%s464 + $0x1e8] sm:$0xff]
        %v527 = vld [vmem:[%s464 + $0x1f0] sm:$0xff]
        %v528 = vld [vmem:[%s464 + $0x1f8] sm:$0xff]
        %v529 = vld [vmem:[%s2] sm:$0x1]
        %v530 = vld [vmem:[%s3] sm:$0x1]
        %vm596 = vcmask 1040384
        %v597 = vrot.slane 0.0, 7
        %v598 = vsel %vm596, %v597, %v597
        %v599 = vrot.slane %v465, 7
        %v600 = vrot.slane %v466, 7
        %v601 = vsel %vm596, %v599, %v600
        %v602 = vrot.slane %v467, 7
        %v603 = vrot.slane %v468, 7
        %v604 = vsel %vm596, %v602, %v603
        %v605 = vrot.slane %v469, 7
        %v606 = vrot.slane %v470, 7
        %v607 = vsel %vm596, %v605, %v606
        %v608 = vrot.slane %v471, 7
        %v609 = vrot.slane %v472, 7
        %v610 = vsel %vm596, %v608, %v609
        %v611 = vrot.slane %v473, 7
        %v612 = vrot.slane %v474, 7
        %v613 = vsel %vm596, %v611, %v612
        %v614 = vrot.slane %v475, 7
        %v615 = vrot.slane %v476, 7
        %v616 = vsel %vm596, %v614, %v615
        %v617 = vrot.slane %v477, 7
        %v618 = vrot.slane %v478, 7
        %v619 = vsel %vm596, %v617, %v618
        %v620 = vrot.slane %v479, 7
        %v621 = vrot.slane %v480, 7
        %v622 = vsel %vm596, %v620, %v621
        %v623 = vrot.slane %v481, 7
        %v624 = vrot.slane %v482, 7
        %v625 = vsel %vm596, %v623, %v624
        %v626 = vrot.slane %v483, 7
        %v627 = vrot.slane %v484, 7
        %v628 = vsel %vm596, %v626, %v627
        %v629 = vrot.slane %v485, 7
        %v630 = vrot.slane %v486, 7
        %v631 = vsel %vm596, %v629, %v630
        %v632 = vrot.slane %v487, 7
        %v633 = vrot.slane %v488, 7
        %v634 = vsel %vm596, %v632, %v633
        %v635 = vrot.slane %v489, 7
        %v636 = vrot.slane %v490, 7
        %v637 = vsel %vm596, %v635, %v636
        %v638 = vrot.slane %v491, 7
        %v639 = vrot.slane %v492, 7
        %v640 = vsel %vm596, %v638, %v639
        %v641 = vrot.slane %v493, 7
        %v642 = vrot.slane %v494, 7
        %v643 = vsel %vm596, %v641, %v642
        %v644 = vrot.slane %v495, 7
        %v645 = vrot.slane %v496, 7
        %v646 = vsel %vm596, %v644, %v645
        %v647 = vrot.slane %v497, 7
        %v648 = vrot.slane %v498, 7
        %v649 = vsel %vm596, %v647, %v648
        %v650 = vrot.slane %v499, 7
        %v651 = vrot.slane %v500, 7
        %v652 = vsel %vm596, %v650, %v651
        %v653 = vrot.slane %v501, 7
        %v654 = vrot.slane %v502, 7
        %v655 = vsel %vm596, %v653, %v654
        %v656 = vrot.slane %v503, 7
        %v657 = vrot.slane %v504, 7
        %v658 = vsel %vm596, %v656, %v657
        %v659 = vrot.slane %v505, 7
        %v660 = vrot.slane %v506, 7
        %v661 = vsel %vm596, %v659, %v660
        %v662 = vrot.slane %v507, 7
        %v663 = vrot.slane %v508, 7
        %v664 = vsel %vm596, %v662, %v663
        %v665 = vrot.slane %v509, 7
        %v666 = vrot.slane %v510, 7
        %v667 = vsel %vm596, %v665, %v666
        %v668 = vrot.slane %v511, 7
        %v669 = vrot.slane %v512, 7
        %v670 = vsel %vm596, %v668, %v669
        %v671 = vrot.slane %v513, 7
        %v672 = vrot.slane %v514, 7
        %v673 = vsel %vm596, %v671, %v672
        %v674 = vrot.slane %v515, 7
        %v675 = vrot.slane %v516, 7
        %v676 = vsel %vm596, %v674, %v675
        %v677 = vrot.slane %v517, 7
        %v678 = vrot.slane %v518, 7
        %v679 = vsel %vm596, %v677, %v678
        %v680 = vrot.slane %v519, 7
        %v681 = vrot.slane %v520, 7
        %v682 = vsel %vm596, %v680, %v681
        %v683 = vrot.slane %v521, 7
        %v684 = vrot.slane %v522, 7
        %v685 = vsel %vm596, %v683, %v684
        %v686 = vrot.slane %v523, 7
        %v687 = vrot.slane %v524, 7
        %v688 = vsel %vm596, %v686, %v687
        %v689 = vrot.slane %v525, 7
        %v690 = vrot.slane %v526, 7
        %v691 = vsel %vm596, %v689, %v690
        %v692 = vrot.slane %v527, 7
        %v693 = vrot.slane %v528, 7
        %v694 = vsel %vm596, %v692, %v693
        %v760 = vsel %vm596, 0.0, %v597
        %v761 = vsel %vm596, 0.0, %v599
        %v762 = vsel %vm596, 0.0, %v602
        %v763 = vsel %vm596, 0.0, %v605
        %v764 = vsel %vm596, 0.0, %v608
        %v765 = vsel %vm596, 0.0, %v611
        %v766 = vsel %vm596, 0.0, %v614
        %v767 = vsel %vm596, 0.0, %v617
        %v768 = vsel %vm596, 0.0, %v620
        %v769 = vsel %vm596, 0.0, %v623
        %v770 = vsel %vm596, 0.0, %v626
        %v771 = vsel %vm596, 0.0, %v629
        %v772 = vsel %vm596, 0.0, %v632
        %v773 = vsel %vm596, 0.0, %v635
        %v774 = vsel %vm596, 0.0, %v638
        %v775 = vsel %vm596, 0.0, %v641
        %v776 = vsel %vm596, 0.0, %v644
        %v777 = vsel %vm596, 0.0, %v647
        %v778 = vsel %vm596, 0.0, %v650
        %v779 = vsel %vm596, 0.0, %v653
        %v780 = vsel %vm596, 0.0, %v656
        %v781 = vsel %vm596, 0.0, %v659
        %v782 = vsel %vm596, 0.0, %v662
        %v783 = vsel %vm596, 0.0, %v665
        %v784 = vsel %vm596, 0.0, %v668
        %v785 = vsel %vm596, 0.0, %v671
        %v786 = vsel %vm596, 0.0, %v674
        %v787 = vsel %vm596, 0.0, %v677
        %v788 = vsel %vm596, 0.0, %v680
        %v789 = vsel %vm596, 0.0, %v683
        %v790 = vsel %vm596, 0.0, %v686
        %v791 = vsel %vm596, 0.0, %v689
        %v792 = vsel %vm596, 0.0, %v692
        %v793 = vsel %vm596, %v597, 0.0
        %v794 = vsel %vm596, %v600, 0.0
        %v795 = vsel %vm596, %v603, 0.0
        %v796 = vsel %vm596, %v606, 0.0
        %v797 = vsel %vm596, %v609, 0.0
        %v798 = vsel %vm596, %v612, 0.0
        %v799 = vsel %vm596, %v615, 0.0
        %v800 = vsel %vm596, %v618, 0.0
        %v801 = vsel %vm596, %v621, 0.0
        %v802 = vsel %vm596, %v624, 0.0
        %v803 = vsel %vm596, %v627, 0.0
        %v804 = vsel %vm596, %v630, 0.0
        %v805 = vsel %vm596, %v633, 0.0
        %v806 = vsel %vm596, %v636, 0.0
        %v807 = vsel %vm596, %v639, 0.0
        %v808 = vsel %vm596, %v642, 0.0
        %v809 = vsel %vm596, %v645, 0.0
        %v810 = vsel %vm596, %v648, 0.0
        %v811 = vsel %vm596, %v651, 0.0
        %v812 = vsel %vm596, %v654, 0.0
        %v813 = vsel %vm596, %v657, 0.0
        %v814 = vsel %vm596, %v660, 0.0
        %v815 = vsel %vm596, %v663, 0.0
        %v816 = vsel %vm596, %v666, 0.0
        %v817 = vsel %vm596, %v669, 0.0
        %v818 = vsel %vm596, %v672, 0.0
        %v819 = vsel %vm596, %v675, 0.0
        %v820 = vsel %vm596, %v678, 0.0
        %v821 = vsel %vm596, %v681, 0.0
        %v822 = vsel %vm596, %v684, 0.0
        %v823 = vsel %vm596, %v687, 0.0
        %v824 = vsel %vm596, %v690, 0.0
        %v825 = vsel %vm596, %v693, 0.0
        %v826 = vld [vmem:[%s1] sm:$0x7]
        %vm889 = vcmask 1046528
        %v890 = vrot.slane %v760, 1
        %v891 = vrot.slane %v598, 1
        %v892 = vsel %vm889, %v890, %v891
        %v893 = vrot.slane %v793, 1
        %v894 = vsel %vm889, %v891, %v893
        %v895 = vrot.slane %v761, 1
        %v896 = vrot.slane %v601, 1
        %v897 = vsel %vm889, %v895, %v896
        %v898 = vrot.slane %v794, 1
        %v899 = vsel %vm889, %v896, %v898
        %v900 = vrot.slane %v762, 1
        %v901 = vrot.slane %v604, 1
        %v902 = vsel %vm889, %v900, %v901
        %v903 = vrot.slane %v795, 1
        %v904 = vsel %vm889, %v901, %v903
        %v905 = vrot.slane %v763, 1
        %v906 = vrot.slane %v607, 1
        %v907 = vsel %vm889, %v905, %v906
        %v908 = vrot.slane %v796, 1
        %v909 = vsel %vm889, %v906, %v908
        %v910 = vrot.slane %v764, 1
        %v911 = vrot.slane %v610, 1
        %v912 = vsel %vm889, %v910, %v911
        %v913 = vrot.slane %v797, 1
        %v914 = vsel %vm889, %v911, %v913
        %v915 = vrot.slane %v765, 1
        %v916 = vrot.slane %v613, 1
        %v917 = vsel %vm889, %v915, %v916
        %v918 = vrot.slane %v798, 1
        %v919 = vsel %vm889, %v916, %v918
        %v920 = vrot.slane %v766, 1
        %v921 = vrot.slane %v616, 1
        %v922 = vsel %vm889, %v920, %v921
        %v923 = vrot.slane %v799, 1
        %v924 = vsel %vm889, %v921, %v923
        %v925 = vrot.slane %v767, 1
        %v926 = vrot.slane %v619, 1
        %v927 = vsel %vm889, %v925, %v926
        %v928 = vrot.slane %v800, 1
        %v929 = vsel %vm889, %v926, %v928
        %v930 = vrot.slane %v768, 1
        %v931 = vrot.slane %v622, 1
        %v932 = vsel %vm889, %v930, %v931
        %v933 = vrot.slane %v801, 1
        %v934 = vsel %vm889, %v931, %v933
        %v935 = vrot.slane %v769, 1
        %v936 = vrot.slane %v625, 1
        %v937 = vsel %vm889, %v935, %v936
        %v938 = vrot.slane %v802, 1
        %v939 = vsel %vm889, %v936, %v938
        %v940 = vrot.slane %v770, 1
        %v941 = vrot.slane %v628, 1
        %v942 = vsel %vm889, %v940, %v941
        %v943 = vrot.slane %v803, 1
        %v944 = vsel %vm889, %v941, %v943
        %v945 = vrot.slane %v771, 1
        %v946 = vrot.slane %v631, 1
        %v947 = vsel %vm889, %v945, %v946
        %v948 = vrot.slane %v804, 1
        %v949 = vsel %vm889, %v946, %v948
        %v950 = vrot.slane %v772, 1
        %v951 = vrot.slane %v634, 1
        %v952 = vsel %vm889, %v950, %v951
        %v953 = vrot.slane %v805, 1
        %v954 = vsel %vm889, %v951, %v953
        %v955 = vrot.slane %v773, 1
        %v956 = vrot.slane %v637, 1
        %v957 = vsel %vm889, %v955, %v956
        %v958 = vrot.slane %v806, 1
        %v959 = vsel %vm889, %v956, %v958
        %v960 = vrot.slane %v774, 1
        %v961 = vrot.slane %v640, 1
        %v962 = vsel %vm889, %v960, %v961
        %v963 = vrot.slane %v807, 1
        %v964 = vsel %vm889, %v961, %v963
        %v965 = vrot.slane %v775, 1
        %v966 = vrot.slane %v643, 1
        %v967 = vsel %vm889, %v965, %v966
        %v968 = vrot.slane %v808, 1
        %v969 = vsel %vm889, %v966, %v968
        %v970 = vrot.slane %v777, 1
        %v971 = vrot.slane %v649, 1
        %v972 = vsel %vm889, %v970, %v971
        %v973 = vrot.slane %v810, 1
        %v974 = vsel %vm889, %v971, %v973
        %v975 = vrot.slane %v778, 1
        %v976 = vrot.slane %v652, 1
        %v977 = vsel %vm889, %v975, %v976
        %v978 = vrot.slane %v811, 1
        %v979 = vsel %vm889, %v976, %v978
        %v980 = vrot.slane %v779, 1
        %v981 = vrot.slane %v655, 1
        %v982 = vsel %vm889, %v980, %v981
        %v983 = vrot.slane %v812, 1
        %v984 = vsel %vm889, %v981, %v983
        %v985 = vrot.slane %v780, 1
        %v986 = vrot.slane %v658, 1
        %v987 = vsel %vm889, %v985, %v986
        %v988 = vrot.slane %v813, 1
        %v989 = vsel %vm889, %v986, %v988
        %v990 = vrot.slane %v781, 1
        %v991 = vrot.slane %v661, 1
        %v992 = vsel %vm889, %v990, %v991
        %v993 = vrot.slane %v814, 1
        %v994 = vsel %vm889, %v991, %v993
        %v995 = vrot.slane %v782, 1
        %v996 = vrot.slane %v664, 1
        %v997 = vsel %vm889, %v995, %v996
        %v998 = vrot.slane %v815, 1
        %v999 = vsel %vm889, %v996, %v998
        %v1000 = vrot.slane %v783, 1
        %v1001 = vrot.slane %v667, 1
        %v1002 = vsel %vm889, %v1000, %v1001
        %v1003 = vrot.slane %v816, 1
        %v1004 = vsel %vm889, %v1001, %v1003
        %v1005 = vrot.slane %v784, 1
        %v1006 = vrot.slane %v670, 1
        %v1007 = vsel %vm889, %v1005, %v1006
        %v1008 = vrot.slane %v817, 1
        %v1009 = vsel %vm889, %v1006, %v1008
        %v1010 = vrot.slane %v785, 1
        %v1011 = vrot.slane %v673, 1
        %v1012 = vsel %vm889, %v1010, %v1011
        %v1013 = vrot.slane %v818, 1
        %v1014 = vsel %vm889, %v1011, %v1013
        %v1015 = vrot.slane %v786, 1
        %v1016 = vrot.slane %v676, 1
        %v1017 = vsel %vm889, %v1015, %v1016
        %v1018 = vrot.slane %v819, 1
        %v1019 = vsel %vm889, %v1016, %v1018
        %v1020 = vrot.slane %v787, 1
        %v1021 = vrot.slane %v679, 1
        %v1022 = vsel %vm889, %v1020, %v1021
        %v1023 = vrot.slane %v820, 1
        %v1024 = vsel %vm889, %v1021, %v1023
        %v1025 = vrot.slane %v788, 1
        %v1026 = vrot.slane %v682, 1
        %v1027 = vsel %vm889, %v1025, %v1026
        %v1028 = vrot.slane %v821, 1
        %v1029 = vsel %vm889, %v1026, %v1028
        %v1030 = vrot.slane %v789, 1
        %v1031 = vrot.slane %v685, 1
        %v1032 = vsel %vm889, %v1030, %v1031
        %v1033 = vrot.slane %v822, 1
        %v1034 = vsel %vm889, %v1031, %v1033
        %v1035 = vrot.slane %v790, 1
        %v1036 = vrot.slane %v688, 1
        %v1037 = vsel %vm889, %v1035, %v1036
        %v1038 = vrot.slane %v823, 1
        %v1039 = vsel %vm889, %v1036, %v1038
        %v1040 = vrot.slane %v791, 1
        %v1041 = vrot.slane %v691, 1
        %v1042 = vsel %vm889, %v1040, %v1041
        %v1043 = vrot.slane %v824, 1
        %v1044 = vsel %vm889, %v1041, %v1043
        %s1045 = scalar_lea.vmem %s1, 4
        %v1046 = vld [vmem:[%s1045] sm:$0x7]
        %vm1047 = vcmask 23552
        %v1048 = vsel %vm1047, %v892, 0
        %v1050 = vsel %vm1047, %v894, 0
        %v1052 = vsel %vm1047, %v897, 0
        %v1054 = vsel %vm1047, %v899, 0
        %v1056 = vsel %vm1047, %v902, 0
        %v1058 = vsel %vm1047, %v904, 0
        %v1060 = vsel %vm1047, %v907, 0
        %v1062 = vsel %vm1047, %v909, 0
        %v1064 = vsel %vm1047, %v912, 0
        %v1066 = vsel %vm1047, %v914, 0
        %v1068 = vsel %vm1047, %v917, 0
        %v1070 = vsel %vm1047, %v919, 0
        %v1072 = vsel %vm1047, %v922, 0
        %v1074 = vsel %vm1047, %v924, 0
        %v1076 = vsel %vm1047, %v927, 0
        %v1078 = vsel %vm1047, %v929, 0
        %v1080 = vsel %vm1047, %v932, 0
        %v1082 = vsel %vm1047, %v934, 0
        %v1084 = vsel %vm1047, %v937, 0
        %v1086 = vsel %vm1047, %v939, 0
        %v1088 = vsel %vm1047, %v942, 0
        %v1090 = vsel %vm1047, %v944, 0
        %v1092 = vsel %vm1047, %v947, 0
        %v1094 = vsel %vm1047, %v949, 0
        %v1096 = vsel %vm1047, %v952, 0
        %v1098 = vsel %vm1047, %v954, 0
        %v1100 = vsel %vm1047, %v957, 0
        %v1102 = vsel %vm1047, %v959, 0
        %v1104 = vsel %vm1047, %v962, 0
        %v1106 = vsel %vm1047, %v964, 0
        %v1108 = vsel %vm1047, %v967, 0
        %v1110 = vsel %vm1047, %v969, 0
        %v1112 = vsel %vm1047, %v972, 0
        %v1114 = vsel %vm1047, %v974, 0
        %v1116 = vsel %vm1047, %v977, 0
        %v1118 = vsel %vm1047, %v979, 0
        %v1120 = vsel %vm1047, %v982, 0
        %v1122 = vsel %vm1047, %v984, 0
        %v1124 = vsel %vm1047, %v987, 0
        %v1126 = vsel %vm1047, %v989, 0
        %v1128 = vsel %vm1047, %v992, 0
        %v1130 = vsel %vm1047, %v994, 0
        %v1132 = vsel %vm1047, %v997, 0
        %v1134 = vsel %vm1047, %v999, 0
        %v1136 = vsel %vm1047, %v1002, 0
        %v1138 = vsel %vm1047, %v1004, 0
        %v1140 = vsel %vm1047, %v1007, 0
        %v1142 = vsel %vm1047, %v1009, 0
        %v1144 = vsel %vm1047, %v1012, 0
        %v1146 = vsel %vm1047, %v1014, 0
        %v1148 = vsel %vm1047, %v1017, 0
        %v1150 = vsel %vm1047, %v1019, 0
        %v1152 = vsel %vm1047, %v1022, 0
        %v1154 = vsel %vm1047, %v1024, 0
        %v1156 = vsel %vm1047, %v1027, 0
        %v1158 = vsel %vm1047, %v1029, 0
        %v1160 = vsel %vm1047, %v1032, 0
        %v1162 = vsel %vm1047, %v1034, 0
        %v1164 = vsel %vm1047, %v1037, 0
        %v1166 = vsel %vm1047, %v1039, 0
        %v1168 = vsel %vm1047, %v1042, 0
        %v1170 = vsel %vm1047, %v1044, 0
        %vm1172 = vcmask 1042432
        %v1174 = vsel %vm1172, %v1046, 0
        %1176 = vmatprep.subr.mxu0 0.0
        %1177 = vmatpush1.msra.mxu0 %v1174
        %1178 = vmatprep.subr.mxu0 0.0
        %1179 = vmatpush1.msra.mxu0 0.0
        %1180 = vmatprep.subr.mxu0 0.0
        %1181 = vmatpush1.msra.mxu0 0.0
        %1182 = vmatprep.subr.mxu0 0.0
        %1183 = vmatpush1.msra.mxu0 0.0
        %1184 = vmatprep.subr.mxu0 0.0
        %1185 = vmatpush1.msra.mxu0 0.0
        %1186 = vmatprep.subr.mxu0 0.0
        %1187 = vmatpush1.msra.mxu0 0.0
        %1188 = vmatprep.subr.mxu0 0.0
        %1189 = vmatpush1.msra.mxu0 0.0
        %1190 = vmatprep.subr.mxu0 0.0
        %1191 = vmatpush1.msra.mxu0 0.0
        %1192 = vmatprep.subr.mxu0 0.0
        %1193 = vmatpush1.msra.mxu0 0.0
        %1194 = vmatprep.subr.mxu0 0.0
        %1195 = vmatpush1.msra.mxu0 0.0
        %1196 = vmatprep.subr.mxu0 0.0
        %1197 = vmatpush1.msra.mxu0 0.0
        %1198 = vmatprep.subr.mxu0 0.0
        %1199 = vmatpush1.msra.mxu0 0.0
        %1200 = vmatprep.subr.mxu0 0.0
        %1201 = vmatpush1.msra.mxu0 0.0
        %1202 = vmatprep.subr.mxu0 0.0
        %1203 = vmatpush1.msra.mxu0 0.0
        %1204 = vmatprep.subr.mxu0 0.0
        %1205 = vmatpush1.msra.mxu0 0.0
        %1206 = vmatprep.subr.mxu0 0.0
        %1207 = vmatpush1.msra.mxu0 0.0
        %1208 = vmatprep.subr.mxu0 0.0
        %1209 = vmatpush1.msra.mxu0 0.0
        %1210 = vmatprep.subr.mxu0 0.0
        %1211 = vmatpush1.msra.mxu0 0.0
        %1212 = vmatprep.subr.mxu0 0.0
        %1213 = vmatpush1.msra.mxu0 0.0
        %1214 = vmatprep.subr.mxu0 0.0
        %1215 = vmatpush1.msra.mxu0 0.0
        %1216 = vmatprep.subr.mxu0 0.0
        %1217 = vmatpush1.msra.mxu0 0.0
        %1218 = vmatprep.subr.mxu0 0.0
        %1219 = vmatpush1.msra.mxu0 0.0
        %1220 = vmatprep.subr.mxu0 0.0
        %1221 = vmatpush1.msra.mxu0 0.0
        %1222 = vmatprep.subr.mxu0 0.0
        %1223 = vmatpush1.msra.mxu0 0.0
        %1224 = vmatprep.subr.mxu0 0.0
        %1225 = vmatpush1.msra.mxu0 0.0
        %1226 = vmatprep.subr.mxu0 0.0
        %1227 = vmatpush1.msra.mxu0 0.0
        %1228 = vmatprep.subr.mxu0 0.0
        %1229 = vmatpush1.msra.mxu0 0.0
        %1230 = vmatprep.subr.mxu0 0.0
        %1231 = vmatpush1.msra.mxu0 0.0
        %1232 = vmatprep.subr.mxu0 0.0
        %1233 = vmatpush1.msra.mxu0 0.0
        %1234 = vmatprep.subr.mxu0 0.0
        %1235 = vmatpush1.msra.mxu0 0.0
        %1236 = vmatprep.subr.mxu0 0.0
        %1237 = vmatpush1.msra.mxu0 0.0
        %1238 = vmatprep.subr.mxu0 0.0
        %1239 = vmatpush1.msra.mxu0 0.0
        %1240 = vmatprep.mubr.f32.mxu0 0.0
        %1241 = vmatmul.mubr.f32.gmra.mrb[0].mxu0 %v1048
        %v1242 = vpop.f32.mrb[0].mxu0
        %v1243 = vadd.f32 0.0, %v1242
        %v1244 = vpop.f32.mrb[0].mxu0
        %1245 = vmatprep.mubr.f32.mxu0 0.0
        %1246 = vmatmul.mubr.f32.gmra.mrb[0].mxu0 %v1050
        %v1247 = vpop.f32.mrb[0].mxu0
        %v1248 = vadd.f32 0.0, %v1247
        %v1249 = vpop.f32.mrb[0].mxu0
        %1250 = vmatprep.mubr.f32.mxu0 0.0
        %1251 = vmatmul.mubr.f32.gmra.mrb[0].mxu0 %v1052
        %v1252 = vpop.f32.mrb[0].mxu0
        %v1253 = vadd.f32 0.0, %v1252
        %v1254 = vpop.f32.mrb[0].mxu0
        %1255 = vmatprep.mubr.f32.mxu0 0.0
        %1256 = vmatmul.mubr.f32.gmra.mrb[0].mxu0 %v1054
        %v1257 = vpop.f32.mrb[0].mxu0
        %v1258 = vadd.f32 0.0, %v1257
        %v1259 = vpop.f32.mrb[0].mxu0
        %1260 = vmatprep.mubr.f32.mxu0 0.0
        %1261 = vmatmul.mubr.f32.gmra.mrb[0].mxu0 %v1056
        %v1262 = vpop.f32.mrb[0].mxu0
        %v1263 = vadd.f32 0.0, %v1262
        %v1264 = vpop.f32.mrb[0].mxu0
        %1265 = vmatprep.mubr.f32.mxu0 0.0
        %1266 = vmatmul.mubr.f32.gmra.mrb[0].mxu0 %v1058
        %v1267 = vpop.f32.mrb[0].mxu0
        %v1268 = vadd.f32 0.0, %v1267
        %v1269 = vpop.f32.mrb[0].mxu0
        %1270 = vmatprep.mubr.f32.mxu0 0.0
        %1271 = vmatmul.mubr.f32.gmra.mrb[0].mxu0 %v1060
        %v1272 = vpop.f32.mrb[0].mxu0
        %v1273 = vadd.f32 0.0, %v1272
        %v1274 = vpop.f32.mrb[0].mxu0
        %1275 = vmatprep.mubr.f32.mxu0 0.0
        %1276 = vmatmul.mubr.f32.gmra.mrb[0].mxu0 %v1062
        %v1277 = vpop.f32.mrb[0].mxu0
        %v1278 = vadd.f32 0.0, %v1277
        %v1279 = vpop.f32.mrb[0].mxu0
        %1280 = vmatprep.mubr.f32.mxu0 0.0
        %1281 = vmatmul.mubr.f32.gmra.mrb[0].mxu0 %v1064
        %v1282 = vpop.f32.mrb[0].mxu0
        %v1283 = vadd.f32 0.0, %v1282
        %v1284 = vpop.f32.mrb[0].mxu0
        %1285 = vmatprep.mubr.f32.mxu0 0.0
        %1286 = vmatmul.mubr.f32.gmra.mrb[0].mxu0 %v1066
        %v1287 = vpop.f32.mrb[0].mxu0
        %v1288 = vadd.f32 0.0, %v1287
        %v1289 = vpop.f32.mrb[0].mxu0
        %1290 = vmatprep.mubr.f32.mxu0 0.0
        %1291 = vmatmul.mubr.f32.gmra.mrb[0].mxu0 %v1068
        %v1292 = vpop.f32.mrb[0].mxu0
        %v1293 = vadd.f32 0.0, %v1292
        %v1294 = vpop.f32.mrb[0].mxu0
        %1295 = vmatprep.mubr.f32.mxu0 0.0
        %1296 = vmatmul.mubr.f32.gmra.mrb[0].mxu0 %v1070
        %v1297 = vpop.f32.mrb[0].mxu0
        %v1298 = vadd.f32 0.0, %v1297
        %v1299 = vpop.f32.mrb[0].mxu0
        %1300 = vmatprep.mubr.f32.mxu0 0.0
        %1301 = vmatmul.mubr.f32.gmra.mrb[0].mxu0 %v1072
        %v1302 = vpop.f32.mrb[0].mxu0
        %v1303 = vadd.f32 0.0, %v1302
        %v1304 = vpop.f32.mrb[0].mxu0
        %1305 = vmatprep.mubr.f32.mxu0 0.0
        %1306 = vmatmul.mubr.f32.gmra.mrb[0].mxu0 %v1074
        %v1307 = vpop.f32.mrb[0].mxu0
        %v1308 = vadd.f32 0.0, %v1307
        %v1309 = vpop.f32.mrb[0].mxu0
        %1310 = vmatprep.mubr.f32.mxu0 0.0
        %1311 = vmatmul.mubr.f32.gmra.mrb[0].mxu0 %v1076
        %v1312 = vpop.f32.mrb[0].mxu0
        %v1313 = vadd.f32 0.0, %v1312
        %v1314 = vpop.f32.mrb[0].mxu0
        %1315 = vmatprep.mubr.f32.mxu0 0.0
        %1316 = vmatmul.mubr.f32.gmra.mrb[0].mxu0 %v1078
        %v1317 = vpop.f32.mrb[0].mxu0
        %v1318 = vadd.f32 0.0, %v1317
        %v1319 = vpop.f32.mrb[0].mxu0
        %1320 = vmatprep.mubr.f32.mxu0 0.0
        %1321 = vmatmul.mubr.f32.gmra.mrb[0].mxu0 %v1080
        %v1322 = vpop.f32.mrb[0].mxu0
        %v1323 = vadd.f32 0.0, %v1322
        %v1324 = vpop.f32.mrb[0].mxu0
        %1325 = vmatprep.mubr.f32.mxu0 0.0
        %1326 = vmatmul.mubr.f32.gmra.mrb[0].mxu0 %v1082
        %v1327 = vpop.f32.mrb[0].mxu0
        %v1328 = vadd.f32 0.0, %v1327
        %v1329 = vpop.f32.mrb[0].mxu0
        %1330 = vmatprep.mubr.f32.mxu0 0.0
        %1331 = vmatmul.mubr.f32.gmra.mrb[0].mxu0 %v1084
        %v1332 = vpop.f32.mrb[0].mxu0
        %v1333 = vadd.f32 0.0, %v1332
        %v1334 = vpop.f32.mrb[0].mxu0
        %1335 = vmatprep.mubr.f32.mxu0 0.0
        %1336 = vmatmul.mubr.f32.gmra.mrb[0].mxu0 %v1086
        %v1337 = vpop.f32.mrb[0].mxu0
        %v1338 = vadd.f32 0.0, %v1337
        %v1339 = vpop.f32.mrb[0].mxu0
        %1340 = vmatprep.mubr.f32.mxu0 0.0
        %1341 = vmatmul.mubr.f32.gmra.mrb[0].mxu0 %v1088
        %v1342 = vpop.f32.mrb[0].mxu0
        %v1343 = vadd.f32 0.0, %v1342
        %v1344 = vpop.f32.mrb[0].mxu0
        %1345 = vmatprep.mubr.f32.mxu0 0.0
        %1346 = vmatmul.mubr.f32.gmra.mrb[0].mxu0 %v1090
        %v1347 = vpop.f32.mrb[0].mxu0
        %v1348 = vadd.f32 0.0, %v1347
        %v1349 = vpop.f32.mrb[0].mxu0
        %1350 = vmatprep.mubr.f32.mxu0 0.0
        %1351 = vmatmul.mubr.f32.gmra.mrb[0].mxu0 %v1092
        %v1352 = vpop.f32.mrb[0].mxu0
        %v1353 = vadd.f32 0.0, %v1352
        %v1354 = vpop.f32.mrb[0].mxu0
        %1355 = vmatprep.mubr.f32.mxu0 0.0
        %1356 = vmatmul.mubr.f32.gmra.mrb[0].mxu0 %v1094
        %v1357 = vpop.f32.mrb[0].mxu0
        %v1358 = vadd.f32 0.0, %v1357
        %v1359 = vpop.f32.mrb[0].mxu0
        %1360 = vmatprep.mubr.f32.mxu0 0.0
        %1361 = vmatmul.mubr.f32.gmra.mrb[0].mxu0 %v1096
        %v1362 = vpop.f32.mrb[0].mxu0
        %v1363 = vadd.f32 0.0, %v1362
        %v1364 = vpop.f32.mrb[0].mxu0
        %1365 = vmatprep.mubr.f32.mxu0 0.0
        %1366 = vmatmul.mubr.f32.gmra.mrb[0].mxu0 %v1098
        %v1367 = vpop.f32.mrb[0].mxu0
        %v1368 = vadd.f32 0.0, %v1367
        %v1369 = vpop.f32.mrb[0].mxu0
        %1370 = vmatprep.mubr.f32.mxu0 0.0
        %1371 = vmatmul.mubr.f32.gmra.mrb[0].mxu0 %v1100
        %v1372 = vpop.f32.mrb[0].mxu0
        %v1373 = vadd.f32 0.0, %v1372
        %v1374 = vpop.f32.mrb[0].mxu0
        %1375 = vmatprep.mubr.f32.mxu0 0.0
        %1376 = vmatmul.mubr.f32.gmra.mrb[0].mxu0 %v1102
        %v1377 = vpop.f32.mrb[0].mxu0
        %v1378 = vadd.f32 0.0, %v1377
        %v1379 = vpop.f32.mrb[0].mxu0
        %1380 = vmatprep.mubr.f32.mxu0 0.0
        %1381 = vmatmul.mubr.f32.gmra.mrb[0].mxu0 %v1104
        %v1382 = vpop.f32.mrb[0].mxu0
        %v1383 = vadd.f32 0.0, %v1382
        %v1384 = vpop.f32.mrb[0].mxu0
        %1385 = vmatprep.mubr.f32.mxu0 0.0
        %1386 = vmatmul.mubr.f32.gmra.mrb[0].mxu0 %v1106
        %v1387 = vpop.f32.mrb[0].mxu0
        %v1388 = vadd.f32 0.0, %v1387
        %v1389 = vpop.f32.mrb[0].mxu0
        %1390 = vmatprep.mubr.f32.mxu0 0.0
        %1391 = vmatmul.mubr.f32.gmra.mrb[0].mxu0 %v1108
        %v1392 = vpop.f32.mrb[0].mxu0
        %v1393 = vadd.f32 0.0, %v1392
        %v1394 = vpop.f32.mrb[0].mxu0
        %1395 = vmatprep.mubr.f32.mxu0 0.0
        %1396 = vmatmul.mubr.f32.gmra.mrb[0].mxu0 %v1110
        %v1397 = vpop.f32.mrb[0].mxu0
        %v1398 = vadd.f32 0.0, %v1397
        %v1399 = vpop.f32.mrb[0].mxu0
        %1400 = vmatprep.mubr.f32.mxu0 0.0
        %1401 = vmatmul.mubr.f32.gmra.mrb[0].mxu0 %v1048
        %v1402 = vpop.f32.mrb[0].mxu0
        %v1403 = vadd.f32 0.0, %v1402
        %v1404 = vpop.f32.mrb[0].mxu0
        %1405 = vmatprep.mubr.f32.mxu0 0.0
        %1406 = vmatmul.mubr.f32.gmra.mrb[0].mxu0 %v1050
        %v1407 = vpop.f32.mrb[0].mxu0
        %v1408 = vadd.f32 0.0, %v1407
        %v1409 = vpop.f32.mrb[0].mxu0
        %1410 = vmatprep.mubr.f32.mxu0 0.0
        %1411 = vmatmul.mubr.f32.gmra.mrb[0].mxu0 %v1112
        %v1412 = vpop.f32.mrb[0].mxu0
        %v1413 = vadd.f32 0.0, %v1412
        %v1414 = vpop.f32.mrb[0].mxu0
        %1415 = vmatprep.mubr.f32.mxu0 0.0
        %1416 = vmatmul.mubr.f32.gmra.mrb[0].mxu0 %v1114
        %v1417 = vpop.f32.mrb[0].mxu0
        %v1418 = vadd.f32 0.0, %v1417
        %v1419 = vpop.f32.mrb[0].mxu0
        %1420 = vmatprep.mubr.f32.mxu0 0.0
        %1421 = vmatmul.mubr.f32.gmra.mrb[0].mxu0 %v1116
        %v1422 = vpop.f32.mrb[0].mxu0
        %v1423 = vadd.f32 0.0, %v1422
        %v1424 = vpop.f32.mrb[0].mxu0
        %1425 = vmatprep.mubr.f32.mxu0 0.0
        %1426 = vmatmul.mubr.f32.gmra.mrb[0].mxu0 %v1118
        %v1427 = vpop.f32.mrb[0].mxu0
        %v1428 = vadd.f32 0.0, %v1427
        %v1429 = vpop.f32.mrb[0].mxu0
        %1430 = vmatprep.mubr.f32.mxu0 0.0
        %1431 = vmatmul.mubr.f32.gmra.mrb[0].mxu0 %v1120
        %v1432 = vpop.f32.mrb[0].mxu0
        %v1433 = vadd.f32 0.0, %v1432
        %v1434 = vpop.f32.mrb[0].mxu0
        %1435 = vmatprep.mubr.f32.mxu0 0.0
        %1436 = vmatmul.mubr.f32.gmra.mrb[0].mxu0 %v1122
        %v1437 = vpop.f32.mrb[0].mxu0
        %v1438 = vadd.f32 0.0, %v1437
        %v1439 = vpop.f32.mrb[0].mxu0
        %1440 = vmatprep.mubr.f32.mxu0 0.0
        %1441 = vmatmul.mubr.f32.gmra.mrb[0].mxu0 %v1124
        %v1442 = vpop.f32.mrb[0].mxu0
        %v1443 = vadd.f32 0.0, %v1442
        %v1444 = vpop.f32.mrb[0].mxu0
        %1445 = vmatprep.mubr.f32.mxu0 0.0
        %1446 = vmatmul.mubr.f32.gmra.mrb[0].mxu0 %v1126
        %v1447 = vpop.f32.mrb[0].mxu0
        %v1448 = vadd.f32 0.0, %v1447
        %v1449 = vpop.f32.mrb[0].mxu0
        %1450 = vmatprep.mubr.f32.mxu0 0.0
        %1451 = vmatmul.mubr.f32.gmra.mrb[0].mxu0 %v1128
        %v1452 = vpop.f32.mrb[0].mxu0
        %v1453 = vadd.f32 0.0, %v1452
        %v1454 = vpop.f32.mrb[0].mxu0
        %1455 = vmatprep.mubr.f32.mxu0 0.0
        %1456 = vmatmul.mubr.f32.gmra.mrb[0].mxu0 %v1130
        %v1457 = vpop.f32.mrb[0].mxu0
        %v1458 = vadd.f32 0.0, %v1457
        %v1459 = vpop.f32.mrb[0].mxu0
        %1460 = vmatprep.mubr.f32.mxu0 0.0
        %1461 = vmatmul.mubr.f32.gmra.mrb[0].mxu0 %v1132
        %v1462 = vpop.f32.mrb[0].mxu0
        %v1463 = vadd.f32 0.0, %v1462
        %v1464 = vpop.f32.mrb[0].mxu0
        %1465 = vmatprep.mubr.f32.mxu0 0.0
        %1466 = vmatmul.mubr.f32.gmra.mrb[0].mxu0 %v1134
        %v1467 = vpop.f32.mrb[0].mxu0
        %v1468 = vadd.f32 0.0, %v1467
        %v1469 = vpop.f32.mrb[0].mxu0
        %1470 = vmatprep.mubr.f32.mxu0 0.0
        %1471 = vmatmul.mubr.f32.gmra.mrb[0].mxu0 %v1136
        %v1472 = vpop.f32.mrb[0].mxu0
        %v1473 = vadd.f32 0.0, %v1472
        %v1474 = vpop.f32.mrb[0].mxu0
        %1475 = vmatprep.mubr.f32.mxu0 0.0
        %1476 = vmatmul.mubr.f32.gmra.mrb[0].mxu0 %v1138
        %v1477 = vpop.f32.mrb[0].mxu0
        %v1478 = vadd.f32 0.0, %v1477
        %v1479 = vpop.f32.mrb[0].mxu0
        %1480 = vmatprep.mubr.f32.mxu0 0.0
        %1481 = vmatmul.mubr.f32.gmra.mrb[0].mxu0 %v1140
        %v1482 = vpop.f32.mrb[0].mxu0
        %v1483 = vadd.f32 0.0, %v1482
        %v1484 = vpop.f32.mrb[0].mxu0
        %1485 = vmatprep.mubr.f32.mxu0 0.0
        %1486 = vmatmul.mubr.f32.gmra.mrb[0].mxu0 %v1142
        %v1487 = vpop.f32.mrb[0].mxu0
        %v1488 = vadd.f32 0.0, %v1487
        %v1489 = vpop.f32.mrb[0].mxu0
        %1490 = vmatprep.mubr.f32.mxu0 0.0
        %1491 = vmatmul.mubr.f32.gmra.mrb[0].mxu0 %v1144
        %v1492 = vpop.f32.mrb[0].mxu0
        %v1493 = vadd.f32 0.0, %v1492
        %v1494 = vpop.f32.mrb[0].mxu0
        %1495 = vmatprep.mubr.f32.mxu0 0.0
        %1496 = vmatmul.mubr.f32.gmra.mrb[0].mxu0 %v1146
        %v1497 = vpop.f32.mrb[0].mxu0
        %v1498 = vadd.f32 0.0, %v1497
        %v1499 = vpop.f32.mrb[0].mxu0
        %1500 = vmatprep.mubr.f32.mxu0 0.0
        %1501 = vmatmul.mubr.f32.gmra.mrb[0].mxu0 %v1148
        %v1502 = vpop.f32.mrb[0].mxu0
        %v1503 = vadd.f32 0.0, %v1502
        %v1504 = vpop.f32.mrb[0].mxu0
        %1505 = vmatprep.mubr.f32.mxu0 0.0
        %1506 = vmatmul.mubr.f32.gmra.mrb[0].mxu0 %v1150
        %v1507 = vpop.f32.mrb[0].mxu0
        %v1508 = vadd.f32 0.0, %v1507
        %v1509 = vpop.f32.mrb[0].mxu0
        %1510 = vmatprep.mubr.f32.mxu0 0.0
        %1511 = vmatmul.mubr.f32.gmra.mrb[0].mxu0 %v1152
        %v1512 = vpop.f32.mrb[0].mxu0
        %v1513 = vadd.f32 0.0, %v1512
        %v1514 = vpop.f32.mrb[0].mxu0
        %1515 = vmatprep.mubr.f32.mxu0 0.0
        %1516 = vmatmul.mubr.f32.gmra.mrb[0].mxu0 %v1154
        %v1517 = vpop.f32.mrb[0].mxu0
        %v1518 = vadd.f32 0.0, %v1517
        %v1519 = vpop.f32.mrb[0].mxu0
        %1520 = vmatprep.mubr.f32.mxu0 0.0
        %1521 = vmatmul.mubr.f32.gmra.mrb[0].mxu0 %v1156
        %v1522 = vpop.f32.mrb[0].mxu0
        %v1523 = vadd.f32 0.0, %v1522
        %v1524 = vpop.f32.mrb[0].mxu0
        %1525 = vmatprep.mubr.f32.mxu0 0.0
        %1526 = vmatmul.mubr.f32.gmra.mrb[0].mxu0 %v1158
        %v1527 = vpop.f32.mrb[0].mxu0
        %v1528 = vadd.f32 0.0, %v1527
        %v1529 = vpop.f32.mrb[0].mxu0
        %1530 = vmatprep.mubr.f32.mxu0 0.0
        %1531 = vmatmul.mubr.f32.gmra.mrb[0].mxu0 %v1160
        %v1532 = vpop.f32.mrb[0].mxu0
        %v1533 = vadd.f32 0.0, %v1532
        %v1534 = vpop.f32.mrb[0].mxu0
        %1535 = vmatprep.mubr.f32.mxu0 0.0
        %1536 = vmatmul.mubr.f32.gmra.mrb[0].mxu0 %v1162
        %v1537 = vpop.f32.mrb[0].mxu0
        %v1538 = vadd.f32 0.0, %v1537
        %v1539 = vpop.f32.mrb[0].mxu0
        %1540 = vmatprep.mubr.f32.mxu0 0.0
        %1541 = vmatmul.mubr.f32.gmra.mrb[0].mxu0 %v1164
        %v1542 = vpop.f32.mrb[0].mxu0
        %v1543 = vadd.f32 0.0, %v1542
        %v1544 = vpop.f32.mrb[0].mxu0
        %1545 = vmatprep.mubr.f32.mxu0 0.0
        %1546 = vmatmul.mubr.f32.gmra.mrb[0].mxu0 %v1166
        %v1547 = vpop.f32.mrb[0].mxu0
        %v1548 = vadd.f32 0.0, %v1547
        %v1549 = vpop.f32.mrb[0].mxu0
        %1550 = vmatprep.mubr.f32.mxu0 0.0
        %1551 = vmatmul.mubr.f32.gmra.mrb[0].mxu0 %v1168
        %v1552 = vpop.f32.mrb[0].mxu0
        %v1553 = vadd.f32 0.0, %v1552
        %v1554 = vpop.f32.mrb[0].mxu0
        %1555 = vmatprep.mubr.f32.mxu0 0.0
        %1556 = vmatmul.mubr.f32.gmra.mrb[0].mxu0 %v1170
        %v1557 = vpop.f32.mrb[0].mxu0
        %v1558 = vadd.f32 0.0, %v1557
        %v1559 = vpop.f32.mrb[0].mxu0
        %1560 = vdwg.mxu0
        %v1561 = vsel %vm1047, %v760, 0
        %v1563 = vsel %vm1047, %v598, 0
        %v1565 = vsel %vm1047, %v761, 0
        %v1567 = vsel %vm1047, %v601, 0
        %v1569 = vsel %vm1047, %v762, 0
        %v1571 = vsel %vm1047, %v604, 0
        %v1573 = vsel %vm1047, %v763, 0
        %v1575 = vsel %vm1047, %v607, 0
        %v1577 = vsel %vm1047, %v764, 0
        %v1579 = vsel %vm1047, %v610, 0
        %v1581 = vsel %vm1047, %v765, 0
        %v1583 = vsel %vm1047, %v613, 0
        %v1585 = vsel %vm1047, %v766, 0
        %v1587 = vsel %vm1047, %v616, 0
        %v1589 = vsel %vm1047, %v767, 0
        %v1591 = vsel %vm1047, %v619, 0
        %v1593 = vsel %vm1047, %v768, 0
        %v1595 = vsel %vm1047, %v622, 0
        %v1597 = vsel %vm1047, %v769, 0
        %v1599 = vsel %vm1047, %v625, 0
        %v1601 = vsel %vm1047, %v770, 0
        %v1603 = vsel %vm1047, %v628, 0
        %v1605 = vsel %vm1047, %v771, 0
        %v1607 = vsel %vm1047, %v631, 0
        %v1609 = vsel %vm1047, %v772, 0
        %v1611 = vsel %vm1047, %v634, 0
        %v1613 = vsel %vm1047, %v773, 0
        %v1615 = vsel %vm1047, %v637, 0
        %v1617 = vsel %vm1047, %v774, 0
        %v1619 = vsel %vm1047, %v640, 0
        %v1621 = vsel %vm1047, %v775, 0
        %v1623 = vsel %vm1047, %v643, 0
        %v1625 = vsel %vm1047, %v777, 0
        %v1627 = vsel %vm1047, %v649, 0
        %v1629 = vsel %vm1047, %v778, 0
        %v1631 = vsel %vm1047, %v652, 0
        %v1633 = vsel %vm1047, %v779, 0
        %v1635 = vsel %vm1047, %v655, 0
        %v1637 = vsel %vm1047, %v780, 0
        %v1639 = vsel %vm1047, %v658, 0
        %v1641 = vsel %vm1047, %v781, 0
        %v1643 = vsel %vm1047, %v661, 0
        %v1645 = vsel %vm1047, %v782, 0
        %v1647 = vsel %vm1047, %v664, 0
        %v1649 = vsel %vm1047, %v783, 0
        %v1651 = vsel %vm1047, %v667, 0
        %v1653 = vsel %vm1047, %v784, 0
        %v1655 = vsel %vm1047, %v670, 0
        %v1657 = vsel %vm1047, %v785, 0
        %v1659 = vsel %vm1047, %v673, 0
        %v1661 = vsel %vm1047, %v786, 0
        %v1663 = vsel %vm1047, %v676, 0
        %v1665 = vsel %vm1047, %v787, 0
        %v1667 = vsel %vm1047, %v679, 0
        %v1669 = vsel %vm1047, %v788, 0
        %v1671 = vsel %vm1047, %v682, 0
        %v1673 = vsel %vm1047, %v789, 0
        %v1675 = vsel %vm1047, %v685, 0
        %v1677 = vsel %vm1047, %v790, 0
        %v1679 = vsel %vm1047, %v688, 0
        %v1681 = vsel %vm1047, %v791, 0
        %v1683 = vsel %vm1047, %v691, 0
        %v1686 = vsel %vm1172, %v826, 0
        %1688 = vmatprep.subr.mxu0 0.0
        %1689 = vmatpush1.msra.mxu0 %v1686
        %1690 = vmatprep.subr.mxu0 0.0
        %1691 = vmatpush1.msra.mxu0 0.0
        %1692 = vmatprep.subr.mxu0 0.0
        %1693 = vmatpush1.msra.mxu0 0.0
        %1694 = vmatprep.subr.mxu0 0.0
        %1695 = vmatpush1.msra.mxu0 0.0
        %1696 = vmatprep.subr.mxu0 0.0
        %1697 = vmatpush1.msra.mxu0 0.0
        %1698 = vmatprep.subr.mxu0 0.0
        %1699 = vmatpush1.msra.mxu0 0.0
        %1700 = vmatprep.subr.mxu0 0.0
        %1701 = vmatpush1.msra.mxu0 0.0
        %1702 = vmatprep.subr.mxu0 0.0
        %1703 = vmatpush1.msra.mxu0 0.0
        %1704 = vmatprep.subr.mxu0 0.0
        %1705 = vmatpush1.msra.mxu0 0.0
        %1706 = vmatprep.subr.mxu0 0.0
        %1707 = vmatpush1.msra.mxu0 0.0
        %1708 = vmatprep.subr.mxu0 0.0
        %1709 = vmatpush1.msra.mxu0 0.0
        %1710 = vmatprep.subr.mxu0 0.0
        %1711 = vmatpush1.msra.mxu0 0.0
        %1712 = vmatprep.subr.mxu0 0.0
        %1713 = vmatpush1.msra.mxu0 0.0
        %1714 = vmatprep.subr.mxu0 0.0
        %1715 = vmatpush1.msra.mxu0 0.0
        %1716 = vmatprep.subr.mxu0 0.0
        %1717 = vmatpush1.msra.mxu0 0.0
        %1718 = vmatprep.subr.mxu0 0.0
        %1719 = vmatpush1.msra.mxu0 0.0
        %1720 = vmatprep.subr.mxu0 0.0
        %1721 = vmatpush1.msra.mxu0 0.0
        %1722 = vmatprep.subr.mxu0 0.0
        %1723 = vmatpush1.msra.mxu0 0.0
        %1724 = vmatprep.subr.mxu0 0.0
        %1725 = vmatpush1.msra.mxu0 0.0
        %1726 = vmatprep.subr.mxu0 0.0
        %1727 = vmatpush1.msra.mxu0 0.0
        %1728 = vmatprep.subr.mxu0 0.0
        %1729 = vmatpush1.msra.mxu0 0.0
        %1730 = vmatprep.subr.mxu0 0.0
        %1731 = vmatpush1.msra.mxu0 0.0
        %1732 = vmatprep.subr.mxu0 0.0
        %1733 = vmatpush1.msra.mxu0 0.0
        %1734 = vmatprep.subr.mxu0 0.0
        %1735 = vmatpush1.msra.mxu0 0.0
        %1736 = vmatprep.subr.mxu0 0.0
        %1737 = vmatpush1.msra.mxu0 0.0
        %1738 = vmatprep.subr.mxu0 0.0
        %1739 = vmatpush1.msra.mxu0 0.0
        %1740 = vmatprep.subr.mxu0 0.0
        %1741 = vmatpush1.msra.mxu0 0.0
        %1742 = vmatprep.subr.mxu0 0.0
        %1743 = vmatpush1.msra.mxu0 0.0
        %1744 = vmatprep.subr.mxu0 0.0
        %1745 = vmatpush1.msra.mxu0 0.0
        %1746 = vmatprep.subr.mxu0 0.0
        %1747 = vmatpush1.msra.mxu0 0.0
        %1748 = vmatprep.subr.mxu0 0.0
        %1749 = vmatpush1.msra.mxu0 0.0
        %1750 = vmatprep.subr.mxu0 0.0
        %1751 = vmatpush1.msra.mxu0 0.0
        %1752 = vmatprep.mubr.f32.mxu0 0.0
        %1753 = vmatmul.mubr.f32.gmra.mrb[0].mxu0 %v1561
        %v1754 = vpop.f32.mrb[0].mxu0
        %v1755 = vadd.f32 %v1243, %v1754
        %v1756 = vpop.f32.mrb[0].mxu0
        %1757 = vmatprep.mubr.f32.mxu0 0.0
        %1758 = vmatmul.mubr.f32.gmra.mrb[0].mxu0 %v1563
        %v1759 = vpop.f32.mrb[0].mxu0
        %v1760 = vadd.f32 %v1248, %v1759
        %v1761 = vpop.f32.mrb[0].mxu0
        %1762 = vmatprep.mubr.f32.mxu0 0.0
        %1763 = vmatmul.mubr.f32.gmra.mrb[0].mxu0 %v1565
        %v1764 = vpop.f32.mrb[0].mxu0
        %v1765 = vadd.f32 %v1253, %v1764
        %v1766 = vpop.f32.mrb[0].mxu0
        %1767 = vmatprep.mubr.f32.mxu0 0.0
        %1768 = vmatmul.mubr.f32.gmra.mrb[0].mxu0 %v1567
        %v1769 = vpop.f32.mrb[0].mxu0
        %v1770 = vadd.f32 %v1258, %v1769
        %v1771 = vpop.f32.mrb[0].mxu0
        %1772 = vmatprep.mubr.f32.mxu0 0.0
        %1773 = vmatmul.mubr.f32.gmra.mrb[0].mxu0 %v1569
        %v1774 = vpop.f32.mrb[0].mxu0
        %v1775 = vadd.f32 %v1263, %v1774
        %v1776 = vpop.f32.mrb[0].mxu0
        %1777 = vmatprep.mubr.f32.mxu0 0.0
        %1778 = vmatmul.mubr.f32.gmra.mrb[0].mxu0 %v1571
        %v1779 = vpop.f32.mrb[0].mxu0
        %v1780 = vadd.f32 %v1268, %v1779
        %v1781 = vpop.f32.mrb[0].mxu0
        %1782 = vmatprep.mubr.f32.mxu0 0.0
        %1783 = vmatmul.mubr.f32.gmra.mrb[0].mxu0 %v1573
        %v1784 = vpop.f32.mrb[0].mxu0
        %v1785 = vadd.f32 %v1273, %v1784
        %v1786 = vpop.f32.mrb[0].mxu0
        %1787 = vmatprep.mubr.f32.mxu0 0.0
        %1788 = vmatmul.mubr.f32.gmra.mrb[0].mxu0 %v1575
        %v1789 = vpop.f32.mrb[0].mxu0
        %v1790 = vadd.f32 %v1278, %v1789
        %v1791 = vpop.f32.mrb[0].mxu0
        %1792 = vmatprep.mubr.f32.mxu0 0.0
        %1793 = vmatmul.mubr.f32.gmra.mrb[0].mxu0 %v1577
        %v1794 = vpop.f32.mrb[0].mxu0
        %v1795 = vadd.f32 %v1283, %v1794
        %v1796 = vpop.f32.mrb[0].mxu0
        %1797 = vmatprep.mubr.f32.mxu0 0.0
        %1798 = vmatmul.mubr.f32.gmra.mrb[0].mxu0 %v1579
        %v1799 = vpop.f32.mrb[0].mxu0
        %v1800 = vadd.f32 %v1288, %v1799
        %v1801 = vpop.f32.mrb[0].mxu0
        %1802 = vmatprep.mubr.f32.mxu0 0.0
        %1803 = vmatmul.mubr.f32.gmra.mrb[0].mxu0 %v1581
        %v1804 = vpop.f32.mrb[0].mxu0
        %v1805 = vadd.f32 %v1293, %v1804
        %v1806 = vpop.f32.mrb[0].mxu0
        %1807 = vmatprep.mubr.f32.mxu0 0.0
        %1808 = vmatmul.mubr.f32.gmra.mrb[0].mxu0 %v1583
        %v1809 = vpop.f32.mrb[0].mxu0
        %v1810 = vadd.f32 %v1298, %v1809
        %v1811 = vpop.f32.mrb[0].mxu0
        %1812 = vmatprep.mubr.f32.mxu0 0.0
        %1813 = vmatmul.mubr.f32.gmra.mrb[0].mxu0 %v1585
        %v1814 = vpop.f32.mrb[0].mxu0
        %v1815 = vadd.f32 %v1303, %v1814
        %v1816 = vpop.f32.mrb[0].mxu0
        %1817 = vmatprep.mubr.f32.mxu0 0.0
        %1818 = vmatmul.mubr.f32.gmra.mrb[0].mxu0 %v1587
        %v1819 = vpop.f32.mrb[0].mxu0
        %v1820 = vadd.f32 %v1308, %v1819
        %v1821 = vpop.f32.mrb[0].mxu0
        %1822 = vmatprep.mubr.f32.mxu0 0.0
        %1823 = vmatmul.mubr.f32.gmra.mrb[0].mxu0 %v1589
        %v1824 = vpop.f32.mrb[0].mxu0
        %v1825 = vadd.f32 %v1313, %v1824
        %v1826 = vpop.f32.mrb[0].mxu0
        %1827 = vmatprep.mubr.f32.mxu0 0.0
        %1828 = vmatmul.mubr.f32.gmra.mrb[0].mxu0 %v1591
        %v1829 = vpop.f32.mrb[0].mxu0
        %v1830 = vadd.f32 %v1318, %v1829
        %v1831 = vpop.f32.mrb[0].mxu0
        %1832 = vmatprep.mubr.f32.mxu0 0.0
        %1833 = vmatmul.mubr.f32.gmra.mrb[0].mxu0 %v1593
        %v1834 = vpop.f32.mrb[0].mxu0
        %v1835 = vadd.f32 %v1323, %v1834
        %v1836 = vpop.f32.mrb[0].mxu0
        %1837 = vmatprep.mubr.f32.mxu0 0.0
        %1838 = vmatmul.mubr.f32.gmra.mrb[0].mxu0 %v1595
        %v1839 = vpop.f32.mrb[0].mxu0
        %v1840 = vadd.f32 %v1328, %v1839
        %v1841 = vpop.f32.mrb[0].mxu0
        %1842 = vmatprep.mubr.f32.mxu0 0.0
        %1843 = vmatmul.mubr.f32.gmra.mrb[0].mxu0 %v1597
        %v1844 = vpop.f32.mrb[0].mxu0
        %v1845 = vadd.f32 %v1333, %v1844
        %v1846 = vpop.f32.mrb[0].mxu0
        %1847 = vmatprep.mubr.f32.mxu0 0.0
        %1848 = vmatmul.mubr.f32.gmra.mrb[0].mxu0 %v1599
        %v1849 = vpop.f32.mrb[0].mxu0
        %v1850 = vadd.f32 %v1338, %v1849
        %v1851 = vpop.f32.mrb[0].mxu0
        %1852 = vmatprep.mubr.f32.mxu0 0.0
        %1853 = vmatmul.mubr.f32.gmra.mrb[0].mxu0 %v1601
        %v1854 = vpop.f32.mrb[0].mxu0
        %v1855 = vadd.f32 %v1343, %v1854
        %v1856 = vpop.f32.mrb[0].mxu0
        %1857 = vmatprep.mubr.f32.mxu0 0.0
        %1858 = vmatmul.mubr.f32.gmra.mrb[0].mxu0 %v1603
        %v1859 = vpop.f32.mrb[0].mxu0
        %v1860 = vadd.f32 %v1348, %v1859
        %v1861 = vpop.f32.mrb[0].mxu0
        %1862 = vmatprep.mubr.f32.mxu0 0.0
        %1863 = vmatmul.mubr.f32.gmra.mrb[0].mxu0 %v1605
        %v1864 = vpop.f32.mrb[0].mxu0
        %v1865 = vadd.f32 %v1353, %v1864
        %v1866 = vpop.f32.mrb[0].mxu0
        %1867 = vmatprep.mubr.f32.mxu0 0.0
        %1868 = vmatmul.mubr.f32.gmra.mrb[0].mxu0 %v1607
        %v1869 = vpop.f32.mrb[0].mxu0
        %v1870 = vadd.f32 %v1358, %v1869
        %v1871 = vpop.f32.mrb[0].mxu0
        %1872 = vmatprep.mubr.f32.mxu0 0.0
        %1873 = vmatmul.mubr.f32.gmra.mrb[0].mxu0 %v1609
        %v1874 = vpop.f32.mrb[0].mxu0
        %v1875 = vadd.f32 %v1363, %v1874
        %v1876 = vpop.f32.mrb[0].mxu0
        %1877 = vmatprep.mubr.f32.mxu0 0.0
        %1878 = vmatmul.mubr.f32.gmra.mrb[0].mxu0 %v1611
        %v1879 = vpop.f32.mrb[0].mxu0
        %v1880 = vadd.f32 %v1368, %v1879
        %v1881 = vpop.f32.mrb[0].mxu0
        %1882 = vmatprep.mubr.f32.mxu0 0.0
        %1883 = vmatmul.mubr.f32.gmra.mrb[0].mxu0 %v1613
        %v1884 = vpop.f32.mrb[0].mxu0
        %v1885 = vadd.f32 %v1373, %v1884
        %v1886 = vpop.f32.mrb[0].mxu0
        %1887 = vmatprep.mubr.f32.mxu0 0.0
        %1888 = vmatmul.mubr.f32.gmra.mrb[0].mxu0 %v1615
        %v1889 = vpop.f32.mrb[0].mxu0
        %v1890 = vadd.f32 %v1378, %v1889
        %v1891 = vpop.f32.mrb[0].mxu0
        %1892 = vmatprep.mubr.f32.mxu0 0.0
        %1893 = vmatmul.mubr.f32.gmra.mrb[0].mxu0 %v1617
        %v1894 = vpop.f32.mrb[0].mxu0
        %v1895 = vadd.f32 %v1383, %v1894
        %v1896 = vpop.f32.mrb[0].mxu0
        %1897 = vmatprep.mubr.f32.mxu0 0.0
        %1898 = vmatmul.mubr.f32.gmra.mrb[0].mxu0 %v1619
        %v1899 = vpop.f32.mrb[0].mxu0
        %v1900 = vadd.f32 %v1388, %v1899
        %v1901 = vpop.f32.mrb[0].mxu0
        %1902 = vmatprep.mubr.f32.mxu0 0.0
        %1903 = vmatmul.mubr.f32.gmra.mrb[0].mxu0 %v1621
        %v1904 = vpop.f32.mrb[0].mxu0
        %v1905 = vadd.f32 %v1393, %v1904
        %v1906 = vpop.f32.mrb[0].mxu0
        %1907 = vmatprep.mubr.f32.mxu0 0.0
        %1908 = vmatmul.mubr.f32.gmra.mrb[0].mxu0 %v1623
        %v1909 = vpop.f32.mrb[0].mxu0
        %v1910 = vadd.f32 %v1398, %v1909
        %v1911 = vpop.f32.mrb[0].mxu0
        %1912 = vmatprep.mubr.f32.mxu0 0.0
        %1913 = vmatmul.mubr.f32.gmra.mrb[0].mxu0 %v1561
        %v1914 = vpop.f32.mrb[0].mxu0
        %v1915 = vadd.f32 %v1403, %v1914
        %v1916 = vpop.f32.mrb[0].mxu0
        %1917 = vmatprep.mubr.f32.mxu0 0.0
        %1918 = vmatmul.mubr.f32.gmra.mrb[0].mxu0 %v1563
        %v1919 = vpop.f32.mrb[0].mxu0
        %v1920 = vadd.f32 %v1408, %v1919
        %v1921 = vpop.f32.mrb[0].mxu0
        %1922 = vmatprep.mubr.f32.mxu0 0.0
        %1923 = vmatmul.mubr.f32.gmra.mrb[0].mxu0 %v1625
        %v1924 = vpop.f32.mrb[0].mxu0
        %v1925 = vadd.f32 %v1413, %v1924
        %v1926 = vpop.f32.mrb[0].mxu0
        %1927 = vmatprep.mubr.f32.mxu0 0.0
        %1928 = vmatmul.mubr.f32.gmra.mrb[0].mxu0 %v1627
        %v1929 = vpop.f32.mrb[0].mxu0
        %v1930 = vadd.f32 %v1418, %v1929
        %v1931 = vpop.f32.mrb[0].mxu0
        %1932 = vmatprep.mubr.f32.mxu0 0.0
        %1933 = vmatmul.mubr.f32.gmra.mrb[0].mxu0 %v1629
        %v1934 = vpop.f32.mrb[0].mxu0
        %v1935 = vadd.f32 %v1423, %v1934
        %v1936 = vpop.f32.mrb[0].mxu0
        %1937 = vmatprep.mubr.f32.mxu0 0.0
        %1938 = vmatmul.mubr.f32.gmra.mrb[0].mxu0 %v1631
        %v1939 = vpop.f32.mrb[0].mxu0
        %v1940 = vadd.f32 %v1428, %v1939
        %v1941 = vpop.f32.mrb[0].mxu0
        %1942 = vmatprep.mubr.f32.mxu0 0.0
        %1943 = vmatmul.mubr.f32.gmra.mrb[0].mxu0 %v1633
        %v1944 = vpop.f32.mrb[0].mxu0
        %v1945 = vadd.f32 %v1433, %v1944
        %v1946 = vpop.f32.mrb[0].mxu0
        %1947 = vmatprep.mubr.f32.mxu0 0.0
        %1948 = vmatmul.mubr.f32.gmra.mrb[0].mxu0 %v1635
        %v1949 = vpop.f32.mrb[0].mxu0
        %v1950 = vadd.f32 %v1438, %v1949
        %v1951 = vpop.f32.mrb[0].mxu0
        %1952 = vmatprep.mubr.f32.mxu0 0.0
        %1953 = vmatmul.mubr.f32.gmra.mrb[0].mxu0 %v1637
        %v1954 = vpop.f32.mrb[0].mxu0
        %v1955 = vadd.f32 %v1443, %v1954
        %v1956 = vpop.f32.mrb[0].mxu0
        %1957 = vmatprep.mubr.f32.mxu0 0.0
        %1958 = vmatmul.mubr.f32.gmra.mrb[0].mxu0 %v1639
        %v1959 = vpop.f32.mrb[0].mxu0
        %v1960 = vadd.f32 %v1448, %v1959
        %v1961 = vpop.f32.mrb[0].mxu0
        %1962 = vmatprep.mubr.f32.mxu0 0.0
        %1963 = vmatmul.mubr.f32.gmra.mrb[0].mxu0 %v1641
        %v1964 = vpop.f32.mrb[0].mxu0
        %v1965 = vadd.f32 %v1453, %v1964
        %v1966 = vpop.f32.mrb[0].mxu0
        %1967 = vmatprep.mubr.f32.mxu0 0.0
        %1968 = vmatmul.mubr.f32.gmra.mrb[0].mxu0 %v1643
        %v1969 = vpop.f32.mrb[0].mxu0
        %v1970 = vadd.f32 %v1458, %v1969
        %v1971 = vpop.f32.mrb[0].mxu0
        %1972 = vmatprep.mubr.f32.mxu0 0.0
        %1973 = vmatmul.mubr.f32.gmra.mrb[0].mxu0 %v1645
        %v1974 = vpop.f32.mrb[0].mxu0
        %v1975 = vadd.f32 %v1463, %v1974
        %v1976 = vpop.f32.mrb[0].mxu0
        %1977 = vmatprep.mubr.f32.mxu0 0.0
        %1978 = vmatmul.mubr.f32.gmra.mrb[0].mxu0 %v1647
        %v1979 = vpop.f32.mrb[0].mxu0
        %v1980 = vadd.f32 %v1468, %v1979
        %v1981 = vpop.f32.mrb[0].mxu0
        %1982 = vmatprep.mubr.f32.mxu0 0.0
        %1983 = vmatmul.mubr.f32.gmra.mrb[0].mxu0 %v1649
        %v1984 = vpop.f32.mrb[0].mxu0
        %v1985 = vadd.f32 %v1473, %v1984
        %v1986 = vpop.f32.mrb[0].mxu0
        %1987 = vmatprep.mubr.f32.mxu0 0.0
        %1988 = vmatmul.mubr.f32.gmra.mrb[0].mxu0 %v1651
        %v1989 = vpop.f32.mrb[0].mxu0
        %v1990 = vadd.f32 %v1478, %v1989
        %v1991 = vpop.f32.mrb[0].mxu0
        %1992 = vmatprep.mubr.f32.mxu0 0.0
        %1993 = vmatmul.mubr.f32.gmra.mrb[0].mxu0 %v1653
        %v1994 = vpop.f32.mrb[0].mxu0
        %v1995 = vadd.f32 %v1483, %v1994
        %v1996 = vpop.f32.mrb[0].mxu0
        %1997 = vmatprep.mubr.f32.mxu0 0.0
        %1998 = vmatmul.mubr.f32.gmra.mrb[0].mxu0 %v1655
        %v1999 = vpop.f32.mrb[0].mxu0
        %v2000 = vadd.f32 %v1488, %v1999
        %v2001 = vpop.f32.mrb[0].mxu0
        %2002 = vmatprep.mubr.f32.mxu0 0.0
        %2003 = vmatmul.mubr.f32.gmra.mrb[0].mxu0 %v1657
        %v2004 = vpop.f32.mrb[0].mxu0
        %v2005 = vadd.f32 %v1493, %v2004
        %v2006 = vpop.f32.mrb[0].mxu0
        %2007 = vmatprep.mubr.f32.mxu0 0.0
        %2008 = vmatmul.mubr.f32.gmra.mrb[0].mxu0 %v1659
        %v2009 = vpop.f32.mrb[0].mxu0
        %v2010 = vadd.f32 %v1498, %v2009
        %v2011 = vpop.f32.mrb[0].mxu0
        %2012 = vmatprep.mubr.f32.mxu0 0.0
        %2013 = vmatmul.mubr.f32.gmra.mrb[0].mxu0 %v1661
        %v2014 = vpop.f32.mrb[0].mxu0
        %v2015 = vadd.f32 %v1503, %v2014
        %v2016 = vpop.f32.mrb[0].mxu0
        %2017 = vmatprep.mubr.f32.mxu0 0.0
        %2018 = vmatmul.mubr.f32.gmra.mrb[0].mxu0 %v1663
        %v2019 = vpop.f32.mrb[0].mxu0
        %v2020 = vadd.f32 %v1508, %v2019
        %v2021 = vpop.f32.mrb[0].mxu0
        %2022 = vmatprep.mubr.f32.mxu0 0.0
        %2023 = vmatmul.mubr.f32.gmra.mrb[0].mxu0 %v1665
        %v2024 = vpop.f32.mrb[0].mxu0
        %v2025 = vadd.f32 %v1513, %v2024
        %v2026 = vpop.f32.mrb[0].mxu0
        %2027 = vmatprep.mubr.f32.mxu0 0.0
        %2028 = vmatmul.mubr.f32.gmra.mrb[0].mxu0 %v1667
        %v2029 = vpop.f32.mrb[0].mxu0
        %v2030 = vadd.f32 %v1518, %v2029
        %v2031 = vpop.f32.mrb[0].mxu0
        %2032 = vmatprep.mubr.f32.mxu0 0.0
        %2033 = vmatmul.mubr.f32.gmra.mrb[0].mxu0 %v1669
        %v2034 = vpop.f32.mrb[0].mxu0
        %v2035 = vadd.f32 %v1523, %v2034
        %v2036 = vpop.f32.mrb[0].mxu0
        %2037 = vmatprep.mubr.f32.mxu0 0.0
        %2038 = vmatmul.mubr.f32.gmra.mrb[0].mxu0 %v1671
        %v2039 = vpop.f32.mrb[0].mxu0
        %v2040 = vadd.f32 %v1528, %v2039
        %v2041 = vpop.f32.mrb[0].mxu0
        %2042 = vmatprep.mubr.f32.mxu0 0.0
        %2043 = vmatmul.mubr.f32.gmra.mrb[0].mxu0 %v1673
        %v2044 = vpop.f32.mrb[0].mxu0
        %v2045 = vadd.f32 %v1533, %v2044
        %v2046 = vpop.f32.mrb[0].mxu0
        %2047 = vmatprep.mubr.f32.mxu0 0.0
        %2048 = vmatmul.mubr.f32.gmra.mrb[0].mxu0 %v1675
        %v2049 = vpop.f32.mrb[0].mxu0
        %v2050 = vadd.f32 %v1538, %v2049
        %v2051 = vpop.f32.mrb[0].mxu0
        %2052 = vmatprep.mubr.f32.mxu0 0.0
        %2053 = vmatmul.mubr.f32.gmra.mrb[0].mxu0 %v1677
        %v2054 = vpop.f32.mrb[0].mxu0
        %v2055 = vadd.f32 %v1543, %v2054
        %v2056 = vpop.f32.mrb[0].mxu0
        %2057 = vmatprep.mubr.f32.mxu0 0.0
        %2058 = vmatmul.mubr.f32.gmra.mrb[0].mxu0 %v1679
        %v2059 = vpop.f32.mrb[0].mxu0
        %v2060 = vadd.f32 %v1548, %v2059
        %v2061 = vpop.f32.mrb[0].mxu0
        %2062 = vmatprep.mubr.f32.mxu0 0.0
        %2063 = vmatmul.mubr.f32.gmra.mrb[0].mxu0 %v1681
        %v2064 = vpop.f32.mrb[0].mxu0
        %v2065 = vadd.f32 %v1553, %v2064
        %v2066 = vpop.f32.mrb[0].mxu0
        %2067 = vmatprep.mubr.f32.mxu0 0.0
        %2068 = vmatmul.mubr.f32.gmra.mrb[0].mxu0 %v1683
        %v2069 = vpop.f32.mrb[0].mxu0
        %v2070 = vadd.f32 %v1558, %v2069
        %v2071 = vpop.f32.mrb[0].mxu0
        %2072 = vdwg.mxu0
        %vm2073 = vcmask 1045504
        %v2074 = vrot.slane %v760, 2
        %v2075 = vrot.slane %v598, 2
        %v2076 = vsel %vm2073, %v2074, %v2075
        %v2077 = vrot.slane %v793, 2
        %v2078 = vsel %vm2073, %v2075, %v2077
        %v2079 = vrot.slane %v761, 2
        %v2080 = vrot.slane %v601, 2
        %v2081 = vsel %vm2073, %v2079, %v2080
        %v2082 = vrot.slane %v794, 2
        %v2083 = vsel %vm2073, %v2080, %v2082
        %v2084 = vrot.slane %v762, 2
        %v2085 = vrot.slane %v604, 2
        %v2086 = vsel %vm2073, %v2084, %v2085
        %v2087 = vrot.slane %v795, 2
        %v2088 = vsel %vm2073, %v2085, %v2087
        %v2089 = vrot.slane %v763, 2
        %v2090 = vrot.slane %v607, 2
        %v2091 = vsel %vm2073, %v2089, %v2090
        %v2092 = vrot.slane %v796, 2
        %v2093 = vsel %vm2073, %v2090, %v2092
        %v2094 = vrot.slane %v764, 2
        %v2095 = vrot.slane %v610, 2
        %v2096 = vsel %vm2073, %v2094, %v2095
        %v2097 = vrot.slane %v797, 2
        %v2098 = vsel %vm2073, %v2095, %v2097
        %v2099 = vrot.slane %v765, 2
        %v2100 = vrot.slane %v613, 2
        %v2101 = vsel %vm2073, %v2099, %v2100
        %v2102 = vrot.slane %v798, 2
        %v2103 = vsel %vm2073, %v2100, %v2102
        %v2104 = vrot.slane %v766, 2
        %v2105 = vrot.slane %v616, 2
        %v2106 = vsel %vm2073, %v2104, %v2105
        %v2107 = vrot.slane %v799, 2
        %v2108 = vsel %vm2073, %v2105, %v2107
        %v2109 = vrot.slane %v767, 2
        %v2110 = vrot.slane %v619, 2
        %v2111 = vsel %vm2073, %v2109, %v2110
        %v2112 = vrot.slane %v800, 2
        %v2113 = vsel %vm2073, %v2110, %v2112
        %v2114 = vrot.slane %v768, 2
        %v2115 = vrot.slane %v622, 2
        %v2116 = vsel %vm2073, %v2114, %v2115
        %v2117 = vrot.slane %v801, 2
        %v2118 = vsel %vm2073, %v2115, %v2117
        %v2119 = vrot.slane %v769, 2
        %v2120 = vrot.slane %v625, 2
        %v2121 = vsel %vm2073, %v2119, %v2120
        %v2122 = vrot.slane %v802, 2
        %v2123 = vsel %vm2073, %v2120, %v2122
        %v2124 = vrot.slane %v770, 2
        %v2125 = vrot.slane %v628, 2
        %v2126 = vsel %vm2073, %v2124, %v2125
        %v2127 = vrot.slane %v803, 2
        %v2128 = vsel %vm2073, %v2125, %v2127
        %v2129 = vrot.slane %v771, 2
        %v2130 = vrot.slane %v631, 2
        %v2131 = vsel %vm2073, %v2129, %v2130
        %v2132 = vrot.slane %v804, 2
        %v2133 = vsel %vm2073, %v2130, %v2132
        %v2134 = vrot.slane %v772, 2
        %v2135 = vrot.slane %v634, 2
        %v2136 = vsel %vm2073, %v2134, %v2135
        %v2137 = vrot.slane %v805, 2
        %v2138 = vsel %vm2073, %v2135, %v2137
        %v2139 = vrot.slane %v773, 2
        %v2140 = vrot.slane %v637, 2
        %v2141 = vsel %vm2073, %v2139, %v2140
        %v2142 = vrot.slane %v806, 2
        %v2143 = vsel %vm2073, %v2140, %v2142
        %v2144 = vrot.slane %v774, 2
        %v2145 = vrot.slane %v640, 2
        %v2146 = vsel %vm2073, %v2144, %v2145
        %v2147 = vrot.slane %v807, 2
        %v2148 = vsel %vm2073, %v2145, %v2147
        %v2149 = vrot.slane %v775, 2
        %v2150 = vrot.slane %v643, 2
        %v2151 = vsel %vm2073, %v2149, %v2150
        %v2152 = vrot.slane %v808, 2
        %v2153 = vsel %vm2073, %v2150, %v2152
        %v2154 = vrot.slane %v777, 2
        %v2155 = vrot.slane %v649, 2
        %v2156 = vsel %vm2073, %v2154, %v2155
        %v2157 = vrot.slane %v810, 2
        %v2158 = vsel %vm2073, %v2155, %v2157
        %v2159 = vrot.slane %v778, 2
        %v2160 = vrot.slane %v652, 2
        %v2161 = vsel %vm2073, %v2159, %v2160
        %v2162 = vrot.slane %v811, 2
        %v2163 = vsel %vm2073, %v2160, %v2162
        %v2164 = vrot.slane %v779, 2
        %v2165 = vrot.slane %v655, 2
        %v2166 = vsel %vm2073, %v2164, %v2165
        %v2167 = vrot.slane %v812, 2
        %v2168 = vsel %vm2073, %v2165, %v2167
        %v2169 = vrot.slane %v780, 2
        %v2170 = vrot.slane %v658, 2
        %v2171 = vsel %vm2073, %v2169, %v2170
        %v2172 = vrot.slane %v813, 2
        %v2173 = vsel %vm2073, %v2170, %v2172
        %v2174 = vrot.slane %v781, 2
        %v2175 = vrot.slane %v661, 2
        %v2176 = vsel %vm2073, %v2174, %v2175
        %v2177 = vrot.slane %v814, 2
        %v2178 = vsel %vm2073, %v2175, %v2177
        %v2179 = vrot.slane %v782, 2
        %v2180 = vrot.slane %v664, 2
        %v2181 = vsel %vm2073, %v2179, %v2180
        %v2182 = vrot.slane %v815, 2
        %v2183 = vsel %vm2073, %v2180, %v2182
        %v2184 = vrot.slane %v783, 2
        %v2185 = vrot.slane %v667, 2
        %v2186 = vsel %vm2073, %v2184, %v2185
        %v2187 = vrot.slane %v816, 2
        %v2188 = vsel %vm2073, %v2185, %v2187
        %v2189 = vrot.slane %v784, 2
        %v2190 = vrot.slane %v670, 2
        %v2191 = vsel %vm2073, %v2189, %v2190
        %v2192 = vrot.slane %v817, 2
        %v2193 = vsel %vm2073, %v2190, %v2192
        %v2194 = vrot.slane %v785, 2
        %v2195 = vrot.slane %v673, 2
        %v2196 = vsel %vm2073, %v2194, %v2195
        %v2197 = vrot.slane %v818, 2
        %v2198 = vsel %vm2073, %v2195, %v2197
        %v2199 = vrot.slane %v786, 2
        %v2200 = vrot.slane %v676, 2
        %v2201 = vsel %vm2073, %v2199, %v2200
        %v2202 = vrot.slane %v819, 2
        %v2203 = vsel %vm2073, %v2200, %v2202
        %v2204 = vrot.slane %v787, 2
        %v2205 = vrot.slane %v679, 2
        %v2206 = vsel %vm2073, %v2204, %v2205
        %v2207 = vrot.slane %v820, 2
        %v2208 = vsel %vm2073, %v2205, %v2207
        %v2209 = vrot.slane %v788, 2
        %v2210 = vrot.slane %v682, 2
        %v2211 = vsel %vm2073, %v2209, %v2210
        %v2212 = vrot.slane %v821, 2
        %v2213 = vsel %vm2073, %v2210, %v2212
        %v2214 = vrot.slane %v789, 2
        %v2215 = vrot.slane %v685, 2
        %v2216 = vsel %vm2073, %v2214, %v2215
        %v2217 = vrot.slane %v822, 2
        %v2218 = vsel %vm2073, %v2215, %v2217
        %v2219 = vrot.slane %v790, 2
        %v2220 = vrot.slane %v688, 2
        %v2221 = vsel %vm2073, %v2219, %v2220
        %v2222 = vrot.slane %v823, 2
        %v2223 = vsel %vm2073, %v2220, %v2222
        %v2224 = vrot.slane %v791, 2
        %v2225 = vrot.slane %v691, 2
        %v2226 = vsel %vm2073, %v2224, %v2225
        %v2227 = vrot.slane %v824, 2
        %v2228 = vsel %vm2073, %v2225, %v2227
        %s2229 = scalar_lea.vmem %s1, 8
        %v2230 = vld [vmem:[%s2229] sm:$0x7]
        %v2231 = vsel %vm1047, %v2076, 0
        %v2233 = vsel %vm1047, %v2078, 0
        %v2235 = vsel %vm1047, %v2081, 0
        %v2237 = vsel %vm1047, %v2083, 0
        %v2239 = vsel %vm1047, %v2086, 0
        %v2241 = vsel %vm1047, %v2088, 0
        %v2243 = vsel %vm1047, %v2091, 0
        %v2245 = vsel %vm1047, %v2093, 0
        %v2247 = vsel %vm1047, %v2096, 0
        %v2249 = vsel %vm1047, %v2098, 0
        %v2251 = vsel %vm1047, %v2101, 0
        %v2253 = vsel %vm1047, %v2103, 0
        %v2255 = vsel %vm1047, %v2106, 0
        %v2257 = vsel %vm1047, %v2108, 0
        %v2259 = vsel %vm1047, %v2111, 0
        %v2261 = vsel %vm1047, %v2113, 0
        %v2263 = vsel %vm1047, %v2116, 0
        %v2265 = vsel %vm1047, %v2118, 0
        %v2267 = vsel %vm1047, %v2121, 0
        %v2269 = vsel %vm1047, %v2123, 0
        %v2271 = vsel %vm1047, %v2126, 0
        %v2273 = vsel %vm1047, %v2128, 0
        %v2275 = vsel %vm1047, %v2131, 0
        %v2277 = vsel %vm1047, %v2133, 0
        %v2279 = vsel %vm1047, %v2136, 0
        %v2281 = vsel %vm1047, %v2138, 0
        %v2283 = vsel %vm1047, %v2141, 0
        %v2285 = vsel %vm1047, %v2143, 0
        %v2287 = vsel %vm1047, %v2146, 0
        %v2289 = vsel %vm1047, %v2148, 0
        %v2291 = vsel %vm1047, %v2151, 0
        %v2293 = vsel %vm1047, %v2153, 0
        %v2295 = vsel %vm1047, %v2156, 0
        %v2297 = vsel %vm1047, %v2158, 0
        %v2299 = vsel %vm1047, %v2161, 0
        %v2301 = vsel %vm1047, %v2163, 0
        %v2303 = vsel %vm1047, %v2166, 0
        %v2305 = vsel %vm1047, %v2168, 0
        %v2307 = vsel %vm1047, %v2171, 0
        %v2309 = vsel %vm1047, %v2173, 0
        %v2311 = vsel %vm1047, %v2176, 0
        %v2313 = vsel %vm1047, %v2178, 0
        %v2315 = vsel %vm1047, %v2181, 0
        %v2317 = vsel %vm1047, %v2183, 0
        %v2319 = vsel %vm1047, %v2186, 0
        %v2321 = vsel %vm1047, %v2188, 0
        %v2323 = vsel %vm1047, %v2191, 0
        %v2325 = vsel %vm1047, %v2193, 0
        %v2327 = vsel %vm1047, %v2196, 0
        %v2329 = vsel %vm1047, %v2198, 0
        %v2331 = vsel %vm1047, %v2201, 0
        %v2333 = vsel %vm1047, %v2203, 0
        %v2335 = vsel %vm1047, %v2206, 0
        %v2337 = vsel %vm1047, %v2208, 0
        %v2339 = vsel %vm1047, %v2211, 0
        %v2341 = vsel %vm1047, %v2213, 0
        %v2343 = vsel %vm1047, %v2216, 0
        %v2345 = vsel %vm1047, %v2218, 0
        %v2347 = vsel %vm1047, %v2221, 0
        %v2349 = vsel %vm1047, %v2223, 0
        %v2351 = vsel %vm1047, %v2226, 0
        %v2353 = vsel %vm1047, %v2228, 0
        %v2356 = vsel %vm1172, %v2230, 0
        %2358 = vmatprep.subr.mxu0 0.0
        %2359 = vmatpush1.msra.mxu0 %v2356
        %2360 = vmatprep.subr.mxu0 0.0
        %2361 = vmatpush1.msra.mxu0 0.0
        %2362 = vmatprep.subr.mxu0 0.0
        %2363 = vmatpush1.msra.mxu0 0.0
        %2364 = vmatprep.subr.mxu0 0.0
        %2365 = vmatpush1.msra.mxu0 0.0
        %2366 = vmatprep.subr.mxu0 0.0
        %2367 = vmatpush1.msra.mxu0 0.0
        %2368 = vmatprep.subr.mxu0 0.0
        %2369 = vmatpush1.msra.mxu0 0.0
        %2370 = vmatprep.subr.mxu0 0.0
        %2371 = vmatpush1.msra.mxu0 0.0
        %2372 = vmatprep.subr.mxu0 0.0
        %2373 = vmatpush1.msra.mxu0 0.0
        %2374 = vmatprep.subr.mxu0 0.0
        %2375 = vmatpush1.msra.mxu0 0.0
        %2376 = vmatprep.subr.mxu0 0.0
        %2377 = vmatpush1.msra.mxu0 0.0
        %2378 = vmatprep.subr.mxu0 0.0
        %2379 = vmatpush1.msra.mxu0 0.0
        %2380 = vmatprep.subr.mxu0 0.0
        %2381 = vmatpush1.msra.mxu0 0.0
        %2382 = vmatprep.subr.mxu0 0.0
        %2383 = vmatpush1.msra.mxu0 0.0
        %2384 = vmatprep.subr.mxu0 0.0
        %2385 = vmatpush1.msra.mxu0 0.0
        %2386 = vmatprep.subr.mxu0 0.0
        %2387 = vmatpush1.msra.mxu0 0.0
        %2388 = vmatprep.subr.mxu0 0.0
        %2389 = vmatpush1.msra.mxu0 0.0
        %2390 = vmatprep.subr.mxu0 0.0
        %2391 = vmatpush1.msra.mxu0 0.0
        %2392 = vmatprep.subr.mxu0 0.0
        %2393 = vmatpush1.msra.mxu0 0.0
        %2394 = vmatprep.subr.mxu0 0.0
        %2395 = vmatpush1.msra.mxu0 0.0
        %2396 = vmatprep.subr.mxu0 0.0
        %2397 = vmatpush1.msra.mxu0 0.0
        %2398 = vmatprep.subr.mxu0 0.0
        %2399 = vmatpush1.msra.mxu0 0.0
        %2400 = vmatprep.subr.mxu0 0.0
        %2401 = vmatpush1.msra.mxu0 0.0
        %2402 = vmatprep.subr.mxu0 0.0
        %2403 = vmatpush1.msra.mxu0 0.0
        %2404 = vmatprep.subr.mxu0 0.0
        %2405 = vmatpush1.msra.mxu0 0.0
        %2406 = vmatprep.subr.mxu0 0.0
        %2407 = vmatpush1.msra.mxu0 0.0
        %2408 = vmatprep.subr.mxu0 0.0
        %2409 = vmatpush1.msra.mxu0 0.0
        %2410 = vmatprep.subr.mxu0 0.0
        %2411 = vmatpush1.msra.mxu0 0.0
        %2412 = vmatprep.subr.mxu0 0.0
        %2413 = vmatpush1.msra.mxu0 0.0
        %2414 = vmatprep.subr.mxu0 0.0
        %2415 = vmatpush1.msra.mxu0 0.0
        %2416 = vmatprep.subr.mxu0 0.0
        %2417 = vmatpush1.msra.mxu0 0.0
        %2418 = vmatprep.subr.mxu0 0.0
        %2419 = vmatpush1.msra.mxu0 0.0
        %2420 = vmatprep.subr.mxu0 0.0
        %2421 = vmatpush1.msra.mxu0 0.0
        %2422 = vmatprep.mubr.f32.mxu0 0.0
        %2423 = vmatmul.mubr.f32.gmra.mrb[0].mxu0 %v2231
        %v2424 = vpop.f32.mrb[0].mxu0
        %v2425 = vadd.f32 0.0, %v2424
        %v2426 = vpop.f32.mrb[0].mxu0
        %2427 = vmatprep.mubr.f32.mxu0 0.0
        %2428 = vmatmul.mubr.f32.gmra.mrb[0].mxu0 %v2233
        %v2429 = vpop.f32.mrb[0].mxu0
        %v2430 = vadd.f32 0.0, %v2429
        %v2431 = vpop.f32.mrb[0].mxu0
        %2432 = vmatprep.mubr.f32.mxu0 0.0
        %2433 = vmatmul.mubr.f32.gmra.mrb[0].mxu0 %v2235
        %v2434 = vpop.f32.mrb[0].mxu0
        %v2435 = vadd.f32 0.0, %v2434
        %v2436 = vpop.f32.mrb[0].mxu0
        %2437 = vmatprep.mubr.f32.mxu0 0.0
        %2438 = vmatmul.mubr.f32.gmra.mrb[0].mxu0 %v2237
        %v2439 = vpop.f32.mrb[0].mxu0
        %v2440 = vadd.f32 0.0, %v2439
        %v2441 = vpop.f32.mrb[0].mxu0
        %2442 = vmatprep.mubr.f32.mxu0 0.0
        %2443 = vmatmul.mubr.f32.gmra.mrb[0].mxu0 %v2239
        %v2444 = vpop.f32.mrb[0].mxu0
        %v2445 = vadd.f32 0.0, %v2444
        %v2446 = vpop.f32.mrb[0].mxu0
        %2447 = vmatprep.mubr.f32.mxu0 0.0
        %2448 = vmatmul.mubr.f32.gmra.mrb[0].mxu0 %v2241
        %v2449 = vpop.f32.mrb[0].mxu0
        %v2450 = vadd.f32 0.0, %v2449
        %v2451 = vpop.f32.mrb[0].mxu0
        %2452 = vmatprep.mubr.f32.mxu0 0.0
        %2453 = vmatmul.mubr.f32.gmra.mrb[0].mxu0 %v2243
        %v2454 = vpop.f32.mrb[0].mxu0
        %v2455 = vadd.f32 0.0, %v2454
        %v2456 = vpop.f32.mrb[0].mxu0
        %2457 = vmatprep.mubr.f32.mxu0 0.0
        %2458 = vmatmul.mubr.f32.gmra.mrb[0].mxu0 %v2245
        %v2459 = vpop.f32.mrb[0].mxu0
        %v2460 = vadd.f32 0.0, %v2459
        %v2461 = vpop.f32.mrb[0].mxu0
        %2462 = vmatprep.mubr.f32.mxu0 0.0
        %2463 = vmatmul.mubr.f32.gmra.mrb[0].mxu0 %v2247
        %v2464 = vpop.f32.mrb[0].mxu0
        %v2465 = vadd.f32 0.0, %v2464
        %v2466 = vpop.f32.mrb[0].mxu0
        %2467 = vmatprep.mubr.f32.mxu0 0.0
        %2468 = vmatmul.mubr.f32.gmra.mrb[0].mxu0 %v2249
        %v2469 = vpop.f32.mrb[0].mxu0
        %v2470 = vadd.f32 0.0, %v2469
        %v2471 = vpop.f32.mrb[0].mxu0
        %2472 = vmatprep.mubr.f32.mxu0 0.0
        %2473 = vmatmul.mubr.f32.gmra.mrb[0].mxu0 %v2251
        %v2474 = vpop.f32.mrb[0].mxu0
        %v2475 = vadd.f32 0.0, %v2474
        %v2476 = vpop.f32.mrb[0].mxu0
        %2477 = vmatprep.mubr.f32.mxu0 0.0
        %2478 = vmatmul.mubr.f32.gmra.mrb[0].mxu0 %v2253
        %v2479 = vpop.f32.mrb[0].mxu0
        %v2480 = vadd.f32 0.0, %v2479
        %v2481 = vpop.f32.mrb[0].mxu0
        %2482 = vmatprep.mubr.f32.mxu0 0.0
        %2483 = vmatmul.mubr.f32.gmra.mrb[0].mxu0 %v2255
        %v2484 = vpop.f32.mrb[0].mxu0
        %v2485 = vadd.f32 0.0, %v2484
        %v2486 = vpop.f32.mrb[0].mxu0
        %2487 = vmatprep.mubr.f32.mxu0 0.0
        %2488 = vmatmul.mubr.f32.gmra.mrb[0].mxu0 %v2257
        %v2489 = vpop.f32.mrb[0].mxu0
        %v2490 = vadd.f32 0.0, %v2489
        %v2491 = vpop.f32.mrb[0].mxu0
        %2492 = vmatprep.mubr.f32.mxu0 0.0
        %2493 = vmatmul.mubr.f32.gmra.mrb[0].mxu0 %v2259
        %v2494 = vpop.f32.mrb[0].mxu0
        %v2495 = vadd.f32 0.0, %v2494
        %v2496 = vpop.f32.mrb[0].mxu0
        %2497 = vmatprep.mubr.f32.mxu0 0.0
        %2498 = vmatmul.mubr.f32.gmra.mrb[0].mxu0 %v2261
        %v2499 = vpop.f32.mrb[0].mxu0
        %v2500 = vadd.f32 0.0, %v2499
        %v2501 = vpop.f32.mrb[0].mxu0
        %2502 = vmatprep.mubr.f32.mxu0 0.0
        %2503 = vmatmul.mubr.f32.gmra.mrb[0].mxu0 %v2263
        %v2504 = vpop.f32.mrb[0].mxu0
        %v2505 = vadd.f32 0.0, %v2504
        %v2506 = vpop.f32.mrb[0].mxu0
        %2507 = vmatprep.mubr.f32.mxu0 0.0
        %2508 = vmatmul.mubr.f32.gmra.mrb[0].mxu0 %v2265
        %v2509 = vpop.f32.mrb[0].mxu0
        %v2510 = vadd.f32 0.0, %v2509
        %v2511 = vpop.f32.mrb[0].mxu0
        %2512 = vmatprep.mubr.f32.mxu0 0.0
        %2513 = vmatmul.mubr.f32.gmra.mrb[0].mxu0 %v2267
        %v2514 = vpop.f32.mrb[0].mxu0
        %v2515 = vadd.f32 0.0, %v2514
        %v2516 = vpop.f32.mrb[0].mxu0
        %2517 = vmatprep.mubr.f32.mxu0 0.0
        %2518 = vmatmul.mubr.f32.gmra.mrb[0].mxu0 %v2269
        %v2519 = vpop.f32.mrb[0].mxu0
        %v2520 = vadd.f32 0.0, %v2519
        %v2521 = vpop.f32.mrb[0].mxu0
        %2522 = vmatprep.mubr.f32.mxu0 0.0
        %2523 = vmatmul.mubr.f32.gmra.mrb[0].mxu0 %v2271
        %v2524 = vpop.f32.mrb[0].mxu0
        %v2525 = vadd.f32 0.0, %v2524
        %v2526 = vpop.f32.mrb[0].mxu0
        %2527 = vmatprep.mubr.f32.mxu0 0.0
        %2528 = vmatmul.mubr.f32.gmra.mrb[0].mxu0 %v2273
        %v2529 = vpop.f32.mrb[0].mxu0
        %v2530 = vadd.f32 0.0, %v2529
        %v2531 = vpop.f32.mrb[0].mxu0
        %2532 = vmatprep.mubr.f32.mxu0 0.0
        %2533 = vmatmul.mubr.f32.gmra.mrb[0].mxu0 %v2275
        %v2534 = vpop.f32.mrb[0].mxu0
        %v2535 = vadd.f32 0.0, %v2534
        %v2536 = vpop.f32.mrb[0].mxu0
        %2537 = vmatprep.mubr.f32.mxu0 0.0
        %2538 = vmatmul.mubr.f32.gmra.mrb[0].mxu0 %v2277
        %v2539 = vpop.f32.mrb[0].mxu0
        %v2540 = vadd.f32 0.0, %v2539
        %v2541 = vpop.f32.mrb[0].mxu0
        %2542 = vmatprep.mubr.f32.mxu0 0.0
        %2543 = vmatmul.mubr.f32.gmra.mrb[0].mxu0 %v2279
        %v2544 = vpop.f32.mrb[0].mxu0
        %v2545 = vadd.f32 0.0, %v2544
        %v2546 = vpop.f32.mrb[0].mxu0
        %2547 = vmatprep.mubr.f32.mxu0 0.0
        %2548 = vmatmul.mubr.f32.gmra.mrb[0].mxu0 %v2281
        %v2549 = vpop.f32.mrb[0].mxu0
        %v2550 = vadd.f32 0.0, %v2549
        %v2551 = vpop.f32.mrb[0].mxu0
        %2552 = vmatprep.mubr.f32.mxu0 0.0
        %2553 = vmatmul.mubr.f32.gmra.mrb[0].mxu0 %v2283
        %v2554 = vpop.f32.mrb[0].mxu0
        %v2555 = vadd.f32 0.0, %v2554
        %v2556 = vpop.f32.mrb[0].mxu0
        %2557 = vmatprep.mubr.f32.mxu0 0.0
        %2558 = vmatmul.mubr.f32.gmra.mrb[0].mxu0 %v2285
        %v2559 = vpop.f32.mrb[0].mxu0
        %v2560 = vadd.f32 0.0, %v2559
        %v2561 = vpop.f32.mrb[0].mxu0
        %2562 = vmatprep.mubr.f32.mxu0 0.0
        %2563 = vmatmul.mubr.f32.gmra.mrb[0].mxu0 %v2287
        %v2564 = vpop.f32.mrb[0].mxu0
        %v2565 = vadd.f32 0.0, %v2564
        %v2566 = vpop.f32.mrb[0].mxu0
        %2567 = vmatprep.mubr.f32.mxu0 0.0
        %2568 = vmatmul.mubr.f32.gmra.mrb[0].mxu0 %v2289
        %v2569 = vpop.f32.mrb[0].mxu0
        %v2570 = vadd.f32 0.0, %v2569
        %v2571 = vpop.f32.mrb[0].mxu0
        %2572 = vmatprep.mubr.f32.mxu0 0.0
        %2573 = vmatmul.mubr.f32.gmra.mrb[0].mxu0 %v2291
        %v2574 = vpop.f32.mrb[0].mxu0
        %v2575 = vadd.f32 0.0, %v2574
        %v2576 = vpop.f32.mrb[0].mxu0
        %2577 = vmatprep.mubr.f32.mxu0 0.0
        %2578 = vmatmul.mubr.f32.gmra.mrb[0].mxu0 %v2293
        %v2579 = vpop.f32.mrb[0].mxu0
        %v2580 = vadd.f32 0.0, %v2579
        %v2581 = vpop.f32.mrb[0].mxu0
        %2582 = vmatprep.mubr.f32.mxu0 0.0
        %2583 = vmatmul.mubr.f32.gmra.mrb[0].mxu0 %v2231
        %v2584 = vpop.f32.mrb[0].mxu0
        %v2585 = vadd.f32 0.0, %v2584
        %v2586 = vpop.f32.mrb[0].mxu0
        %2587 = vmatprep.mubr.f32.mxu0 0.0
        %2588 = vmatmul.mubr.f32.gmra.mrb[0].mxu0 %v2233
        %v2589 = vpop.f32.mrb[0].mxu0
        %v2590 = vadd.f32 0.0, %v2589
        %v2591 = vpop.f32.mrb[0].mxu0
        %2592 = vmatprep.mubr.f32.mxu0 0.0
        %2593 = vmatmul.mubr.f32.gmra.mrb[0].mxu0 %v2295
        %v2594 = vpop.f32.mrb[0].mxu0
        %v2595 = vadd.f32 0.0, %v2594
        %v2596 = vpop.f32.mrb[0].mxu0
        %2597 = vmatprep.mubr.f32.mxu0 0.0
        %2598 = vmatmul.mubr.f32.gmra.mrb[0].mxu0 %v2297
        %v2599 = vpop.f32.mrb[0].mxu0
        %v2600 = vadd.f32 0.0, %v2599
        %v2601 = vpop.f32.mrb[0].mxu0
        %2602 = vmatprep.mubr.f32.mxu0 0.0
        %2603 = vmatmul.mubr.f32.gmra.mrb[0].mxu0 %v2299
        %v2604 = vpop.f32.mrb[0].mxu0
        %v2605 = vadd.f32 0.0, %v2604
        %v2606 = vpop.f32.mrb[0].mxu0
        %2607 = vmatprep.mubr.f32.mxu0 0.0
        %2608 = vmatmul.mubr.f32.gmra.mrb[0].mxu0 %v2301
        %v2609 = vpop.f32.mrb[0].mxu0
        %v2610 = vadd.f32 0.0, %v2609
        %v2611 = vpop.f32.mrb[0].mxu0
        %2612 = vmatprep.mubr.f32.mxu0 0.0
        %2613 = vmatmul.mubr.f32.gmra.mrb[0].mxu0 %v2303
        %v2614 = vpop.f32.mrb[0].mxu0
        %v2615 = vadd.f32 0.0, %v2614
        %v2616 = vpop.f32.mrb[0].mxu0
        %2617 = vmatprep.mubr.f32.mxu0 0.0
        %2618 = vmatmul.mubr.f32.gmra.mrb[0].mxu0 %v2305
        %v2619 = vpop.f32.mrb[0].mxu0
        %v2620 = vadd.f32 0.0, %v2619
        %v2621 = vpop.f32.mrb[0].mxu0
        %2622 = vmatprep.mubr.f32.mxu0 0.0
        %2623 = vmatmul.mubr.f32.gmra.mrb[0].mxu0 %v2307
        %v2624 = vpop.f32.mrb[0].mxu0
        %v2625 = vadd.f32 0.0, %v2624
        %v2626 = vpop.f32.mrb[0].mxu0
        %2627 = vmatprep.mubr.f32.mxu0 0.0
        %2628 = vmatmul.mubr.f32.gmra.mrb[0].mxu0 %v2309
        %v2629 = vpop.f32.mrb[0].mxu0
        %v2630 = vadd.f32 0.0, %v2629
        %v2631 = vpop.f32.mrb[0].mxu0
        %2632 = vmatprep.mubr.f32.mxu0 0.0
        %2633 = vmatmul.mubr.f32.gmra.mrb[0].mxu0 %v2311
        %v2634 = vpop.f32.mrb[0].mxu0
        %v2635 = vadd.f32 0.0, %v2634
        %v2636 = vpop.f32.mrb[0].mxu0
        %2637 = vmatprep.mubr.f32.mxu0 0.0
        %2638 = vmatmul.mubr.f32.gmra.mrb[0].mxu0 %v2313
        %v2639 = vpop.f32.mrb[0].mxu0
        %v2640 = vadd.f32 0.0, %v2639
        %v2641 = vpop.f32.mrb[0].mxu0
        %2642 = vmatprep.mubr.f32.mxu0 0.0
        %2643 = vmatmul.mubr.f32.gmra.mrb[0].mxu0 %v2315
        %v2644 = vpop.f32.mrb[0].mxu0
        %v2645 = vadd.f32 0.0, %v2644
        %v2646 = vpop.f32.mrb[0].mxu0
        %2647 = vmatprep.mubr.f32.mxu0 0.0
        %2648 = vmatmul.mubr.f32.gmra.mrb[0].mxu0 %v2317
        %v2649 = vpop.f32.mrb[0].mxu0
        %v2650 = vadd.f32 0.0, %v2649
        %v2651 = vpop.f32.mrb[0].mxu0
        %2652 = vmatprep.mubr.f32.mxu0 0.0
        %2653 = vmatmul.mubr.f32.gmra.mrb[0].mxu0 %v2319
        %v2654 = vpop.f32.mrb[0].mxu0
        %v2655 = vadd.f32 0.0, %v2654
        %v2656 = vpop.f32.mrb[0].mxu0
        %2657 = vmatprep.mubr.f32.mxu0 0.0
        %2658 = vmatmul.mubr.f32.gmra.mrb[0].mxu0 %v2321
        %v2659 = vpop.f32.mrb[0].mxu0
        %v2660 = vadd.f32 0.0, %v2659
        %v2661 = vpop.f32.mrb[0].mxu0
        %2662 = vmatprep.mubr.f32.mxu0 0.0
        %2663 = vmatmul.mubr.f32.gmra.mrb[0].mxu0 %v2323
        %v2664 = vpop.f32.mrb[0].mxu0
        %v2665 = vadd.f32 0.0, %v2664
        %v2666 = vpop.f32.mrb[0].mxu0
        %2667 = vmatprep.mubr.f32.mxu0 0.0
        %2668 = vmatmul.mubr.f32.gmra.mrb[0].mxu0 %v2325
        %v2669 = vpop.f32.mrb[0].mxu0
        %v2670 = vadd.f32 0.0, %v2669
        %v2671 = vpop.f32.mrb[0].mxu0
        %2672 = vmatprep.mubr.f32.mxu0 0.0
        %2673 = vmatmul.mubr.f32.gmra.mrb[0].mxu0 %v2327
        %v2674 = vpop.f32.mrb[0].mxu0
        %v2675 = vadd.f32 0.0, %v2674
        %v2676 = vpop.f32.mrb[0].mxu0
        %2677 = vmatprep.mubr.f32.mxu0 0.0
        %2678 = vmatmul.mubr.f32.gmra.mrb[0].mxu0 %v2329
        %v2679 = vpop.f32.mrb[0].mxu0
        %v2680 = vadd.f32 0.0, %v2679
        %v2681 = vpop.f32.mrb[0].mxu0
        %2682 = vmatprep.mubr.f32.mxu0 0.0
        %2683 = vmatmul.mubr.f32.gmra.mrb[0].mxu0 %v2331
        %v2684 = vpop.f32.mrb[0].mxu0
        %v2685 = vadd.f32 0.0, %v2684
        %v2686 = vpop.f32.mrb[0].mxu0
        %2687 = vmatprep.mubr.f32.mxu0 0.0
        %2688 = vmatmul.mubr.f32.gmra.mrb[0].mxu0 %v2333
        %v2689 = vpop.f32.mrb[0].mxu0
        %v2690 = vadd.f32 0.0, %v2689
        %v2691 = vpop.f32.mrb[0].mxu0
        %2692 = vmatprep.mubr.f32.mxu0 0.0
        %2693 = vmatmul.mubr.f32.gmra.mrb[0].mxu0 %v2335
        %v2694 = vpop.f32.mrb[0].mxu0
        %v2695 = vadd.f32 0.0, %v2694
        %v2696 = vpop.f32.mrb[0].mxu0
        %2697 = vmatprep.mubr.f32.mxu0 0.0
        %2698 = vmatmul.mubr.f32.gmra.mrb[0].mxu0 %v2337
        %v2699 = vpop.f32.mrb[0].mxu0
        %v2700 = vadd.f32 0.0, %v2699
        %v2701 = vpop.f32.mrb[0].mxu0
        %2702 = vmatprep.mubr.f32.mxu0 0.0
        %2703 = vmatmul.mubr.f32.gmra.mrb[0].mxu0 %v2339
        %v2704 = vpop.f32.mrb[0].mxu0
        %v2705 = vadd.f32 0.0, %v2704
        %v2706 = vpop.f32.mrb[0].mxu0
        %2707 = vmatprep.mubr.f32.mxu0 0.0
        %2708 = vmatmul.mubr.f32.gmra.mrb[0].mxu0 %v2341
        %v2709 = vpop.f32.mrb[0].mxu0
        %v2710 = vadd.f32 0.0, %v2709
        %v2711 = vpop.f32.mrb[0].mxu0
        %2712 = vmatprep.mubr.f32.mxu0 0.0
        %2713 = vmatmul.mubr.f32.gmra.mrb[0].mxu0 %v2343
        %v2714 = vpop.f32.mrb[0].mxu0
        %v2715 = vadd.f32 0.0, %v2714
        %v2716 = vpop.f32.mrb[0].mxu0
        %2717 = vmatprep.mubr.f32.mxu0 0.0
        %2718 = vmatmul.mubr.f32.gmra.mrb[0].mxu0 %v2345
        %v2719 = vpop.f32.mrb[0].mxu0
        %v2720 = vadd.f32 0.0, %v2719
        %v2721 = vpop.f32.mrb[0].mxu0
        %2722 = vmatprep.mubr.f32.mxu0 0.0
        %2723 = vmatmul.mubr.f32.gmra.mrb[0].mxu0 %v2347
        %v2724 = vpop.f32.mrb[0].mxu0
        %v2725 = vadd.f32 0.0, %v2724
        %v2726 = vpop.f32.mrb[0].mxu0
        %2727 = vmatprep.mubr.f32.mxu0 0.0
        %2728 = vmatmul.mubr.f32.gmra.mrb[0].mxu0 %v2349
        %v2729 = vpop.f32.mrb[0].mxu0
        %v2730 = vadd.f32 0.0, %v2729
        %v2731 = vpop.f32.mrb[0].mxu0
        %2732 = vmatprep.mubr.f32.mxu0 0.0
        %2733 = vmatmul.mubr.f32.gmra.mrb[0].mxu0 %v2351
        %v2734 = vpop.f32.mrb[0].mxu0
        %v2735 = vadd.f32 0.0, %v2734
        %v2736 = vpop.f32.mrb[0].mxu0
        %2737 = vmatprep.mubr.f32.mxu0 0.0
        %2738 = vmatmul.mubr.f32.gmra.mrb[0].mxu0 %v2353
        %v2739 = vpop.f32.mrb[0].mxu0
        %v2740 = vadd.f32 0.0, %v2739
        %v2741 = vpop.f32.mrb[0].mxu0
        %2742 = vdwg.mxu0
        %v2743 = vadd.f32 %v1755, %v2425
        %v2744 = vadd.f32 %v1760, %v2430
        %v2745 = vadd.f32 %v1765, %v2435
        %v2746 = vadd.f32 %v1770, %v2440
        %v2747 = vadd.f32 %v1775, %v2445
        %v2748 = vadd.f32 %v1780, %v2450
        %v2749 = vadd.f32 %v1785, %v2455
        %v2750 = vadd.f32 %v1790, %v2460
        %v2751 = vadd.f32 %v1795, %v2465
        %v2752 = vadd.f32 %v1800, %v2470
        %v2753 = vadd.f32 %v1805, %v2475
        %v2754 = vadd.f32 %v1810, %v2480
        %v2755 = vadd.f32 %v1815, %v2485
        %v2756 = vadd.f32 %v1820, %v2490
        %v2757 = vadd.f32 %v1825, %v2495
        %v2758 = vadd.f32 %v1830, %v2500
        %v2759 = vadd.f32 %v1835, %v2505
        %v2760 = vadd.f32 %v1840, %v2510
        %v2761 = vadd.f32 %v1845, %v2515
        %v2762 = vadd.f32 %v1850, %v2520
        %v2763 = vadd.f32 %v1855, %v2525
        %v2764 = vadd.f32 %v1860, %v2530
        %v2765 = vadd.f32 %v1865, %v2535
        %v2766 = vadd.f32 %v1870, %v2540
        %v2767 = vadd.f32 %v1875, %v2545
        %v2768 = vadd.f32 %v1880, %v2550
        %v2769 = vadd.f32 %v1885, %v2555
        %v2770 = vadd.f32 %v1890, %v2560
        %v2771 = vadd.f32 %v1895, %v2565
        %v2772 = vadd.f32 %v1900, %v2570
        %v2773 = vadd.f32 %v1905, %v2575
        %v2774 = vadd.f32 %v1910, %v2580
        %v2775 = vadd.f32 %v1915, %v2585
        %v2776 = vadd.f32 %v1920, %v2590
        %v2777 = vadd.f32 %v1925, %v2595
        %v2778 = vadd.f32 %v1930, %v2600
        %v2779 = vadd.f32 %v1935, %v2605
        %v2780 = vadd.f32 %v1940, %v2610
        %v2781 = vadd.f32 %v1945, %v2615
        %v2782 = vadd.f32 %v1950, %v2620
        %v2783 = vadd.f32 %v1955, %v2625
        %v2784 = vadd.f32 %v1960, %v2630
        %v2785 = vadd.f32 %v1965, %v2635
        %v2786 = vadd.f32 %v1970, %v2640
        %v2787 = vadd.f32 %v1975, %v2645
        %v2788 = vadd.f32 %v1980, %v2650
        %v2789 = vadd.f32 %v1985, %v2655
        %v2790 = vadd.f32 %v1990, %v2660
        %v2791 = vadd.f32 %v1995, %v2665
        %v2792 = vadd.f32 %v2000, %v2670
        %v2793 = vadd.f32 %v2005, %v2675
        %v2794 = vadd.f32 %v2010, %v2680
        %v2795 = vadd.f32 %v2015, %v2685
        %v2796 = vadd.f32 %v2020, %v2690
        %v2797 = vadd.f32 %v2025, %v2695
        %v2798 = vadd.f32 %v2030, %v2700
        %v2799 = vadd.f32 %v2035, %v2705
        %v2800 = vadd.f32 %v2040, %v2710
        %v2801 = vadd.f32 %v2045, %v2715
        %v2802 = vadd.f32 %v2050, %v2720
        %v2803 = vadd.f32 %v2055, %v2725
        %v2804 = vadd.f32 %v2060, %v2730
        %v2805 = vadd.f32 %v2065, %v2735
        %v2806 = vadd.f32 %v2070, %v2740
        %s2807 = scalar_lea.vmem %s1, 12
        %v2808 = vld [vmem:[%s2807] sm:$0x7]
        %v2810 = vsel %vm1047, %v776, 0
        %v2812 = vsel %vm1047, %v646, 0
        %v2815 = vsel %vm1047, %v792, 0
        %v2817 = vsel %vm1047, %v694, 0
        %v2820 = vsel %vm1172, %v2808, 0
        %2822 = vmatprep.subr.mxu0 0.0
        %2823 = vmatpush1.msra.mxu0 %v2820
        %2824 = vmatprep.subr.mxu0 0.0
        %2825 = vmatpush1.msra.mxu0 0.0
        %2826 = vmatprep.subr.mxu0 0.0
        %2827 = vmatpush1.msra.mxu0 0.0
        %2828 = vmatprep.subr.mxu0 0.0
        %2829 = vmatpush1.msra.mxu0 0.0
        %2830 = vmatprep.subr.mxu0 0.0
        %2831 = vmatpush1.msra.mxu0 0.0
        %2832 = vmatprep.subr.mxu0 0.0
        %2833 = vmatpush1.msra.mxu0 0.0
        %2834 = vmatprep.subr.mxu0 0.0
        %2835 = vmatpush1.msra.mxu0 0.0
        %2836 = vmatprep.subr.mxu0 0.0
        %2837 = vmatpush1.msra.mxu0 0.0
        %2838 = vmatprep.subr.mxu0 0.0
        %2839 = vmatpush1.msra.mxu0 0.0
        %2840 = vmatprep.subr.mxu0 0.0
        %2841 = vmatpush1.msra.mxu0 0.0
        %2842 = vmatprep.subr.mxu0 0.0
        %2843 = vmatpush1.msra.mxu0 0.0
        %2844 = vmatprep.subr.mxu0 0.0
        %2845 = vmatpush1.msra.mxu0 0.0
        %2846 = vmatprep.subr.mxu0 0.0
        %2847 = vmatpush1.msra.mxu0 0.0
        %2848 = vmatprep.subr.mxu0 0.0
        %2849 = vmatpush1.msra.mxu0 0.0
        %2850 = vmatprep.subr.mxu0 0.0
        %2851 = vmatpush1.msra.mxu0 0.0
        %2852 = vmatprep.subr.mxu0 0.0
        %2853 = vmatpush1.msra.mxu0 0.0
        %2854 = vmatprep.subr.mxu0 0.0
        %2855 = vmatpush1.msra.mxu0 0.0
        %2856 = vmatprep.subr.mxu0 0.0
        %2857 = vmatpush1.msra.mxu0 0.0
        %2858 = vmatprep.subr.mxu0 0.0
        %2859 = vmatpush1.msra.mxu0 0.0
        %2860 = vmatprep.subr.mxu0 0.0
        %2861 = vmatpush1.msra.mxu0 0.0
        %2862 = vmatprep.subr.mxu0 0.0
        %2863 = vmatpush1.msra.mxu0 0.0
        %2864 = vmatprep.subr.mxu0 0.0
        %2865 = vmatpush1.msra.mxu0 0.0
        %2866 = vmatprep.subr.mxu0 0.0
        %2867 = vmatpush1.msra.mxu0 0.0
        %2868 = vmatprep.subr.mxu0 0.0
        %2869 = vmatpush1.msra.mxu0 0.0
        %2870 = vmatprep.subr.mxu0 0.0
        %2871 = vmatpush1.msra.mxu0 0.0
        %2872 = vmatprep.subr.mxu0 0.0
        %2873 = vmatpush1.msra.mxu0 0.0
        %2874 = vmatprep.subr.mxu0 0.0
        %2875 = vmatpush1.msra.mxu0 0.0
        %2876 = vmatprep.subr.mxu0 0.0
        %2877 = vmatpush1.msra.mxu0 0.0
        %2878 = vmatprep.subr.mxu0 0.0
        %2879 = vmatpush1.msra.mxu0 0.0
        %2880 = vmatprep.subr.mxu0 0.0
        %2881 = vmatpush1.msra.mxu0 0.0
        %2882 = vmatprep.subr.mxu0 0.0
        %2883 = vmatpush1.msra.mxu0 0.0
        %2884 = vmatprep.subr.mxu0 0.0
        %2885 = vmatpush1.msra.mxu0 0.0
        %2886 = vmatprep.mubr.f32.mxu0 0.0
        %2887 = vmatmul.mubr.f32.gmra.mrb[0].mxu0 %v1565
        %v2888 = vpop.f32.mrb[0].mxu0
        %v2889 = vadd.f32 0.0, %v2888
        %v2890 = vpop.f32.mrb[0].mxu0
        %2891 = vmatprep.mubr.f32.mxu0 0.0
        %2892 = vmatmul.mubr.f32.gmra.mrb[0].mxu0 %v1567
        %v2893 = vpop.f32.mrb[0].mxu0
        %v2894 = vadd.f32 0.0, %v2893
        %v2895 = vpop.f32.mrb[0].mxu0
        %2896 = vmatprep.mubr.f32.mxu0 0.0
        %2897 = vmatmul.mubr.f32.gmra.mrb[0].mxu0 %v1569
        %v2898 = vpop.f32.mrb[0].mxu0
        %v2899 = vadd.f32 0.0, %v2898
        %v2900 = vpop.f32.mrb[0].mxu0
        %2901 = vmatprep.mubr.f32.mxu0 0.0
        %2902 = vmatmul.mubr.f32.gmra.mrb[0].mxu0 %v1571
        %v2903 = vpop.f32.mrb[0].mxu0
        %v2904 = vadd.f32 0.0, %v2903
        %v2905 = vpop.f32.mrb[0].mxu0
        %2906 = vmatprep.mubr.f32.mxu0 0.0
        %2907 = vmatmul.mubr.f32.gmra.mrb[0].mxu0 %v1573
        %v2908 = vpop.f32.mrb[0].mxu0
        %v2909 = vadd.f32 0.0, %v2908
        %v2910 = vpop.f32.mrb[0].mxu0
        %2911 = vmatprep.mubr.f32.mxu0 0.0
        %2912 = vmatmul.mubr.f32.gmra.mrb[0].mxu0 %v1575
        %v2913 = vpop.f32.mrb[0].mxu0
        %v2914 = vadd.f32 0.0, %v2913
        %v2915 = vpop.f32.mrb[0].mxu0
        %2916 = vmatprep.mubr.f32.mxu0 0.0
        %2917 = vmatmul.mubr.f32.gmra.mrb[0].mxu0 %v1577
        %v2918 = vpop.f32.mrb[0].mxu0
        %v2919 = vadd.f32 0.0, %v2918
        %v2920 = vpop.f32.mrb[0].mxu0
        %2921 = vmatprep.mubr.f32.mxu0 0.0
        %2922 = vmatmul.mubr.f32.gmra.mrb[0].mxu0 %v1579
        %v2923 = vpop.f32.mrb[0].mxu0
        %v2924 = vadd.f32 0.0, %v2923
        %v2925 = vpop.f32.mrb[0].mxu0
        %2926 = vmatprep.mubr.f32.mxu0 0.0
        %2927 = vmatmul.mubr.f32.gmra.mrb[0].mxu0 %v1581
        %v2928 = vpop.f32.mrb[0].mxu0
        %v2929 = vadd.f32 0.0, %v2928
        %v2930 = vpop.f32.mrb[0].mxu0
        %2931 = vmatprep.mubr.f32.mxu0 0.0
        %2932 = vmatmul.mubr.f32.gmra.mrb[0].mxu0 %v1583
        %v2933 = vpop.f32.mrb[0].mxu0
        %v2934 = vadd.f32 0.0, %v2933
        %v2935 = vpop.f32.mrb[0].mxu0
        %2936 = vmatprep.mubr.f32.mxu0 0.0
        %2937 = vmatmul.mubr.f32.gmra.mrb[0].mxu0 %v1585
        %v2938 = vpop.f32.mrb[0].mxu0
        %v2939 = vadd.f32 0.0, %v2938
        %v2940 = vpop.f32.mrb[0].mxu0
        %2941 = vmatprep.mubr.f32.mxu0 0.0
        %2942 = vmatmul.mubr.f32.gmra.mrb[0].mxu0 %v1587
        %v2943 = vpop.f32.mrb[0].mxu0
        %v2944 = vadd.f32 0.0, %v2943
        %v2945 = vpop.f32.mrb[0].mxu0
        %2946 = vmatprep.mubr.f32.mxu0 0.0
        %2947 = vmatmul.mubr.f32.gmra.mrb[0].mxu0 %v1589
        %v2948 = vpop.f32.mrb[0].mxu0
        %v2949 = vadd.f32 0.0, %v2948
        %v2950 = vpop.f32.mrb[0].mxu0
        %2951 = vmatprep.mubr.f32.mxu0 0.0
        %2952 = vmatmul.mubr.f32.gmra.mrb[0].mxu0 %v1591
        %v2953 = vpop.f32.mrb[0].mxu0
        %v2954 = vadd.f32 0.0, %v2953
        %v2955 = vpop.f32.mrb[0].mxu0
        %2956 = vmatprep.mubr.f32.mxu0 0.0
        %2957 = vmatmul.mubr.f32.gmra.mrb[0].mxu0 %v1593
        %v2958 = vpop.f32.mrb[0].mxu0
        %v2959 = vadd.f32 0.0, %v2958
        %v2960 = vpop.f32.mrb[0].mxu0
        %2961 = vmatprep.mubr.f32.mxu0 0.0
        %2962 = vmatmul.mubr.f32.gmra.mrb[0].mxu0 %v1595
        %v2963 = vpop.f32.mrb[0].mxu0
        %v2964 = vadd.f32 0.0, %v2963
        %v2965 = vpop.f32.mrb[0].mxu0
        %2966 = vmatprep.mubr.f32.mxu0 0.0
        %2967 = vmatmul.mubr.f32.gmra.mrb[0].mxu0 %v1597
        %v2968 = vpop.f32.mrb[0].mxu0
        %v2969 = vadd.f32 0.0, %v2968
        %v2970 = vpop.f32.mrb[0].mxu0
        %2971 = vmatprep.mubr.f32.mxu0 0.0
        %2972 = vmatmul.mubr.f32.gmra.mrb[0].mxu0 %v1599
        %v2973 = vpop.f32.mrb[0].mxu0
        %v2974 = vadd.f32 0.0, %v2973
        %v2975 = vpop.f32.mrb[0].mxu0
        %2976 = vmatprep.mubr.f32.mxu0 0.0
        %2977 = vmatmul.mubr.f32.gmra.mrb[0].mxu0 %v1601
        %v2978 = vpop.f32.mrb[0].mxu0
        %v2979 = vadd.f32 0.0, %v2978
        %v2980 = vpop.f32.mrb[0].mxu0
        %2981 = vmatprep.mubr.f32.mxu0 0.0
        %2982 = vmatmul.mubr.f32.gmra.mrb[0].mxu0 %v1603
        %v2983 = vpop.f32.mrb[0].mxu0
        %v2984 = vadd.f32 0.0, %v2983
        %v2985 = vpop.f32.mrb[0].mxu0
        %2986 = vmatprep.mubr.f32.mxu0 0.0
        %2987 = vmatmul.mubr.f32.gmra.mrb[0].mxu0 %v1605
        %v2988 = vpop.f32.mrb[0].mxu0
        %v2989 = vadd.f32 0.0, %v2988
        %v2990 = vpop.f32.mrb[0].mxu0
        %2991 = vmatprep.mubr.f32.mxu0 0.0
        %2992 = vmatmul.mubr.f32.gmra.mrb[0].mxu0 %v1607
        %v2993 = vpop.f32.mrb[0].mxu0
        %v2994 = vadd.f32 0.0, %v2993
        %v2995 = vpop.f32.mrb[0].mxu0
        %2996 = vmatprep.mubr.f32.mxu0 0.0
        %2997 = vmatmul.mubr.f32.gmra.mrb[0].mxu0 %v1609
        %v2998 = vpop.f32.mrb[0].mxu0
        %v2999 = vadd.f32 0.0, %v2998
        %v3000 = vpop.f32.mrb[0].mxu0
        %3001 = vmatprep.mubr.f32.mxu0 0.0
        %3002 = vmatmul.mubr.f32.gmra.mrb[0].mxu0 %v1611
        %v3003 = vpop.f32.mrb[0].mxu0
        %v3004 = vadd.f32 0.0, %v3003
        %v3005 = vpop.f32.mrb[0].mxu0
        %3006 = vmatprep.mubr.f32.mxu0 0.0
        %3007 = vmatmul.mubr.f32.gmra.mrb[0].mxu0 %v1613
        %v3008 = vpop.f32.mrb[0].mxu0
        %v3009 = vadd.f32 0.0, %v3008
        %v3010 = vpop.f32.mrb[0].mxu0
        %3011 = vmatprep.mubr.f32.mxu0 0.0
        %3012 = vmatmul.mubr.f32.gmra.mrb[0].mxu0 %v1615
        %v3013 = vpop.f32.mrb[0].mxu0
        %v3014 = vadd.f32 0.0, %v3013
        %v3015 = vpop.f32.mrb[0].mxu0
        %3016 = vmatprep.mubr.f32.mxu0 0.0
        %3017 = vmatmul.mubr.f32.gmra.mrb[0].mxu0 %v1617
        %v3018 = vpop.f32.mrb[0].mxu0
        %v3019 = vadd.f32 0.0, %v3018
        %v3020 = vpop.f32.mrb[0].mxu0
        %3021 = vmatprep.mubr.f32.mxu0 0.0
        %3022 = vmatmul.mubr.f32.gmra.mrb[0].mxu0 %v1619
        %v3023 = vpop.f32.mrb[0].mxu0
        %v3024 = vadd.f32 0.0, %v3023
        %v3025 = vpop.f32.mrb[0].mxu0
        %3026 = vmatprep.mubr.f32.mxu0 0.0
        %3027 = vmatmul.mubr.f32.gmra.mrb[0].mxu0 %v1621
        %v3028 = vpop.f32.mrb[0].mxu0
        %v3029 = vadd.f32 0.0, %v3028
        %v3030 = vpop.f32.mrb[0].mxu0
        %3031 = vmatprep.mubr.f32.mxu0 0.0
        %3032 = vmatmul.mubr.f32.gmra.mrb[0].mxu0 %v1623
        %v3033 = vpop.f32.mrb[0].mxu0
        %v3034 = vadd.f32 0.0, %v3033
        %v3035 = vpop.f32.mrb[0].mxu0
        %3036 = vmatprep.mubr.f32.mxu0 0.0
        %3037 = vmatmul.mubr.f32.gmra.mrb[0].mxu0 %v2810
        %v3038 = vpop.f32.mrb[0].mxu0
        %v3039 = vadd.f32 0.0, %v3038
        %v3040 = vpop.f32.mrb[0].mxu0
        %3041 = vmatprep.mubr.f32.mxu0 0.0
        %3042 = vmatmul.mubr.f32.gmra.mrb[0].mxu0 %v2812
        %v3043 = vpop.f32.mrb[0].mxu0
        %v3044 = vadd.f32 0.0, %v3043
        %v3045 = vpop.f32.mrb[0].mxu0
        %3046 = vmatprep.mubr.f32.mxu0 0.0
        %3047 = vmatmul.mubr.f32.gmra.mrb[0].mxu0 %v1625
        %v3048 = vpop.f32.mrb[0].mxu0
        %v3049 = vadd.f32 0.0, %v3048
        %v3050 = vpop.f32.mrb[0].mxu0
        %3051 = vmatprep.mubr.f32.mxu0 0.0
        %3052 = vmatmul.mubr.f32.gmra.mrb[0].mxu0 %v1627
        %v3053 = vpop.f32.mrb[0].mxu0
        %v3054 = vadd.f32 0.0, %v3053
        %v3055 = vpop.f32.mrb[0].mxu0
        %3056 = vmatprep.mubr.f32.mxu0 0.0
        %3057 = vmatmul.mubr.f32.gmra.mrb[0].mxu0 %v1629
        %v3058 = vpop.f32.mrb[0].mxu0
        %v3059 = vadd.f32 0.0, %v3058
        %v3060 = vpop.f32.mrb[0].mxu0
        %3061 = vmatprep.mubr.f32.mxu0 0.0
        %3062 = vmatmul.mubr.f32.gmra.mrb[0].mxu0 %v1631
        %v3063 = vpop.f32.mrb[0].mxu0
        %v3064 = vadd.f32 0.0, %v3063
        %v3065 = vpop.f32.mrb[0].mxu0
        %3066 = vmatprep.mubr.f32.mxu0 0.0
        %3067 = vmatmul.mubr.f32.gmra.mrb[0].mxu0 %v1633
        %v3068 = vpop.f32.mrb[0].mxu0
        %v3069 = vadd.f32 0.0, %v3068
        %v3070 = vpop.f32.mrb[0].mxu0
        %3071 = vmatprep.mubr.f32.mxu0 0.0
        %3072 = vmatmul.mubr.f32.gmra.mrb[0].mxu0 %v1635
        %v3073 = vpop.f32.mrb[0].mxu0
        %v3074 = vadd.f32 0.0, %v3073
        %v3075 = vpop.f32.mrb[0].mxu0
        %3076 = vmatprep.mubr.f32.mxu0 0.0
        %3077 = vmatmul.mubr.f32.gmra.mrb[0].mxu0 %v1637
        %v3078 = vpop.f32.mrb[0].mxu0
        %v3079 = vadd.f32 0.0, %v3078
        %v3080 = vpop.f32.mrb[0].mxu0
        %3081 = vmatprep.mubr.f32.mxu0 0.0
        %3082 = vmatmul.mubr.f32.gmra.mrb[0].mxu0 %v1639
        %v3083 = vpop.f32.mrb[0].mxu0
        %v3084 = vadd.f32 0.0, %v3083
        %v3085 = vpop.f32.mrb[0].mxu0
        %3086 = vmatprep.mubr.f32.mxu0 0.0
        %3087 = vmatmul.mubr.f32.gmra.mrb[0].mxu0 %v1641
        %v3088 = vpop.f32.mrb[0].mxu0
        %v3089 = vadd.f32 0.0, %v3088
        %v3090 = vpop.f32.mrb[0].mxu0
        %3091 = vmatprep.mubr.f32.mxu0 0.0
        %3092 = vmatmul.mubr.f32.gmra.mrb[0].mxu0 %v1643
        %v3093 = vpop.f32.mrb[0].mxu0
        %v3094 = vadd.f32 0.0, %v3093
        %v3095 = vpop.f32.mrb[0].mxu0
        %3096 = vmatprep.mubr.f32.mxu0 0.0
        %3097 = vmatmul.mubr.f32.gmra.mrb[0].mxu0 %v1645
        %v3098 = vpop.f32.mrb[0].mxu0
        %v3099 = vadd.f32 0.0, %v3098
        %v3100 = vpop.f32.mrb[0].mxu0
        %3101 = vmatprep.mubr.f32.mxu0 0.0
        %3102 = vmatmul.mubr.f32.gmra.mrb[0].mxu0 %v1647
        %v3103 = vpop.f32.mrb[0].mxu0
        %v3104 = vadd.f32 0.0, %v3103
        %v3105 = vpop.f32.mrb[0].mxu0
        %3106 = vmatprep.mubr.f32.mxu0 0.0
        %3107 = vmatmul.mubr.f32.gmra.mrb[0].mxu0 %v1649
        %v3108 = vpop.f32.mrb[0].mxu0
        %v3109 = vadd.f32 0.0, %v3108
        %v3110 = vpop.f32.mrb[0].mxu0
        %3111 = vmatprep.mubr.f32.mxu0 0.0
        %3112 = vmatmul.mubr.f32.gmra.mrb[0].mxu0 %v1651
        %v3113 = vpop.f32.mrb[0].mxu0
        %v3114 = vadd.f32 0.0, %v3113
        %v3115 = vpop.f32.mrb[0].mxu0
        %3116 = vmatprep.mubr.f32.mxu0 0.0
        %3117 = vmatmul.mubr.f32.gmra.mrb[0].mxu0 %v1653
        %v3118 = vpop.f32.mrb[0].mxu0
        %v3119 = vadd.f32 0.0, %v3118
        %v3120 = vpop.f32.mrb[0].mxu0
        %3121 = vmatprep.mubr.f32.mxu0 0.0
        %3122 = vmatmul.mubr.f32.gmra.mrb[0].mxu0 %v1655
        %v3123 = vpop.f32.mrb[0].mxu0
        %v3124 = vadd.f32 0.0, %v3123
        %v3125 = vpop.f32.mrb[0].mxu0
        %3126 = vmatprep.mubr.f32.mxu0 0.0
        %3127 = vmatmul.mubr.f32.gmra.mrb[0].mxu0 %v1657
        %v3128 = vpop.f32.mrb[0].mxu0
        %v3129 = vadd.f32 0.0, %v3128
        %v3130 = vpop.f32.mrb[0].mxu0
        %3131 = vmatprep.mubr.f32.mxu0 0.0
        %3132 = vmatmul.mubr.f32.gmra.mrb[0].mxu0 %v1659
        %v3133 = vpop.f32.mrb[0].mxu0
        %v3134 = vadd.f32 0.0, %v3133
        %v3135 = vpop.f32.mrb[0].mxu0
        %3136 = vmatprep.mubr.f32.mxu0 0.0
        %3137 = vmatmul.mubr.f32.gmra.mrb[0].mxu0 %v1661
        %v3138 = vpop.f32.mrb[0].mxu0
        %v3139 = vadd.f32 0.0, %v3138
        %v3140 = vpop.f32.mrb[0].mxu0
        %3141 = vmatprep.mubr.f32.mxu0 0.0
        %3142 = vmatmul.mubr.f32.gmra.mrb[0].mxu0 %v1663
        %v3143 = vpop.f32.mrb[0].mxu0
        %v3144 = vadd.f32 0.0, %v3143
        %v3145 = vpop.f32.mrb[0].mxu0
        %3146 = vmatprep.mubr.f32.mxu0 0.0
        %3147 = vmatmul.mubr.f32.gmra.mrb[0].mxu0 %v1665
        %v3148 = vpop.f32.mrb[0].mxu0
        %v3149 = vadd.f32 0.0, %v3148
        %v3150 = vpop.f32.mrb[0].mxu0
        %3151 = vmatprep.mubr.f32.mxu0 0.0
        %3152 = vmatmul.mubr.f32.gmra.mrb[0].mxu0 %v1667
        %v3153 = vpop.f32.mrb[0].mxu0
        %v3154 = vadd.f32 0.0, %v3153
        %v3155 = vpop.f32.mrb[0].mxu0
        %3156 = vmatprep.mubr.f32.mxu0 0.0
        %3157 = vmatmul.mubr.f32.gmra.mrb[0].mxu0 %v1669
        %v3158 = vpop.f32.mrb[0].mxu0
        %v3159 = vadd.f32 0.0, %v3158
        %v3160 = vpop.f32.mrb[0].mxu0
        %3161 = vmatprep.mubr.f32.mxu0 0.0
        %3162 = vmatmul.mubr.f32.gmra.mrb[0].mxu0 %v1671
        %v3163 = vpop.f32.mrb[0].mxu0
        %v3164 = vadd.f32 0.0, %v3163
        %v3165 = vpop.f32.mrb[0].mxu0
        %3166 = vmatprep.mubr.f32.mxu0 0.0
        %3167 = vmatmul.mubr.f32.gmra.mrb[0].mxu0 %v1673
        %v3168 = vpop.f32.mrb[0].mxu0
        %v3169 = vadd.f32 0.0, %v3168
        %v3170 = vpop.f32.mrb[0].mxu0
        %3171 = vmatprep.mubr.f32.mxu0 0.0
        %3172 = vmatmul.mubr.f32.gmra.mrb[0].mxu0 %v1675
        %v3173 = vpop.f32.mrb[0].mxu0
        %v3174 = vadd.f32 0.0, %v3173
        %v3175 = vpop.f32.mrb[0].mxu0
        %3176 = vmatprep.mubr.f32.mxu0 0.0
        %3177 = vmatmul.mubr.f32.gmra.mrb[0].mxu0 %v1677
        %v3178 = vpop.f32.mrb[0].mxu0
        %v3179 = vadd.f32 0.0, %v3178
        %v3180 = vpop.f32.mrb[0].mxu0
        %3181 = vmatprep.mubr.f32.mxu0 0.0
        %3182 = vmatmul.mubr.f32.gmra.mrb[0].mxu0 %v1679
        %v3183 = vpop.f32.mrb[0].mxu0
        %v3184 = vadd.f32 0.0, %v3183
        %v3185 = vpop.f32.mrb[0].mxu0
        %3186 = vmatprep.mubr.f32.mxu0 0.0
        %3187 = vmatmul.mubr.f32.gmra.mrb[0].mxu0 %v1681
        %v3188 = vpop.f32.mrb[0].mxu0
        %v3189 = vadd.f32 0.0, %v3188
        %v3190 = vpop.f32.mrb[0].mxu0
        %3191 = vmatprep.mubr.f32.mxu0 0.0
        %3192 = vmatmul.mubr.f32.gmra.mrb[0].mxu0 %v1683
        %v3193 = vpop.f32.mrb[0].mxu0
        %v3194 = vadd.f32 0.0, %v3193
        %v3195 = vpop.f32.mrb[0].mxu0
        %3196 = vmatprep.mubr.f32.mxu0 0.0
        %3197 = vmatmul.mubr.f32.gmra.mrb[0].mxu0 %v2815
        %v3198 = vpop.f32.mrb[0].mxu0
        %v3199 = vadd.f32 0.0, %v3198
        %v3200 = vpop.f32.mrb[0].mxu0
        %3201 = vmatprep.mubr.f32.mxu0 0.0
        %3202 = vmatmul.mubr.f32.gmra.mrb[0].mxu0 %v2817
        %v3203 = vpop.f32.mrb[0].mxu0
        %v3204 = vadd.f32 0.0, %v3203
        %v3205 = vpop.f32.mrb[0].mxu0
        %3206 = vdwg.mxu0
        %v3207 = vadd.f32 %v2743, %v2889
        %v3208 = vadd.f32 %v2744, %v2894
        %v3209 = vadd.f32 %v2745, %v2899
        %v3210 = vadd.f32 %v2746, %v2904
        %v3211 = vadd.f32 %v2747, %v2909
        %v3212 = vadd.f32 %v2748, %v2914
        %v3213 = vadd.f32 %v2749, %v2919
        %v3214 = vadd.f32 %v2750, %v2924
        %v3215 = vadd.f32 %v2751, %v2929
        %v3216 = vadd.f32 %v2752, %v2934
        %v3217 = vadd.f32 %v2753, %v2939
        %v3218 = vadd.f32 %v2754, %v2944
        %v3219 = vadd.f32 %v2755, %v2949
        %v3220 = vadd.f32 %v2756, %v2954
        %v3221 = vadd.f32 %v2757, %v2959
        %v3222 = vadd.f32 %v2758, %v2964
        %v3223 = vadd.f32 %v2759, %v2969
        %v3224 = vadd.f32 %v2760, %v2974
        %v3225 = vadd.f32 %v2761, %v2979
        %v3226 = vadd.f32 %v2762, %v2984
        %v3227 = vadd.f32 %v2763, %v2989
        %v3228 = vadd.f32 %v2764, %v2994
        %v3229 = vadd.f32 %v2765, %v2999
        %v3230 = vadd.f32 %v2766, %v3004
        %v3231 = vadd.f32 %v2767, %v3009
        %v3232 = vadd.f32 %v2768, %v3014
        %v3233 = vadd.f32 %v2769, %v3019
        %v3234 = vadd.f32 %v2770, %v3024
        %v3235 = vadd.f32 %v2771, %v3029
        %v3236 = vadd.f32 %v2772, %v3034
        %v3237 = vadd.f32 %v2773, %v3039
        %v3238 = vadd.f32 %v2774, %v3044
        %v3239 = vadd.f32 %v2775, %v3049
        %v3240 = vadd.f32 %v2776, %v3054
        %v3241 = vadd.f32 %v2777, %v3059
        %v3242 = vadd.f32 %v2778, %v3064
        %v3243 = vadd.f32 %v2779, %v3069
        %v3244 = vadd.f32 %v2780, %v3074
        %v3245 = vadd.f32 %v2781, %v3079
        %v3246 = vadd.f32 %v2782, %v3084
        %v3247 = vadd.f32 %v2783, %v3089
        %v3248 = vadd.f32 %v2784, %v3094
        %v3249 = vadd.f32 %v2785, %v3099
        %v3250 = vadd.f32 %v2786, %v3104
        %v3251 = vadd.f32 %v2787, %v3109
        %v3252 = vadd.f32 %v2788, %v3114
        %v3253 = vadd.f32 %v2789, %v3119
        %v3254 = vadd.f32 %v2790, %v3124
        %v3255 = vadd.f32 %v2791, %v3129
        %v3256 = vadd.f32 %v2792, %v3134
        %v3257 = vadd.f32 %v2793, %v3139
        %v3258 = vadd.f32 %v2794, %v3144
        %v3259 = vadd.f32 %v2795, %v3149
        %v3260 = vadd.f32 %v2796, %v3154
        %v3261 = vadd.f32 %v2797, %v3159
        %v3262 = vadd.f32 %v2798, %v3164
        %v3263 = vadd.f32 %v2799, %v3169
        %v3264 = vadd.f32 %v2800, %v3174
        %v3265 = vadd.f32 %v2801, %v3179
        %v3266 = vadd.f32 %v2802, %v3184
        %v3267 = vadd.f32 %v2803, %v3189
        %v3268 = vadd.f32 %v2804, %v3194
        %v3269 = vadd.f32 %v2805, %v3199
        %v3270 = vadd.f32 %v2806, %v3204
        %v3273 = vrot.slane %v776, 1
        %v3274 = vrot.slane %v646, 1
        %v3275 = vsel %vm889, %v3273, %v3274
        %v3276 = vrot.slane %v809, 1
        %v3277 = vsel %vm889, %v3274, %v3276
        %v3278 = vrot.slane %v792, 1
        %v3279 = vrot.slane %v694, 1
        %v3280 = vsel %vm889, %v3278, %v3279
        %v3281 = vrot.slane %v825, 1
        %v3282 = vsel %vm889, %v3279, %v3281
        %s3283 = scalar_lea.vmem %s1, 16
        %v3284 = vld [vmem:[%s3283] sm:$0x7]
        %v3285 = vsel %vm1047, %v3275, 0
        %v3287 = vsel %vm1047, %v3277, 0
        %v3289 = vsel %vm1047, %v3280, 0
        %v3291 = vsel %vm1047, %v3282, 0
        %v3294 = vsel %vm1172, %v3284, 0
        %3296 = vmatprep.subr.mxu0 0.0
        %3297 = vmatpush1.msra.mxu0 %v3294
        %3298 = vmatprep.subr.mxu0 0.0
        %3299 = vmatpush1.msra.mxu0 0.0
        %3300 = vmatprep.subr.mxu0 0.0
        %3301 = vmatpush1.msra.mxu0 0.0
        %3302 = vmatprep.subr.mxu0 0.0
        %3303 = vmatpush1.msra.mxu0 0.0
        %3304 = vmatprep.subr.mxu0 0.0
        %3305 = vmatpush1.msra.mxu0 0.0
        %3306 = vmatprep.subr.mxu0 0.0
        %3307 = vmatpush1.msra.mxu0 0.0
        %3308 = vmatprep.subr.mxu0 0.0
        %3309 = vmatpush1.msra.mxu0 0.0
        %3310 = vmatprep.subr.mxu0 0.0
        %3311 = vmatpush1.msra.mxu0 0.0
        %3312 = vmatprep.subr.mxu0 0.0
        %3313 = vmatpush1.msra.mxu0 0.0
        %3314 = vmatprep.subr.mxu0 0.0
        %3315 = vmatpush1.msra.mxu0 0.0
        %3316 = vmatprep.subr.mxu0 0.0
        %3317 = vmatpush1.msra.mxu0 0.0
        %3318 = vmatprep.subr.mxu0 0.0
        %3319 = vmatpush1.msra.mxu0 0.0
        %3320 = vmatprep.subr.mxu0 0.0
        %3321 = vmatpush1.msra.mxu0 0.0
        %3322 = vmatprep.subr.mxu0 0.0
        %3323 = vmatpush1.msra.mxu0 0.0
        %3324 = vmatprep.subr.mxu0 0.0
        %3325 = vmatpush1.msra.mxu0 0.0
        %3326 = vmatprep.subr.mxu0 0.0
        %3327 = vmatpush1.msra.mxu0 0.0
        %3328 = vmatprep.subr.mxu0 0.0
        %3329 = vmatpush1.msra.mxu0 0.0
        %3330 = vmatprep.subr.mxu0 0.0
        %3331 = vmatpush1.msra.mxu0 0.0
        %3332 = vmatprep.subr.mxu0 0.0
        %3333 = vmatpush1.msra.mxu0 0.0
        %3334 = vmatprep.subr.mxu0 0.0
        %3335 = vmatpush1.msra.mxu0 0.0
        %3336 = vmatprep.subr.mxu0 0.0
        %3337 = vmatpush1.msra.mxu0 0.0
        %3338 = vmatprep.subr.mxu0 0.0
        %3339 = vmatpush1.msra.mxu0 0.0
        %3340 = vmatprep.subr.mxu0 0.0
        %3341 = vmatpush1.msra.mxu0 0.0
        %3342 = vmatprep.subr.mxu0 0.0
        %3343 = vmatpush1.msra.mxu0 0.0
        %3344 = vmatprep.subr.mxu0 0.0
        %3345 = vmatpush1.msra.mxu0 0.0
        %3346 = vmatprep.subr.mxu0 0.0
        %3347 = vmatpush1.msra.mxu0 0.0
        %3348 = vmatprep.subr.mxu0 0.0
        %3349 = vmatpush1.msra.mxu0 0.0
        %3350 = vmatprep.subr.mxu0 0.0
        %3351 = vmatpush1.msra.mxu0 0.0
        %3352 = vmatprep.subr.mxu0 0.0
        %3353 = vmatpush1.msra.mxu0 0.0
        %3354 = vmatprep.subr.mxu0 0.0
        %3355 = vmatpush1.msra.mxu0 0.0
        %3356 = vmatprep.subr.mxu0 0.0
        %3357 = vmatpush1.msra.mxu0 0.0
        %3358 = vmatprep.subr.mxu0 0.0
        %3359 = vmatpush1.msra.mxu0 0.0
        %3360 = vmatprep.mubr.f32.mxu0 0.0
        %3361 = vmatmul.mubr.f32.gmra.mrb[0].mxu0 %v1052
        %v3362 = vpop.f32.mrb[0].mxu0
        %v3363 = vadd.f32 0.0, %v3362
        %v3364 = vpop.f32.mrb[0].mxu0
        %3365 = vmatprep.mubr.f32.mxu0 0.0
        %3366 = vmatmul.mubr.f32.gmra.mrb[0].mxu0 %v1054
        %v3367 = vpop.f32.mrb[0].mxu0
        %v3368 = vadd.f32 0.0, %v3367
        %v3369 = vpop.f32.mrb[0].mxu0
        %3370 = vmatprep.mubr.f32.mxu0 0.0
        %3371 = vmatmul.mubr.f32.gmra.mrb[0].mxu0 %v1056
        %v3372 = vpop.f32.mrb[0].mxu0
        %v3373 = vadd.f32 0.0, %v3372
        %v3374 = vpop.f32.mrb[0].mxu0
        %3375 = vmatprep.mubr.f32.mxu0 0.0
        %3376 = vmatmul.mubr.f32.gmra.mrb[0].mxu0 %v1058
        %v3377 = vpop.f32.mrb[0].mxu0
        %v3378 = vadd.f32 0.0, %v3377
        %v3379 = vpop.f32.mrb[0].mxu0
        %3380 = vmatprep.mubr.f32.mxu0 0.0
        %3381 = vmatmul.mubr.f32.gmra.mrb[0].mxu0 %v1060
        %v3382 = vpop.f32.mrb[0].mxu0
        %v3383 = vadd.f32 0.0, %v3382
        %v3384 = vpop.f32.mrb[0].mxu0
        %3385 = vmatprep.mubr.f32.mxu0 0.0
        %3386 = vmatmul.mubr.f32.gmra.mrb[0].mxu0 %v1062
        %v3387 = vpop.f32.mrb[0].mxu0
        %v3388 = vadd.f32 0.0, %v3387
        %v3389 = vpop.f32.mrb[0].mxu0
        %3390 = vmatprep.mubr.f32.mxu0 0.0
        %3391 = vmatmul.mubr.f32.gmra.mrb[0].mxu0 %v1064
        %v3392 = vpop.f32.mrb[0].mxu0
        %v3393 = vadd.f32 0.0, %v3392
        %v3394 = vpop.f32.mrb[0].mxu0
        %3395 = vmatprep.mubr.f32.mxu0 0.0
        %3396 = vmatmul.mubr.f32.gmra.mrb[0].mxu0 %v1066
        %v3397 = vpop.f32.mrb[0].mxu0
        %v3398 = vadd.f32 0.0, %v3397
        %v3399 = vpop.f32.mrb[0].mxu0
        %3400 = vmatprep.mubr.f32.mxu0 0.0
        %3401 = vmatmul.mubr.f32.gmra.mrb[0].mxu0 %v1068
        %v3402 = vpop.f32.mrb[0].mxu0
        %v3403 = vadd.f32 0.0, %v3402
        %v3404 = vpop.f32.mrb[0].mxu0
        %3405 = vmatprep.mubr.f32.mxu0 0.0
        %3406 = vmatmul.mubr.f32.gmra.mrb[0].mxu0 %v1070
        %v3407 = vpop.f32.mrb[0].mxu0
        %v3408 = vadd.f32 0.0, %v3407
        %v3409 = vpop.f32.mrb[0].mxu0
        %3410 = vmatprep.mubr.f32.mxu0 0.0
        %3411 = vmatmul.mubr.f32.gmra.mrb[0].mxu0 %v1072
        %v3412 = vpop.f32.mrb[0].mxu0
        %v3413 = vadd.f32 0.0, %v3412
        %v3414 = vpop.f32.mrb[0].mxu0
        %3415 = vmatprep.mubr.f32.mxu0 0.0
        %3416 = vmatmul.mubr.f32.gmra.mrb[0].mxu0 %v1074
        %v3417 = vpop.f32.mrb[0].mxu0
        %v3418 = vadd.f32 0.0, %v3417
        %v3419 = vpop.f32.mrb[0].mxu0
        %3420 = vmatprep.mubr.f32.mxu0 0.0
        %3421 = vmatmul.mubr.f32.gmra.mrb[0].mxu0 %v1076
        %v3422 = vpop.f32.mrb[0].mxu0
        %v3423 = vadd.f32 0.0, %v3422
        %v3424 = vpop.f32.mrb[0].mxu0
        %3425 = vmatprep.mubr.f32.mxu0 0.0
        %3426 = vmatmul.mubr.f32.gmra.mrb[0].mxu0 %v1078
        %v3427 = vpop.f32.mrb[0].mxu0
        %v3428 = vadd.f32 0.0, %v3427
        %v3429 = vpop.f32.mrb[0].mxu0
        %3430 = vmatprep.mubr.f32.mxu0 0.0
        %3431 = vmatmul.mubr.f32.gmra.mrb[0].mxu0 %v1080
        %v3432 = vpop.f32.mrb[0].mxu0
        %v3433 = vadd.f32 0.0, %v3432
        %v3434 = vpop.f32.mrb[0].mxu0
        %3435 = vmatprep.mubr.f32.mxu0 0.0
        %3436 = vmatmul.mubr.f32.gmra.mrb[0].mxu0 %v1082
        %v3437 = vpop.f32.mrb[0].mxu0
        %v3438 = vadd.f32 0.0, %v3437
        %v3439 = vpop.f32.mrb[0].mxu0
        %3440 = vmatprep.mubr.f32.mxu0 0.0
        %3441 = vmatmul.mubr.f32.gmra.mrb[0].mxu0 %v1084
        %v3442 = vpop.f32.mrb[0].mxu0
        %v3443 = vadd.f32 0.0, %v3442
        %v3444 = vpop.f32.mrb[0].mxu0
        %3445 = vmatprep.mubr.f32.mxu0 0.0
        %3446 = vmatmul.mubr.f32.gmra.mrb[0].mxu0 %v1086
        %v3447 = vpop.f32.mrb[0].mxu0
        %v3448 = vadd.f32 0.0, %v3447
        %v3449 = vpop.f32.mrb[0].mxu0
        %3450 = vmatprep.mubr.f32.mxu0 0.0
        %3451 = vmatmul.mubr.f32.gmra.mrb[0].mxu0 %v1088
        %v3452 = vpop.f32.mrb[0].mxu0
        %v3453 = vadd.f32 0.0, %v3452
        %v3454 = vpop.f32.mrb[0].mxu0
        %3455 = vmatprep.mubr.f32.mxu0 0.0
        %3456 = vmatmul.mubr.f32.gmra.mrb[0].mxu0 %v1090
        %v3457 = vpop.f32.mrb[0].mxu0
        %v3458 = vadd.f32 0.0, %v3457
        %v3459 = vpop.f32.mrb[0].mxu0
        %3460 = vmatprep.mubr.f32.mxu0 0.0
        %3461 = vmatmul.mubr.f32.gmra.mrb[0].mxu0 %v1092
        %v3462 = vpop.f32.mrb[0].mxu0
        %v3463 = vadd.f32 0.0, %v3462
        %v3464 = vpop.f32.mrb[0].mxu0
        %3465 = vmatprep.mubr.f32.mxu0 0.0
        %3466 = vmatmul.mubr.f32.gmra.mrb[0].mxu0 %v1094
        %v3467 = vpop.f32.mrb[0].mxu0
        %v3468 = vadd.f32 0.0, %v3467
        %v3469 = vpop.f32.mrb[0].mxu0
        %3470 = vmatprep.mubr.f32.mxu0 0.0
        %3471 = vmatmul.mubr.f32.gmra.mrb[0].mxu0 %v1096
        %v3472 = vpop.f32.mrb[0].mxu0
        %v3473 = vadd.f32 0.0, %v3472
        %v3474 = vpop.f32.mrb[0].mxu0
        %3475 = vmatprep.mubr.f32.mxu0 0.0
        %3476 = vmatmul.mubr.f32.gmra.mrb[0].mxu0 %v1098
        %v3477 = vpop.f32.mrb[0].mxu0
        %v3478 = vadd.f32 0.0, %v3477
        %v3479 = vpop.f32.mrb[0].mxu0
        %3480 = vmatprep.mubr.f32.mxu0 0.0
        %3481 = vmatmul.mubr.f32.gmra.mrb[0].mxu0 %v1100
        %v3482 = vpop.f32.mrb[0].mxu0
        %v3483 = vadd.f32 0.0, %v3482
        %v3484 = vpop.f32.mrb[0].mxu0
        %3485 = vmatprep.mubr.f32.mxu0 0.0
        %3486 = vmatmul.mubr.f32.gmra.mrb[0].mxu0 %v1102
        %v3487 = vpop.f32.mrb[0].mxu0
        %v3488 = vadd.f32 0.0, %v3487
        %v3489 = vpop.f32.mrb[0].mxu0
        %3490 = vmatprep.mubr.f32.mxu0 0.0
        %3491 = vmatmul.mubr.f32.gmra.mrb[0].mxu0 %v1104
        %v3492 = vpop.f32.mrb[0].mxu0
        %v3493 = vadd.f32 0.0, %v3492
        %v3494 = vpop.f32.mrb[0].mxu0
        %3495 = vmatprep.mubr.f32.mxu0 0.0
        %3496 = vmatmul.mubr.f32.gmra.mrb[0].mxu0 %v1106
        %v3497 = vpop.f32.mrb[0].mxu0
        %v3498 = vadd.f32 0.0, %v3497
        %v3499 = vpop.f32.mrb[0].mxu0
        %3500 = vmatprep.mubr.f32.mxu0 0.0
        %3501 = vmatmul.mubr.f32.gmra.mrb[0].mxu0 %v1108
        %v3502 = vpop.f32.mrb[0].mxu0
        %v3503 = vadd.f32 0.0, %v3502
        %v3504 = vpop.f32.mrb[0].mxu0
        %3505 = vmatprep.mubr.f32.mxu0 0.0
        %3506 = vmatmul.mubr.f32.gmra.mrb[0].mxu0 %v1110
        %v3507 = vpop.f32.mrb[0].mxu0
        %v3508 = vadd.f32 0.0, %v3507
        %v3509 = vpop.f32.mrb[0].mxu0
        %3510 = vmatprep.mubr.f32.mxu0 0.0
        %3511 = vmatmul.mubr.f32.gmra.mrb[0].mxu0 %v3285
        %v3512 = vpop.f32.mrb[0].mxu0
        %v3513 = vadd.f32 0.0, %v3512
        %v3514 = vpop.f32.mrb[0].mxu0
        %3515 = vmatprep.mubr.f32.mxu0 0.0
        %3516 = vmatmul.mubr.f32.gmra.mrb[0].mxu0 %v3287
        %v3517 = vpop.f32.mrb[0].mxu0
        %v3518 = vadd.f32 0.0, %v3517
        %v3519 = vpop.f32.mrb[0].mxu0
        %3520 = vmatprep.mubr.f32.mxu0 0.0
        %3521 = vmatmul.mubr.f32.gmra.mrb[0].mxu0 %v1112
        %v3522 = vpop.f32.mrb[0].mxu0
        %v3523 = vadd.f32 0.0, %v3522
        %v3524 = vpop.f32.mrb[0].mxu0
        %3525 = vmatprep.mubr.f32.mxu0 0.0
        %3526 = vmatmul.mubr.f32.gmra.mrb[0].mxu0 %v1114
        %v3527 = vpop.f32.mrb[0].mxu0
        %v3528 = vadd.f32 0.0, %v3527
        %v3529 = vpop.f32.mrb[0].mxu0
        %3530 = vmatprep.mubr.f32.mxu0 0.0
        %3531 = vmatmul.mubr.f32.gmra.mrb[0].mxu0 %v1116
        %v3532 = vpop.f32.mrb[0].mxu0
        %v3533 = vadd.f32 0.0, %v3532
        %v3534 = vpop.f32.mrb[0].mxu0
        %3535 = vmatprep.mubr.f32.mxu0 0.0
        %3536 = vmatmul.mubr.f32.gmra.mrb[0].mxu0 %v1118
        %v3537 = vpop.f32.mrb[0].mxu0
        %v3538 = vadd.f32 0.0, %v3537
        %v3539 = vpop.f32.mrb[0].mxu0
        %3540 = vmatprep.mubr.f32.mxu0 0.0
        %3541 = vmatmul.mubr.f32.gmra.mrb[0].mxu0 %v1120
        %v3542 = vpop.f32.mrb[0].mxu0
        %v3543 = vadd.f32 0.0, %v3542
        %v3544 = vpop.f32.mrb[0].mxu0
        %3545 = vmatprep.mubr.f32.mxu0 0.0
        %3546 = vmatmul.mubr.f32.gmra.mrb[0].mxu0 %v1122
        %v3547 = vpop.f32.mrb[0].mxu0
        %v3548 = vadd.f32 0.0, %v3547
        %v3549 = vpop.f32.mrb[0].mxu0
        %3550 = vmatprep.mubr.f32.mxu0 0.0
        %3551 = vmatmul.mubr.f32.gmra.mrb[0].mxu0 %v1124
        %v3552 = vpop.f32.mrb[0].mxu0
        %v3553 = vadd.f32 0.0, %v3552
        %v3554 = vpop.f32.mrb[0].mxu0
        %3555 = vmatprep.mubr.f32.mxu0 0.0
        %3556 = vmatmul.mubr.f32.gmra.mrb[0].mxu0 %v1126
        %v3557 = vpop.f32.mrb[0].mxu0
        %v3558 = vadd.f32 0.0, %v3557
        %v3559 = vpop.f32.mrb[0].mxu0
        %3560 = vmatprep.mubr.f32.mxu0 0.0
        %3561 = vmatmul.mubr.f32.gmra.mrb[0].mxu0 %v1128
        %v3562 = vpop.f32.mrb[0].mxu0
        %v3563 = vadd.f32 0.0, %v3562
        %v3564 = vpop.f32.mrb[0].mxu0
        %3565 = vmatprep.mubr.f32.mxu0 0.0
        %3566 = vmatmul.mubr.f32.gmra.mrb[0].mxu0 %v1130
        %v3567 = vpop.f32.mrb[0].mxu0
        %v3568 = vadd.f32 0.0, %v3567
        %v3569 = vpop.f32.mrb[0].mxu0
        %3570 = vmatprep.mubr.f32.mxu0 0.0
        %3571 = vmatmul.mubr.f32.gmra.mrb[0].mxu0 %v1132
        %v3572 = vpop.f32.mrb[0].mxu0
        %v3573 = vadd.f32 0.0, %v3572
        %v3574 = vpop.f32.mrb[0].mxu0
        %3575 = vmatprep.mubr.f32.mxu0 0.0
        %3576 = vmatmul.mubr.f32.gmra.mrb[0].mxu0 %v1134
        %v3577 = vpop.f32.mrb[0].mxu0
        %v3578 = vadd.f32 0.0, %v3577
        %v3579 = vpop.f32.mrb[0].mxu0
        %3580 = vmatprep.mubr.f32.mxu0 0.0
        %3581 = vmatmul.mubr.f32.gmra.mrb[0].mxu0 %v1136
        %v3582 = vpop.f32.mrb[0].mxu0
        %v3583 = vadd.f32 0.0, %v3582
        %v3584 = vpop.f32.mrb[0].mxu0
        %3585 = vmatprep.mubr.f32.mxu0 0.0
        %3586 = vmatmul.mubr.f32.gmra.mrb[0].mxu0 %v1138
        %v3587 = vpop.f32.mrb[0].mxu0
        %v3588 = vadd.f32 0.0, %v3587
        %v3589 = vpop.f32.mrb[0].mxu0
        %3590 = vmatprep.mubr.f32.mxu0 0.0
        %3591 = vmatmul.mubr.f32.gmra.mrb[0].mxu0 %v1140
        %v3592 = vpop.f32.mrb[0].mxu0
        %v3593 = vadd.f32 0.0, %v3592
        %v3594 = vpop.f32.mrb[0].mxu0
        %3595 = vmatprep.mubr.f32.mxu0 0.0
        %3596 = vmatmul.mubr.f32.gmra.mrb[0].mxu0 %v1142
        %v3597 = vpop.f32.mrb[0].mxu0
        %v3598 = vadd.f32 0.0, %v3597
        %v3599 = vpop.f32.mrb[0].mxu0
        %3600 = vmatprep.mubr.f32.mxu0 0.0
        %3601 = vmatmul.mubr.f32.gmra.mrb[0].mxu0 %v1144
        %v3602 = vpop.f32.mrb[0].mxu0
        %v3603 = vadd.f32 0.0, %v3602
        %v3604 = vpop.f32.mrb[0].mxu0
        %3605 = vmatprep.mubr.f32.mxu0 0.0
        %3606 = vmatmul.mubr.f32.gmra.mrb[0].mxu0 %v1146
        %v3607 = vpop.f32.mrb[0].mxu0
        %v3608 = vadd.f32 0.0, %v3607
        %v3609 = vpop.f32.mrb[0].mxu0
        %3610 = vmatprep.mubr.f32.mxu0 0.0
        %3611 = vmatmul.mubr.f32.gmra.mrb[0].mxu0 %v1148
        %v3612 = vpop.f32.mrb[0].mxu0
        %v3613 = vadd.f32 0.0, %v3612
        %v3614 = vpop.f32.mrb[0].mxu0
        %3615 = vmatprep.mubr.f32.mxu0 0.0
        %3616 = vmatmul.mubr.f32.gmra.mrb[0].mxu0 %v1150
        %v3617 = vpop.f32.mrb[0].mxu0
        %v3618 = vadd.f32 0.0, %v3617
        %v3619 = vpop.f32.mrb[0].mxu0
        %3620 = vmatprep.mubr.f32.mxu0 0.0
        %3621 = vmatmul.mubr.f32.gmra.mrb[0].mxu0 %v1152
        %v3622 = vpop.f32.mrb[0].mxu0
        %v3623 = vadd.f32 0.0, %v3622
        %v3624 = vpop.f32.mrb[0].mxu0
        %3625 = vmatprep.mubr.f32.mxu0 0.0
        %3626 = vmatmul.mubr.f32.gmra.mrb[0].mxu0 %v1154
        %v3627 = vpop.f32.mrb[0].mxu0
        %v3628 = vadd.f32 0.0, %v3627
        %v3629 = vpop.f32.mrb[0].mxu0
        %3630 = vmatprep.mubr.f32.mxu0 0.0
        %3631 = vmatmul.mubr.f32.gmra.mrb[0].mxu0 %v1156
        %v3632 = vpop.f32.mrb[0].mxu0
        %v3633 = vadd.f32 0.0, %v3632
        %v3634 = vpop.f32.mrb[0].mxu0
        %3635 = vmatprep.mubr.f32.mxu0 0.0
        %3636 = vmatmul.mubr.f32.gmra.mrb[0].mxu0 %v1158
        %v3637 = vpop.f32.mrb[0].mxu0
        %v3638 = vadd.f32 0.0, %v3637
        %v3639 = vpop.f32.mrb[0].mxu0
        %3640 = vmatprep.mubr.f32.mxu0 0.0
        %3641 = vmatmul.mubr.f32.gmra.mrb[0].mxu0 %v1160
        %v3642 = vpop.f32.mrb[0].mxu0
        %v3643 = vadd.f32 0.0, %v3642
        %v3644 = vpop.f32.mrb[0].mxu0
        %3645 = vmatprep.mubr.f32.mxu0 0.0
        %3646 = vmatmul.mubr.f32.gmra.mrb[0].mxu0 %v1162
        %v3647 = vpop.f32.mrb[0].mxu0
        %v3648 = vadd.f32 0.0, %v3647
        %v3649 = vpop.f32.mrb[0].mxu0
        %3650 = vmatprep.mubr.f32.mxu0 0.0
        %3651 = vmatmul.mubr.f32.gmra.mrb[0].mxu0 %v1164
        %v3652 = vpop.f32.mrb[0].mxu0
        %v3653 = vadd.f32 0.0, %v3652
        %v3654 = vpop.f32.mrb[0].mxu0
        %3655 = vmatprep.mubr.f32.mxu0 0.0
        %3656 = vmatmul.mubr.f32.gmra.mrb[0].mxu0 %v1166
        %v3657 = vpop.f32.mrb[0].mxu0
        %v3658 = vadd.f32 0.0, %v3657
        %v3659 = vpop.f32.mrb[0].mxu0
        %3660 = vmatprep.mubr.f32.mxu0 0.0
        %3661 = vmatmul.mubr.f32.gmra.mrb[0].mxu0 %v1168
        %v3662 = vpop.f32.mrb[0].mxu0
        %v3663 = vadd.f32 0.0, %v3662
        %v3664 = vpop.f32.mrb[0].mxu0
        %3665 = vmatprep.mubr.f32.mxu0 0.0
        %3666 = vmatmul.mubr.f32.gmra.mrb[0].mxu0 %v1170
        %v3667 = vpop.f32.mrb[0].mxu0
        %v3668 = vadd.f32 0.0, %v3667
        %v3669 = vpop.f32.mrb[0].mxu0
        %3670 = vmatprep.mubr.f32.mxu0 0.0
        %3671 = vmatmul.mubr.f32.gmra.mrb[0].mxu0 %v3289
        %v3672 = vpop.f32.mrb[0].mxu0
        %v3673 = vadd.f32 0.0, %v3672
        %v3674 = vpop.f32.mrb[0].mxu0
        %3675 = vmatprep.mubr.f32.mxu0 0.0
        %3676 = vmatmul.mubr.f32.gmra.mrb[0].mxu0 %v3291
        %v3677 = vpop.f32.mrb[0].mxu0
        %v3678 = vadd.f32 0.0, %v3677
        %v3679 = vpop.f32.mrb[0].mxu0
        %3680 = vdwg.mxu0
        %v3681 = vadd.f32 %v3207, %v3363
        %v3682 = vadd.f32 %v3208, %v3368
        %v3683 = vadd.f32 %v3209, %v3373
        %v3684 = vadd.f32 %v3210, %v3378
        %v3685 = vadd.f32 %v3211, %v3383
        %v3686 = vadd.f32 %v3212, %v3388
        %v3687 = vadd.f32 %v3213, %v3393
        %v3688 = vadd.f32 %v3214, %v3398
        %v3689 = vadd.f32 %v3215, %v3403
        %v3690 = vadd.f32 %v3216, %v3408
        %v3691 = vadd.f32 %v3217, %v3413
        %v3692 = vadd.f32 %v3218, %v3418
        %v3693 = vadd.f32 %v3219, %v3423
        %v3694 = vadd.f32 %v3220, %v3428
        %v3695 = vadd.f32 %v3221, %v3433
        %v3696 = vadd.f32 %v3222, %v3438
        %v3697 = vadd.f32 %v3223, %v3443
        %v3698 = vadd.f32 %v3224, %v3448
        %v3699 = vadd.f32 %v3225, %v3453
        %v3700 = vadd.f32 %v3226, %v3458
        %v3701 = vadd.f32 %v3227, %v3463
        %v3702 = vadd.f32 %v3228, %v3468
        %v3703 = vadd.f32 %v3229, %v3473
        %v3704 = vadd.f32 %v3230, %v3478
        %v3705 = vadd.f32 %v3231, %v3483
        %v3706 = vadd.f32 %v3232, %v3488
        %v3707 = vadd.f32 %v3233, %v3493
        %v3708 = vadd.f32 %v3234, %v3498
        %v3709 = vadd.f32 %v3235, %v3503
        %v3710 = vadd.f32 %v3236, %v3508
        %v3711 = vadd.f32 %v3237, %v3513
        %v3712 = vadd.f32 %v3238, %v3518
        %v3713 = vadd.f32 %v3239, %v3523
        %v3714 = vadd.f32 %v3240, %v3528
        %v3715 = vadd.f32 %v3241, %v3533
        %v3716 = vadd.f32 %v3242, %v3538
        %v3717 = vadd.f32 %v3243, %v3543
        %v3718 = vadd.f32 %v3244, %v3548
        %v3719 = vadd.f32 %v3245, %v3553
        %v3720 = vadd.f32 %v3246, %v3558
        %v3721 = vadd.f32 %v3247, %v3563
        %v3722 = vadd.f32 %v3248, %v3568
        %v3723 = vadd.f32 %v3249, %v3573
        %v3724 = vadd.f32 %v3250, %v3578
        %v3725 = vadd.f32 %v3251, %v3583
        %v3726 = vadd.f32 %v3252, %v3588
        %v3727 = vadd.f32 %v3253, %v3593
        %v3728 = vadd.f32 %v3254, %v3598
        %v3729 = vadd.f32 %v3255, %v3603
        %v3730 = vadd.f32 %v3256, %v3608
        %v3731 = vadd.f32 %v3257, %v3613
        %v3732 = vadd.f32 %v3258, %v3618
        %v3733 = vadd.f32 %v3259, %v3623
        %v3734 = vadd.f32 %v3260, %v3628
        %v3735 = vadd.f32 %v3261, %v3633
        %v3736 = vadd.f32 %v3262, %v3638
        %v3737 = vadd.f32 %v3263, %v3643
        %v3738 = vadd.f32 %v3264, %v3648
        %v3739 = vadd.f32 %v3265, %v3653
        %v3740 = vadd.f32 %v3266, %v3658
        %v3741 = vadd.f32 %v3267, %v3663
        %v3742 = vadd.f32 %v3268, %v3668
        %v3743 = vadd.f32 %v3269, %v3673
        %v3744 = vadd.f32 %v3270, %v3678
        %v3745 = vrot.slane %v776, 2
        %v3746 = vrot.slane %v646, 2
        %v3747 = vsel %vm2073, %v3745, %v3746
        %v3748 = vrot.slane %v809, 2
        %v3749 = vsel %vm2073, %v3746, %v3748
        %v3750 = vrot.slane %v792, 2
        %v3751 = vrot.slane %v694, 2
        %v3752 = vsel %vm2073, %v3750, %v3751
        %v3753 = vrot.slane %v825, 2
        %v3754 = vsel %vm2073, %v3751, %v3753
        %s3755 = scalar_lea.vmem %s1, 20
        %v3756 = vld [vmem:[%s3755] sm:$0x7]
        %v3757 = vsel %vm1047, %v3747, 0
        %v3759 = vsel %vm1047, %v3749, 0
        %v3761 = vsel %vm1047, %v3752, 0
        %v3763 = vsel %vm1047, %v3754, 0
        %v3766 = vsel %vm1172, %v3756, 0
        %3768 = vmatprep.subr.mxu0 0.0
        %3769 = vmatpush1.msra.mxu0 %v3766
        %3770 = vmatprep.subr.mxu0 0.0
        %3771 = vmatpush1.msra.mxu0 0.0
        %3772 = vmatprep.subr.mxu0 0.0
        %3773 = vmatpush1.msra.mxu0 0.0
        %3774 = vmatprep.subr.mxu0 0.0
        %3775 = vmatpush1.msra.mxu0 0.0
        %3776 = vmatprep.subr.mxu0 0.0
        %3777 = vmatpush1.msra.mxu0 0.0
        %3778 = vmatprep.subr.mxu0 0.0
        %3779 = vmatpush1.msra.mxu0 0.0
        %3780 = vmatprep.subr.mxu0 0.0
        %3781 = vmatpush1.msra.mxu0 0.0
        %3782 = vmatprep.subr.mxu0 0.0
        %3783 = vmatpush1.msra.mxu0 0.0
        %3784 = vmatprep.subr.mxu0 0.0
        %3785 = vmatpush1.msra.mxu0 0.0
        %3786 = vmatprep.subr.mxu0 0.0
        %3787 = vmatpush1.msra.mxu0 0.0
        %3788 = vmatprep.subr.mxu0 0.0
        %3789 = vmatpush1.msra.mxu0 0.0
        %3790 = vmatprep.subr.mxu0 0.0
        %3791 = vmatpush1.msra.mxu0 0.0
        %3792 = vmatprep.subr.mxu0 0.0
        %3793 = vmatpush1.msra.mxu0 0.0
        %3794 = vmatprep.subr.mxu0 0.0
        %3795 = vmatpush1.msra.mxu0 0.0
        %3796 = vmatprep.subr.mxu0 0.0
        %3797 = vmatpush1.msra.mxu0 0.0
        %3798 = vmatprep.subr.mxu0 0.0
        %3799 = vmatpush1.msra.mxu0 0.0
        %3800 = vmatprep.subr.mxu0 0.0
        %3801 = vmatpush1.msra.mxu0 0.0
        %3802 = vmatprep.subr.mxu0 0.0
        %3803 = vmatpush1.msra.mxu0 0.0
        %3804 = vmatprep.subr.mxu0 0.0
        %3805 = vmatpush1.msra.mxu0 0.0
        %3806 = vmatprep.subr.mxu0 0.0
        %3807 = vmatpush1.msra.mxu0 0.0
        %3808 = vmatprep.subr.mxu0 0.0
        %3809 = vmatpush1.msra.mxu0 0.0
        %3810 = vmatprep.subr.mxu0 0.0
        %3811 = vmatpush1.msra.mxu0 0.0
        %3812 = vmatprep.subr.mxu0 0.0
        %3813 = vmatpush1.msra.mxu0 0.0
        %3814 = vmatprep.subr.mxu0 0.0
        %3815 = vmatpush1.msra.mxu0 0.0
        %3816 = vmatprep.subr.mxu0 0.0
        %3817 = vmatpush1.msra.mxu0 0.0
        %3818 = vmatprep.subr.mxu0 0.0
        %3819 = vmatpush1.msra.mxu0 0.0
        %3820 = vmatprep.subr.mxu0 0.0
        %3821 = vmatpush1.msra.mxu0 0.0
        %3822 = vmatprep.subr.mxu0 0.0
        %3823 = vmatpush1.msra.mxu0 0.0
        %3824 = vmatprep.subr.mxu0 0.0
        %3825 = vmatpush1.msra.mxu0 0.0
        %3826 = vmatprep.subr.mxu0 0.0
        %3827 = vmatpush1.msra.mxu0 0.0
        %3828 = vmatprep.subr.mxu0 0.0
        %3829 = vmatpush1.msra.mxu0 0.0
        %3830 = vmatprep.subr.mxu0 0.0
        %3831 = vmatpush1.msra.mxu0 0.0
        %3832 = vmatprep.mubr.f32.mxu0 0.0
        %3833 = vmatmul.mubr.f32.gmra.mrb[0].mxu0 %v2235
        %v3834 = vpop.f32.mrb[0].mxu0
        %v3835 = vadd.f32 0.0, %v3834
        %v3836 = vpop.f32.mrb[0].mxu0
        %3837 = vmatprep.mubr.f32.mxu0 0.0
        %3838 = vmatmul.mubr.f32.gmra.mrb[0].mxu0 %v2237
        %v3839 = vpop.f32.mrb[0].mxu0
        %v3840 = vadd.f32 0.0, %v3839
        %v3841 = vpop.f32.mrb[0].mxu0
        %3842 = vmatprep.mubr.f32.mxu0 0.0
        %3843 = vmatmul.mubr.f32.gmra.mrb[0].mxu0 %v2239
        %v3844 = vpop.f32.mrb[0].mxu0
        %v3845 = vadd.f32 0.0, %v3844
        %v3846 = vpop.f32.mrb[0].mxu0
        %3847 = vmatprep.mubr.f32.mxu0 0.0
        %3848 = vmatmul.mubr.f32.gmra.mrb[0].mxu0 %v2241
        %v3849 = vpop.f32.mrb[0].mxu0
        %v3850 = vadd.f32 0.0, %v3849
        %v3851 = vpop.f32.mrb[0].mxu0
        %3852 = vmatprep.mubr.f32.mxu0 0.0
        %3853 = vmatmul.mubr.f32.gmra.mrb[0].mxu0 %v2243
        %v3854 = vpop.f32.mrb[0].mxu0
        %v3855 = vadd.f32 0.0, %v3854
        %v3856 = vpop.f32.mrb[0].mxu0
        %3857 = vmatprep.mubr.f32.mxu0 0.0
        %3858 = vmatmul.mubr.f32.gmra.mrb[0].mxu0 %v2245
        %v3859 = vpop.f32.mrb[0].mxu0
        %v3860 = vadd.f32 0.0, %v3859
        %v3861 = vpop.f32.mrb[0].mxu0
        %3862 = vmatprep.mubr.f32.mxu0 0.0
        %3863 = vmatmul.mubr.f32.gmra.mrb[0].mxu0 %v2247
        %v3864 = vpop.f32.mrb[0].mxu0
        %v3865 = vadd.f32 0.0, %v3864
        %v3866 = vpop.f32.mrb[0].mxu0
        %3867 = vmatprep.mubr.f32.mxu0 0.0
        %3868 = vmatmul.mubr.f32.gmra.mrb[0].mxu0 %v2249
        %v3869 = vpop.f32.mrb[0].mxu0
        %v3870 = vadd.f32 0.0, %v3869
        %v3871 = vpop.f32.mrb[0].mxu0
        %3872 = vmatprep.mubr.f32.mxu0 0.0
        %3873 = vmatmul.mubr.f32.gmra.mrb[0].mxu0 %v2251
        %v3874 = vpop.f32.mrb[0].mxu0
        %v3875 = vadd.f32 0.0, %v3874
        %v3876 = vpop.f32.mrb[0].mxu0
        %3877 = vmatprep.mubr.f32.mxu0 0.0
        %3878 = vmatmul.mubr.f32.gmra.mrb[0].mxu0 %v2253
        %v3879 = vpop.f32.mrb[0].mxu0
        %v3880 = vadd.f32 0.0, %v3879
        %v3881 = vpop.f32.mrb[0].mxu0
        %3882 = vmatprep.mubr.f32.mxu0 0.0
        %3883 = vmatmul.mubr.f32.gmra.mrb[0].mxu0 %v2255
        %v3884 = vpop.f32.mrb[0].mxu0
        %v3885 = vadd.f32 0.0, %v3884
        %v3886 = vpop.f32.mrb[0].mxu0
        %3887 = vmatprep.mubr.f32.mxu0 0.0
        %3888 = vmatmul.mubr.f32.gmra.mrb[0].mxu0 %v2257
        %v3889 = vpop.f32.mrb[0].mxu0
        %v3890 = vadd.f32 0.0, %v3889
        %v3891 = vpop.f32.mrb[0].mxu0
        %3892 = vmatprep.mubr.f32.mxu0 0.0
        %3893 = vmatmul.mubr.f32.gmra.mrb[0].mxu0 %v2259
        %v3894 = vpop.f32.mrb[0].mxu0
        %v3895 = vadd.f32 0.0, %v3894
        %v3896 = vpop.f32.mrb[0].mxu0
        %3897 = vmatprep.mubr.f32.mxu0 0.0
        %3898 = vmatmul.mubr.f32.gmra.mrb[0].mxu0 %v2261
        %v3899 = vpop.f32.mrb[0].mxu0
        %v3900 = vadd.f32 0.0, %v3899
        %v3901 = vpop.f32.mrb[0].mxu0
        %3902 = vmatprep.mubr.f32.mxu0 0.0
        %3903 = vmatmul.mubr.f32.gmra.mrb[0].mxu0 %v2263
        %v3904 = vpop.f32.mrb[0].mxu0
        %v3905 = vadd.f32 0.0, %v3904
        %v3906 = vpop.f32.mrb[0].mxu0
        %3907 = vmatprep.mubr.f32.mxu0 0.0
        %3908 = vmatmul.mubr.f32.gmra.mrb[0].mxu0 %v2265
        %v3909 = vpop.f32.mrb[0].mxu0
        %v3910 = vadd.f32 0.0, %v3909
        %v3911 = vpop.f32.mrb[0].mxu0
        %3912 = vmatprep.mubr.f32.mxu0 0.0
        %3913 = vmatmul.mubr.f32.gmra.mrb[0].mxu0 %v2267
        %v3914 = vpop.f32.mrb[0].mxu0
        %v3915 = vadd.f32 0.0, %v3914
        %v3916 = vpop.f32.mrb[0].mxu0
        %3917 = vmatprep.mubr.f32.mxu0 0.0
        %3918 = vmatmul.mubr.f32.gmra.mrb[0].mxu0 %v2269
        %v3919 = vpop.f32.mrb[0].mxu0
        %v3920 = vadd.f32 0.0, %v3919
        %v3921 = vpop.f32.mrb[0].mxu0
        %3922 = vmatprep.mubr.f32.mxu0 0.0
        %3923 = vmatmul.mubr.f32.gmra.mrb[0].mxu0 %v2271
        %v3924 = vpop.f32.mrb[0].mxu0
        %v3925 = vadd.f32 0.0, %v3924
        %v3926 = vpop.f32.mrb[0].mxu0
        %3927 = vmatprep.mubr.f32.mxu0 0.0
        %3928 = vmatmul.mubr.f32.gmra.mrb[0].mxu0 %v2273
        %v3929 = vpop.f32.mrb[0].mxu0
        %v3930 = vadd.f32 0.0, %v3929
        %v3931 = vpop.f32.mrb[0].mxu0
        %3932 = vmatprep.mubr.f32.mxu0 0.0
        %3933 = vmatmul.mubr.f32.gmra.mrb[0].mxu0 %v2275
        %v3934 = vpop.f32.mrb[0].mxu0
        %v3935 = vadd.f32 0.0, %v3934
        %v3936 = vpop.f32.mrb[0].mxu0
        %3937 = vmatprep.mubr.f32.mxu0 0.0
        %3938 = vmatmul.mubr.f32.gmra.mrb[0].mxu0 %v2277
        %v3939 = vpop.f32.mrb[0].mxu0
        %v3940 = vadd.f32 0.0, %v3939
        %v3941 = vpop.f32.mrb[0].mxu0
        %3942 = vmatprep.mubr.f32.mxu0 0.0
        %3943 = vmatmul.mubr.f32.gmra.mrb[0].mxu0 %v2279
        %v3944 = vpop.f32.mrb[0].mxu0
        %v3945 = vadd.f32 0.0, %v3944
        %v3946 = vpop.f32.mrb[0].mxu0
        %3947 = vmatprep.mubr.f32.mxu0 0.0
        %3948 = vmatmul.mubr.f32.gmra.mrb[0].mxu0 %v2281
        %v3949 = vpop.f32.mrb[0].mxu0
        %v3950 = vadd.f32 0.0, %v3949
        %v3951 = vpop.f32.mrb[0].mxu0
        %3952 = vmatprep.mubr.f32.mxu0 0.0
        %3953 = vmatmul.mubr.f32.gmra.mrb[0].mxu0 %v2283
        %v3954 = vpop.f32.mrb[0].mxu0
        %v3955 = vadd.f32 0.0, %v3954
        %v3956 = vpop.f32.mrb[0].mxu0
        %3957 = vmatprep.mubr.f32.mxu0 0.0
        %3958 = vmatmul.mubr.f32.gmra.mrb[0].mxu0 %v2285
        %v3959 = vpop.f32.mrb[0].mxu0
        %v3960 = vadd.f32 0.0, %v3959
        %v3961 = vpop.f32.mrb[0].mxu0
        %3962 = vmatprep.mubr.f32.mxu0 0.0
        %3963 = vmatmul.mubr.f32.gmra.mrb[0].mxu0 %v2287
        %v3964 = vpop.f32.mrb[0].mxu0
        %v3965 = vadd.f32 0.0, %v3964
        %v3966 = vpop.f32.mrb[0].mxu0
        %3967 = vmatprep.mubr.f32.mxu0 0.0
        %3968 = vmatmul.mubr.f32.gmra.mrb[0].mxu0 %v2289
        %v3969 = vpop.f32.mrb[0].mxu0
        %v3970 = vadd.f32 0.0, %v3969
        %v3971 = vpop.f32.mrb[0].mxu0
        %3972 = vmatprep.mubr.f32.mxu0 0.0
        %3973 = vmatmul.mubr.f32.gmra.mrb[0].mxu0 %v2291
        %v3974 = vpop.f32.mrb[0].mxu0
        %v3975 = vadd.f32 0.0, %v3974
        %v3976 = vpop.f32.mrb[0].mxu0
        %3977 = vmatprep.mubr.f32.mxu0 0.0
        %3978 = vmatmul.mubr.f32.gmra.mrb[0].mxu0 %v2293
        %v3979 = vpop.f32.mrb[0].mxu0
        %v3980 = vadd.f32 0.0, %v3979
        %v3981 = vpop.f32.mrb[0].mxu0
        %3982 = vmatprep.mubr.f32.mxu0 0.0
        %3983 = vmatmul.mubr.f32.gmra.mrb[0].mxu0 %v3757
        %v3984 = vpop.f32.mrb[0].mxu0
        %v3985 = vadd.f32 0.0, %v3984
        %v3986 = vpop.f32.mrb[0].mxu0
        %3987 = vmatprep.mubr.f32.mxu0 0.0
        %3988 = vmatmul.mubr.f32.gmra.mrb[0].mxu0 %v3759
        %v3989 = vpop.f32.mrb[0].mxu0
        %v3990 = vadd.f32 0.0, %v3989
        %v3991 = vpop.f32.mrb[0].mxu0
        %3992 = vmatprep.mubr.f32.mxu0 0.0
        %3993 = vmatmul.mubr.f32.gmra.mrb[0].mxu0 %v2295
        %v3994 = vpop.f32.mrb[0].mxu0
        %v3995 = vadd.f32 0.0, %v3994
        %v3996 = vpop.f32.mrb[0].mxu0
        %3997 = vmatprep.mubr.f32.mxu0 0.0
        %3998 = vmatmul.mubr.f32.gmra.mrb[0].mxu0 %v2297
        %v3999 = vpop.f32.mrb[0].mxu0
        %v4000 = vadd.f32 0.0, %v3999
        %v4001 = vpop.f32.mrb[0].mxu0
        %4002 = vmatprep.mubr.f32.mxu0 0.0
        %4003 = vmatmul.mubr.f32.gmra.mrb[0].mxu0 %v2299
        %v4004 = vpop.f32.mrb[0].mxu0
        %v4005 = vadd.f32 0.0, %v4004
        %v4006 = vpop.f32.mrb[0].mxu0
        %4007 = vmatprep.mubr.f32.mxu0 0.0
        %4008 = vmatmul.mubr.f32.gmra.mrb[0].mxu0 %v2301
        %v4009 = vpop.f32.mrb[0].mxu0
        %v4010 = vadd.f32 0.0, %v4009
        %v4011 = vpop.f32.mrb[0].mxu0
        %4012 = vmatprep.mubr.f32.mxu0 0.0
        %4013 = vmatmul.mubr.f32.gmra.mrb[0].mxu0 %v2303
        %v4014 = vpop.f32.mrb[0].mxu0
        %v4015 = vadd.f32 0.0, %v4014
        %v4016 = vpop.f32.mrb[0].mxu0
        %4017 = vmatprep.mubr.f32.mxu0 0.0
        %4018 = vmatmul.mubr.f32.gmra.mrb[0].mxu0 %v2305
        %v4019 = vpop.f32.mrb[0].mxu0
        %v4020 = vadd.f32 0.0, %v4019
        %v4021 = vpop.f32.mrb[0].mxu0
        %4022 = vmatprep.mubr.f32.mxu0 0.0
        %4023 = vmatmul.mubr.f32.gmra.mrb[0].mxu0 %v2307
        %v4024 = vpop.f32.mrb[0].mxu0
        %v4025 = vadd.f32 0.0, %v4024
        %v4026 = vpop.f32.mrb[0].mxu0
        %4027 = vmatprep.mubr.f32.mxu0 0.0
        %4028 = vmatmul.mubr.f32.gmra.mrb[0].mxu0 %v2309
        %v4029 = vpop.f32.mrb[0].mxu0
        %v4030 = vadd.f32 0.0, %v4029
        %v4031 = vpop.f32.mrb[0].mxu0
        %4032 = vmatprep.mubr.f32.mxu0 0.0
        %4033 = vmatmul.mubr.f32.gmra.mrb[0].mxu0 %v2311
        %v4034 = vpop.f32.mrb[0].mxu0
        %v4035 = vadd.f32 0.0, %v4034
        %v4036 = vpop.f32.mrb[0].mxu0
        %4037 = vmatprep.mubr.f32.mxu0 0.0
        %4038 = vmatmul.mubr.f32.gmra.mrb[0].mxu0 %v2313
        %v4039 = vpop.f32.mrb[0].mxu0
        %v4040 = vadd.f32 0.0, %v4039
        %v4041 = vpop.f32.mrb[0].mxu0
        %4042 = vmatprep.mubr.f32.mxu0 0.0
        %4043 = vmatmul.mubr.f32.gmra.mrb[0].mxu0 %v2315
        %v4044 = vpop.f32.mrb[0].mxu0
        %v4045 = vadd.f32 0.0, %v4044
        %v4046 = vpop.f32.mrb[0].mxu0
        %4047 = vmatprep.mubr.f32.mxu0 0.0
        %4048 = vmatmul.mubr.f32.gmra.mrb[0].mxu0 %v2317
        %v4049 = vpop.f32.mrb[0].mxu0
        %v4050 = vadd.f32 0.0, %v4049
        %v4051 = vpop.f32.mrb[0].mxu0
        %4052 = vmatprep.mubr.f32.mxu0 0.0
        %4053 = vmatmul.mubr.f32.gmra.mrb[0].mxu0 %v2319
        %v4054 = vpop.f32.mrb[0].mxu0
        %v4055 = vadd.f32 0.0, %v4054
        %v4056 = vpop.f32.mrb[0].mxu0
        %4057 = vmatprep.mubr.f32.mxu0 0.0
        %4058 = vmatmul.mubr.f32.gmra.mrb[0].mxu0 %v2321
        %v4059 = vpop.f32.mrb[0].mxu0
        %v4060 = vadd.f32 0.0, %v4059
        %v4061 = vpop.f32.mrb[0].mxu0
        %4062 = vmatprep.mubr.f32.mxu0 0.0
        %4063 = vmatmul.mubr.f32.gmra.mrb[0].mxu0 %v2323
        %v4064 = vpop.f32.mrb[0].mxu0
        %v4065 = vadd.f32 0.0, %v4064
        %v4066 = vpop.f32.mrb[0].mxu0
        %4067 = vmatprep.mubr.f32.mxu0 0.0
        %4068 = vmatmul.mubr.f32.gmra.mrb[0].mxu0 %v2325
        %v4069 = vpop.f32.mrb[0].mxu0
        %v4070 = vadd.f32 0.0, %v4069
        %v4071 = vpop.f32.mrb[0].mxu0
        %4072 = vmatprep.mubr.f32.mxu0 0.0
        %4073 = vmatmul.mubr.f32.gmra.mrb[0].mxu0 %v2327
        %v4074 = vpop.f32.mrb[0].mxu0
        %v4075 = vadd.f32 0.0, %v4074
        %v4076 = vpop.f32.mrb[0].mxu0
        %4077 = vmatprep.mubr.f32.mxu0 0.0
        %4078 = vmatmul.mubr.f32.gmra.mrb[0].mxu0 %v2329
        %v4079 = vpop.f32.mrb[0].mxu0
        %v4080 = vadd.f32 0.0, %v4079
        %v4081 = vpop.f32.mrb[0].mxu0
        %4082 = vmatprep.mubr.f32.mxu0 0.0
        %4083 = vmatmul.mubr.f32.gmra.mrb[0].mxu0 %v2331
        %v4084 = vpop.f32.mrb[0].mxu0
        %v4085 = vadd.f32 0.0, %v4084
        %v4086 = vpop.f32.mrb[0].mxu0
        %4087 = vmatprep.mubr.f32.mxu0 0.0
        %4088 = vmatmul.mubr.f32.gmra.mrb[0].mxu0 %v2333
        %v4089 = vpop.f32.mrb[0].mxu0
        %v4090 = vadd.f32 0.0, %v4089
        %v4091 = vpop.f32.mrb[0].mxu0
        %4092 = vmatprep.mubr.f32.mxu0 0.0
        %4093 = vmatmul.mubr.f32.gmra.mrb[0].mxu0 %v2335
        %v4094 = vpop.f32.mrb[0].mxu0
        %v4095 = vadd.f32 0.0, %v4094
        %v4096 = vpop.f32.mrb[0].mxu0
        %4097 = vmatprep.mubr.f32.mxu0 0.0
        %4098 = vmatmul.mubr.f32.gmra.mrb[0].mxu0 %v2337
        %v4099 = vpop.f32.mrb[0].mxu0
        %v4100 = vadd.f32 0.0, %v4099
        %v4101 = vpop.f32.mrb[0].mxu0
        %4102 = vmatprep.mubr.f32.mxu0 0.0
        %4103 = vmatmul.mubr.f32.gmra.mrb[0].mxu0 %v2339
        %v4104 = vpop.f32.mrb[0].mxu0
        %v4105 = vadd.f32 0.0, %v4104
        %v4106 = vpop.f32.mrb[0].mxu0
        %4107 = vmatprep.mubr.f32.mxu0 0.0
        %4108 = vmatmul.mubr.f32.gmra.mrb[0].mxu0 %v2341
        %v4109 = vpop.f32.mrb[0].mxu0
        %v4110 = vadd.f32 0.0, %v4109
        %v4111 = vpop.f32.mrb[0].mxu0
        %4112 = vmatprep.mubr.f32.mxu0 0.0
        %4113 = vmatmul.mubr.f32.gmra.mrb[0].mxu0 %v2343
        %v4114 = vpop.f32.mrb[0].mxu0
        %v4115 = vadd.f32 0.0, %v4114
        %v4116 = vpop.f32.mrb[0].mxu0
        %4117 = vmatprep.mubr.f32.mxu0 0.0
        %4118 = vmatmul.mubr.f32.gmra.mrb[0].mxu0 %v2345
        %v4119 = vpop.f32.mrb[0].mxu0
        %v4120 = vadd.f32 0.0, %v4119
        %v4121 = vpop.f32.mrb[0].mxu0
        %4122 = vmatprep.mubr.f32.mxu0 0.0
        %4123 = vmatmul.mubr.f32.gmra.mrb[0].mxu0 %v2347
        %v4124 = vpop.f32.mrb[0].mxu0
        %v4125 = vadd.f32 0.0, %v4124
        %v4126 = vpop.f32.mrb[0].mxu0
        %4127 = vmatprep.mubr.f32.mxu0 0.0
        %4128 = vmatmul.mubr.f32.gmra.mrb[0].mxu0 %v2349
        %v4129 = vpop.f32.mrb[0].mxu0
        %v4130 = vadd.f32 0.0, %v4129
        %v4131 = vpop.f32.mrb[0].mxu0
        %4132 = vmatprep.mubr.f32.mxu0 0.0
        %4133 = vmatmul.mubr.f32.gmra.mrb[0].mxu0 %v2351
        %v4134 = vpop.f32.mrb[0].mxu0
        %v4135 = vadd.f32 0.0, %v4134
        %v4136 = vpop.f32.mrb[0].mxu0
        %4137 = vmatprep.mubr.f32.mxu0 0.0
        %4138 = vmatmul.mubr.f32.gmra.mrb[0].mxu0 %v2353
        %v4139 = vpop.f32.mrb[0].mxu0
        %v4140 = vadd.f32 0.0, %v4139
        %v4141 = vpop.f32.mrb[0].mxu0
        %4142 = vmatprep.mubr.f32.mxu0 0.0
        %4143 = vmatmul.mubr.f32.gmra.mrb[0].mxu0 %v3761
        %v4144 = vpop.f32.mrb[0].mxu0
        %v4145 = vadd.f32 0.0, %v4144
        %v4146 = vpop.f32.mrb[0].mxu0
        %4147 = vmatprep.mubr.f32.mxu0 0.0
        %4148 = vmatmul.mubr.f32.gmra.mrb[0].mxu0 %v3763
        %v4149 = vpop.f32.mrb[0].mxu0
        %v4150 = vadd.f32 0.0, %v4149
        %v4151 = vpop.f32.mrb[0].mxu0
        %4152 = vdwg.mxu0
        %v4153 = vadd.f32 %v3681, %v3835
        %v4154 = vadd.f32 %v3682, %v3840
        %v4155 = vadd.f32 %v3683, %v3845
        %v4156 = vadd.f32 %v3684, %v3850
        %v4157 = vadd.f32 %v3685, %v3855
        %v4158 = vadd.f32 %v3686, %v3860
        %v4159 = vadd.f32 %v3687, %v3865
        %v4160 = vadd.f32 %v3688, %v3870
        %v4161 = vadd.f32 %v3689, %v3875
        %v4162 = vadd.f32 %v3690, %v3880
        %v4163 = vadd.f32 %v3691, %v3885
        %v4164 = vadd.f32 %v3692, %v3890
        %v4165 = vadd.f32 %v3693, %v3895
        %v4166 = vadd.f32 %v3694, %v3900
        %v4167 = vadd.f32 %v3695, %v3905
        %v4168 = vadd.f32 %v3696, %v3910
        %v4169 = vadd.f32 %v3697, %v3915
        %v4170 = vadd.f32 %v3698, %v3920
        %v4171 = vadd.f32 %v3699, %v3925
        %v4172 = vadd.f32 %v3700, %v3930
        %v4173 = vadd.f32 %v3701, %v3935
        %v4174 = vadd.f32 %v3702, %v3940
        %v4175 = vadd.f32 %v3703, %v3945
        %v4176 = vadd.f32 %v3704, %v3950
        %v4177 = vadd.f32 %v3705, %v3955
        %v4178 = vadd.f32 %v3706, %v3960
        %v4179 = vadd.f32 %v3707, %v3965
        %v4180 = vadd.f32 %v3708, %v3970
        %v4181 = vadd.f32 %v3709, %v3975
        %v4182 = vadd.f32 %v3710, %v3980
        %v4183 = vadd.f32 %v3711, %v3985
        %v4184 = vadd.f32 %v3712, %v3990
        %v4185 = vadd.f32 %v3713, %v3995
        %v4186 = vadd.f32 %v3714, %v4000
        %v4187 = vadd.f32 %v3715, %v4005
        %v4188 = vadd.f32 %v3716, %v4010
        %v4189 = vadd.f32 %v3717, %v4015
        %v4190 = vadd.f32 %v3718, %v4020
        %v4191 = vadd.f32 %v3719, %v4025
        %v4192 = vadd.f32 %v3720, %v4030
        %v4193 = vadd.f32 %v3721, %v4035
        %v4194 = vadd.f32 %v3722, %v4040
        %v4195 = vadd.f32 %v3723, %v4045
        %v4196 = vadd.f32 %v3724, %v4050
        %v4197 = vadd.f32 %v3725, %v4055
        %v4198 = vadd.f32 %v3726, %v4060
        %v4199 = vadd.f32 %v3727, %v4065
        %v4200 = vadd.f32 %v3728, %v4070
        %v4201 = vadd.f32 %v3729, %v4075
        %v4202 = vadd.f32 %v3730, %v4080
        %v4203 = vadd.f32 %v3731, %v4085
        %v4204 = vadd.f32 %v3732, %v4090
        %v4205 = vadd.f32 %v3733, %v4095
        %v4206 = vadd.f32 %v3734, %v4100
        %v4207 = vadd.f32 %v3735, %v4105
        %v4208 = vadd.f32 %v3736, %v4110
        %v4209 = vadd.f32 %v3737, %v4115
        %v4210 = vadd.f32 %v3738, %v4120
        %v4211 = vadd.f32 %v3739, %v4125
        %v4212 = vadd.f32 %v3740, %v4130
        %v4213 = vadd.f32 %v3741, %v4135
        %v4214 = vadd.f32 %v3742, %v4140
        %v4215 = vadd.f32 %v3743, %v4145
        %v4216 = vadd.f32 %v3744, %v4150
        %s4217 = scalar_lea.vmem %s1, 24
        %v4218 = vld [vmem:[%s4217] sm:$0x7]
        %v4220 = vsel %vm1172, %v4218, 0
        %4222 = vmatprep.subr.mxu0 0.0
        %4223 = vmatpush1.msra.mxu0 %v4220
        %4224 = vmatprep.subr.mxu0 0.0
        %4225 = vmatpush1.msra.mxu0 0.0
        %4226 = vmatprep.subr.mxu0 0.0
        %4227 = vmatpush1.msra.mxu0 0.0
        %4228 = vmatprep.subr.mxu0 0.0
        %4229 = vmatpush1.msra.mxu0 0.0
        %4230 = vmatprep.subr.mxu0 0.0
        %4231 = vmatpush1.msra.mxu0 0.0
        %4232 = vmatprep.subr.mxu0 0.0
        %4233 = vmatpush1.msra.mxu0 0.0
        %4234 = vmatprep.subr.mxu0 0.0
        %4235 = vmatpush1.msra.mxu0 0.0
        %4236 = vmatprep.subr.mxu0 0.0
        %4237 = vmatpush1.msra.mxu0 0.0
        %4238 = vmatprep.subr.mxu0 0.0
        %4239 = vmatpush1.msra.mxu0 0.0
        %4240 = vmatprep.subr.mxu0 0.0
        %4241 = vmatpush1.msra.mxu0 0.0
        %4242 = vmatprep.subr.mxu0 0.0
        %4243 = vmatpush1.msra.mxu0 0.0
        %4244 = vmatprep.subr.mxu0 0.0
        %4245 = vmatpush1.msra.mxu0 0.0
        %4246 = vmatprep.subr.mxu0 0.0
        %4247 = vmatpush1.msra.mxu0 0.0
        %4248 = vmatprep.subr.mxu0 0.0
        %4249 = vmatpush1.msra.mxu0 0.0
        %4250 = vmatprep.subr.mxu0 0.0
        %4251 = vmatpush1.msra.mxu0 0.0
        %4252 = vmatprep.subr.mxu0 0.0
        %4253 = vmatpush1.msra.mxu0 0.0
        %4254 = vmatprep.subr.mxu0 0.0
        %4255 = vmatpush1.msra.mxu0 0.0
        %4256 = vmatprep.subr.mxu0 0.0
        %4257 = vmatpush1.msra.mxu0 0.0
        %4258 = vmatprep.subr.mxu0 0.0
        %4259 = vmatpush1.msra.mxu0 0.0
        %4260 = vmatprep.subr.mxu0 0.0
        %4261 = vmatpush1.msra.mxu0 0.0
        %4262 = vmatprep.subr.mxu0 0.0
        %4263 = vmatpush1.msra.mxu0 0.0
        %4264 = vmatprep.subr.mxu0 0.0
        %4265 = vmatpush1.msra.mxu0 0.0
        %4266 = vmatprep.subr.mxu0 0.0
        %4267 = vmatpush1.msra.mxu0 0.0
        %4268 = vmatprep.subr.mxu0 0.0
        %4269 = vmatpush1.msra.mxu0 0.0
        %4270 = vmatprep.subr.mxu0 0.0
        %4271 = vmatpush1.msra.mxu0 0.0
        %4272 = vmatprep.subr.mxu0 0.0
        %4273 = vmatpush1.msra.mxu0 0.0
        %4274 = vmatprep.subr.mxu0 0.0
        %4275 = vmatpush1.msra.mxu0 0.0
        %4276 = vmatprep.subr.mxu0 0.0
        %4277 = vmatpush1.msra.mxu0 0.0
        %4278 = vmatprep.subr.mxu0 0.0
        %4279 = vmatpush1.msra.mxu0 0.0
        %4280 = vmatprep.subr.mxu0 0.0
        %4281 = vmatpush1.msra.mxu0 0.0
        %4282 = vmatprep.subr.mxu0 0.0
        %4283 = vmatpush1.msra.mxu0 0.0
        %4284 = vmatprep.subr.mxu0 0.0
        %4285 = vmatpush1.msra.mxu0 0.0
        %4286 = vmatprep.mubr.f32.mxu0 0.0
        %4287 = vmatmul.mubr.f32.gmra.mrb[0].mxu0 %v1569
        %v4288 = vpop.f32.mrb[0].mxu0
        %v4289 = vadd.f32 0.0, %v4288
        %v4290 = vpop.f32.mrb[0].mxu0
        %4291 = vmatprep.mubr.f32.mxu0 0.0
        %4292 = vmatmul.mubr.f32.gmra.mrb[0].mxu0 %v1571
        %v4293 = vpop.f32.mrb[0].mxu0
        %v4294 = vadd.f32 0.0, %v4293
        %v4295 = vpop.f32.mrb[0].mxu0
        %4296 = vmatprep.mubr.f32.mxu0 0.0
        %4297 = vmatmul.mubr.f32.gmra.mrb[0].mxu0 %v1573
        %v4298 = vpop.f32.mrb[0].mxu0
        %v4299 = vadd.f32 0.0, %v4298
        %v4300 = vpop.f32.mrb[0].mxu0
        %4301 = vmatprep.mubr.f32.mxu0 0.0
        %4302 = vmatmul.mubr.f32.gmra.mrb[0].mxu0 %v1575
        %v4303 = vpop.f32.mrb[0].mxu0
        %v4304 = vadd.f32 0.0, %v4303
        %v4305 = vpop.f32.mrb[0].mxu0
        %4306 = vmatprep.mubr.f32.mxu0 0.0
        %4307 = vmatmul.mubr.f32.gmra.mrb[0].mxu0 %v1577
        %v4308 = vpop.f32.mrb[0].mxu0
        %v4309 = vadd.f32 0.0, %v4308
        %v4310 = vpop.f32.mrb[0].mxu0
        %4311 = vmatprep.mubr.f32.mxu0 0.0
        %4312 = vmatmul.mubr.f32.gmra.mrb[0].mxu0 %v1579
        %v4313 = vpop.f32.mrb[0].mxu0
        %v4314 = vadd.f32 0.0, %v4313
        %v4315 = vpop.f32.mrb[0].mxu0
        %4316 = vmatprep.mubr.f32.mxu0 0.0
        %4317 = vmatmul.mubr.f32.gmra.mrb[0].mxu0 %v1581
        %v4318 = vpop.f32.mrb[0].mxu0
        %v4319 = vadd.f32 0.0, %v4318
        %v4320 = vpop.f32.mrb[0].mxu0
        %4321 = vmatprep.mubr.f32.mxu0 0.0
        %4322 = vmatmul.mubr.f32.gmra.mrb[0].mxu0 %v1583
        %v4323 = vpop.f32.mrb[0].mxu0
        %v4324 = vadd.f32 0.0, %v4323
        %v4325 = vpop.f32.mrb[0].mxu0
        %4326 = vmatprep.mubr.f32.mxu0 0.0
        %4327 = vmatmul.mubr.f32.gmra.mrb[0].mxu0 %v1585
        %v4328 = vpop.f32.mrb[0].mxu0
        %v4329 = vadd.f32 0.0, %v4328
        %v4330 = vpop.f32.mrb[0].mxu0
        %4331 = vmatprep.mubr.f32.mxu0 0.0
        %4332 = vmatmul.mubr.f32.gmra.mrb[0].mxu0 %v1587
        %v4333 = vpop.f32.mrb[0].mxu0
        %v4334 = vadd.f32 0.0, %v4333
        %v4335 = vpop.f32.mrb[0].mxu0
        %4336 = vmatprep.mubr.f32.mxu0 0.0
        %4337 = vmatmul.mubr.f32.gmra.mrb[0].mxu0 %v1589
        %v4338 = vpop.f32.mrb[0].mxu0
        %v4339 = vadd.f32 0.0, %v4338
        %v4340 = vpop.f32.mrb[0].mxu0
        %4341 = vmatprep.mubr.f32.mxu0 0.0
        %4342 = vmatmul.mubr.f32.gmra.mrb[0].mxu0 %v1591
        %v4343 = vpop.f32.mrb[0].mxu0
        %v4344 = vadd.f32 0.0, %v4343
        %v4345 = vpop.f32.mrb[0].mxu0
        %4346 = vmatprep.mubr.f32.mxu0 0.0
        %4347 = vmatmul.mubr.f32.gmra.mrb[0].mxu0 %v1593
        %v4348 = vpop.f32.mrb[0].mxu0
        %v4349 = vadd.f32 0.0, %v4348
        %v4350 = vpop.f32.mrb[0].mxu0
        %4351 = vmatprep.mubr.f32.mxu0 0.0
        %4352 = vmatmul.mubr.f32.gmra.mrb[0].mxu0 %v1595
        %v4353 = vpop.f32.mrb[0].mxu0
        %v4354 = vadd.f32 0.0, %v4353
        %v4355 = vpop.f32.mrb[0].mxu0
        %4356 = vmatprep.mubr.f32.mxu0 0.0
        %4357 = vmatmul.mubr.f32.gmra.mrb[0].mxu0 %v1597
        %v4358 = vpop.f32.mrb[0].mxu0
        %v4359 = vadd.f32 0.0, %v4358
        %v4360 = vpop.f32.mrb[0].mxu0
        %4361 = vmatprep.mubr.f32.mxu0 0.0
        %4362 = vmatmul.mubr.f32.gmra.mrb[0].mxu0 %v1599
        %v4363 = vpop.f32.mrb[0].mxu0
        %v4364 = vadd.f32 0.0, %v4363
        %v4365 = vpop.f32.mrb[0].mxu0
        %4366 = vmatprep.mubr.f32.mxu0 0.0
        %4367 = vmatmul.mubr.f32.gmra.mrb[0].mxu0 %v1601
        %v4368 = vpop.f32.mrb[0].mxu0
        %v4369 = vadd.f32 0.0, %v4368
        %v4370 = vpop.f32.mrb[0].mxu0
        %4371 = vmatprep.mubr.f32.mxu0 0.0
        %4372 = vmatmul.mubr.f32.gmra.mrb[0].mxu0 %v1603
        %v4373 = vpop.f32.mrb[0].mxu0
        %v4374 = vadd.f32 0.0, %v4373
        %v4375 = vpop.f32.mrb[0].mxu0
        %4376 = vmatprep.mubr.f32.mxu0 0.0
        %4377 = vmatmul.mubr.f32.gmra.mrb[0].mxu0 %v1605
        %v4378 = vpop.f32.mrb[0].mxu0
        %v4379 = vadd.f32 0.0, %v4378
        %v4380 = vpop.f32.mrb[0].mxu0
        %4381 = vmatprep.mubr.f32.mxu0 0.0
        %4382 = vmatmul.mubr.f32.gmra.mrb[0].mxu0 %v1607
        %v4383 = vpop.f32.mrb[0].mxu0
        %v4384 = vadd.f32 0.0, %v4383
        %v4385 = vpop.f32.mrb[0].mxu0
        %4386 = vmatprep.mubr.f32.mxu0 0.0
        %4387 = vmatmul.mubr.f32.gmra.mrb[0].mxu0 %v1609
        %v4388 = vpop.f32.mrb[0].mxu0
        %v4389 = vadd.f32 0.0, %v4388
        %v4390 = vpop.f32.mrb[0].mxu0
        %4391 = vmatprep.mubr.f32.mxu0 0.0
        %4392 = vmatmul.mubr.f32.gmra.mrb[0].mxu0 %v1611
        %v4393 = vpop.f32.mrb[0].mxu0
        %v4394 = vadd.f32 0.0, %v4393
        %v4395 = vpop.f32.mrb[0].mxu0
        %4396 = vmatprep.mubr.f32.mxu0 0.0
        %4397 = vmatmul.mubr.f32.gmra.mrb[0].mxu0 %v1613
        %v4398 = vpop.f32.mrb[0].mxu0
        %v4399 = vadd.f32 0.0, %v4398
        %v4400 = vpop.f32.mrb[0].mxu0
        %4401 = vmatprep.mubr.f32.mxu0 0.0
        %4402 = vmatmul.mubr.f32.gmra.mrb[0].mxu0 %v1615
        %v4403 = vpop.f32.mrb[0].mxu0
        %v4404 = vadd.f32 0.0, %v4403
        %v4405 = vpop.f32.mrb[0].mxu0
        %4406 = vmatprep.mubr.f32.mxu0 0.0
        %4407 = vmatmul.mubr.f32.gmra.mrb[0].mxu0 %v1617
        %v4408 = vpop.f32.mrb[0].mxu0
        %v4409 = vadd.f32 0.0, %v4408
        %v4410 = vpop.f32.mrb[0].mxu0
        %4411 = vmatprep.mubr.f32.mxu0 0.0
        %4412 = vmatmul.mubr.f32.gmra.mrb[0].mxu0 %v1619
        %v4413 = vpop.f32.mrb[0].mxu0
        %v4414 = vadd.f32 0.0, %v4413
        %v4415 = vpop.f32.mrb[0].mxu0
        %4416 = vmatprep.mubr.f32.mxu0 0.0
        %4417 = vmatmul.mubr.f32.gmra.mrb[0].mxu0 %v1621
        %v4418 = vpop.f32.mrb[0].mxu0
        %v4419 = vadd.f32 0.0, %v4418
        %v4420 = vpop.f32.mrb[0].mxu0
        %4421 = vmatprep.mubr.f32.mxu0 0.0
        %4422 = vmatmul.mubr.f32.gmra.mrb[0].mxu0 %v1623
        %v4423 = vpop.f32.mrb[0].mxu0
        %v4424 = vadd.f32 0.0, %v4423
        %v4425 = vpop.f32.mrb[0].mxu0
        %4426 = vmatprep.mubr.f32.mxu0 0.0
        %4427 = vmatmul.mubr.f32.gmra.mrb[0].mxu0 %v2810
        %v4428 = vpop.f32.mrb[0].mxu0
        %v4429 = vadd.f32 0.0, %v4428
        %v4430 = vpop.f32.mrb[0].mxu0
        %4431 = vmatprep.mubr.f32.mxu0 0.0
        %4432 = vmatmul.mubr.f32.gmra.mrb[0].mxu0 %v2812
        %v4433 = vpop.f32.mrb[0].mxu0
        %v4434 = vadd.f32 0.0, %v4433
        %v4435 = vpop.f32.mrb[0].mxu0
        %4436 = vmatprep.mubr.f32.mxu0 0.0
        %4437 = vmatmul.mubr.f32.gmra.mrb[0].mxu0 %v1561
        %v4438 = vpop.f32.mrb[0].mxu0
        %v4439 = vadd.f32 0.0, %v4438
        %v4440 = vpop.f32.mrb[0].mxu0
        %4441 = vmatprep.mubr.f32.mxu0 0.0
        %4442 = vmatmul.mubr.f32.gmra.mrb[0].mxu0 %v1563
        %v4443 = vpop.f32.mrb[0].mxu0
        %v4444 = vadd.f32 0.0, %v4443
        %v4445 = vpop.f32.mrb[0].mxu0
        %4446 = vmatprep.mubr.f32.mxu0 0.0
        %4447 = vmatmul.mubr.f32.gmra.mrb[0].mxu0 %v1629
        %v4448 = vpop.f32.mrb[0].mxu0
        %v4449 = vadd.f32 0.0, %v4448
        %v4450 = vpop.f32.mrb[0].mxu0
        %4451 = vmatprep.mubr.f32.mxu0 0.0
        %4452 = vmatmul.mubr.f32.gmra.mrb[0].mxu0 %v1631
        %v4453 = vpop.f32.mrb[0].mxu0
        %v4454 = vadd.f32 0.0, %v4453
        %v4455 = vpop.f32.mrb[0].mxu0
        %4456 = vmatprep.mubr.f32.mxu0 0.0
        %4457 = vmatmul.mubr.f32.gmra.mrb[0].mxu0 %v1633
        %v4458 = vpop.f32.mrb[0].mxu0
        %v4459 = vadd.f32 0.0, %v4458
        %v4460 = vpop.f32.mrb[0].mxu0
        %4461 = vmatprep.mubr.f32.mxu0 0.0
        %4462 = vmatmul.mubr.f32.gmra.mrb[0].mxu0 %v1635
        %v4463 = vpop.f32.mrb[0].mxu0
        %v4464 = vadd.f32 0.0, %v4463
        %v4465 = vpop.f32.mrb[0].mxu0
        %4466 = vmatprep.mubr.f32.mxu0 0.0
        %4467 = vmatmul.mubr.f32.gmra.mrb[0].mxu0 %v1637
        %v4468 = vpop.f32.mrb[0].mxu0
        %v4469 = vadd.f32 0.0, %v4468
        %v4470 = vpop.f32.mrb[0].mxu0
        %4471 = vmatprep.mubr.f32.mxu0 0.0
        %4472 = vmatmul.mubr.f32.gmra.mrb[0].mxu0 %v1639
        %v4473 = vpop.f32.mrb[0].mxu0
        %v4474 = vadd.f32 0.0, %v4473
        %v4475 = vpop.f32.mrb[0].mxu0
        %4476 = vmatprep.mubr.f32.mxu0 0.0
        %4477 = vmatmul.mubr.f32.gmra.mrb[0].mxu0 %v1641
        %v4478 = vpop.f32.mrb[0].mxu0
        %v4479 = vadd.f32 0.0, %v4478
        %v4480 = vpop.f32.mrb[0].mxu0
        %4481 = vmatprep.mubr.f32.mxu0 0.0
        %4482 = vmatmul.mubr.f32.gmra.mrb[0].mxu0 %v1643
        %v4483 = vpop.f32.mrb[0].mxu0
        %v4484 = vadd.f32 0.0, %v4483
        %v4485 = vpop.f32.mrb[0].mxu0
        %4486 = vmatprep.mubr.f32.mxu0 0.0
        %4487 = vmatmul.mubr.f32.gmra.mrb[0].mxu0 %v1645
        %v4488 = vpop.f32.mrb[0].mxu0
        %v4489 = vadd.f32 0.0, %v4488
        %v4490 = vpop.f32.mrb[0].mxu0
        %4491 = vmatprep.mubr.f32.mxu0 0.0
        %4492 = vmatmul.mubr.f32.gmra.mrb[0].mxu0 %v1647
        %v4493 = vpop.f32.mrb[0].mxu0
        %v4494 = vadd.f32 0.0, %v4493
        %v4495 = vpop.f32.mrb[0].mxu0
        %4496 = vmatprep.mubr.f32.mxu0 0.0
        %4497 = vmatmul.mubr.f32.gmra.mrb[0].mxu0 %v1649
        %v4498 = vpop.f32.mrb[0].mxu0
        %v4499 = vadd.f32 0.0, %v4498
        %v4500 = vpop.f32.mrb[0].mxu0
        %4501 = vmatprep.mubr.f32.mxu0 0.0
        %4502 = vmatmul.mubr.f32.gmra.mrb[0].mxu0 %v1651
        %v4503 = vpop.f32.mrb[0].mxu0
        %v4504 = vadd.f32 0.0, %v4503
        %v4505 = vpop.f32.mrb[0].mxu0
        %4506 = vmatprep.mubr.f32.mxu0 0.0
        %4507 = vmatmul.mubr.f32.gmra.mrb[0].mxu0 %v1653
        %v4508 = vpop.f32.mrb[0].mxu0
        %v4509 = vadd.f32 0.0, %v4508
        %v4510 = vpop.f32.mrb[0].mxu0
        %4511 = vmatprep.mubr.f32.mxu0 0.0
        %4512 = vmatmul.mubr.f32.gmra.mrb[0].mxu0 %v1655
        %v4513 = vpop.f32.mrb[0].mxu0
        %v4514 = vadd.f32 0.0, %v4513
        %v4515 = vpop.f32.mrb[0].mxu0
        %4516 = vmatprep.mubr.f32.mxu0 0.0
        %4517 = vmatmul.mubr.f32.gmra.mrb[0].mxu0 %v1657
        %v4518 = vpop.f32.mrb[0].mxu0
        %v4519 = vadd.f32 0.0, %v4518
        %v4520 = vpop.f32.mrb[0].mxu0
        %4521 = vmatprep.mubr.f32.mxu0 0.0
        %4522 = vmatmul.mubr.f32.gmra.mrb[0].mxu0 %v1659
        %v4523 = vpop.f32.mrb[0].mxu0
        %v4524 = vadd.f32 0.0, %v4523
        %v4525 = vpop.f32.mrb[0].mxu0
        %4526 = vmatprep.mubr.f32.mxu0 0.0
        %4527 = vmatmul.mubr.f32.gmra.mrb[0].mxu0 %v1661
        %v4528 = vpop.f32.mrb[0].mxu0
        %v4529 = vadd.f32 0.0, %v4528
        %v4530 = vpop.f32.mrb[0].mxu0
        %4531 = vmatprep.mubr.f32.mxu0 0.0
        %4532 = vmatmul.mubr.f32.gmra.mrb[0].mxu0 %v1663
        %v4533 = vpop.f32.mrb[0].mxu0
        %v4534 = vadd.f32 0.0, %v4533
        %v4535 = vpop.f32.mrb[0].mxu0
        %4536 = vmatprep.mubr.f32.mxu0 0.0
        %4537 = vmatmul.mubr.f32.gmra.mrb[0].mxu0 %v1665
        %v4538 = vpop.f32.mrb[0].mxu0
        %v4539 = vadd.f32 0.0, %v4538
        %v4540 = vpop.f32.mrb[0].mxu0
        %4541 = vmatprep.mubr.f32.mxu0 0.0
        %4542 = vmatmul.mubr.f32.gmra.mrb[0].mxu0 %v1667
        %v4543 = vpop.f32.mrb[0].mxu0
        %v4544 = vadd.f32 0.0, %v4543
        %v4545 = vpop.f32.mrb[0].mxu0
        %4546 = vmatprep.mubr.f32.mxu0 0.0
        %4547 = vmatmul.mubr.f32.gmra.mrb[0].mxu0 %v1669
        %v4548 = vpop.f32.mrb[0].mxu0
        %v4549 = vadd.f32 0.0, %v4548
        %v4550 = vpop.f32.mrb[0].mxu0
        %4551 = vmatprep.mubr.f32.mxu0 0.0
        %4552 = vmatmul.mubr.f32.gmra.mrb[0].mxu0 %v1671
        %v4553 = vpop.f32.mrb[0].mxu0
        %v4554 = vadd.f32 0.0, %v4553
        %v4555 = vpop.f32.mrb[0].mxu0
        %4556 = vmatprep.mubr.f32.mxu0 0.0
        %4557 = vmatmul.mubr.f32.gmra.mrb[0].mxu0 %v1673
        %v4558 = vpop.f32.mrb[0].mxu0
        %v4559 = vadd.f32 0.0, %v4558
        %v4560 = vpop.f32.mrb[0].mxu0
        %4561 = vmatprep.mubr.f32.mxu0 0.0
        %4562 = vmatmul.mubr.f32.gmra.mrb[0].mxu0 %v1675
        %v4563 = vpop.f32.mrb[0].mxu0
        %v4564 = vadd.f32 0.0, %v4563
        %v4565 = vpop.f32.mrb[0].mxu0
        %4566 = vmatprep.mubr.f32.mxu0 0.0
        %4567 = vmatmul.mubr.f32.gmra.mrb[0].mxu0 %v1677
        %v4568 = vpop.f32.mrb[0].mxu0
        %v4569 = vadd.f32 0.0, %v4568
        %v4570 = vpop.f32.mrb[0].mxu0
        %4571 = vmatprep.mubr.f32.mxu0 0.0
        %4572 = vmatmul.mubr.f32.gmra.mrb[0].mxu0 %v1679
        %v4573 = vpop.f32.mrb[0].mxu0
        %v4574 = vadd.f32 0.0, %v4573
        %v4575 = vpop.f32.mrb[0].mxu0
        %4576 = vmatprep.mubr.f32.mxu0 0.0
        %4577 = vmatmul.mubr.f32.gmra.mrb[0].mxu0 %v1681
        %v4578 = vpop.f32.mrb[0].mxu0
        %v4579 = vadd.f32 0.0, %v4578
        %v4580 = vpop.f32.mrb[0].mxu0
        %4581 = vmatprep.mubr.f32.mxu0 0.0
        %4582 = vmatmul.mubr.f32.gmra.mrb[0].mxu0 %v1683
        %v4583 = vpop.f32.mrb[0].mxu0
        %v4584 = vadd.f32 0.0, %v4583
        %v4585 = vpop.f32.mrb[0].mxu0
        %4586 = vmatprep.mubr.f32.mxu0 0.0
        %4587 = vmatmul.mubr.f32.gmra.mrb[0].mxu0 %v2815
        %v4588 = vpop.f32.mrb[0].mxu0
        %v4589 = vadd.f32 0.0, %v4588
        %v4590 = vpop.f32.mrb[0].mxu0
        %4591 = vmatprep.mubr.f32.mxu0 0.0
        %4592 = vmatmul.mubr.f32.gmra.mrb[0].mxu0 %v2817
        %v4593 = vpop.f32.mrb[0].mxu0
        %v4594 = vadd.f32 0.0, %v4593
        %v4595 = vpop.f32.mrb[0].mxu0
        %4596 = vmatprep.mubr.f32.mxu0 0.0
        %4597 = vmatmul.mubr.f32.gmra.mrb[0].mxu0 %v1561
        %v4598 = vpop.f32.mrb[0].mxu0
        %v4599 = vadd.f32 0.0, %v4598
        %v4600 = vpop.f32.mrb[0].mxu0
        %4601 = vmatprep.mubr.f32.mxu0 0.0
        %4602 = vmatmul.mubr.f32.gmra.mrb[0].mxu0 %v1563
        %v4603 = vpop.f32.mrb[0].mxu0
        %v4604 = vadd.f32 0.0, %v4603
        %v4605 = vpop.f32.mrb[0].mxu0
        %4606 = vdwg.mxu0
        %v4607 = vadd.f32 %v4153, %v4289
        %v4608 = vadd.f32 %v4154, %v4294
        %v4609 = vadd.f32 %v4155, %v4299
        %v4610 = vadd.f32 %v4156, %v4304
        %v4611 = vadd.f32 %v4157, %v4309
        %v4612 = vadd.f32 %v4158, %v4314
        %v4613 = vadd.f32 %v4159, %v4319
        %v4614 = vadd.f32 %v4160, %v4324
        %v4615 = vadd.f32 %v4161, %v4329
        %v4616 = vadd.f32 %v4162, %v4334
        %v4617 = vadd.f32 %v4163, %v4339
        %v4618 = vadd.f32 %v4164, %v4344
        %v4619 = vadd.f32 %v4165, %v4349
        %v4620 = vadd.f32 %v4166, %v4354
        %v4621 = vadd.f32 %v4167, %v4359
        %v4622 = vadd.f32 %v4168, %v4364
        %v4623 = vadd.f32 %v4169, %v4369
        %v4624 = vadd.f32 %v4170, %v4374
        %v4625 = vadd.f32 %v4171, %v4379
        %v4626 = vadd.f32 %v4172, %v4384
        %v4627 = vadd.f32 %v4173, %v4389
        %v4628 = vadd.f32 %v4174, %v4394
        %v4629 = vadd.f32 %v4175, %v4399
        %v4630 = vadd.f32 %v4176, %v4404
        %v4631 = vadd.f32 %v4177, %v4409
        %v4632 = vadd.f32 %v4178, %v4414
        %v4633 = vadd.f32 %v4179, %v4419
        %v4634 = vadd.f32 %v4180, %v4424
        %v4635 = vadd.f32 %v4181, %v4429
        %v4636 = vadd.f32 %v4182, %v4434
        %v4637 = vadd.f32 %v4183, %v4439
        %v4638 = vadd.f32 %v4184, %v4444
        %v4639 = vadd.f32 %v4185, %v4449
        %v4640 = vadd.f32 %v4186, %v4454
        %v4641 = vadd.f32 %v4187, %v4459
        %v4642 = vadd.f32 %v4188, %v4464
        %v4643 = vadd.f32 %v4189, %v4469
        %v4644 = vadd.f32 %v4190, %v4474
        %v4645 = vadd.f32 %v4191, %v4479
        %v4646 = vadd.f32 %v4192, %v4484
        %v4647 = vadd.f32 %v4193, %v4489
        %v4648 = vadd.f32 %v4194, %v4494
        %v4649 = vadd.f32 %v4195, %v4499
        %v4650 = vadd.f32 %v4196, %v4504
        %v4651 = vadd.f32 %v4197, %v4509
        %v4652 = vadd.f32 %v4198, %v4514
        %v4653 = vadd.f32 %v4199, %v4519
        %v4654 = vadd.f32 %v4200, %v4524
        %v4655 = vadd.f32 %v4201, %v4529
        %v4656 = vadd.f32 %v4202, %v4534
        %v4657 = vadd.f32 %v4203, %v4539
        %v4658 = vadd.f32 %v4204, %v4544
        %v4659 = vadd.f32 %v4205, %v4549
        %v4660 = vadd.f32 %v4206, %v4554
        %v4661 = vadd.f32 %v4207, %v4559
        %v4662 = vadd.f32 %v4208, %v4564
        %v4663 = vadd.f32 %v4209, %v4569
        %v4664 = vadd.f32 %v4210, %v4574
        %v4665 = vadd.f32 %v4211, %v4579
        %v4666 = vadd.f32 %v4212, %v4584
        %v4667 = vadd.f32 %v4213, %v4589
        %v4668 = vadd.f32 %v4214, %v4594
        %v4669 = vadd.f32 %v4215, %v4599
        %v4670 = vadd.f32 %v4216, %v4604
        %s4671 = scalar_lea.vmem %s1, 28
        %v4672 = vld [vmem:[%s4671] sm:$0x7]
        %v4674 = vsel %vm1172, %v4672, 0
        %4676 = vmatprep.subr.mxu0 0.0
        %4677 = vmatpush1.msra.mxu0 %v4674
        %4678 = vmatprep.subr.mxu0 0.0
        %4679 = vmatpush1.msra.mxu0 0.0
        %4680 = vmatprep.subr.mxu0 0.0
        %4681 = vmatpush1.msra.mxu0 0.0
        %4682 = vmatprep.subr.mxu0 0.0
        %4683 = vmatpush1.msra.mxu0 0.0
        %4684 = vmatprep.subr.mxu0 0.0
        %4685 = vmatpush1.msra.mxu0 0.0
        %4686 = vmatprep.subr.mxu0 0.0
        %4687 = vmatpush1.msra.mxu0 0.0
        %4688 = vmatprep.subr.mxu0 0.0
        %4689 = vmatpush1.msra.mxu0 0.0
        %4690 = vmatprep.subr.mxu0 0.0
        %4691 = vmatpush1.msra.mxu0 0.0
        %4692 = vmatprep.subr.mxu0 0.0
        %4693 = vmatpush1.msra.mxu0 0.0
        %4694 = vmatprep.subr.mxu0 0.0
        %4695 = vmatpush1.msra.mxu0 0.0
        %4696 = vmatprep.subr.mxu0 0.0
        %4697 = vmatpush1.msra.mxu0 0.0
        %4698 = vmatprep.subr.mxu0 0.0
        %4699 = vmatpush1.msra.mxu0 0.0
        %4700 = vmatprep.subr.mxu0 0.0
        %4701 = vmatpush1.msra.mxu0 0.0
        %4702 = vmatprep.subr.mxu0 0.0
        %4703 = vmatpush1.msra.mxu0 0.0
        %4704 = vmatprep.subr.mxu0 0.0
        %4705 = vmatpush1.msra.mxu0 0.0
        %4706 = vmatprep.subr.mxu0 0.0
        %4707 = vmatpush1.msra.mxu0 0.0
        %4708 = vmatprep.subr.mxu0 0.0
        %4709 = vmatpush1.msra.mxu0 0.0
        %4710 = vmatprep.subr.mxu0 0.0
        %4711 = vmatpush1.msra.mxu0 0.0
        %4712 = vmatprep.subr.mxu0 0.0
        %4713 = vmatpush1.msra.mxu0 0.0
        %4714 = vmatprep.subr.mxu0 0.0
        %4715 = vmatpush1.msra.mxu0 0.0
        %4716 = vmatprep.subr.mxu0 0.0
        %4717 = vmatpush1.msra.mxu0 0.0
        %4718 = vmatprep.subr.mxu0 0.0
        %4719 = vmatpush1.msra.mxu0 0.0
        %4720 = vmatprep.subr.mxu0 0.0
        %4721 = vmatpush1.msra.mxu0 0.0
        %4722 = vmatprep.subr.mxu0 0.0
        %4723 = vmatpush1.msra.mxu0 0.0
        %4724 = vmatprep.subr.mxu0 0.0
        %4725 = vmatpush1.msra.mxu0 0.0
        %4726 = vmatprep.subr.mxu0 0.0
        %4727 = vmatpush1.msra.mxu0 0.0
        %4728 = vmatprep.subr.mxu0 0.0
        %4729 = vmatpush1.msra.mxu0 0.0
        %4730 = vmatprep.subr.mxu0 0.0
        %4731 = vmatpush1.msra.mxu0 0.0
        %4732 = vmatprep.subr.mxu0 0.0
        %4733 = vmatpush1.msra.mxu0 0.0
        %4734 = vmatprep.subr.mxu0 0.0
        %4735 = vmatpush1.msra.mxu0 0.0
        %4736 = vmatprep.subr.mxu0 0.0
        %4737 = vmatpush1.msra.mxu0 0.0
        %4738 = vmatprep.subr.mxu0 0.0
        %4739 = vmatpush1.msra.mxu0 0.0
        %4740 = vmatprep.mubr.f32.mxu0 0.0
        %4741 = vmatmul.mubr.f32.gmra.mrb[0].mxu0 %v1056
        %v4742 = vpop.f32.mrb[0].mxu0
        %v4743 = vadd.f32 0.0, %v4742
        %v4744 = vpop.f32.mrb[0].mxu0
        %4745 = vmatprep.mubr.f32.mxu0 0.0
        %4746 = vmatmul.mubr.f32.gmra.mrb[0].mxu0 %v1058
        %v4747 = vpop.f32.mrb[0].mxu0
        %v4748 = vadd.f32 0.0, %v4747
        %v4749 = vpop.f32.mrb[0].mxu0
        %4750 = vmatprep.mubr.f32.mxu0 0.0
        %4751 = vmatmul.mubr.f32.gmra.mrb[0].mxu0 %v1060
        %v4752 = vpop.f32.mrb[0].mxu0
        %v4753 = vadd.f32 0.0, %v4752
        %v4754 = vpop.f32.mrb[0].mxu0
        %4755 = vmatprep.mubr.f32.mxu0 0.0
        %4756 = vmatmul.mubr.f32.gmra.mrb[0].mxu0 %v1062
        %v4757 = vpop.f32.mrb[0].mxu0
        %v4758 = vadd.f32 0.0, %v4757
        %v4759 = vpop.f32.mrb[0].mxu0
        %4760 = vmatprep.mubr.f32.mxu0 0.0
        %4761 = vmatmul.mubr.f32.gmra.mrb[0].mxu0 %v1064
        %v4762 = vpop.f32.mrb[0].mxu0
        %v4763 = vadd.f32 0.0, %v4762
        %v4764 = vpop.f32.mrb[0].mxu0
        %4765 = vmatprep.mubr.f32.mxu0 0.0
        %4766 = vmatmul.mubr.f32.gmra.mrb[0].mxu0 %v1066
        %v4767 = vpop.f32.mrb[0].mxu0
        %v4768 = vadd.f32 0.0, %v4767
        %v4769 = vpop.f32.mrb[0].mxu0
        %4770 = vmatprep.mubr.f32.mxu0 0.0
        %4771 = vmatmul.mubr.f32.gmra.mrb[0].mxu0 %v1068
        %v4772 = vpop.f32.mrb[0].mxu0
        %v4773 = vadd.f32 0.0, %v4772
        %v4774 = vpop.f32.mrb[0].mxu0
        %4775 = vmatprep.mubr.f32.mxu0 0.0
        %4776 = vmatmul.mubr.f32.gmra.mrb[0].mxu0 %v1070
        %v4777 = vpop.f32.mrb[0].mxu0
        %v4778 = vadd.f32 0.0, %v4777
        %v4779 = vpop.f32.mrb[0].mxu0
        %4780 = vmatprep.mubr.f32.mxu0 0.0
        %4781 = vmatmul.mubr.f32.gmra.mrb[0].mxu0 %v1072
        %v4782 = vpop.f32.mrb[0].mxu0
        %v4783 = vadd.f32 0.0, %v4782
        %v4784 = vpop.f32.mrb[0].mxu0
        %4785 = vmatprep.mubr.f32.mxu0 0.0
        %4786 = vmatmul.mubr.f32.gmra.mrb[0].mxu0 %v1074
        %v4787 = vpop.f32.mrb[0].mxu0
        %v4788 = vadd.f32 0.0, %v4787
        %v4789 = vpop.f32.mrb[0].mxu0
        %4790 = vmatprep.mubr.f32.mxu0 0.0
        %4791 = vmatmul.mubr.f32.gmra.mrb[0].mxu0 %v1076
        %v4792 = vpop.f32.mrb[0].mxu0
        %v4793 = vadd.f32 0.0, %v4792
        %v4794 = vpop.f32.mrb[0].mxu0
        %4795 = vmatprep.mubr.f32.mxu0 0.0
        %4796 = vmatmul.mubr.f32.gmra.mrb[0].mxu0 %v1078
        %v4797 = vpop.f32.mrb[0].mxu0
        %v4798 = vadd.f32 0.0, %v4797
        %v4799 = vpop.f32.mrb[0].mxu0
        %4800 = vmatprep.mubr.f32.mxu0 0.0
        %4801 = vmatmul.mubr.f32.gmra.mrb[0].mxu0 %v1080
        %v4802 = vpop.f32.mrb[0].mxu0
        %v4803 = vadd.f32 0.0, %v4802
        %v4804 = vpop.f32.mrb[0].mxu0
        %4805 = vmatprep.mubr.f32.mxu0 0.0
        %4806 = vmatmul.mubr.f32.gmra.mrb[0].mxu0 %v1082
        %v4807 = vpop.f32.mrb[0].mxu0
        %v4808 = vadd.f32 0.0, %v4807
        %v4809 = vpop.f32.mrb[0].mxu0
        %4810 = vmatprep.mubr.f32.mxu0 0.0
        %4811 = vmatmul.mubr.f32.gmra.mrb[0].mxu0 %v1084
        %v4812 = vpop.f32.mrb[0].mxu0
        %v4813 = vadd.f32 0.0, %v4812
        %v4814 = vpop.f32.mrb[0].mxu0
        %4815 = vmatprep.mubr.f32.mxu0 0.0
        %4816 = vmatmul.mubr.f32.gmra.mrb[0].mxu0 %v1086
        %v4817 = vpop.f32.mrb[0].mxu0
        %v4818 = vadd.f32 0.0, %v4817
        %v4819 = vpop.f32.mrb[0].mxu0
        %4820 = vmatprep.mubr.f32.mxu0 0.0
        %4821 = vmatmul.mubr.f32.gmra.mrb[0].mxu0 %v1088
        %v4822 = vpop.f32.mrb[0].mxu0
        %v4823 = vadd.f32 0.0, %v4822
        %v4824 = vpop.f32.mrb[0].mxu0
        %4825 = vmatprep.mubr.f32.mxu0 0.0
        %4826 = vmatmul.mubr.f32.gmra.mrb[0].mxu0 %v1090
        %v4827 = vpop.f32.mrb[0].mxu0
        %v4828 = vadd.f32 0.0, %v4827
        %v4829 = vpop.f32.mrb[0].mxu0
        %4830 = vmatprep.mubr.f32.mxu0 0.0
        %4831 = vmatmul.mubr.f32.gmra.mrb[0].mxu0 %v1092
        %v4832 = vpop.f32.mrb[0].mxu0
        %v4833 = vadd.f32 0.0, %v4832
        %v4834 = vpop.f32.mrb[0].mxu0
        %4835 = vmatprep.mubr.f32.mxu0 0.0
        %4836 = vmatmul.mubr.f32.gmra.mrb[0].mxu0 %v1094
        %v4837 = vpop.f32.mrb[0].mxu0
        %v4838 = vadd.f32 0.0, %v4837
        %v4839 = vpop.f32.mrb[0].mxu0
        %4840 = vmatprep.mubr.f32.mxu0 0.0
        %4841 = vmatmul.mubr.f32.gmra.mrb[0].mxu0 %v1096
        %v4842 = vpop.f32.mrb[0].mxu0
        %v4843 = vadd.f32 0.0, %v4842
        %v4844 = vpop.f32.mrb[0].mxu0
        %4845 = vmatprep.mubr.f32.mxu0 0.0
        %4846 = vmatmul.mubr.f32.gmra.mrb[0].mxu0 %v1098
        %v4847 = vpop.f32.mrb[0].mxu0
        %v4848 = vadd.f32 0.0, %v4847
        %v4849 = vpop.f32.mrb[0].mxu0
        %4850 = vmatprep.mubr.f32.mxu0 0.0
        %4851 = vmatmul.mubr.f32.gmra.mrb[0].mxu0 %v1100
        %v4852 = vpop.f32.mrb[0].mxu0
        %v4853 = vadd.f32 0.0, %v4852
        %v4854 = vpop.f32.mrb[0].mxu0
        %4855 = vmatprep.mubr.f32.mxu0 0.0
        %4856 = vmatmul.mubr.f32.gmra.mrb[0].mxu0 %v1102
        %v4857 = vpop.f32.mrb[0].mxu0
        %v4858 = vadd.f32 0.0, %v4857
        %v4859 = vpop.f32.mrb[0].mxu0
        %4860 = vmatprep.mubr.f32.mxu0 0.0
        %4861 = vmatmul.mubr.f32.gmra.mrb[0].mxu0 %v1104
        %v4862 = vpop.f32.mrb[0].mxu0
        %v4863 = vadd.f32 0.0, %v4862
        %v4864 = vpop.f32.mrb[0].mxu0
        %4865 = vmatprep.mubr.f32.mxu0 0.0
        %4866 = vmatmul.mubr.f32.gmra.mrb[0].mxu0 %v1106
        %v4867 = vpop.f32.mrb[0].mxu0
        %v4868 = vadd.f32 0.0, %v4867
        %v4869 = vpop.f32.mrb[0].mxu0
        %4870 = vmatprep.mubr.f32.mxu0 0.0
        %4871 = vmatmul.mubr.f32.gmra.mrb[0].mxu0 %v1108
        %v4872 = vpop.f32.mrb[0].mxu0
        %v4873 = vadd.f32 0.0, %v4872
        %v4874 = vpop.f32.mrb[0].mxu0
        %4875 = vmatprep.mubr.f32.mxu0 0.0
        %4876 = vmatmul.mubr.f32.gmra.mrb[0].mxu0 %v1110
        %v4877 = vpop.f32.mrb[0].mxu0
        %v4878 = vadd.f32 0.0, %v4877
        %v4879 = vpop.f32.mrb[0].mxu0
        %4880 = vmatprep.mubr.f32.mxu0 0.0
        %4881 = vmatmul.mubr.f32.gmra.mrb[0].mxu0 %v3285
        %v4882 = vpop.f32.mrb[0].mxu0
        %v4883 = vadd.f32 0.0, %v4882
        %v4884 = vpop.f32.mrb[0].mxu0
        %4885 = vmatprep.mubr.f32.mxu0 0.0
        %4886 = vmatmul.mubr.f32.gmra.mrb[0].mxu0 %v3287
        %v4887 = vpop.f32.mrb[0].mxu0
        %v4888 = vadd.f32 0.0, %v4887
        %v4889 = vpop.f32.mrb[0].mxu0
        %4890 = vmatprep.mubr.f32.mxu0 0.0
        %4891 = vmatmul.mubr.f32.gmra.mrb[0].mxu0 %v1048
        %v4892 = vpop.f32.mrb[0].mxu0
        %v4893 = vadd.f32 0.0, %v4892
        %v4894 = vpop.f32.mrb[0].mxu0
        %4895 = vmatprep.mubr.f32.mxu0 0.0
        %4896 = vmatmul.mubr.f32.gmra.mrb[0].mxu0 %v1050
        %v4897 = vpop.f32.mrb[0].mxu0
        %v4898 = vadd.f32 0.0, %v4897
        %v4899 = vpop.f32.mrb[0].mxu0
        %4900 = vmatprep.mubr.f32.mxu0 0.0
        %4901 = vmatmul.mubr.f32.gmra.mrb[0].mxu0 %v1116
        %v4902 = vpop.f32.mrb[0].mxu0
        %v4903 = vadd.f32 0.0, %v4902
        %v4904 = vpop.f32.mrb[0].mxu0
        %4905 = vmatprep.mubr.f32.mxu0 0.0
        %4906 = vmatmul.mubr.f32.gmra.mrb[0].mxu0 %v1118
        %v4907 = vpop.f32.mrb[0].mxu0
        %v4908 = vadd.f32 0.0, %v4907
        %v4909 = vpop.f32.mrb[0].mxu0
        %4910 = vmatprep.mubr.f32.mxu0 0.0
        %4911 = vmatmul.mubr.f32.gmra.mrb[0].mxu0 %v1120
        %v4912 = vpop.f32.mrb[0].mxu0
        %v4913 = vadd.f32 0.0, %v4912
        %v4914 = vpop.f32.mrb[0].mxu0
        %4915 = vmatprep.mubr.f32.mxu0 0.0
        %4916 = vmatmul.mubr.f32.gmra.mrb[0].mxu0 %v1122
        %v4917 = vpop.f32.mrb[0].mxu0
        %v4918 = vadd.f32 0.0, %v4917
        %v4919 = vpop.f32.mrb[0].mxu0
        %4920 = vmatprep.mubr.f32.mxu0 0.0
        %4921 = vmatmul.mubr.f32.gmra.mrb[0].mxu0 %v1124
        %v4922 = vpop.f32.mrb[0].mxu0
        %v4923 = vadd.f32 0.0, %v4922
        %v4924 = vpop.f32.mrb[0].mxu0
        %4925 = vmatprep.mubr.f32.mxu0 0.0
        %4926 = vmatmul.mubr.f32.gmra.mrb[0].mxu0 %v1126
        %v4927 = vpop.f32.mrb[0].mxu0
        %v4928 = vadd.f32 0.0, %v4927
        %v4929 = vpop.f32.mrb[0].mxu0
        %4930 = vmatprep.mubr.f32.mxu0 0.0
        %4931 = vmatmul.mubr.f32.gmra.mrb[0].mxu0 %v1128
        %v4932 = vpop.f32.mrb[0].mxu0
        %v4933 = vadd.f32 0.0, %v4932
        %v4934 = vpop.f32.mrb[0].mxu0
        %4935 = vmatprep.mubr.f32.mxu0 0.0
        %4936 = vmatmul.mubr.f32.gmra.mrb[0].mxu0 %v1130
        %v4937 = vpop.f32.mrb[0].mxu0
        %v4938 = vadd.f32 0.0, %v4937
        %v4939 = vpop.f32.mrb[0].mxu0
        %4940 = vmatprep.mubr.f32.mxu0 0.0
        %4941 = vmatmul.mubr.f32.gmra.mrb[0].mxu0 %v1132
        %v4942 = vpop.f32.mrb[0].mxu0
        %v4943 = vadd.f32 0.0, %v4942
        %v4944 = vpop.f32.mrb[0].mxu0
        %4945 = vmatprep.mubr.f32.mxu0 0.0
        %4946 = vmatmul.mubr.f32.gmra.mrb[0].mxu0 %v1134
        %v4947 = vpop.f32.mrb[0].mxu0
        %v4948 = vadd.f32 0.0, %v4947
        %v4949 = vpop.f32.mrb[0].mxu0
        %4950 = vmatprep.mubr.f32.mxu0 0.0
        %4951 = vmatmul.mubr.f32.gmra.mrb[0].mxu0 %v1136
        %v4952 = vpop.f32.mrb[0].mxu0
        %v4953 = vadd.f32 0.0, %v4952
        %v4954 = vpop.f32.mrb[0].mxu0
        %4955 = vmatprep.mubr.f32.mxu0 0.0
        %4956 = vmatmul.mubr.f32.gmra.mrb[0].mxu0 %v1138
        %v4957 = vpop.f32.mrb[0].mxu0
        %v4958 = vadd.f32 0.0, %v4957
        %v4959 = vpop.f32.mrb[0].mxu0
        %4960 = vmatprep.mubr.f32.mxu0 0.0
        %4961 = vmatmul.mubr.f32.gmra.mrb[0].mxu0 %v1140
        %v4962 = vpop.f32.mrb[0].mxu0
        %v4963 = vadd.f32 0.0, %v4962
        %v4964 = vpop.f32.mrb[0].mxu0
        %4965 = vmatprep.mubr.f32.mxu0 0.0
        %4966 = vmatmul.mubr.f32.gmra.mrb[0].mxu0 %v1142
        %v4967 = vpop.f32.mrb[0].mxu0
        %v4968 = vadd.f32 0.0, %v4967
        %v4969 = vpop.f32.mrb[0].mxu0
        %4970 = vmatprep.mubr.f32.mxu0 0.0
        %4971 = vmatmul.mubr.f32.gmra.mrb[0].mxu0 %v1144
        %v4972 = vpop.f32.mrb[0].mxu0
        %v4973 = vadd.f32 0.0, %v4972
        %v4974 = vpop.f32.mrb[0].mxu0
        %4975 = vmatprep.mubr.f32.mxu0 0.0
        %4976 = vmatmul.mubr.f32.gmra.mrb[0].mxu0 %v1146
        %v4977 = vpop.f32.mrb[0].mxu0
        %v4978 = vadd.f32 0.0, %v4977
        %v4979 = vpop.f32.mrb[0].mxu0
        %4980 = vmatprep.mubr.f32.mxu0 0.0
        %4981 = vmatmul.mubr.f32.gmra.mrb[0].mxu0 %v1148
        %v4982 = vpop.f32.mrb[0].mxu0
        %v4983 = vadd.f32 0.0, %v4982
        %v4984 = vpop.f32.mrb[0].mxu0
        %4985 = vmatprep.mubr.f32.mxu0 0.0
        %4986 = vmatmul.mubr.f32.gmra.mrb[0].mxu0 %v1150
        %v4987 = vpop.f32.mrb[0].mxu0
        %v4988 = vadd.f32 0.0, %v4987
        %v4989 = vpop.f32.mrb[0].mxu0
        %4990 = vmatprep.mubr.f32.mxu0 0.0
        %4991 = vmatmul.mubr.f32.gmra.mrb[0].mxu0 %v1152
        %v4992 = vpop.f32.mrb[0].mxu0
        %v4993 = vadd.f32 0.0, %v4992
        %v4994 = vpop.f32.mrb[0].mxu0
        %4995 = vmatprep.mubr.f32.mxu0 0.0
        %4996 = vmatmul.mubr.f32.gmra.mrb[0].mxu0 %v1154
        %v4997 = vpop.f32.mrb[0].mxu0
        %v4998 = vadd.f32 0.0, %v4997
        %v4999 = vpop.f32.mrb[0].mxu0
        %5000 = vmatprep.mubr.f32.mxu0 0.0
        %5001 = vmatmul.mubr.f32.gmra.mrb[0].mxu0 %v1156
        %v5002 = vpop.f32.mrb[0].mxu0
        %v5003 = vadd.f32 0.0, %v5002
        %v5004 = vpop.f32.mrb[0].mxu0
        %5005 = vmatprep.mubr.f32.mxu0 0.0
        %5006 = vmatmul.mubr.f32.gmra.mrb[0].mxu0 %v1158
        %v5007 = vpop.f32.mrb[0].mxu0
        %v5008 = vadd.f32 0.0, %v5007
        %v5009 = vpop.f32.mrb[0].mxu0
        %5010 = vmatprep.mubr.f32.mxu0 0.0
        %5011 = vmatmul.mubr.f32.gmra.mrb[0].mxu0 %v1160
        %v5012 = vpop.f32.mrb[0].mxu0
        %v5013 = vadd.f32 0.0, %v5012
        %v5014 = vpop.f32.mrb[0].mxu0
        %5015 = vmatprep.mubr.f32.mxu0 0.0
        %5016 = vmatmul.mubr.f32.gmra.mrb[0].mxu0 %v1162
        %v5017 = vpop.f32.mrb[0].mxu0
        %v5018 = vadd.f32 0.0, %v5017
        %v5019 = vpop.f32.mrb[0].mxu0
        %5020 = vmatprep.mubr.f32.mxu0 0.0
        %5021 = vmatmul.mubr.f32.gmra.mrb[0].mxu0 %v1164
        %v5022 = vpop.f32.mrb[0].mxu0
        %v5023 = vadd.f32 0.0, %v5022
        %v5024 = vpop.f32.mrb[0].mxu0
        %5025 = vmatprep.mubr.f32.mxu0 0.0
        %5026 = vmatmul.mubr.f32.gmra.mrb[0].mxu0 %v1166
        %v5027 = vpop.f32.mrb[0].mxu0
        %v5028 = vadd.f32 0.0, %v5027
        %v5029 = vpop.f32.mrb[0].mxu0
        %5030 = vmatprep.mubr.f32.mxu0 0.0
        %5031 = vmatmul.mubr.f32.gmra.mrb[0].mxu0 %v1168
        %v5032 = vpop.f32.mrb[0].mxu0
        %v5033 = vadd.f32 0.0, %v5032
        %v5034 = vpop.f32.mrb[0].mxu0
        %5035 = vmatprep.mubr.f32.mxu0 0.0
        %5036 = vmatmul.mubr.f32.gmra.mrb[0].mxu0 %v1170
        %v5037 = vpop.f32.mrb[0].mxu0
        %v5038 = vadd.f32 0.0, %v5037
        %v5039 = vpop.f32.mrb[0].mxu0
        %5040 = vmatprep.mubr.f32.mxu0 0.0
        %5041 = vmatmul.mubr.f32.gmra.mrb[0].mxu0 %v3289
        %v5042 = vpop.f32.mrb[0].mxu0
        %v5043 = vadd.f32 0.0, %v5042
        %v5044 = vpop.f32.mrb[0].mxu0
        %5045 = vmatprep.mubr.f32.mxu0 0.0
        %5046 = vmatmul.mubr.f32.gmra.mrb[0].mxu0 %v3291
        %v5047 = vpop.f32.mrb[0].mxu0
        %v5048 = vadd.f32 0.0, %v5047
        %v5049 = vpop.f32.mrb[0].mxu0
        %5050 = vmatprep.mubr.f32.mxu0 0.0
        %5051 = vmatmul.mubr.f32.gmra.mrb[0].mxu0 %v1048
        %v5052 = vpop.f32.mrb[0].mxu0
        %v5053 = vadd.f32 0.0, %v5052
        %v5054 = vpop.f32.mrb[0].mxu0
        %5055 = vmatprep.mubr.f32.mxu0 0.0
        %5056 = vmatmul.mubr.f32.gmra.mrb[0].mxu0 %v1050
        %v5057 = vpop.f32.mrb[0].mxu0
        %v5058 = vadd.f32 0.0, %v5057
        %v5059 = vpop.f32.mrb[0].mxu0
        %5060 = vdwg.mxu0
        %v5061 = vadd.f32 %v4607, %v4743
        %v5062 = vadd.f32 %v4608, %v4748
        %v5063 = vadd.f32 %v4609, %v4753
        %v5064 = vadd.f32 %v4610, %v4758
        %v5065 = vadd.f32 %v4611, %v4763
        %v5066 = vadd.f32 %v4612, %v4768
        %v5067 = vadd.f32 %v4613, %v4773
        %v5068 = vadd.f32 %v4614, %v4778
        %v5069 = vadd.f32 %v4615, %v4783
        %v5070 = vadd.f32 %v4616, %v4788
        %v5071 = vadd.f32 %v4617, %v4793
        %v5072 = vadd.f32 %v4618, %v4798
        %v5073 = vadd.f32 %v4619, %v4803
        %v5074 = vadd.f32 %v4620, %v4808
        %v5075 = vadd.f32 %v4621, %v4813
        %v5076 = vadd.f32 %v4622, %v4818
        %v5077 = vadd.f32 %v4623, %v4823
        %v5078 = vadd.f32 %v4624, %v4828
        %v5079 = vadd.f32 %v4625, %v4833
        %v5080 = vadd.f32 %v4626, %v4838
        %v5081 = vadd.f32 %v4627, %v4843
        %v5082 = vadd.f32 %v4628, %v4848
        %v5083 = vadd.f32 %v4629, %v4853
        %v5084 = vadd.f32 %v4630, %v4858
        %v5085 = vadd.f32 %v4631, %v4863
        %v5086 = vadd.f32 %v4632, %v4868
        %v5087 = vadd.f32 %v4633, %v4873
        %v5088 = vadd.f32 %v4634, %v4878
        %v5089 = vadd.f32 %v4635, %v4883
        %v5090 = vadd.f32 %v4636, %v4888
        %v5091 = vadd.f32 %v4637, %v4893
        %v5092 = vadd.f32 %v4638, %v4898
        %v5093 = vadd.f32 %v4639, %v4903
        %v5094 = vadd.f32 %v4640, %v4908
        %v5095 = vadd.f32 %v4641, %v4913
        %v5096 = vadd.f32 %v4642, %v4918
        %v5097 = vadd.f32 %v4643, %v4923
        %v5098 = vadd.f32 %v4644, %v4928
        %v5099 = vadd.f32 %v4645, %v4933
        %v5100 = vadd.f32 %v4646, %v4938
        %v5101 = vadd.f32 %v4647, %v4943
        %v5102 = vadd.f32 %v4648, %v4948
        %v5103 = vadd.f32 %v4649, %v4953
        %v5104 = vadd.f32 %v4650, %v4958
        %v5105 = vadd.f32 %v4651, %v4963
        %v5106 = vadd.f32 %v4652, %v4968
        %v5107 = vadd.f32 %v4653, %v4973
        %v5108 = vadd.f32 %v4654, %v4978
        %v5109 = vadd.f32 %v4655, %v4983
        %v5110 = vadd.f32 %v4656, %v4988
        %v5111 = vadd.f32 %v4657, %v4993
        %v5112 = vadd.f32 %v4658, %v4998
        %v5113 = vadd.f32 %v4659, %v5003
        %v5114 = vadd.f32 %v4660, %v5008
        %v5115 = vadd.f32 %v4661, %v5013
        %v5116 = vadd.f32 %v4662, %v5018
        %v5117 = vadd.f32 %v4663, %v5023
        %v5118 = vadd.f32 %v4664, %v5028
        %v5119 = vadd.f32 %v4665, %v5033
        %v5120 = vadd.f32 %v4666, %v5038
        %v5121 = vadd.f32 %v4667, %v5043
        %v5122 = vadd.f32 %v4668, %v5048
        %v5123 = vadd.f32 %v4669, %v5053
        %v5124 = vadd.f32 %v4670, %v5058
        %s5125 = scalar_lea.vmem %s1, 32
        %v5126 = vld [vmem:[%s5125] sm:$0x7]
        %v5128 = vsel %vm1172, %v5126, 0
        %5130 = vmatprep.subr.mxu0 0.0
        %5131 = vmatpush1.msra.mxu0 %v5128
        %5132 = vmatprep.subr.mxu0 0.0
        %5133 = vmatpush1.msra.mxu0 0.0
        %5134 = vmatprep.subr.mxu0 0.0
        %5135 = vmatpush1.msra.mxu0 0.0
        %5136 = vmatprep.subr.mxu0 0.0
        %5137 = vmatpush1.msra.mxu0 0.0
        %5138 = vmatprep.subr.mxu0 0.0
        %5139 = vmatpush1.msra.mxu0 0.0
        %5140 = vmatprep.subr.mxu0 0.0
        %5141 = vmatpush1.msra.mxu0 0.0
        %5142 = vmatprep.subr.mxu0 0.0
        %5143 = vmatpush1.msra.mxu0 0.0
        %5144 = vmatprep.subr.mxu0 0.0
        %5145 = vmatpush1.msra.mxu0 0.0
        %5146 = vmatprep.subr.mxu0 0.0
        %5147 = vmatpush1.msra.mxu0 0.0
        %5148 = vmatprep.subr.mxu0 0.0
        %5149 = vmatpush1.msra.mxu0 0.0
        %5150 = vmatprep.subr.mxu0 0.0
        %5151 = vmatpush1.msra.mxu0 0.0
        %5152 = vmatprep.subr.mxu0 0.0
        %5153 = vmatpush1.msra.mxu0 0.0
        %5154 = vmatprep.subr.mxu0 0.0
        %5155 = vmatpush1.msra.mxu0 0.0
        %5156 = vmatprep.subr.mxu0 0.0
        %5157 = vmatpush1.msra.mxu0 0.0
        %5158 = vmatprep.subr.mxu0 0.0
        %5159 = vmatpush1.msra.mxu0 0.0
        %5160 = vmatprep.subr.mxu0 0.0
        %5161 = vmatpush1.msra.mxu0 0.0
        %5162 = vmatprep.subr.mxu0 0.0
        %5163 = vmatpush1.msra.mxu0 0.0
        %5164 = vmatprep.subr.mxu0 0.0
        %5165 = vmatpush1.msra.mxu0 0.0
        %5166 = vmatprep.subr.mxu0 0.0
        %5167 = vmatpush1.msra.mxu0 0.0
        %5168 = vmatprep.subr.mxu0 0.0
        %5169 = vmatpush1.msra.mxu0 0.0
        %5170 = vmatprep.subr.mxu0 0.0
        %5171 = vmatpush1.msra.mxu0 0.0
        %5172 = vmatprep.subr.mxu0 0.0
        %5173 = vmatpush1.msra.mxu0 0.0
        %5174 = vmatprep.subr.mxu0 0.0
        %5175 = vmatpush1.msra.mxu0 0.0
        %5176 = vmatprep.subr.mxu0 0.0
        %5177 = vmatpush1.msra.mxu0 0.0
        %5178 = vmatprep.subr.mxu0 0.0
        %5179 = vmatpush1.msra.mxu0 0.0
        %5180 = vmatprep.subr.mxu0 0.0
        %5181 = vmatpush1.msra.mxu0 0.0
        %5182 = vmatprep.subr.mxu0 0.0
        %5183 = vmatpush1.msra.mxu0 0.0
        %5184 = vmatprep.subr.mxu0 0.0
        %5185 = vmatpush1.msra.mxu0 0.0
        %5186 = vmatprep.subr.mxu0 0.0
        %5187 = vmatpush1.msra.mxu0 0.0
        %5188 = vmatprep.subr.mxu0 0.0
        %5189 = vmatpush1.msra.mxu0 0.0
        %5190 = vmatprep.subr.mxu0 0.0
        %5191 = vmatpush1.msra.mxu0 0.0
        %5192 = vmatprep.subr.mxu0 0.0
        %5193 = vmatpush1.msra.mxu0 0.0
        %5194 = vmatprep.mubr.f32.mxu0 0.0
        %5195 = vmatmul.mubr.f32.gmra.mrb[0].mxu0 %v2239
        %v5196 = vpop.f32.mrb[0].mxu0
        %v5197 = vadd.f32 0.0, %v5196
        %v5198 = vpop.f32.mrb[0].mxu0
        %5199 = vmatprep.mubr.f32.mxu0 0.0
        %5200 = vmatmul.mubr.f32.gmra.mrb[0].mxu0 %v2241
        %v5201 = vpop.f32.mrb[0].mxu0
        %v5202 = vadd.f32 0.0, %v5201
        %v5203 = vpop.f32.mrb[0].mxu0
        %5204 = vmatprep.mubr.f32.mxu0 0.0
        %5205 = vmatmul.mubr.f32.gmra.mrb[0].mxu0 %v2243
        %v5206 = vpop.f32.mrb[0].mxu0
        %v5207 = vadd.f32 0.0, %v5206
        %v5208 = vpop.f32.mrb[0].mxu0
        %5209 = vmatprep.mubr.f32.mxu0 0.0
        %5210 = vmatmul.mubr.f32.gmra.mrb[0].mxu0 %v2245
        %v5211 = vpop.f32.mrb[0].mxu0
        %v5212 = vadd.f32 0.0, %v5211
        %v5213 = vpop.f32.mrb[0].mxu0
        %5214 = vmatprep.mubr.f32.mxu0 0.0
        %5215 = vmatmul.mubr.f32.gmra.mrb[0].mxu0 %v2247
        %v5216 = vpop.f32.mrb[0].mxu0
        %v5217 = vadd.f32 0.0, %v5216
        %v5218 = vpop.f32.mrb[0].mxu0
        %5219 = vmatprep.mubr.f32.mxu0 0.0
        %5220 = vmatmul.mubr.f32.gmra.mrb[0].mxu0 %v2249
        %v5221 = vpop.f32.mrb[0].mxu0
        %v5222 = vadd.f32 0.0, %v5221
        %v5223 = vpop.f32.mrb[0].mxu0
        %5224 = vmatprep.mubr.f32.mxu0 0.0
        %5225 = vmatmul.mubr.f32.gmra.mrb[0].mxu0 %v2251
        %v5226 = vpop.f32.mrb[0].mxu0
        %v5227 = vadd.f32 0.0, %v5226
        %v5228 = vpop.f32.mrb[0].mxu0
        %5229 = vmatprep.mubr.f32.mxu0 0.0
        %5230 = vmatmul.mubr.f32.gmra.mrb[0].mxu0 %v2253
        %v5231 = vpop.f32.mrb[0].mxu0
        %v5232 = vadd.f32 0.0, %v5231
        %v5233 = vpop.f32.mrb[0].mxu0
        %5234 = vmatprep.mubr.f32.mxu0 0.0
        %5235 = vmatmul.mubr.f32.gmra.mrb[0].mxu0 %v2255
        %v5236 = vpop.f32.mrb[0].mxu0
        %v5237 = vadd.f32 0.0, %v5236
        %v5238 = vpop.f32.mrb[0].mxu0
        %5239 = vmatprep.mubr.f32.mxu0 0.0
        %5240 = vmatmul.mubr.f32.gmra.mrb[0].mxu0 %v2257
        %v5241 = vpop.f32.mrb[0].mxu0
        %v5242 = vadd.f32 0.0, %v5241
        %v5243 = vpop.f32.mrb[0].mxu0
        %5244 = vmatprep.mubr.f32.mxu0 0.0
        %5245 = vmatmul.mubr.f32.gmra.mrb[0].mxu0 %v2259
        %v5246 = vpop.f32.mrb[0].mxu0
        %v5247 = vadd.f32 0.0, %v5246
        %v5248 = vpop.f32.mrb[0].mxu0
        %5249 = vmatprep.mubr.f32.mxu0 0.0
        %5250 = vmatmul.mubr.f32.gmra.mrb[0].mxu0 %v2261
        %v5251 = vpop.f32.mrb[0].mxu0
        %v5252 = vadd.f32 0.0, %v5251
        %v5253 = vpop.f32.mrb[0].mxu0
        %5254 = vmatprep.mubr.f32.mxu0 0.0
        %5255 = vmatmul.mubr.f32.gmra.mrb[0].mxu0 %v2263
        %v5256 = vpop.f32.mrb[0].mxu0
        %v5257 = vadd.f32 0.0, %v5256
        %v5258 = vpop.f32.mrb[0].mxu0
        %5259 = vmatprep.mubr.f32.mxu0 0.0
        %5260 = vmatmul.mubr.f32.gmra.mrb[0].mxu0 %v2265
        %v5261 = vpop.f32.mrb[0].mxu0
        %v5262 = vadd.f32 0.0, %v5261
        %v5263 = vpop.f32.mrb[0].mxu0
        %5264 = vmatprep.mubr.f32.mxu0 0.0
        %5265 = vmatmul.mubr.f32.gmra.mrb[0].mxu0 %v2267
        %v5266 = vpop.f32.mrb[0].mxu0
        %v5267 = vadd.f32 0.0, %v5266
        %v5268 = vpop.f32.mrb[0].mxu0
        %5269 = vmatprep.mubr.f32.mxu0 0.0
        %5270 = vmatmul.mubr.f32.gmra.mrb[0].mxu0 %v2269
        %v5271 = vpop.f32.mrb[0].mxu0
        %v5272 = vadd.f32 0.0, %v5271
        %v5273 = vpop.f32.mrb[0].mxu0
        %5274 = vmatprep.mubr.f32.mxu0 0.0
        %5275 = vmatmul.mubr.f32.gmra.mrb[0].mxu0 %v2271
        %v5276 = vpop.f32.mrb[0].mxu0
        %v5277 = vadd.f32 0.0, %v5276
        %v5278 = vpop.f32.mrb[0].mxu0
        %5279 = vmatprep.mubr.f32.mxu0 0.0
        %5280 = vmatmul.mubr.f32.gmra.mrb[0].mxu0 %v2273
        %v5281 = vpop.f32.mrb[0].mxu0
        %v5282 = vadd.f32 0.0, %v5281
        %v5283 = vpop.f32.mrb[0].mxu0
        %5284 = vmatprep.mubr.f32.mxu0 0.0
        %5285 = vmatmul.mubr.f32.gmra.mrb[0].mxu0 %v2275
        %v5286 = vpop.f32.mrb[0].mxu0
        %v5287 = vadd.f32 0.0, %v5286
        %v5288 = vpop.f32.mrb[0].mxu0
        %5289 = vmatprep.mubr.f32.mxu0 0.0
        %5290 = vmatmul.mubr.f32.gmra.mrb[0].mxu0 %v2277
        %v5291 = vpop.f32.mrb[0].mxu0
        %v5292 = vadd.f32 0.0, %v5291
        %v5293 = vpop.f32.mrb[0].mxu0
        %5294 = vmatprep.mubr.f32.mxu0 0.0
        %5295 = vmatmul.mubr.f32.gmra.mrb[0].mxu0 %v2279
        %v5296 = vpop.f32.mrb[0].mxu0
        %v5297 = vadd.f32 0.0, %v5296
        %v5298 = vpop.f32.mrb[0].mxu0
        %5299 = vmatprep.mubr.f32.mxu0 0.0
        %5300 = vmatmul.mubr.f32.gmra.mrb[0].mxu0 %v2281
        %v5301 = vpop.f32.mrb[0].mxu0
        %v5302 = vadd.f32 0.0, %v5301
        %v5303 = vpop.f32.mrb[0].mxu0
        %5304 = vmatprep.mubr.f32.mxu0 0.0
        %5305 = vmatmul.mubr.f32.gmra.mrb[0].mxu0 %v2283
        %v5306 = vpop.f32.mrb[0].mxu0
        %v5307 = vadd.f32 0.0, %v5306
        %v5308 = vpop.f32.mrb[0].mxu0
        %5309 = vmatprep.mubr.f32.mxu0 0.0
        %5310 = vmatmul.mubr.f32.gmra.mrb[0].mxu0 %v2285
        %v5311 = vpop.f32.mrb[0].mxu0
        %v5312 = vadd.f32 0.0, %v5311
        %v5313 = vpop.f32.mrb[0].mxu0
        %5314 = vmatprep.mubr.f32.mxu0 0.0
        %5315 = vmatmul.mubr.f32.gmra.mrb[0].mxu0 %v2287
        %v5316 = vpop.f32.mrb[0].mxu0
        %v5317 = vadd.f32 0.0, %v5316
        %v5318 = vpop.f32.mrb[0].mxu0
        %5319 = vmatprep.mubr.f32.mxu0 0.0
        %5320 = vmatmul.mubr.f32.gmra.mrb[0].mxu0 %v2289
        %v5321 = vpop.f32.mrb[0].mxu0
        %v5322 = vadd.f32 0.0, %v5321
        %v5323 = vpop.f32.mrb[0].mxu0
        %5324 = vmatprep.mubr.f32.mxu0 0.0
        %5325 = vmatmul.mubr.f32.gmra.mrb[0].mxu0 %v2291
        %v5326 = vpop.f32.mrb[0].mxu0
        %v5327 = vadd.f32 0.0, %v5326
        %v5328 = vpop.f32.mrb[0].mxu0
        %5329 = vmatprep.mubr.f32.mxu0 0.0
        %5330 = vmatmul.mubr.f32.gmra.mrb[0].mxu0 %v2293
        %v5331 = vpop.f32.mrb[0].mxu0
        %v5332 = vadd.f32 0.0, %v5331
        %v5333 = vpop.f32.mrb[0].mxu0
        %5334 = vmatprep.mubr.f32.mxu0 0.0
        %5335 = vmatmul.mubr.f32.gmra.mrb[0].mxu0 %v3757
        %v5336 = vpop.f32.mrb[0].mxu0
        %v5337 = vadd.f32 0.0, %v5336
        %v5338 = vpop.f32.mrb[0].mxu0
        %5339 = vmatprep.mubr.f32.mxu0 0.0
        %5340 = vmatmul.mubr.f32.gmra.mrb[0].mxu0 %v3759
        %v5341 = vpop.f32.mrb[0].mxu0
        %v5342 = vadd.f32 0.0, %v5341
        %v5343 = vpop.f32.mrb[0].mxu0
        %5344 = vmatprep.mubr.f32.mxu0 0.0
        %5345 = vmatmul.mubr.f32.gmra.mrb[0].mxu0 %v2231
        %v5346 = vpop.f32.mrb[0].mxu0
        %v5347 = vadd.f32 0.0, %v5346
        %v5348 = vpop.f32.mrb[0].mxu0
        %5349 = vmatprep.mubr.f32.mxu0 0.0
        %5350 = vmatmul.mubr.f32.gmra.mrb[0].mxu0 %v2233
        %v5351 = vpop.f32.mrb[0].mxu0
        %v5352 = vadd.f32 0.0, %v5351
        %v5353 = vpop.f32.mrb[0].mxu0
        %5354 = vmatprep.mubr.f32.mxu0 0.0
        %5355 = vmatmul.mubr.f32.gmra.mrb[0].mxu0 %v2299
        %v5356 = vpop.f32.mrb[0].mxu0
        %v5357 = vadd.f32 0.0, %v5356
        %v5358 = vpop.f32.mrb[0].mxu0
        %5359 = vmatprep.mubr.f32.mxu0 0.0
        %5360 = vmatmul.mubr.f32.gmra.mrb[0].mxu0 %v2301
        %v5361 = vpop.f32.mrb[0].mxu0
        %v5362 = vadd.f32 0.0, %v5361
        %v5363 = vpop.f32.mrb[0].mxu0
        %5364 = vmatprep.mubr.f32.mxu0 0.0
        %5365 = vmatmul.mubr.f32.gmra.mrb[0].mxu0 %v2303
        %v5366 = vpop.f32.mrb[0].mxu0
        %v5367 = vadd.f32 0.0, %v5366
        %v5368 = vpop.f32.mrb[0].mxu0
        %5369 = vmatprep.mubr.f32.mxu0 0.0
        %5370 = vmatmul.mubr.f32.gmra.mrb[0].mxu0 %v2305
        %v5371 = vpop.f32.mrb[0].mxu0
        %v5372 = vadd.f32 0.0, %v5371
        %v5373 = vpop.f32.mrb[0].mxu0
        %5374 = vmatprep.mubr.f32.mxu0 0.0
        %5375 = vmatmul.mubr.f32.gmra.mrb[0].mxu0 %v2307
        %v5376 = vpop.f32.mrb[0].mxu0
        %v5377 = vadd.f32 0.0, %v5376
        %v5378 = vpop.f32.mrb[0].mxu0
        %5379 = vmatprep.mubr.f32.mxu0 0.0
        %5380 = vmatmul.mubr.f32.gmra.mrb[0].mxu0 %v2309
        %v5381 = vpop.f32.mrb[0].mxu0
        %v5382 = vadd.f32 0.0, %v5381
        %v5383 = vpop.f32.mrb[0].mxu0
        %5384 = vmatprep.mubr.f32.mxu0 0.0
        %5385 = vmatmul.mubr.f32.gmra.mrb[0].mxu0 %v2311
        %v5386 = vpop.f32.mrb[0].mxu0
        %v5387 = vadd.f32 0.0, %v5386
        %v5388 = vpop.f32.mrb[0].mxu0
        %5389 = vmatprep.mubr.f32.mxu0 0.0
        %5390 = vmatmul.mubr.f32.gmra.mrb[0].mxu0 %v2313
        %v5391 = vpop.f32.mrb[0].mxu0
        %v5392 = vadd.f32 0.0, %v5391
        %v5393 = vpop.f32.mrb[0].mxu0
        %5394 = vmatprep.mubr.f32.mxu0 0.0
        %5395 = vmatmul.mubr.f32.gmra.mrb[0].mxu0 %v2315
        %v5396 = vpop.f32.mrb[0].mxu0
        %v5397 = vadd.f32 0.0, %v5396
        %v5398 = vpop.f32.mrb[0].mxu0
        %5399 = vmatprep.mubr.f32.mxu0 0.0
        %5400 = vmatmul.mubr.f32.gmra.mrb[0].mxu0 %v2317
        %v5401 = vpop.f32.mrb[0].mxu0
        %v5402 = vadd.f32 0.0, %v5401
        %v5403 = vpop.f32.mrb[0].mxu0
        %5404 = vmatprep.mubr.f32.mxu0 0.0
        %5405 = vmatmul.mubr.f32.gmra.mrb[0].mxu0 %v2319
        %v5406 = vpop.f32.mrb[0].mxu0
        %v5407 = vadd.f32 0.0, %v5406
        %v5408 = vpop.f32.mrb[0].mxu0
        %5409 = vmatprep.mubr.f32.mxu0 0.0
        %5410 = vmatmul.mubr.f32.gmra.mrb[0].mxu0 %v2321
        %v5411 = vpop.f32.mrb[0].mxu0
        %v5412 = vadd.f32 0.0, %v5411
        %v5413 = vpop.f32.mrb[0].mxu0
        %5414 = vmatprep.mubr.f32.mxu0 0.0
        %5415 = vmatmul.mubr.f32.gmra.mrb[0].mxu0 %v2323
        %v5416 = vpop.f32.mrb[0].mxu0
        %v5417 = vadd.f32 0.0, %v5416
        %v5418 = vpop.f32.mrb[0].mxu0
        %5419 = vmatprep.mubr.f32.mxu0 0.0
        %5420 = vmatmul.mubr.f32.gmra.mrb[0].mxu0 %v2325
        %v5421 = vpop.f32.mrb[0].mxu0
        %v5422 = vadd.f32 0.0, %v5421
        %v5423 = vpop.f32.mrb[0].mxu0
        %5424 = vmatprep.mubr.f32.mxu0 0.0
        %5425 = vmatmul.mubr.f32.gmra.mrb[0].mxu0 %v2327
        %v5426 = vpop.f32.mrb[0].mxu0
        %v5427 = vadd.f32 0.0, %v5426
        %v5428 = vpop.f32.mrb[0].mxu0
        %5429 = vmatprep.mubr.f32.mxu0 0.0
        %5430 = vmatmul.mubr.f32.gmra.mrb[0].mxu0 %v2329
        %v5431 = vpop.f32.mrb[0].mxu0
        %v5432 = vadd.f32 0.0, %v5431
        %v5433 = vpop.f32.mrb[0].mxu0
        %5434 = vmatprep.mubr.f32.mxu0 0.0
        %5435 = vmatmul.mubr.f32.gmra.mrb[0].mxu0 %v2331
        %v5436 = vpop.f32.mrb[0].mxu0
        %v5437 = vadd.f32 0.0, %v5436
        %v5438 = vpop.f32.mrb[0].mxu0
        %5439 = vmatprep.mubr.f32.mxu0 0.0
        %5440 = vmatmul.mubr.f32.gmra.mrb[0].mxu0 %v2333
        %v5441 = vpop.f32.mrb[0].mxu0
        %v5442 = vadd.f32 0.0, %v5441
        %v5443 = vpop.f32.mrb[0].mxu0
        %5444 = vmatprep.mubr.f32.mxu0 0.0
        %5445 = vmatmul.mubr.f32.gmra.mrb[0].mxu0 %v2335
        %v5446 = vpop.f32.mrb[0].mxu0
        %v5447 = vadd.f32 0.0, %v5446
        %v5448 = vpop.f32.mrb[0].mxu0
        %5449 = vmatprep.mubr.f32.mxu0 0.0
        %5450 = vmatmul.mubr.f32.gmra.mrb[0].mxu0 %v2337
        %v5451 = vpop.f32.mrb[0].mxu0
        %v5452 = vadd.f32 0.0, %v5451
        %v5453 = vpop.f32.mrb[0].mxu0
        %5454 = vmatprep.mubr.f32.mxu0 0.0
        %5455 = vmatmul.mubr.f32.gmra.mrb[0].mxu0 %v2339
        %v5456 = vpop.f32.mrb[0].mxu0
        %v5457 = vadd.f32 0.0, %v5456
        %v5458 = vpop.f32.mrb[0].mxu0
        %5459 = vmatprep.mubr.f32.mxu0 0.0
        %5460 = vmatmul.mubr.f32.gmra.mrb[0].mxu0 %v2341
        %v5461 = vpop.f32.mrb[0].mxu0
        %v5462 = vadd.f32 0.0, %v5461
        %v5463 = vpop.f32.mrb[0].mxu0
        %5464 = vmatprep.mubr.f32.mxu0 0.0
        %5465 = vmatmul.mubr.f32.gmra.mrb[0].mxu0 %v2343
        %v5466 = vpop.f32.mrb[0].mxu0
        %v5467 = vadd.f32 0.0, %v5466
        %v5468 = vpop.f32.mrb[0].mxu0
        %5469 = vmatprep.mubr.f32.mxu0 0.0
        %5470 = vmatmul.mubr.f32.gmra.mrb[0].mxu0 %v2345
        %v5471 = vpop.f32.mrb[0].mxu0
        %v5472 = vadd.f32 0.0, %v5471
        %v5473 = vpop.f32.mrb[0].mxu0
        %5474 = vmatprep.mubr.f32.mxu0 0.0
        %5475 = vmatmul.mubr.f32.gmra.mrb[0].mxu0 %v2347
        %v5476 = vpop.f32.mrb[0].mxu0
        %v5477 = vadd.f32 0.0, %v5476
        %v5478 = vpop.f32.mrb[0].mxu0
        %5479 = vmatprep.mubr.f32.mxu0 0.0
        %5480 = vmatmul.mubr.f32.gmra.mrb[0].mxu0 %v2349
        %v5481 = vpop.f32.mrb[0].mxu0
        %v5482 = vadd.f32 0.0, %v5481
        %v5483 = vpop.f32.mrb[0].mxu0
        %5484 = vmatprep.mubr.f32.mxu0 0.0
        %5485 = vmatmul.mubr.f32.gmra.mrb[0].mxu0 %v2351
        %v5486 = vpop.f32.mrb[0].mxu0
        %v5487 = vadd.f32 0.0, %v5486
        %v5488 = vpop.f32.mrb[0].mxu0
        %5489 = vmatprep.mubr.f32.mxu0 0.0
        %5490 = vmatmul.mubr.f32.gmra.mrb[0].mxu0 %v2353
        %v5491 = vpop.f32.mrb[0].mxu0
        %v5492 = vadd.f32 0.0, %v5491
        %v5493 = vpop.f32.mrb[0].mxu0
        %5494 = vmatprep.mubr.f32.mxu0 0.0
        %5495 = vmatmul.mubr.f32.gmra.mrb[0].mxu0 %v3761
        %v5496 = vpop.f32.mrb[0].mxu0
        %v5497 = vadd.f32 0.0, %v5496
        %v5498 = vpop.f32.mrb[0].mxu0
        %5499 = vmatprep.mubr.f32.mxu0 0.0
        %5500 = vmatmul.mubr.f32.gmra.mrb[0].mxu0 %v3763
        %v5501 = vpop.f32.mrb[0].mxu0
        %v5502 = vadd.f32 0.0, %v5501
        %v5503 = vpop.f32.mrb[0].mxu0
        %5504 = vmatprep.mubr.f32.mxu0 0.0
        %5505 = vmatmul.mubr.f32.gmra.mrb[0].mxu0 %v2231
        %v5506 = vpop.f32.mrb[0].mxu0
        %v5507 = vadd.f32 0.0, %v5506
        %v5508 = vpop.f32.mrb[0].mxu0
        %5509 = vmatprep.mubr.f32.mxu0 0.0
        %5510 = vmatmul.mubr.f32.gmra.mrb[0].mxu0 %v2233
        %v5511 = vpop.f32.mrb[0].mxu0
        %v5512 = vadd.f32 0.0, %v5511
        %v5513 = vpop.f32.mrb[0].mxu0
        %5514 = vdwg.mxu0
        %v5515 = vadd.f32 %v5061, %v5197
        %v5516 = vadd.f32 %v5062, %v5202
        %v5517 = vadd.f32 %v5063, %v5207
        %v5518 = vadd.f32 %v5064, %v5212
        %v5519 = vadd.f32 %v5065, %v5217
        %v5520 = vadd.f32 %v5066, %v5222
        %v5521 = vadd.f32 %v5067, %v5227
        %v5522 = vadd.f32 %v5068, %v5232
        %v5523 = vadd.f32 %v5069, %v5237
        %v5524 = vadd.f32 %v5070, %v5242
        %v5525 = vadd.f32 %v5071, %v5247
        %v5526 = vadd.f32 %v5072, %v5252
        %v5527 = vadd.f32 %v5073, %v5257
        %v5528 = vadd.f32 %v5074, %v5262
        %v5529 = vadd.f32 %v5075, %v5267
        %v5530 = vadd.f32 %v5076, %v5272
        %v5531 = vadd.f32 %v5077, %v5277
        %v5532 = vadd.f32 %v5078, %v5282
        %v5533 = vadd.f32 %v5079, %v5287
        %v5534 = vadd.f32 %v5080, %v5292
        %v5535 = vadd.f32 %v5081, %v5297
        %v5536 = vadd.f32 %v5082, %v5302
        %v5537 = vadd.f32 %v5083, %v5307
        %v5538 = vadd.f32 %v5084, %v5312
        %v5539 = vadd.f32 %v5085, %v5317
        %v5540 = vadd.f32 %v5086, %v5322
        %v5541 = vadd.f32 %v5087, %v5327
        %v5542 = vadd.f32 %v5088, %v5332
        %v5543 = vadd.f32 %v5089, %v5337
        %v5544 = vadd.f32 %v5090, %v5342
        %v5545 = vadd.f32 %v5091, %v5347
        %v5546 = vadd.f32 %v5092, %v5352
        %v5547 = vadd.f32 %v5093, %v5357
        %v5548 = vadd.f32 %v5094, %v5362
        %v5549 = vadd.f32 %v5095, %v5367
        %v5550 = vadd.f32 %v5096, %v5372
        %v5551 = vadd.f32 %v5097, %v5377
        %v5552 = vadd.f32 %v5098, %v5382
        %v5553 = vadd.f32 %v5099, %v5387
        %v5554 = vadd.f32 %v5100, %v5392
        %v5555 = vadd.f32 %v5101, %v5397
        %v5556 = vadd.f32 %v5102, %v5402
        %v5557 = vadd.f32 %v5103, %v5407
        %v5558 = vadd.f32 %v5104, %v5412
        %v5559 = vadd.f32 %v5105, %v5417
        %v5560 = vadd.f32 %v5106, %v5422
        %v5561 = vadd.f32 %v5107, %v5427
        %v5562 = vadd.f32 %v5108, %v5432
        %v5563 = vadd.f32 %v5109, %v5437
        %v5564 = vadd.f32 %v5110, %v5442
        %v5565 = vadd.f32 %v5111, %v5447
        %v5566 = vadd.f32 %v5112, %v5452
        %v5567 = vadd.f32 %v5113, %v5457
        %v5568 = vadd.f32 %v5114, %v5462
        %v5569 = vadd.f32 %v5115, %v5467
        %v5570 = vadd.f32 %v5116, %v5472
        %v5571 = vadd.f32 %v5117, %v5477
        %v5572 = vadd.f32 %v5118, %v5482
        %v5573 = vadd.f32 %v5119, %v5487
        %v5574 = vadd.f32 %v5120, %v5492
        %v5575 = vadd.f32 %v5121, %v5497
        %v5576 = vadd.f32 %v5122, %v5502
        %v5577 = vadd.f32 %v5123, %v5507
        %v5578 = vadd.f32 %v5124, %v5512
        %v5580 = vlaneseq
        %v5581 = vshrl.u32 %v5580, 7
        %v5582 = vsub.s32 0, %v5581
        %v5583 = vrot.slane %v529, %v5582
        %v5585 = vmul.f32 %v5515, %v5583
        %v5586 = vmul.f32 %v5516, %v5583
        %v5587 = vmul.f32 %v5517, %v5583
        %v5588 = vmul.f32 %v5518, %v5583
        %v5589 = vmul.f32 %v5519, %v5583
        %v5590 = vmul.f32 %v5520, %v5583
        %v5591 = vmul.f32 %v5521, %v5583
        %v5592 = vmul.f32 %v5522, %v5583
        %v5593 = vmul.f32 %v5523, %v5583
        %v5594 = vmul.f32 %v5524, %v5583
        %v5595 = vmul.f32 %v5525, %v5583
        %v5596 = vmul.f32 %v5526, %v5583
        %v5597 = vmul.f32 %v5527, %v5583
        %v5598 = vmul.f32 %v5528, %v5583
        %v5599 = vmul.f32 %v5529, %v5583
        %v5600 = vmul.f32 %v5530, %v5583
        %v5601 = vmul.f32 %v5531, %v5583
        %v5602 = vmul.f32 %v5532, %v5583
        %v5603 = vmul.f32 %v5533, %v5583
        %v5604 = vmul.f32 %v5534, %v5583
        %v5605 = vmul.f32 %v5535, %v5583
        %v5606 = vmul.f32 %v5536, %v5583
        %v5607 = vmul.f32 %v5537, %v5583
        %v5608 = vmul.f32 %v5538, %v5583
        %v5609 = vmul.f32 %v5539, %v5583
        %v5610 = vmul.f32 %v5540, %v5583
        %v5611 = vmul.f32 %v5541, %v5583
        %v5612 = vmul.f32 %v5542, %v5583
        %v5613 = vmul.f32 %v5543, %v5583
        %v5614 = vmul.f32 %v5544, %v5583
        %v5615 = vmul.f32 %v5545, %v5583
        %v5616 = vmul.f32 %v5546, %v5583
        %v5617 = vmul.f32 %v5547, %v5583
        %v5618 = vmul.f32 %v5548, %v5583
        %v5619 = vmul.f32 %v5549, %v5583
        %v5620 = vmul.f32 %v5550, %v5583
        %v5621 = vmul.f32 %v5551, %v5583
        %v5622 = vmul.f32 %v5552, %v5583
        %v5623 = vmul.f32 %v5553, %v5583
        %v5624 = vmul.f32 %v5554, %v5583
        %v5625 = vmul.f32 %v5555, %v5583
        %v5626 = vmul.f32 %v5556, %v5583
        %v5627 = vmul.f32 %v5557, %v5583
        %v5628 = vmul.f32 %v5558, %v5583
        %v5629 = vmul.f32 %v5559, %v5583
        %v5630 = vmul.f32 %v5560, %v5583
        %v5631 = vmul.f32 %v5561, %v5583
        %v5632 = vmul.f32 %v5562, %v5583
        %v5633 = vmul.f32 %v5563, %v5583
        %v5634 = vmul.f32 %v5564, %v5583
        %v5635 = vmul.f32 %v5565, %v5583
        %v5636 = vmul.f32 %v5566, %v5583
        %v5637 = vmul.f32 %v5567, %v5583
        %v5638 = vmul.f32 %v5568, %v5583
        %v5639 = vmul.f32 %v5569, %v5583
        %v5640 = vmul.f32 %v5570, %v5583
        %v5641 = vmul.f32 %v5571, %v5583
        %v5642 = vmul.f32 %v5572, %v5583
        %v5643 = vmul.f32 %v5573, %v5583
        %v5644 = vmul.f32 %v5574, %v5583
        %v5645 = vmul.f32 %v5575, %v5583
        %v5646 = vmul.f32 %v5576, %v5583
        %v5647 = vmul.f32 %v5577, %v5583
        %v5648 = vmul.f32 %v5578, %v5583
        %v5650 = vlaneseq
        %v5651 = vshrl.u32 %v5650, 7
        %v5652 = vsub.s32 0, %v5651
        %v5653 = vrot.slane %v530, %v5652
        %v5655 = vadd.f32 %v5585, %v5653
        %v5656 = vadd.f32 %v5586, %v5653
        %v5657 = vadd.f32 %v5587, %v5653
        %v5658 = vadd.f32 %v5588, %v5653
        %v5659 = vadd.f32 %v5589, %v5653
        %v5660 = vadd.f32 %v5590, %v5653
        %v5661 = vadd.f32 %v5591, %v5653
        %v5662 = vadd.f32 %v5592, %v5653
        %v5663 = vadd.f32 %v5593, %v5653
        %v5664 = vadd.f32 %v5594, %v5653
        %v5665 = vadd.f32 %v5595, %v5653
        %v5666 = vadd.f32 %v5596, %v5653
        %v5667 = vadd.f32 %v5597, %v5653
        %v5668 = vadd.f32 %v5598, %v5653
        %v5669 = vadd.f32 %v5599, %v5653
        %v5670 = vadd.f32 %v5600, %v5653
        %v5671 = vadd.f32 %v5601, %v5653
        %v5672 = vadd.f32 %v5602, %v5653
        %v5673 = vadd.f32 %v5603, %v5653
        %v5674 = vadd.f32 %v5604, %v5653
        %v5675 = vadd.f32 %v5605, %v5653
        %v5676 = vadd.f32 %v5606, %v5653
        %v5677 = vadd.f32 %v5607, %v5653
        %v5678 = vadd.f32 %v5608, %v5653
        %v5679 = vadd.f32 %v5609, %v5653
        %v5680 = vadd.f32 %v5610, %v5653
        %v5681 = vadd.f32 %v5611, %v5653
        %v5682 = vadd.f32 %v5612, %v5653
        %v5683 = vadd.f32 %v5613, %v5653
        %v5684 = vadd.f32 %v5614, %v5653
        %v5685 = vadd.f32 %v5615, %v5653
        %v5686 = vadd.f32 %v5616, %v5653
        %v5687 = vadd.f32 %v5617, %v5653
        %v5688 = vadd.f32 %v5618, %v5653
        %v5689 = vadd.f32 %v5619, %v5653
        %v5690 = vadd.f32 %v5620, %v5653
        %v5691 = vadd.f32 %v5621, %v5653
        %v5692 = vadd.f32 %v5622, %v5653
        %v5693 = vadd.f32 %v5623, %v5653
        %v5694 = vadd.f32 %v5624, %v5653
        %v5695 = vadd.f32 %v5625, %v5653
        %v5696 = vadd.f32 %v5626, %v5653
        %v5697 = vadd.f32 %v5627, %v5653
        %v5698 = vadd.f32 %v5628, %v5653
        %v5699 = vadd.f32 %v5629, %v5653
        %v5700 = vadd.f32 %v5630, %v5653
        %v5701 = vadd.f32 %v5631, %v5653
        %v5702 = vadd.f32 %v5632, %v5653
        %v5703 = vadd.f32 %v5633, %v5653
        %v5704 = vadd.f32 %v5634, %v5653
        %v5705 = vadd.f32 %v5635, %v5653
        %v5706 = vadd.f32 %v5636, %v5653
        %v5707 = vadd.f32 %v5637, %v5653
        %v5708 = vadd.f32 %v5638, %v5653
        %v5709 = vadd.f32 %v5639, %v5653
        %v5710 = vadd.f32 %v5640, %v5653
        %v5711 = vadd.f32 %v5641, %v5653
        %v5712 = vadd.f32 %v5642, %v5653
        %v5713 = vadd.f32 %v5643, %v5653
        %v5714 = vadd.f32 %v5644, %v5653
        %v5715 = vadd.f32 %v5645, %v5653
        %v5716 = vadd.f32 %v5646, %v5653
        %v5717 = vadd.f32 %v5647, %v5653
        %v5718 = vadd.f32 %v5648, %v5653
        %v5719 = vmax.f32 %v5655, 0.0
        %v5720 = vmax.f32 %v5656, 0.0
        %v5721 = vmax.f32 %v5657, 0.0
        %v5722 = vmax.f32 %v5658, 0.0
        %v5723 = vmax.f32 %v5659, 0.0
        %v5724 = vmax.f32 %v5660, 0.0
        %v5725 = vmax.f32 %v5661, 0.0
        %v5726 = vmax.f32 %v5662, 0.0
        %v5727 = vmax.f32 %v5663, 0.0
        %v5728 = vmax.f32 %v5664, 0.0
        %v5729 = vmax.f32 %v5665, 0.0
        %v5730 = vmax.f32 %v5666, 0.0
        %v5731 = vmax.f32 %v5667, 0.0
        %v5732 = vmax.f32 %v5668, 0.0
        %v5733 = vmax.f32 %v5669, 0.0
        %v5734 = vmax.f32 %v5670, 0.0
        %v5735 = vmax.f32 %v5671, 0.0
        %v5736 = vmax.f32 %v5672, 0.0
        %v5737 = vmax.f32 %v5673, 0.0
        %v5738 = vmax.f32 %v5674, 0.0
        %v5739 = vmax.f32 %v5675, 0.0
        %v5740 = vmax.f32 %v5676, 0.0
        %v5741 = vmax.f32 %v5677, 0.0
        %v5742 = vmax.f32 %v5678, 0.0
        %v5743 = vmax.f32 %v5679, 0.0
        %v5744 = vmax.f32 %v5680, 0.0
        %v5745 = vmax.f32 %v5681, 0.0
        %v5746 = vmax.f32 %v5682, 0.0
        %v5747 = vmax.f32 %v5683, 0.0
        %v5748 = vmax.f32 %v5684, 0.0
        %v5749 = vmax.f32 %v5685, 0.0
        %v5750 = vmax.f32 %v5686, 0.0
        %v5751 = vmax.f32 %v5687, 0.0
        %v5752 = vmax.f32 %v5688, 0.0
        %v5753 = vmax.f32 %v5689, 0.0
        %v5754 = vmax.f32 %v5690, 0.0
        %v5755 = vmax.f32 %v5691, 0.0
        %v5756 = vmax.f32 %v5692, 0.0
        %v5757 = vmax.f32 %v5693, 0.0
        %v5758 = vmax.f32 %v5694, 0.0
        %v5759 = vmax.f32 %v5695, 0.0
        %v5760 = vmax.f32 %v5696, 0.0
        %v5761 = vmax.f32 %v5697, 0.0
        %v5762 = vmax.f32 %v5698, 0.0
        %v5763 = vmax.f32 %v5699, 0.0
        %v5764 = vmax.f32 %v5700, 0.0
        %v5765 = vmax.f32 %v5701, 0.0
        %v5766 = vmax.f32 %v5702, 0.0
        %v5767 = vmax.f32 %v5703, 0.0
        %v5768 = vmax.f32 %v5704, 0.0
        %v5769 = vmax.f32 %v5705, 0.0
        %v5770 = vmax.f32 %v5706, 0.0
        %v5771 = vmax.f32 %v5707, 0.0
        %v5772 = vmax.f32 %v5708, 0.0
        %v5773 = vmax.f32 %v5709, 0.0
        %v5774 = vmax.f32 %v5710, 0.0
        %v5775 = vmax.f32 %v5711, 0.0
        %v5776 = vmax.f32 %v5712, 0.0
        %v5777 = vmax.f32 %v5713, 0.0
        %v5778 = vmax.f32 %v5714, 0.0
        %v5779 = vmax.f32 %v5715, 0.0
        %v5780 = vmax.f32 %v5716, 0.0
        %v5781 = vmax.f32 %v5717, 0.0
        %v5782 = vmax.f32 %v5718, 0.0
        %v5783 = vmax.f32 %v5719, %v5721
        %v5784 = vmax.f32 %v5720, %v5722
        %v5785 = vmax.f32 %v5723, %v5725
        %v5786 = vmax.f32 %v5724, %v5726
        %v5787 = vmax.f32 %v5727, %v5729
        %v5788 = vmax.f32 %v5728, %v5730
        %v5789 = vmax.f32 %v5731, %v5733
        %v5790 = vmax.f32 %v5732, %v5734
        %v5791 = vmax.f32 %v5735, %v5737
        %v5792 = vmax.f32 %v5736, %v5738
        %v5793 = vmax.f32 %v5739, %v5741
        %v5794 = vmax.f32 %v5740, %v5742
        %v5795 = vmax.f32 %v5743, %v5745
        %v5796 = vmax.f32 %v5744, %v5746
        %v5797 = vmax.f32 %v5747, %v5749
        %v5798 = vmax.f32 %v5748, %v5750
        %v5799 = vmax.f32 %v5751, %v5753
        %v5800 = vmax.f32 %v5752, %v5754
        %v5801 = vmax.f32 %v5755, %v5757
        %v5802 = vmax.f32 %v5756, %v5758
        %v5803 = vmax.f32 %v5759, %v5761
        %v5804 = vmax.f32 %v5760, %v5762
        %v5805 = vmax.f32 %v5763, %v5765
        %v5806 = vmax.f32 %v5764, %v5766
        %v5807 = vmax.f32 %v5767, %v5769
        %v5808 = vmax.f32 %v5768, %v5770
        %v5809 = vmax.f32 %v5771, %v5773
        %v5810 = vmax.f32 %v5772, %v5774
        %v5811 = vmax.f32 %v5775, %v5777
        %v5812 = vmax.f32 %v5776, %v5778
        %v5813 = vmax.f32 %v5779, %v5781
        %v5814 = vmax.f32 %v5780, %v5782
        %vm5815 = vcmask 64512
        %5816 = vst.msk [vmem:[#allocation2] sm:$0xff] %vm5815, %v5783
        %5817 = vst.msk [vmem:[#allocation2 + $0x8] sm:$0xff] %vm5815, %v5784
        %5818 = vst.msk [vmem:[#allocation2 + $0x10] sm:$0xff] %vm5815, %v5785
        %5819 = vst.msk [vmem:[#allocation2 + $0x18] sm:$0xff] %vm5815, %v5786
        %5820 = vst.msk [vmem:[#allocation2 + $0x20] sm:$0xff] %vm5815, %v5787
        %5821 = vst.msk [vmem:[#allocation2 + $0x28] sm:$0xff] %vm5815, %v5788
        %5822 = vst.msk [vmem:[#allocation2 + $0x30] sm:$0xff] %vm5815, %v5789
        %5823 = vst.msk [vmem:[#allocation2 + $0x38] sm:$0xff] %vm5815, %v5790
        %5824 = vst.msk [vmem:[#allocation2 + $0x40] sm:$0xff] %vm5815, %v5791
        %5825 = vst.msk [vmem:[#allocation2 + $0x48] sm:$0xff] %vm5815, %v5792
        %5826 = vst.msk [vmem:[#allocation2 + $0x50] sm:$0xff] %vm5815, %v5793
        %5827 = vst.msk [vmem:[#allocation2 + $0x58] sm:$0xff] %vm5815, %v5794
        %5828 = vst.msk [vmem:[#allocation2 + $0x60] sm:$0xff] %vm5815, %v5795
        %5829 = vst.msk [vmem:[#allocation2 + $0x68] sm:$0xff] %vm5815, %v5796
        %5830 = vst.msk [vmem:[#allocation2 + $0x70] sm:$0xff] %vm5815, %v5797
        %5831 = vst.msk [vmem:[#allocation2 + $0x78] sm:$0xff] %vm5815, %v5798
        %5832 = vst.msk [vmem:[#allocation2 + $0x80] sm:$0xff] %vm5815, %v5799
        %5833 = vst.msk [vmem:[#allocation2 + $0x88] sm:$0xff] %vm5815, %v5800
        %5834 = vst.msk [vmem:[#allocation2 + $0x90] sm:$0xff] %vm5815, %v5801
        %5835 = vst.msk [vmem:[#allocation2 + $0x98] sm:$0xff] %vm5815, %v5802
        %5836 = vst.msk [vmem:[#allocation2 + $0xa0] sm:$0xff] %vm5815, %v5803
        %5837 = vst.msk [vmem:[#allocation2 + $0xa8] sm:$0xff] %vm5815, %v5804
        %5838 = vst.msk [vmem:[#allocation2 + $0xb0] sm:$0xff] %vm5815, %v5805
        %5839 = vst.msk [vmem:[#allocation2 + $0xb8] sm:$0xff] %vm5815, %v5806
        %5840 = vst.msk [vmem:[#allocation2 + $0xc0] sm:$0xff] %vm5815, %v5807
        %5841 = vst.msk [vmem:[#allocation2 + $0xc8] sm:$0xff] %vm5815, %v5808
        %5842 = vst.msk [vmem:[#allocation2 + $0xd0] sm:$0xff] %vm5815, %v5809
        %5843 = vst.msk [vmem:[#allocation2 + $0xd8] sm:$0xff] %vm5815, %v5810
        %5844 = vst.msk [vmem:[#allocation2 + $0xe0] sm:$0xff] %vm5815, %v5811
        %5845 = vst.msk [vmem:[#allocation2 + $0xe8] sm:$0xff] %vm5815, %v5812
        %5846 = vst.msk [vmem:[#allocation2 + $0xf0] sm:$0xff] %vm5815, %v5813
        %5847 = vst.msk [vmem:[#allocation2 + $0xf8] sm:$0xff] %vm5815, %v5814
        %v5848 = vld [vmem:[#allocation2] ss:$2 sm:$0xff]
        %s5849 = scalar_lea.vmem [#allocation2], 16
        %v5850 = vld [vmem:[%s5849] ss:$2 sm:$0xff]
        %s5851 = scalar_lea.vmem [#allocation2], 32
        %v5852 = vld [vmem:[%s5851] ss:$2 sm:$0xff]
        %s5853 = scalar_lea.vmem [#allocation2], 48
        %v5854 = vld [vmem:[%s5853] ss:$2 sm:$0xff]
        %s5855 = scalar_lea.vmem [#allocation2], 64
        %v5856 = vld [vmem:[%s5855] ss:$2 sm:$0xff]
        %s5857 = scalar_lea.vmem [#allocation2], 80
        %v5858 = vld [vmem:[%s5857] ss:$2 sm:$0xff]
        %s5859 = scalar_lea.vmem [#allocation2], 96
        %v5860 = vld [vmem:[%s5859] ss:$2 sm:$0xff]
        %s5861 = scalar_lea.vmem [#allocation2], 112
        %v5862 = vld [vmem:[%s5861] ss:$2 sm:$0xff]
        %s5863 = scalar_lea.vmem [#allocation2], 128
        %v5864 = vld [vmem:[%s5863] ss:$2 sm:$0xff]
        %s5865 = scalar_lea.vmem [#allocation2], 144
        %v5866 = vld [vmem:[%s5865] ss:$2 sm:$0xff]
        %s5867 = scalar_lea.vmem [#allocation2], 160
        %v5868 = vld [vmem:[%s5867] ss:$2 sm:$0xff]
        %s5869 = scalar_lea.vmem [#allocation2], 176
        %v5870 = vld [vmem:[%s5869] ss:$2 sm:$0xff]
        %s5871 = scalar_lea.vmem [#allocation2], 192
        %v5872 = vld [vmem:[%s5871] ss:$2 sm:$0xff]
        %s5873 = scalar_lea.vmem [#allocation2], 208
        %v5874 = vld [vmem:[%s5873] ss:$2 sm:$0xff]
        %s5875 = scalar_lea.vmem [#allocation2], 224
        %v5876 = vld [vmem:[%s5875] ss:$2 sm:$0xff]
        %s5877 = scalar_lea.vmem [#allocation2], 240
        %v5878 = vld [vmem:[%s5877] ss:$2 sm:$0xff]
        %s5879 = scalar_lea.vmem [#allocation2], 1
        %v5880 = vld [vmem:[%s5879] ss:$2 sm:$0xff]
        %s5881 = scalar_lea.vmem [#allocation2], 17
        %v5882 = vld [vmem:[%s5881] ss:$2 sm:$0xff]
        %s5883 = scalar_lea.vmem [#allocation2], 33
        %v5884 = vld [vmem:[%s5883] ss:$2 sm:$0xff]
        %s5885 = scalar_lea.vmem [#allocation2], 49
        %v5886 = vld [vmem:[%s5885] ss:$2 sm:$0xff]
        %s5887 = scalar_lea.vmem [#allocation2], 65
        %v5888 = vld [vmem:[%s5887] ss:$2 sm:$0xff]
        %s5889 = scalar_lea.vmem [#allocation2], 81
        %v5890 = vld [vmem:[%s5889] ss:$2 sm:$0xff]
        %s5891 = scalar_lea.vmem [#allocation2], 97
        %v5892 = vld [vmem:[%s5891] ss:$2 sm:$0xff]
        %s5893 = scalar_lea.vmem [#allocation2], 113
        %v5894 = vld [vmem:[%s5893] ss:$2 sm:$0xff]
        %s5895 = scalar_lea.vmem [#allocation2], 129
        %v5896 = vld [vmem:[%s5895] ss:$2 sm:$0xff]
        %s5897 = scalar_lea.vmem [#allocation2], 145
        %v5898 = vld [vmem:[%s5897] ss:$2 sm:$0xff]
        %s5899 = scalar_lea.vmem [#allocation2], 161
        %v5900 = vld [vmem:[%s5899] ss:$2 sm:$0xff]
        %s5901 = scalar_lea.vmem [#allocation2], 177
        %v5902 = vld [vmem:[%s5901] ss:$2 sm:$0xff]
        %s5903 = scalar_lea.vmem [#allocation2], 193
        %v5904 = vld [vmem:[%s5903] ss:$2 sm:$0xff]
        %s5905 = scalar_lea.vmem [#allocation2], 209
        %v5906 = vld [vmem:[%s5905] ss:$2 sm:$0xff]
        %s5907 = scalar_lea.vmem [#allocation2], 225
        %v5908 = vld [vmem:[%s5907] ss:$2 sm:$0xff]
        %s5909 = scalar_lea.vmem [#allocation2], 241
        %v5910 = vld [vmem:[%s5909] ss:$2 sm:$0xff]
        %v5911 = vmax.f32 %v5848, %v5880
        %v5912 = vmax.f32 %v5850, %v5882
        %v5913 = vmax.f32 %v5852, %v5884
        %v5914 = vmax.f32 %v5854, %v5886
        %v5915 = vmax.f32 %v5856, %v5888
        %v5916 = vmax.f32 %v5858, %v5890
        %v5917 = vmax.f32 %v5860, %v5892
        %v5918 = vmax.f32 %v5862, %v5894
        %v5919 = vmax.f32 %v5864, %v5896
        %v5920 = vmax.f32 %v5866, %v5898
        %v5921 = vmax.f32 %v5868, %v5900
        %v5922 = vmax.f32 %v5870, %v5902
        %v5923 = vmax.f32 %v5872, %v5904
        %v5924 = vmax.f32 %v5874, %v5906
        %v5925 = vmax.f32 %v5876, %v5908
        %v5926 = vmax.f32 %v5878, %v5910
        %v5927 = vadd.f32 %v5911, %v5919
        %v5928 = vadd.f32 %v5912, %v5920
        %v5929 = vadd.f32 %v5913, %v5921
        %v5930 = vadd.f32 %v5914, %v5922
        %v5931 = vadd.f32 %v5915, %v5923
        %v5932 = vadd.f32 %v5916, %v5924
        %v5933 = vadd.f32 %v5917, %v5925
        %v5934 = vadd.f32 %v5918, %v5926
        %v5935 = vmul.f32 %v5927, 0.5
        %v5936 = vmul.f32 %v5928, 0.5
        %v5937 = vmul.f32 %v5929, 0.5
        %v5938 = vmul.f32 %v5930, 0.5
        %v5939 = vmul.f32 %v5931, 0.5
        %v5940 = vmul.f32 %v5932, 0.5
        %v5941 = vmul.f32 %v5933, 0.5
        %v5942 = vmul.f32 %v5934, 0.5
        %v5943 = vld [vmem:[%s4] sm:$0xff]
        %v5945 = vsel %vm5815, %v5935, 0
        %v5948 = vsel %vm5815, %v5936, 0
        %v5951 = vsel %vm5815, %v5937, 0
        %v5954 = vsel %vm5815, %v5938, 0
        %v5957 = vsel %vm5815, %v5939, 0
        %v5960 = vsel %vm5815, %v5940, 0
        %v5963 = vsel %vm5815, %v5941, 0
        %v5966 = vsel %vm5815, %v5942, 0
        %5968 = vmatprep.subr.mxu0 0.0
        %5969 = vmatpush1.msra.mxu0 %v5943
        %5970 = vmatprep.subr.mxu0 0.0
        %5971 = vmatpush1.msra.mxu0 0.0
        %5972 = vmatprep.subr.mxu0 0.0
        %5973 = vmatpush1.msra.mxu0 0.0
        %5974 = vmatprep.subr.mxu0 0.0
        %5975 = vmatpush1.msra.mxu0 0.0
        %5976 = vmatprep.subr.mxu0 0.0
        %5977 = vmatpush1.msra.mxu0 0.0
        %5978 = vmatprep.subr.mxu0 0.0
        %5979 = vmatpush1.msra.mxu0 0.0
        %5980 = vmatprep.subr.mxu0 0.0
        %5981 = vmatpush1.msra.mxu0 0.0
        %5982 = vmatprep.subr.mxu0 0.0
        %5983 = vmatpush1.msra.mxu0 0.0
        %5984 = vmatprep.subr.mxu0 0.0
        %5985 = vmatpush1.msra.mxu0 0.0
        %5986 = vmatprep.subr.mxu0 0.0
        %5987 = vmatpush1.msra.mxu0 0.0
        %5988 = vmatprep.subr.mxu0 0.0
        %5989 = vmatpush1.msra.mxu0 0.0
        %5990 = vmatprep.subr.mxu0 0.0
        %5991 = vmatpush1.msra.mxu0 0.0
        %5992 = vmatprep.subr.mxu0 0.0
        %5993 = vmatpush1.msra.mxu0 0.0
        %5994 = vmatprep.subr.mxu0 0.0
        %5995 = vmatpush1.msra.mxu0 0.0
        %5996 = vmatprep.subr.mxu0 0.0
        %5997 = vmatpush1.msra.mxu0 0.0
        %5998 = vmatprep.subr.mxu0 0.0
        %5999 = vmatpush1.msra.mxu0 0.0
        %6000 = vmatprep.subr.mxu0 0.0
        %6001 = vmatpush1.msra.mxu0 0.0
        %6002 = vmatprep.subr.mxu0 0.0
        %6003 = vmatpush1.msra.mxu0 0.0
        %6004 = vmatprep.subr.mxu0 0.0
        %6005 = vmatpush1.msra.mxu0 0.0
        %6006 = vmatprep.subr.mxu0 0.0
        %6007 = vmatpush1.msra.mxu0 0.0
        %6008 = vmatprep.subr.mxu0 0.0
        %6009 = vmatpush1.msra.mxu0 0.0
        %6010 = vmatprep.subr.mxu0 0.0
        %6011 = vmatpush1.msra.mxu0 0.0
        %6012 = vmatprep.subr.mxu0 0.0
        %6013 = vmatpush1.msra.mxu0 0.0
        %6014 = vmatprep.subr.mxu0 0.0
        %6015 = vmatpush1.msra.mxu0 0.0
        %6016 = vmatprep.subr.mxu0 0.0
        %6017 = vmatpush1.msra.mxu0 0.0
        %6018 = vmatprep.subr.mxu0 0.0
        %6019 = vmatpush1.msra.mxu0 0.0
        %6020 = vmatprep.subr.mxu0 0.0
        %6021 = vmatpush1.msra.mxu0 0.0
        %6022 = vmatprep.subr.mxu0 0.0
        %6023 = vmatpush1.msra.mxu0 0.0
        %6024 = vmatprep.subr.mxu0 0.0
        %6025 = vmatpush1.msra.mxu0 0.0
        %6026 = vmatprep.subr.mxu0 0.0
        %6027 = vmatpush1.msra.mxu0 0.0
        %6028 = vmatprep.subr.mxu0 0.0
        %6029 = vmatpush1.msra.mxu0 0.0
        %6030 = vmatprep.subr.mxu0 0.0
        %6031 = vmatpush1.msra.mxu0 0.0
        %6032 = vmatprep.mubr.f32.mxu0 0.0
        %6033 = vmatmul.mubr.f32.gmra.mrb[0].mxu0 %v5945
        %v6034 = vpop.f32.mrb[0].mxu0
        %v6035 = vadd.f32 0.0, %v6034
        %v6036 = vpop.f32.mrb[0].mxu0
        %6037 = vmatprep.mubr.f32.mxu0 0.0
        %6038 = vmatmul.mubr.f32.gmra.mrb[0].mxu0 %v5948
        %v6039 = vpop.f32.mrb[0].mxu0
        %v6040 = vadd.f32 0.0, %v6039
        %v6041 = vpop.f32.mrb[0].mxu0
        %6042 = vmatprep.mubr.f32.mxu0 0.0
        %6043 = vmatmul.mubr.f32.gmra.mrb[0].mxu0 %v5951
        %v6044 = vpop.f32.mrb[0].mxu0
        %v6045 = vadd.f32 0.0, %v6044
        %v6046 = vpop.f32.mrb[0].mxu0
        %6047 = vmatprep.mubr.f32.mxu0 0.0
        %6048 = vmatmul.mubr.f32.gmra.mrb[0].mxu0 %v5954
        %v6049 = vpop.f32.mrb[0].mxu0
        %v6050 = vadd.f32 0.0, %v6049
        %v6051 = vpop.f32.mrb[0].mxu0
        %6052 = vmatprep.mubr.f32.mxu0 0.0
        %6053 = vmatmul.mubr.f32.gmra.mrb[0].mxu0 %v5957
        %v6054 = vpop.f32.mrb[0].mxu0
        %v6055 = vadd.f32 0.0, %v6054
        %v6056 = vpop.f32.mrb[0].mxu0
        %6057 = vmatprep.mubr.f32.mxu0 0.0
        %6058 = vmatmul.mubr.f32.gmra.mrb[0].mxu0 %v5960
        %v6059 = vpop.f32.mrb[0].mxu0
        %v6060 = vadd.f32 0.0, %v6059
        %v6061 = vpop.f32.mrb[0].mxu0
        %6062 = vmatprep.mubr.f32.mxu0 0.0
        %6063 = vmatmul.mubr.f32.gmra.mrb[0].mxu0 %v5963
        %v6064 = vpop.f32.mrb[0].mxu0
        %v6065 = vadd.f32 0.0, %v6064
        %v6066 = vpop.f32.mrb[0].mxu0
        %6067 = vmatprep.mubr.f32.mxu0 0.0
        %6068 = vmatmul.mubr.f32.gmra.mrb[0].mxu0 %v5966
        %v6069 = vpop.f32.mrb[0].mxu0
        %v6070 = vadd.f32 0.0, %v6069
        %v6071 = vpop.f32.mrb[0].mxu0
        %6072 = vdwg.mxu0
        %v6073 = vld [vmem:[%s5] sm:$0x1]
        %v6075 = vlaneseq
        %v6076 = vshrl.u32 %v6075, 7
        %v6077 = vsub.s32 0, %v6076
        %v6078 = vrot.slane %v6073, %v6077
        %v6080 = vmul.f32 %v6035, %v6078
        %v6081 = vmul.f32 %v6040, %v6078
        %v6082 = vmul.f32 %v6045, %v6078
        %v6083 = vmul.f32 %v6050, %v6078
        %v6084 = vmul.f32 %v6055, %v6078
        %v6085 = vmul.f32 %v6060, %v6078
        %v6086 = vmul.f32 %v6065, %v6078
        %v6087 = vmul.f32 %v6070, %v6078
        %v6088 = vld [vmem:[%s6] sm:$0x1]
        %v6090 = vlaneseq
        %v6091 = vshrl.u32 %v6090, 7
        %v6092 = vsub.s32 0, %v6091
        %v6093 = vrot.slane %v6088, %v6092
        %v6095 = vadd.f32 %v6080, %v6093
        %v6096 = vadd.f32 %v6081, %v6093
        %v6097 = vadd.f32 %v6082, %v6093
        %v6098 = vadd.f32 %v6083, %v6093
        %v6099 = vadd.f32 %v6084, %v6093
        %v6100 = vadd.f32 %v6085, %v6093
        %v6101 = vadd.f32 %v6086, %v6093
        %v6102 = vadd.f32 %v6087, %v6093
        %v6103 = vmax.f32 %v6095, 0.0
        %v6104 = vmax.f32 %v6096, 0.0
        %v6105 = vmax.f32 %v6097, 0.0
        %v6106 = vmax.f32 %v6098, 0.0
        %v6107 = vmax.f32 %v6099, 0.0
        %v6108 = vmax.f32 %v6100, 0.0
        %v6109 = vmax.f32 %v6101, 0.0
        %v6110 = vmax.f32 %v6102, 0.0
        %v6111 = vadd.f32 %v6103, %v5919
        %v6112 = vadd.f32 %v6104, %v5920
        %v6113 = vadd.f32 %v6105, %v5921
        %v6114 = vadd.f32 %v6106, %v5922
        %v6115 = vadd.f32 %v6107, %v5923
        %v6116 = vadd.f32 %v6108, %v5924
        %v6117 = vadd.f32 %v6109, %v5925
        %v6118 = vadd.f32 %v6110, %v5926
        %v6119 = vld [vmem:[%s8] sm:$0x1]
        %v6120 = vld [vmem:[%s9] sm:$0x1]
        %v6129 = vrot.slane %v6111, 7
        %v6130 = vrot.slane %v6112, 7
        %v6131 = vrot.slane %v6113, 7
        %v6132 = vrot.slane %v6114, 7
        %v6133 = vrot.slane %v6115, 7
        %v6134 = vrot.slane %v6116, 7
        %v6135 = vrot.slane %v6117, 7
        %v6136 = vrot.slane %v6118, 7
        %v6145 = vsel %vm596, 0.0, %v6129
        %v6146 = vsel %vm596, 0.0, %v6130
        %v6147 = vsel %vm596, 0.0, %v6131
        %v6148 = vsel %vm596, 0.0, %v6132
        %v6149 = vsel %vm596, 0.0, %v6133
        %v6150 = vsel %vm596, 0.0, %v6134
        %v6151 = vsel %vm596, 0.0, %v6135
        %v6152 = vsel %vm596, 0.0, %v6136
        %v6153 = vsel %vm596, %v6129, 0.0
        %v6154 = vsel %vm596, %v6130, 0.0
        %v6155 = vsel %vm596, %v6131, 0.0
        %v6156 = vsel %vm596, %v6132, 0.0
        %v6157 = vsel %vm596, %v6133, 0.0
        %v6158 = vsel %vm596, %v6134, 0.0
        %v6159 = vsel %vm596, %v6135, 0.0
        %v6160 = vsel %vm596, %v6136, 0.0
        %v6161 = vld [vmem:[%s7] sm:$0xff]
        %v6176 = vsel %vm889, %v890, %v893
        %v6177 = vrot.slane %v6145, 1
        %v6178 = vrot.slane %v6153, 1
        %v6179 = vsel %vm889, %v6177, %v6178
        %v6180 = vrot.slane %v6146, 1
        %v6181 = vrot.slane %v6154, 1
        %v6182 = vsel %vm889, %v6180, %v6181
        %v6183 = vrot.slane %v6147, 1
        %v6184 = vrot.slane %v6155, 1
        %v6185 = vsel %vm889, %v6183, %v6184
        %v6186 = vrot.slane %v6148, 1
        %v6187 = vrot.slane %v6156, 1
        %v6188 = vsel %vm889, %v6186, %v6187
        %v6189 = vrot.slane %v6149, 1
        %v6190 = vrot.slane %v6157, 1
        %v6191 = vsel %vm889, %v6189, %v6190
        %v6192 = vrot.slane %v6150, 1
        %v6193 = vrot.slane %v6158, 1
        %v6194 = vsel %vm889, %v6192, %v6193
        %v6195 = vrot.slane %v6151, 1
        %v6196 = vrot.slane %v6159, 1
        %v6197 = vsel %vm889, %v6195, %v6196
        %s6198 = scalar_lea.vmem %s7, 8
        %v6199 = vld [vmem:[%s6198] sm:$0xff]
        %v6200 = vsel %vm5815, %v6176, 0
        %v6202 = vsel %vm5815, %v6179, 0
        %v6204 = vsel %vm5815, %v6182, 0
        %v6206 = vsel %vm5815, %v6185, 0
        %v6208 = vsel %vm5815, %v6188, 0
        %v6210 = vsel %vm5815, %v6191, 0
        %v6212 = vsel %vm5815, %v6194, 0
        %v6214 = vsel %vm5815, %v6197, 0
        %6216 = vmatprep.subr.mxu0 0.0
        %6217 = vmatpush1.msra.mxu0 %v6199
        %6218 = vmatprep.subr.mxu0 0.0
        %6219 = vmatpush1.msra.mxu0 0.0
        %6220 = vmatprep.subr.mxu0 0.0
        %6221 = vmatpush1.msra.mxu0 0.0
        %6222 = vmatprep.subr.mxu0 0.0
        %6223 = vmatpush1.msra.mxu0 0.0
        %6224 = vmatprep.subr.mxu0 0.0
        %6225 = vmatpush1.msra.mxu0 0.0
        %6226 = vmatprep.subr.mxu0 0.0
        %6227 = vmatpush1.msra.mxu0 0.0
        %6228 = vmatprep.subr.mxu0 0.0
        %6229 = vmatpush1.msra.mxu0 0.0
        %6230 = vmatprep.subr.mxu0 0.0
        %6231 = vmatpush1.msra.mxu0 0.0
        %6232 = vmatprep.subr.mxu0 0.0
        %6233 = vmatpush1.msra.mxu0 0.0
        %6234 = vmatprep.subr.mxu0 0.0
        %6235 = vmatpush1.msra.mxu0 0.0
        %6236 = vmatprep.subr.mxu0 0.0
        %6237 = vmatpush1.msra.mxu0 0.0
        %6238 = vmatprep.subr.mxu0 0.0
        %6239 = vmatpush1.msra.mxu0 0.0
        %6240 = vmatprep.subr.mxu0 0.0
        %6241 = vmatpush1.msra.mxu0 0.0
        %6242 = vmatprep.subr.mxu0 0.0
        %6243 = vmatpush1.msra.mxu0 0.0
        %6244 = vmatprep.subr.mxu0 0.0
        %6245 = vmatpush1.msra.mxu0 0.0
        %6246 = vmatprep.subr.mxu0 0.0
        %6247 = vmatpush1.msra.mxu0 0.0
        %6248 = vmatprep.subr.mxu0 0.0
        %6249 = vmatpush1.msra.mxu0 0.0
        %6250 = vmatprep.subr.mxu0 0.0
        %6251 = vmatpush1.msra.mxu0 0.0
        %6252 = vmatprep.subr.mxu0 0.0
        %6253 = vmatpush1.msra.mxu0 0.0
        %6254 = vmatprep.subr.mxu0 0.0
        %6255 = vmatpush1.msra.mxu0 0.0
        %6256 = vmatprep.subr.mxu0 0.0
        %6257 = vmatpush1.msra.mxu0 0.0
        %6258 = vmatprep.subr.mxu0 0.0
        %6259 = vmatpush1.msra.mxu0 0.0
        %6260 = vmatprep.subr.mxu0 0.0
        %6261 = vmatpush1.msra.mxu0 0.0
        %6262 = vmatprep.subr.mxu0 0.0
        %6263 = vmatpush1.msra.mxu0 0.0
        %6264 = vmatprep.subr.mxu0 0.0
        %6265 = vmatpush1.msra.mxu0 0.0
        %6266 = vmatprep.subr.mxu0 0.0
        %6267 = vmatpush1.msra.mxu0 0.0
        %6268 = vmatprep.subr.mxu0 0.0
        %6269 = vmatpush1.msra.mxu0 0.0
        %6270 = vmatprep.subr.mxu0 0.0
        %6271 = vmatpush1.msra.mxu0 0.0
        %6272 = vmatprep.subr.mxu0 0.0
        %6273 = vmatpush1.msra.mxu0 0.0
        %6274 = vmatprep.subr.mxu0 0.0
        %6275 = vmatpush1.msra.mxu0 0.0
        %6276 = vmatprep.subr.mxu0 0.0
        %6277 = vmatpush1.msra.mxu0 0.0
        %6278 = vmatprep.subr.mxu0 0.0
        %6279 = vmatpush1.msra.mxu0 0.0
        %6280 = vmatprep.mubr.f32.mxu0 0.0
        %6281 = vmatmul.mubr.f32.gmra.mrb[0].mxu0 %v6200
        %v6282 = vpop.f32.mrb[0].mxu0
        %v6283 = vadd.f32 0.0, %v6282
        %v6284 = vpop.f32.mrb[0].mxu0
        %6285 = vmatprep.mubr.f32.mxu0 0.0
        %6286 = vmatmul.mubr.f32.gmra.mrb[0].mxu0 %v6202
        %v6287 = vpop.f32.mrb[0].mxu0
        %v6288 = vadd.f32 0.0, %v6287
        %v6289 = vpop.f32.mrb[0].mxu0
        %6290 = vmatprep.mubr.f32.mxu0 0.0
        %6291 = vmatmul.mubr.f32.gmra.mrb[0].mxu0 %v6204
        %v6292 = vpop.f32.mrb[0].mxu0
        %v6293 = vadd.f32 0.0, %v6292
        %v6294 = vpop.f32.mrb[0].mxu0
        %6295 = vmatprep.mubr.f32.mxu0 0.0
        %6296 = vmatmul.mubr.f32.gmra.mrb[0].mxu0 %v6206
        %v6297 = vpop.f32.mrb[0].mxu0
        %v6298 = vadd.f32 0.0, %v6297
        %v6299 = vpop.f32.mrb[0].mxu0
        %6300 = vmatprep.mubr.f32.mxu0 0.0
        %6301 = vmatmul.mubr.f32.gmra.mrb[0].mxu0 %v6208
        %v6302 = vpop.f32.mrb[0].mxu0
        %v6303 = vadd.f32 0.0, %v6302
        %v6304 = vpop.f32.mrb[0].mxu0
        %6305 = vmatprep.mubr.f32.mxu0 0.0
        %6306 = vmatmul.mubr.f32.gmra.mrb[0].mxu0 %v6210
        %v6307 = vpop.f32.mrb[0].mxu0
        %v6308 = vadd.f32 0.0, %v6307
        %v6309 = vpop.f32.mrb[0].mxu0
        %6310 = vmatprep.mubr.f32.mxu0 0.0
        %6311 = vmatmul.mubr.f32.gmra.mrb[0].mxu0 %v6212
        %v6312 = vpop.f32.mrb[0].mxu0
        %v6313 = vadd.f32 0.0, %v6312
        %v6314 = vpop.f32.mrb[0].mxu0
        %6315 = vmatprep.mubr.f32.mxu0 0.0
        %6316 = vmatmul.mubr.f32.gmra.mrb[0].mxu0 %v6214
        %v6317 = vpop.f32.mrb[0].mxu0
        %v6318 = vadd.f32 0.0, %v6317
        %v6319 = vpop.f32.mrb[0].mxu0
        %6320 = vdwg.mxu0
        %v6321 = vsel %vm5815, %v760, 0
        %v6323 = vsel %vm5815, %v6145, 0
        %v6325 = vsel %vm5815, %v6146, 0
        %v6327 = vsel %vm5815, %v6147, 0
        %v6329 = vsel %vm5815, %v6148, 0
        %v6331 = vsel %vm5815, %v6149, 0
        %v6333 = vsel %vm5815, %v6150, 0
        %v6335 = vsel %vm5815, %v6151, 0
        %6337 = vmatprep.subr.mxu0 0.0
        %6338 = vmatpush1.msra.mxu0 %v6161
        %6339 = vmatprep.subr.mxu0 0.0
        %6340 = vmatpush1.msra.mxu0 0.0
        %6341 = vmatprep.subr.mxu0 0.0
        %6342 = vmatpush1.msra.mxu0 0.0
        %6343 = vmatprep.subr.mxu0 0.0
        %6344 = vmatpush1.msra.mxu0 0.0
        %6345 = vmatprep.subr.mxu0 0.0
        %6346 = vmatpush1.msra.mxu0 0.0
        %6347 = vmatprep.subr.mxu0 0.0
        %6348 = vmatpush1.msra.mxu0 0.0
        %6349 = vmatprep.subr.mxu0 0.0
        %6350 = vmatpush1.msra.mxu0 0.0
        %6351 = vmatprep.subr.mxu0 0.0
        %6352 = vmatpush1.msra.mxu0 0.0
        %6353 = vmatprep.subr.mxu0 0.0
        %6354 = vmatpush1.msra.mxu0 0.0
        %6355 = vmatprep.subr.mxu0 0.0
        %6356 = vmatpush1.msra.mxu0 0.0
        %6357 = vmatprep.subr.mxu0 0.0
        %6358 = vmatpush1.msra.mxu0 0.0
        %6359 = vmatprep.subr.mxu0 0.0
        %6360 = vmatpush1.msra.mxu0 0.0
        %6361 = vmatprep.subr.mxu0 0.0
        %6362 = vmatpush1.msra.mxu0 0.0
        %6363 = vmatprep.subr.mxu0 0.0
        %6364 = vmatpush1.msra.mxu0 0.0
        %6365 = vmatprep.subr.mxu0 0.0
        %6366 = vmatpush1.msra.mxu0 0.0
        %6367 = vmatprep.subr.mxu0 0.0
        %6368 = vmatpush1.msra.mxu0 0.0
        %6369 = vmatprep.subr.mxu0 0.0
        %6370 = vmatpush1.msra.mxu0 0.0
        %6371 = vmatprep.subr.mxu0 0.0
        %6372 = vmatpush1.msra.mxu0 0.0
        %6373 = vmatprep.subr.mxu0 0.0
        %6374 = vmatpush1.msra.mxu0 0.0
        %6375 = vmatprep.subr.mxu0 0.0
        %6376 = vmatpush1.msra.mxu0 0.0
        %6377 = vmatprep.subr.mxu0 0.0
        %6378 = vmatpush1.msra.mxu0 0.0
        %6379 = vmatprep.subr.mxu0 0.0
        %6380 = vmatpush1.msra.mxu0 0.0
        %6381 = vmatprep.subr.mxu0 0.0
        %6382 = vmatpush1.msra.mxu0 0.0
        %6383 = vmatprep.subr.mxu0 0.0
        %6384 = vmatpush1.msra.mxu0 0.0
        %6385 = vmatprep.subr.mxu0 0.0
        %6386 = vmatpush1.msra.mxu0 0.0
        %6387 = vmatprep.subr.mxu0 0.0
        %6388 = vmatpush1.msra.mxu0 0.0
        %6389 = vmatprep.subr.mxu0 0.0
        %6390 = vmatpush1.msra.mxu0 0.0
        %6391 = vmatprep.subr.mxu0 0.0
        %6392 = vmatpush1.msra.mxu0 0.0
        %6393 = vmatprep.subr.mxu0 0.0
        %6394 = vmatpush1.msra.mxu0 0.0
        %6395 = vmatprep.subr.mxu0 0.0
        %6396 = vmatpush1.msra.mxu0 0.0
        %6397 = vmatprep.subr.mxu0 0.0
        %6398 = vmatpush1.msra.mxu0 0.0
        %6399 = vmatprep.subr.mxu0 0.0
        %6400 = vmatpush1.msra.mxu0 0.0
        %6401 = vmatprep.mubr.f32.mxu0 0.0
        %6402 = vmatmul.mubr.f32.gmra.mrb[0].mxu0 %v6321
        %v6403 = vpop.f32.mrb[0].mxu0
        %v6404 = vadd.f32 %v6283, %v6403
        %v6405 = vpop.f32.mrb[0].mxu0
        %6406 = vmatprep.mubr.f32.mxu0 0.0
        %6407 = vmatmul.mubr.f32.gmra.mrb[0].mxu0 %v6323
        %v6408 = vpop.f32.mrb[0].mxu0
        %v6409 = vadd.f32 %v6288, %v6408
        %v6410 = vpop.f32.mrb[0].mxu0
        %6411 = vmatprep.mubr.f32.mxu0 0.0
        %6412 = vmatmul.mubr.f32.gmra.mrb[0].mxu0 %v6325
        %v6413 = vpop.f32.mrb[0].mxu0
        %v6414 = vadd.f32 %v6293, %v6413
        %v6415 = vpop.f32.mrb[0].mxu0
        %6416 = vmatprep.mubr.f32.mxu0 0.0
        %6417 = vmatmul.mubr.f32.gmra.mrb[0].mxu0 %v6327
        %v6418 = vpop.f32.mrb[0].mxu0
        %v6419 = vadd.f32 %v6298, %v6418
        %v6420 = vpop.f32.mrb[0].mxu0
        %6421 = vmatprep.mubr.f32.mxu0 0.0
        %6422 = vmatmul.mubr.f32.gmra.mrb[0].mxu0 %v6329
        %v6423 = vpop.f32.mrb[0].mxu0
        %v6424 = vadd.f32 %v6303, %v6423
        %v6425 = vpop.f32.mrb[0].mxu0
        %6426 = vmatprep.mubr.f32.mxu0 0.0
        %6427 = vmatmul.mubr.f32.gmra.mrb[0].mxu0 %v6331
        %v6428 = vpop.f32.mrb[0].mxu0
        %v6429 = vadd.f32 %v6308, %v6428
        %v6430 = vpop.f32.mrb[0].mxu0
        %6431 = vmatprep.mubr.f32.mxu0 0.0
        %6432 = vmatmul.mubr.f32.gmra.mrb[0].mxu0 %v6333
        %v6433 = vpop.f32.mrb[0].mxu0
        %v6434 = vadd.f32 %v6313, %v6433
        %v6435 = vpop.f32.mrb[0].mxu0
        %6436 = vmatprep.mubr.f32.mxu0 0.0
        %6437 = vmatmul.mubr.f32.gmra.mrb[0].mxu0 %v6335
        %v6438 = vpop.f32.mrb[0].mxu0
        %v6439 = vadd.f32 %v6318, %v6438
        %v6440 = vpop.f32.mrb[0].mxu0
        %6441 = vdwg.mxu0
        %v6442 = vsel %vm2073, %v2074, %v2077
        %v6443 = vrot.slane %v6145, 2
        %v6444 = vrot.slane %v6153, 2
        %v6445 = vsel %vm2073, %v6443, %v6444
        %v6446 = vrot.slane %v6146, 2
        %v6447 = vrot.slane %v6154, 2
        %v6448 = vsel %vm2073, %v6446, %v6447
        %v6449 = vrot.slane %v6147, 2
        %v6450 = vrot.slane %v6155, 2
        %v6451 = vsel %vm2073, %v6449, %v6450
        %v6452 = vrot.slane %v6148, 2
        %v6453 = vrot.slane %v6156, 2
        %v6454 = vsel %vm2073, %v6452, %v6453
        %v6455 = vrot.slane %v6149, 2
        %v6456 = vrot.slane %v6157, 2
        %v6457 = vsel %vm2073, %v6455, %v6456
        %v6458 = vrot.slane %v6150, 2
        %v6459 = vrot.slane %v6158, 2
        %v6460 = vsel %vm2073, %v6458, %v6459
        %v6461 = vrot.slane %v6151, 2
        %v6462 = vrot.slane %v6159, 2
        %v6463 = vsel %vm2073, %v6461, %v6462
        %s6464 = scalar_lea.vmem %s7, 16
        %v6465 = vld [vmem:[%s6464] sm:$0xff]
        %v6466 = vsel %vm5815, %v6442, 0
        %v6468 = vsel %vm5815, %v6445, 0
        %v6470 = vsel %vm5815, %v6448, 0
        %v6472 = vsel %vm5815, %v6451, 0
        %v6474 = vsel %vm5815, %v6454, 0
        %v6476 = vsel %vm5815, %v6457, 0
        %v6478 = vsel %vm5815, %v6460, 0
        %v6480 = vsel %vm5815, %v6463, 0
        %6482 = vmatprep.subr.mxu0 0.0
        %6483 = vmatpush1.msra.mxu0 %v6465
        %6484 = vmatprep.subr.mxu0 0.0
        %6485 = vmatpush1.msra.mxu0 0.0
        %6486 = vmatprep.subr.mxu0 0.0
        %6487 = vmatpush1.msra.mxu0 0.0
        %6488 = vmatprep.subr.mxu0 0.0
        %6489 = vmatpush1.msra.mxu0 0.0
        %6490 = vmatprep.subr.mxu0 0.0
        %6491 = vmatpush1.msra.mxu0 0.0
        %6492 = vmatprep.subr.mxu0 0.0
        %6493 = vmatpush1.msra.mxu0 0.0
        %6494 = vmatprep.subr.mxu0 0.0
        %6495 = vmatpush1.msra.mxu0 0.0
        %6496 = vmatprep.subr.mxu0 0.0
        %6497 = vmatpush1.msra.mxu0 0.0
        %6498 = vmatprep.subr.mxu0 0.0
        %6499 = vmatpush1.msra.mxu0 0.0
        %6500 = vmatprep.subr.mxu0 0.0
        %6501 = vmatpush1.msra.mxu0 0.0
        %6502 = vmatprep.subr.mxu0 0.0
        %6503 = vmatpush1.msra.mxu0 0.0
        %6504 = vmatprep.subr.mxu0 0.0
        %6505 = vmatpush1.msra.mxu0 0.0
        %6506 = vmatprep.subr.mxu0 0.0
        %6507 = vmatpush1.msra.mxu0 0.0
        %6508 = vmatprep.subr.mxu0 0.0
        %6509 = vmatpush1.msra.mxu0 0.0
        %6510 = vmatprep.subr.mxu0 0.0
        %6511 = vmatpush1.msra.mxu0 0.0
        %6512 = vmatprep.subr.mxu0 0.0
        %6513 = vmatpush1.msra.mxu0 0.0
        %6514 = vmatprep.subr.mxu0 0.0
        %6515 = vmatpush1.msra.mxu0 0.0
        %6516 = vmatprep.subr.mxu0 0.0
        %6517 = vmatpush1.msra.mxu0 0.0
        %6518 = vmatprep.subr.mxu0 0.0
        %6519 = vmatpush1.msra.mxu0 0.0
        %6520 = vmatprep.subr.mxu0 0.0
        %6521 = vmatpush1.msra.mxu0 0.0
        %6522 = vmatprep.subr.mxu0 0.0
        %6523 = vmatpush1.msra.mxu0 0.0
        %6524 = vmatprep.subr.mxu0 0.0
        %6525 = vmatpush1.msra.mxu0 0.0
        %6526 = vmatprep.subr.mxu0 0.0
        %6527 = vmatpush1.msra.mxu0 0.0
        %6528 = vmatprep.subr.mxu0 0.0
        %6529 = vmatpush1.msra.mxu0 0.0
        %6530 = vmatprep.subr.mxu0 0.0
        %6531 = vmatpush1.msra.mxu0 0.0
        %6532 = vmatprep.subr.mxu0 0.0
        %6533 = vmatpush1.msra.mxu0 0.0
        %6534 = vmatprep.subr.mxu0 0.0
        %6535 = vmatpush1.msra.mxu0 0.0
        %6536 = vmatprep.subr.mxu0 0.0
        %6537 = vmatpush1.msra.mxu0 0.0
        %6538 = vmatprep.subr.mxu0 0.0
        %6539 = vmatpush1.msra.mxu0 0.0
        %6540 = vmatprep.subr.mxu0 0.0
        %6541 = vmatpush1.msra.mxu0 0.0
        %6542 = vmatprep.subr.mxu0 0.0
        %6543 = vmatpush1.msra.mxu0 0.0
        %6544 = vmatprep.subr.mxu0 0.0
        %6545 = vmatpush1.msra.mxu0 0.0
        %6546 = vmatprep.mubr.f32.mxu0 0.0
        %6547 = vmatmul.mubr.f32.gmra.mrb[0].mxu0 %v6466
        %v6548 = vpop.f32.mrb[0].mxu0
        %v6549 = vadd.f32 0.0, %v6548
        %v6550 = vpop.f32.mrb[0].mxu0
        %6551 = vmatprep.mubr.f32.mxu0 0.0
        %6552 = vmatmul.mubr.f32.gmra.mrb[0].mxu0 %v6468
        %v6553 = vpop.f32.mrb[0].mxu0
        %v6554 = vadd.f32 0.0, %v6553
        %v6555 = vpop.f32.mrb[0].mxu0
        %6556 = vmatprep.mubr.f32.mxu0 0.0
        %6557 = vmatmul.mubr.f32.gmra.mrb[0].mxu0 %v6470
        %v6558 = vpop.f32.mrb[0].mxu0
        %v6559 = vadd.f32 0.0, %v6558
        %v6560 = vpop.f32.mrb[0].mxu0
        %6561 = vmatprep.mubr.f32.mxu0 0.0
        %6562 = vmatmul.mubr.f32.gmra.mrb[0].mxu0 %v6472
        %v6563 = vpop.f32.mrb[0].mxu0
        %v6564 = vadd.f32 0.0, %v6563
        %v6565 = vpop.f32.mrb[0].mxu0
        %6566 = vmatprep.mubr.f32.mxu0 0.0
        %6567 = vmatmul.mubr.f32.gmra.mrb[0].mxu0 %v6474
        %v6568 = vpop.f32.mrb[0].mxu0
        %v6569 = vadd.f32 0.0, %v6568
        %v6570 = vpop.f32.mrb[0].mxu0
        %6571 = vmatprep.mubr.f32.mxu0 0.0
        %6572 = vmatmul.mubr.f32.gmra.mrb[0].mxu0 %v6476
        %v6573 = vpop.f32.mrb[0].mxu0
        %v6574 = vadd.f32 0.0, %v6573
        %v6575 = vpop.f32.mrb[0].mxu0
        %6576 = vmatprep.mubr.f32.mxu0 0.0
        %6577 = vmatmul.mubr.f32.gmra.mrb[0].mxu0 %v6478
        %v6578 = vpop.f32.mrb[0].mxu0
        %v6579 = vadd.f32 0.0, %v6578
        %v6580 = vpop.f32.mrb[0].mxu0
        %6581 = vmatprep.mubr.f32.mxu0 0.0
        %6582 = vmatmul.mubr.f32.gmra.mrb[0].mxu0 %v6480
        %v6583 = vpop.f32.mrb[0].mxu0
        %v6584 = vadd.f32 0.0, %v6583
        %v6585 = vpop.f32.mrb[0].mxu0
        %6586 = vdwg.mxu0
        %v6587 = vadd.f32 %v6404, %v6549
        %v6588 = vadd.f32 %v6409, %v6554
        %v6589 = vadd.f32 %v6414, %v6559
        %v6590 = vadd.f32 %v6419, %v6564
        %v6591 = vadd.f32 %v6424, %v6569
        %v6592 = vadd.f32 %v6429, %v6574
        %v6593 = vadd.f32 %v6434, %v6579
        %v6594 = vadd.f32 %v6439, %v6584
        %s6595 = scalar_lea.vmem %s7, 24
        %v6596 = vld [vmem:[%s6595] sm:$0xff]
        %v6598 = vsel %vm5815, %v6152, 0
        %6600 = vmatprep.subr.mxu0 0.0
        %6601 = vmatpush1.msra.mxu0 %v6596
        %6602 = vmatprep.subr.mxu0 0.0
        %6603 = vmatpush1.msra.mxu0 0.0
        %6604 = vmatprep.subr.mxu0 0.0
        %6605 = vmatpush1.msra.mxu0 0.0
        %6606 = vmatprep.subr.mxu0 0.0
        %6607 = vmatpush1.msra.mxu0 0.0
        %6608 = vmatprep.subr.mxu0 0.0
        %6609 = vmatpush1.msra.mxu0 0.0
        %6610 = vmatprep.subr.mxu0 0.0
        %6611 = vmatpush1.msra.mxu0 0.0
        %6612 = vmatprep.subr.mxu0 0.0
        %6613 = vmatpush1.msra.mxu0 0.0
        %6614 = vmatprep.subr.mxu0 0.0
        %6615 = vmatpush1.msra.mxu0 0.0
        %6616 = vmatprep.subr.mxu0 0.0
        %6617 = vmatpush1.msra.mxu0 0.0
        %6618 = vmatprep.subr.mxu0 0.0
        %6619 = vmatpush1.msra.mxu0 0.0
        %6620 = vmatprep.subr.mxu0 0.0
        %6621 = vmatpush1.msra.mxu0 0.0
        %6622 = vmatprep.subr.mxu0 0.0
        %6623 = vmatpush1.msra.mxu0 0.0
        %6624 = vmatprep.subr.mxu0 0.0
        %6625 = vmatpush1.msra.mxu0 0.0
        %6626 = vmatprep.subr.mxu0 0.0
        %6627 = vmatpush1.msra.mxu0 0.0
        %6628 = vmatprep.subr.mxu0 0.0
        %6629 = vmatpush1.msra.mxu0 0.0
        %6630 = vmatprep.subr.mxu0 0.0
        %6631 = vmatpush1.msra.mxu0 0.0
        %6632 = vmatprep.subr.mxu0 0.0
        %6633 = vmatpush1.msra.mxu0 0.0
        %6634 = vmatprep.subr.mxu0 0.0
        %6635 = vmatpush1.msra.mxu0 0.0
        %6636 = vmatprep.subr.mxu0 0.0
        %6637 = vmatpush1.msra.mxu0 0.0
        %6638 = vmatprep.subr.mxu0 0.0
        %6639 = vmatpush1.msra.mxu0 0.0
        %6640 = vmatprep.subr.mxu0 0.0
        %6641 = vmatpush1.msra.mxu0 0.0
        %6642 = vmatprep.subr.mxu0 0.0
        %6643 = vmatpush1.msra.mxu0 0.0
        %6644 = vmatprep.subr.mxu0 0.0
        %6645 = vmatpush1.msra.mxu0 0.0
        %6646 = vmatprep.subr.mxu0 0.0
        %6647 = vmatpush1.msra.mxu0 0.0
        %6648 = vmatprep.subr.mxu0 0.0
        %6649 = vmatpush1.msra.mxu0 0.0
        %6650 = vmatprep.subr.mxu0 0.0
        %6651 = vmatpush1.msra.mxu0 0.0
        %6652 = vmatprep.subr.mxu0 0.0
        %6653 = vmatpush1.msra.mxu0 0.0
        %6654 = vmatprep.subr.mxu0 0.0
        %6655 = vmatpush1.msra.mxu0 0.0
        %6656 = vmatprep.subr.mxu0 0.0
        %6657 = vmatpush1.msra.mxu0 0.0
        %6658 = vmatprep.subr.mxu0 0.0
        %6659 = vmatpush1.msra.mxu0 0.0
        %6660 = vmatprep.subr.mxu0 0.0
        %6661 = vmatpush1.msra.mxu0 0.0
        %6662 = vmatprep.subr.mxu0 0.0
        %6663 = vmatpush1.msra.mxu0 0.0
        %6664 = vmatprep.mubr.f32.mxu0 0.0
        %6665 = vmatmul.mubr.f32.gmra.mrb[0].mxu0 %v6323
        %v6666 = vpop.f32.mrb[0].mxu0
        %v6667 = vadd.f32 0.0, %v6666
        %v6668 = vpop.f32.mrb[0].mxu0
        %6669 = vmatprep.mubr.f32.mxu0 0.0
        %6670 = vmatmul.mubr.f32.gmra.mrb[0].mxu0 %v6325
        %v6671 = vpop.f32.mrb[0].mxu0
        %v6672 = vadd.f32 0.0, %v6671
        %v6673 = vpop.f32.mrb[0].mxu0
        %6674 = vmatprep.mubr.f32.mxu0 0.0
        %6675 = vmatmul.mubr.f32.gmra.mrb[0].mxu0 %v6327
        %v6676 = vpop.f32.mrb[0].mxu0
        %v6677 = vadd.f32 0.0, %v6676
        %v6678 = vpop.f32.mrb[0].mxu0
        %6679 = vmatprep.mubr.f32.mxu0 0.0
        %6680 = vmatmul.mubr.f32.gmra.mrb[0].mxu0 %v6329
        %v6681 = vpop.f32.mrb[0].mxu0
        %v6682 = vadd.f32 0.0, %v6681
        %v6683 = vpop.f32.mrb[0].mxu0
        %6684 = vmatprep.mubr.f32.mxu0 0.0
        %6685 = vmatmul.mubr.f32.gmra.mrb[0].mxu0 %v6331
        %v6686 = vpop.f32.mrb[0].mxu0
        %v6687 = vadd.f32 0.0, %v6686
        %v6688 = vpop.f32.mrb[0].mxu0
        %6689 = vmatprep.mubr.f32.mxu0 0.0
        %6690 = vmatmul.mubr.f32.gmra.mrb[0].mxu0 %v6333
        %v6691 = vpop.f32.mrb[0].mxu0
        %v6692 = vadd.f32 0.0, %v6691
        %v6693 = vpop.f32.mrb[0].mxu0
        %6694 = vmatprep.mubr.f32.mxu0 0.0
        %6695 = vmatmul.mubr.f32.gmra.mrb[0].mxu0 %v6335
        %v6696 = vpop.f32.mrb[0].mxu0
        %v6697 = vadd.f32 0.0, %v6696
        %v6698 = vpop.f32.mrb[0].mxu0
        %6699 = vmatprep.mubr.f32.mxu0 0.0
        %6700 = vmatmul.mubr.f32.gmra.mrb[0].mxu0 %v6598
        %v6701 = vpop.f32.mrb[0].mxu0
        %v6702 = vadd.f32 0.0, %v6701
        %v6703 = vpop.f32.mrb[0].mxu0
        %6704 = vdwg.mxu0
        %v6705 = vadd.f32 %v6587, %v6667
        %v6706 = vadd.f32 %v6588, %v6672
        %v6707 = vadd.f32 %v6589, %v6677
        %v6708 = vadd.f32 %v6590, %v6682
        %v6709 = vadd.f32 %v6591, %v6687
        %v6710 = vadd.f32 %v6592, %v6692
        %v6711 = vadd.f32 %v6593, %v6697
        %v6712 = vadd.f32 %v6594, %v6702
        %v6714 = vrot.slane %v6152, 1
        %v6715 = vrot.slane %v6160, 1
        %v6716 = vsel %vm889, %v6714, %v6715
        %s6717 = scalar_lea.vmem %s7, 32
        %v6718 = vld [vmem:[%s6717] sm:$0xff]
        %v6719 = vsel %vm5815, %v6716, 0
        %6721 = vmatprep.subr.mxu0 0.0
        %6722 = vmatpush1.msra.mxu0 %v6718
        %6723 = vmatprep.subr.mxu0 0.0
        %6724 = vmatpush1.msra.mxu0 0.0
        %6725 = vmatprep.subr.mxu0 0.0
        %6726 = vmatpush1.msra.mxu0 0.0
        %6727 = vmatprep.subr.mxu0 0.0
        %6728 = vmatpush1.msra.mxu0 0.0
        %6729 = vmatprep.subr.mxu0 0.0
        %6730 = vmatpush1.msra.mxu0 0.0
        %6731 = vmatprep.subr.mxu0 0.0
        %6732 = vmatpush1.msra.mxu0 0.0
        %6733 = vmatprep.subr.mxu0 0.0
        %6734 = vmatpush1.msra.mxu0 0.0
        %6735 = vmatprep.subr.mxu0 0.0
        %6736 = vmatpush1.msra.mxu0 0.0
        %6737 = vmatprep.subr.mxu0 0.0
        %6738 = vmatpush1.msra.mxu0 0.0
        %6739 = vmatprep.subr.mxu0 0.0
        %6740 = vmatpush1.msra.mxu0 0.0
        %6741 = vmatprep.subr.mxu0 0.0
        %6742 = vmatpush1.msra.mxu0 0.0
        %6743 = vmatprep.subr.mxu0 0.0
        %6744 = vmatpush1.msra.mxu0 0.0
        %6745 = vmatprep.subr.mxu0 0.0
        %6746 = vmatpush1.msra.mxu0 0.0
        %6747 = vmatprep.subr.mxu0 0.0
        %6748 = vmatpush1.msra.mxu0 0.0
        %6749 = vmatprep.subr.mxu0 0.0
        %6750 = vmatpush1.msra.mxu0 0.0
        %6751 = vmatprep.subr.mxu0 0.0
        %6752 = vmatpush1.msra.mxu0 0.0
        %6753 = vmatprep.subr.mxu0 0.0
        %6754 = vmatpush1.msra.mxu0 0.0
        %6755 = vmatprep.subr.mxu0 0.0
        %6756 = vmatpush1.msra.mxu0 0.0
        %6757 = vmatprep.subr.mxu0 0.0
        %6758 = vmatpush1.msra.mxu0 0.0
        %6759 = vmatprep.subr.mxu0 0.0
        %6760 = vmatpush1.msra.mxu0 0.0
        %6761 = vmatprep.subr.mxu0 0.0
        %6762 = vmatpush1.msra.mxu0 0.0
        %6763 = vmatprep.subr.mxu0 0.0
        %6764 = vmatpush1.msra.mxu0 0.0
        %6765 = vmatprep.subr.mxu0 0.0
        %6766 = vmatpush1.msra.mxu0 0.0
        %6767 = vmatprep.subr.mxu0 0.0
        %6768 = vmatpush1.msra.mxu0 0.0
        %6769 = vmatprep.subr.mxu0 0.0
        %6770 = vmatpush1.msra.mxu0 0.0
        %6771 = vmatprep.subr.mxu0 0.0
        %6772 = vmatpush1.msra.mxu0 0.0
        %6773 = vmatprep.subr.mxu0 0.0
        %6774 = vmatpush1.msra.mxu0 0.0
        %6775 = vmatprep.subr.mxu0 0.0
        %6776 = vmatpush1.msra.mxu0 0.0
        %6777 = vmatprep.subr.mxu0 0.0
        %6778 = vmatpush1.msra.mxu0 0.0
        %6779 = vmatprep.subr.mxu0 0.0
        %6780 = vmatpush1.msra.mxu0 0.0
        %6781 = vmatprep.subr.mxu0 0.0
        %6782 = vmatpush1.msra.mxu0 0.0
        %6783 = vmatprep.subr.mxu0 0.0
        %6784 = vmatpush1.msra.mxu0 0.0
        %6785 = vmatprep.mubr.f32.mxu0 0.0
        %6786 = vmatmul.mubr.f32.gmra.mrb[0].mxu0 %v6202
        %v6787 = vpop.f32.mrb[0].mxu0
        %v6788 = vadd.f32 0.0, %v6787
        %v6789 = vpop.f32.mrb[0].mxu0
        %6790 = vmatprep.mubr.f32.mxu0 0.0
        %6791 = vmatmul.mubr.f32.gmra.mrb[0].mxu0 %v6204
        %v6792 = vpop.f32.mrb[0].mxu0
        %v6793 = vadd.f32 0.0, %v6792
        %v6794 = vpop.f32.mrb[0].mxu0
        %6795 = vmatprep.mubr.f32.mxu0 0.0
        %6796 = vmatmul.mubr.f32.gmra.mrb[0].mxu0 %v6206
        %v6797 = vpop.f32.mrb[0].mxu0
        %v6798 = vadd.f32 0.0, %v6797
        %v6799 = vpop.f32.mrb[0].mxu0
        %6800 = vmatprep.mubr.f32.mxu0 0.0
        %6801 = vmatmul.mubr.f32.gmra.mrb[0].mxu0 %v6208
        %v6802 = vpop.f32.mrb[0].mxu0
        %v6803 = vadd.f32 0.0, %v6802
        %v6804 = vpop.f32.mrb[0].mxu0
        %6805 = vmatprep.mubr.f32.mxu0 0.0
        %6806 = vmatmul.mubr.f32.gmra.mrb[0].mxu0 %v6210
        %v6807 = vpop.f32.mrb[0].mxu0
        %v6808 = vadd.f32 0.0, %v6807
        %v6809 = vpop.f32.mrb[0].mxu0
        %6810 = vmatprep.mubr.f32.mxu0 0.0
        %6811 = vmatmul.mubr.f32.gmra.mrb[0].mxu0 %v6212
        %v6812 = vpop.f32.mrb[0].mxu0
        %v6813 = vadd.f32 0.0, %v6812
        %v6814 = vpop.f32.mrb[0].mxu0
        %6815 = vmatprep.mubr.f32.mxu0 0.0
        %6816 = vmatmul.mubr.f32.gmra.mrb[0].mxu0 %v6214
        %v6817 = vpop.f32.mrb[0].mxu0
        %v6818 = vadd.f32 0.0, %v6817
        %v6819 = vpop.f32.mrb[0].mxu0
        %6820 = vmatprep.mubr.f32.mxu0 0.0
        %6821 = vmatmul.mubr.f32.gmra.mrb[0].mxu0 %v6719
        %v6822 = vpop.f32.mrb[0].mxu0
        %v6823 = vadd.f32 0.0, %v6822
        %v6824 = vpop.f32.mrb[0].mxu0
        %6825 = vdwg.mxu0
        %v6826 = vadd.f32 %v6705, %v6788
        %v6827 = vadd.f32 %v6706, %v6793
        %v6828 = vadd.f32 %v6707, %v6798
        %v6829 = vadd.f32 %v6708, %v6803
        %v6830 = vadd.f32 %v6709, %v6808
        %v6831 = vadd.f32 %v6710, %v6813
        %v6832 = vadd.f32 %v6711, %v6818
        %v6833 = vadd.f32 %v6712, %v6823
        %v6834 = vrot.slane %v6152, 2
        %v6835 = vrot.slane %v6160, 2
        %v6836 = vsel %vm2073, %v6834, %v6835
        %s6837 = scalar_lea.vmem %s7, 40
        %v6838 = vld [vmem:[%s6837] sm:$0xff]
        %v6839 = vsel %vm5815, %v6836, 0
        %6841 = vmatprep.subr.mxu0 0.0
        %6842 = vmatpush1.msra.mxu0 %v6838
        %6843 = vmatprep.subr.mxu0 0.0
        %6844 = vmatpush1.msra.mxu0 0.0
        %6845 = vmatprep.subr.mxu0 0.0
        %6846 = vmatpush1.msra.mxu0 0.0
        %6847 = vmatprep.subr.mxu0 0.0
        %6848 = vmatpush1.msra.mxu0 0.0
        %6849 = vmatprep.subr.mxu0 0.0
        %6850 = vmatpush1.msra.mxu0 0.0
        %6851 = vmatprep.subr.mxu0 0.0
        %6852 = vmatpush1.msra.mxu0 0.0
        %6853 = vmatprep.subr.mxu0 0.0
        %6854 = vmatpush1.msra.mxu0 0.0
        %6855 = vmatprep.subr.mxu0 0.0
        %6856 = vmatpush1.msra.mxu0 0.0
        %6857 = vmatprep.subr.mxu0 0.0
        %6858 = vmatpush1.msra.mxu0 0.0
        %6859 = vmatprep.subr.mxu0 0.0
        %6860 = vmatpush1.msra.mxu0 0.0
        %6861 = vmatprep.subr.mxu0 0.0
        %6862 = vmatpush1.msra.mxu0 0.0
        %6863 = vmatprep.subr.mxu0 0.0
        %6864 = vmatpush1.msra.mxu0 0.0
        %6865 = vmatprep.subr.mxu0 0.0
        %6866 = vmatpush1.msra.mxu0 0.0
        %6867 = vmatprep.subr.mxu0 0.0
        %6868 = vmatpush1.msra.mxu0 0.0
        %6869 = vmatprep.subr.mxu0 0.0
        %6870 = vmatpush1.msra.mxu0 0.0
        %6871 = vmatprep.subr.mxu0 0.0
        %6872 = vmatpush1.msra.mxu0 0.0
        %6873 = vmatprep.subr.mxu0 0.0
        %6874 = vmatpush1.msra.mxu0 0.0
        %6875 = vmatprep.subr.mxu0 0.0
        %6876 = vmatpush1.msra.mxu0 0.0
        %6877 = vmatprep.subr.mxu0 0.0
        %6878 = vmatpush1.msra.mxu0 0.0
        %6879 = vmatprep.subr.mxu0 0.0
        %6880 = vmatpush1.msra.mxu0 0.0
        %6881 = vmatprep.subr.mxu0 0.0
        %6882 = vmatpush1.msra.mxu0 0.0
        %6883 = vmatprep.subr.mxu0 0.0
        %6884 = vmatpush1.msra.mxu0 0.0
        %6885 = vmatprep.subr.mxu0 0.0
        %6886 = vmatpush1.msra.mxu0 0.0
        %6887 = vmatprep.subr.mxu0 0.0
        %6888 = vmatpush1.msra.mxu0 0.0
        %6889 = vmatprep.subr.mxu0 0.0
        %6890 = vmatpush1.msra.mxu0 0.0
        %6891 = vmatprep.subr.mxu0 0.0
        %6892 = vmatpush1.msra.mxu0 0.0
        %6893 = vmatprep.subr.mxu0 0.0
        %6894 = vmatpush1.msra.mxu0 0.0
        %6895 = vmatprep.subr.mxu0 0.0
        %6896 = vmatpush1.msra.mxu0 0.0
        %6897 = vmatprep.subr.mxu0 0.0
        %6898 = vmatpush1.msra.mxu0 0.0
        %6899 = vmatprep.subr.mxu0 0.0
        %6900 = vmatpush1.msra.mxu0 0.0
        %6901 = vmatprep.subr.mxu0 0.0
        %6902 = vmatpush1.msra.mxu0 0.0
        %6903 = vmatprep.subr.mxu0 0.0
        %6904 = vmatpush1.msra.mxu0 0.0
        %6905 = vmatprep.mubr.f32.mxu0 0.0
        %6906 = vmatmul.mubr.f32.gmra.mrb[0].mxu0 %v6468
        %v6907 = vpop.f32.mrb[0].mxu0
        %v6908 = vadd.f32 0.0, %v6907
        %v6909 = vpop.f32.mrb[0].mxu0
        %6910 = vmatprep.mubr.f32.mxu0 0.0
        %6911 = vmatmul.mubr.f32.gmra.mrb[0].mxu0 %v6470
        %v6912 = vpop.f32.mrb[0].mxu0
        %v6913 = vadd.f32 0.0, %v6912
        %v6914 = vpop.f32.mrb[0].mxu0
        %6915 = vmatprep.mubr.f32.mxu0 0.0
        %6916 = vmatmul.mubr.f32.gmra.mrb[0].mxu0 %v6472
        %v6917 = vpop.f32.mrb[0].mxu0
        %v6918 = vadd.f32 0.0, %v6917
        %v6919 = vpop.f32.mrb[0].mxu0
        %6920 = vmatprep.mubr.f32.mxu0 0.0
        %6921 = vmatmul.mubr.f32.gmra.mrb[0].mxu0 %v6474
        %v6922 = vpop.f32.mrb[0].mxu0
        %v6923 = vadd.f32 0.0, %v6922
        %v6924 = vpop.f32.mrb[0].mxu0
        %6925 = vmatprep.mubr.f32.mxu0 0.0
        %6926 = vmatmul.mubr.f32.gmra.mrb[0].mxu0 %v6476
        %v6927 = vpop.f32.mrb[0].mxu0
        %v6928 = vadd.f32 0.0, %v6927
        %v6929 = vpop.f32.mrb[0].mxu0
        %6930 = vmatprep.mubr.f32.mxu0 0.0
        %6931 = vmatmul.mubr.f32.gmra.mrb[0].mxu0 %v6478
        %v6932 = vpop.f32.mrb[0].mxu0
        %v6933 = vadd.f32 0.0, %v6932
        %v6934 = vpop.f32.mrb[0].mxu0
        %6935 = vmatprep.mubr.f32.mxu0 0.0
        %6936 = vmatmul.mubr.f32.gmra.mrb[0].mxu0 %v6480
        %v6937 = vpop.f32.mrb[0].mxu0
        %v6938 = vadd.f32 0.0, %v6937
        %v6939 = vpop.f32.mrb[0].mxu0
        %6940 = vmatprep.mubr.f32.mxu0 0.0
        %6941 = vmatmul.mubr.f32.gmra.mrb[0].mxu0 %v6839
        %v6942 = vpop.f32.mrb[0].mxu0
        %v6943 = vadd.f32 0.0, %v6942
        %v6944 = vpop.f32.mrb[0].mxu0
        %6945 = vdwg.mxu0
        %v6946 = vadd.f32 %v6826, %v6908
        %v6947 = vadd.f32 %v6827, %v6913
        %v6948 = vadd.f32 %v6828, %v6918
        %v6949 = vadd.f32 %v6829, %v6923
        %v6950 = vadd.f32 %v6830, %v6928
        %v6951 = vadd.f32 %v6831, %v6933
        %v6952 = vadd.f32 %v6832, %v6938
        %v6953 = vadd.f32 %v6833, %v6943
        %s6954 = scalar_lea.vmem %s7, 48
        %v6955 = vld [vmem:[%s6954] sm:$0xff]
        %6956 = vmatprep.subr.mxu0 0.0
        %6957 = vmatpush1.msra.mxu0 %v6955
        %6958 = vmatprep.subr.mxu0 0.0
        %6959 = vmatpush1.msra.mxu0 0.0
        %6960 = vmatprep.subr.mxu0 0.0
        %6961 = vmatpush1.msra.mxu0 0.0
        %6962 = vmatprep.subr.mxu0 0.0
        %6963 = vmatpush1.msra.mxu0 0.0
        %6964 = vmatprep.subr.mxu0 0.0
        %6965 = vmatpush1.msra.mxu0 0.0
        %6966 = vmatprep.subr.mxu0 0.0
        %6967 = vmatpush1.msra.mxu0 0.0
        %6968 = vmatprep.subr.mxu0 0.0
        %6969 = vmatpush1.msra.mxu0 0.0
        %6970 = vmatprep.subr.mxu0 0.0
        %6971 = vmatpush1.msra.mxu0 0.0
        %6972 = vmatprep.subr.mxu0 0.0
        %6973 = vmatpush1.msra.mxu0 0.0
        %6974 = vmatprep.subr.mxu0 0.0
        %6975 = vmatpush1.msra.mxu0 0.0
        %6976 = vmatprep.subr.mxu0 0.0
        %6977 = vmatpush1.msra.mxu0 0.0
        %6978 = vmatprep.subr.mxu0 0.0
        %6979 = vmatpush1.msra.mxu0 0.0
        %6980 = vmatprep.subr.mxu0 0.0
        %6981 = vmatpush1.msra.mxu0 0.0
        %6982 = vmatprep.subr.mxu0 0.0
        %6983 = vmatpush1.msra.mxu0 0.0
        %6984 = vmatprep.subr.mxu0 0.0
        %6985 = vmatpush1.msra.mxu0 0.0
        %6986 = vmatprep.subr.mxu0 0.0
        %6987 = vmatpush1.msra.mxu0 0.0
        %6988 = vmatprep.subr.mxu0 0.0
        %6989 = vmatpush1.msra.mxu0 0.0
        %6990 = vmatprep.subr.mxu0 0.0
        %6991 = vmatpush1.msra.mxu0 0.0
        %6992 = vmatprep.subr.mxu0 0.0
        %6993 = vmatpush1.msra.mxu0 0.0
        %6994 = vmatprep.subr.mxu0 0.0
        %6995 = vmatpush1.msra.mxu0 0.0
        %6996 = vmatprep.subr.mxu0 0.0
        %6997 = vmatpush1.msra.mxu0 0.0
        %6998 = vmatprep.subr.mxu0 0.0
        %6999 = vmatpush1.msra.mxu0 0.0
        %7000 = vmatprep.subr.mxu0 0.0
        %7001 = vmatpush1.msra.mxu0 0.0
        %7002 = vmatprep.subr.mxu0 0.0
        %7003 = vmatpush1.msra.mxu0 0.0
        %7004 = vmatprep.subr.mxu0 0.0
        %7005 = vmatpush1.msra.mxu0 0.0
        %7006 = vmatprep.subr.mxu0 0.0
        %7007 = vmatpush1.msra.mxu0 0.0
        %7008 = vmatprep.subr.mxu0 0.0
        %7009 = vmatpush1.msra.mxu0 0.0
        %7010 = vmatprep.subr.mxu0 0.0
        %7011 = vmatpush1.msra.mxu0 0.0
        %7012 = vmatprep.subr.mxu0 0.0
        %7013 = vmatpush1.msra.mxu0 0.0
        %7014 = vmatprep.subr.mxu0 0.0
        %7015 = vmatpush1.msra.mxu0 0.0
        %7016 = vmatprep.subr.mxu0 0.0
        %7017 = vmatpush1.msra.mxu0 0.0
        %7018 = vmatprep.subr.mxu0 0.0
        %7019 = vmatpush1.msra.mxu0 0.0
        %7020 = vmatprep.mubr.f32.mxu0 0.0
        %7021 = vmatmul.mubr.f32.gmra.mrb[0].mxu0 %v6325
        %v7022 = vpop.f32.mrb[0].mxu0
        %v7023 = vadd.f32 0.0, %v7022
        %v7024 = vpop.f32.mrb[0].mxu0
        %7025 = vmatprep.mubr.f32.mxu0 0.0
        %7026 = vmatmul.mubr.f32.gmra.mrb[0].mxu0 %v6327
        %v7027 = vpop.f32.mrb[0].mxu0
        %v7028 = vadd.f32 0.0, %v7027
        %v7029 = vpop.f32.mrb[0].mxu0
        %7030 = vmatprep.mubr.f32.mxu0 0.0
        %7031 = vmatmul.mubr.f32.gmra.mrb[0].mxu0 %v6329
        %v7032 = vpop.f32.mrb[0].mxu0
        %v7033 = vadd.f32 0.0, %v7032
        %v7034 = vpop.f32.mrb[0].mxu0
        %7035 = vmatprep.mubr.f32.mxu0 0.0
        %7036 = vmatmul.mubr.f32.gmra.mrb[0].mxu0 %v6331
        %v7037 = vpop.f32.mrb[0].mxu0
        %v7038 = vadd.f32 0.0, %v7037
        %v7039 = vpop.f32.mrb[0].mxu0
        %7040 = vmatprep.mubr.f32.mxu0 0.0
        %7041 = vmatmul.mubr.f32.gmra.mrb[0].mxu0 %v6333
        %v7042 = vpop.f32.mrb[0].mxu0
        %v7043 = vadd.f32 0.0, %v7042
        %v7044 = vpop.f32.mrb[0].mxu0
        %7045 = vmatprep.mubr.f32.mxu0 0.0
        %7046 = vmatmul.mubr.f32.gmra.mrb[0].mxu0 %v6335
        %v7047 = vpop.f32.mrb[0].mxu0
        %v7048 = vadd.f32 0.0, %v7047
        %v7049 = vpop.f32.mrb[0].mxu0
        %7050 = vmatprep.mubr.f32.mxu0 0.0
        %7051 = vmatmul.mubr.f32.gmra.mrb[0].mxu0 %v6598
        %v7052 = vpop.f32.mrb[0].mxu0
        %v7053 = vadd.f32 0.0, %v7052
        %v7054 = vpop.f32.mrb[0].mxu0
        %7055 = vmatprep.mubr.f32.mxu0 0.0
        %7056 = vmatmul.mubr.f32.gmra.mrb[0].mxu0 %v6321
        %v7057 = vpop.f32.mrb[0].mxu0
        %v7058 = vadd.f32 0.0, %v7057
        %v7059 = vpop.f32.mrb[0].mxu0
        %7060 = vdwg.mxu0
        %v7061 = vadd.f32 %v6946, %v7023
        %v7062 = vadd.f32 %v6947, %v7028
        %v7063 = vadd.f32 %v6948, %v7033
        %v7064 = vadd.f32 %v6949, %v7038
        %v7065 = vadd.f32 %v6950, %v7043
        %v7066 = vadd.f32 %v6951, %v7048
        %v7067 = vadd.f32 %v6952, %v7053
        %v7068 = vadd.f32 %v6953, %v7058
        %s7069 = scalar_lea.vmem %s7, 56
        %v7070 = vld [vmem:[%s7069] sm:$0xff]
        %7071 = vmatprep.subr.mxu0 0.0
        %7072 = vmatpush1.msra.mxu0 %v7070
        %7073 = vmatprep.subr.mxu0 0.0
        %7074 = vmatpush1.msra.mxu0 0.0
        %7075 = vmatprep.subr.mxu0 0.0
        %7076 = vmatpush1.msra.mxu0 0.0
        %7077 = vmatprep.subr.mxu0 0.0
        %7078 = vmatpush1.msra.mxu0 0.0
        %7079 = vmatprep.subr.mxu0 0.0
        %7080 = vmatpush1.msra.mxu0 0.0
        %7081 = vmatprep.subr.mxu0 0.0
        %7082 = vmatpush1.msra.mxu0 0.0
        %7083 = vmatprep.subr.mxu0 0.0
        %7084 = vmatpush1.msra.mxu0 0.0
        %7085 = vmatprep.subr.mxu0 0.0
        %7086 = vmatpush1.msra.mxu0 0.0
        %7087 = vmatprep.subr.mxu0 0.0
        %7088 = vmatpush1.msra.mxu0 0.0
        %7089 = vmatprep.subr.mxu0 0.0
        %7090 = vmatpush1.msra.mxu0 0.0
        %7091 = vmatprep.subr.mxu0 0.0
        %7092 = vmatpush1.msra.mxu0 0.0
        %7093 = vmatprep.subr.mxu0 0.0
        %7094 = vmatpush1.msra.mxu0 0.0
        %7095 = vmatprep.subr.mxu0 0.0
        %7096 = vmatpush1.msra.mxu0 0.0
        %7097 = vmatprep.subr.mxu0 0.0
        %7098 = vmatpush1.msra.mxu0 0.0
        %7099 = vmatprep.subr.mxu0 0.0
        %7100 = vmatpush1.msra.mxu0 0.0
        %7101 = vmatprep.subr.mxu0 0.0
        %7102 = vmatpush1.msra.mxu0 0.0
        %7103 = vmatprep.subr.mxu0 0.0
        %7104 = vmatpush1.msra.mxu0 0.0
        %7105 = vmatprep.subr.mxu0 0.0
        %7106 = vmatpush1.msra.mxu0 0.0
        %7107 = vmatprep.subr.mxu0 0.0
        %7108 = vmatpush1.msra.mxu0 0.0
        %7109 = vmatprep.subr.mxu0 0.0
        %7110 = vmatpush1.msra.mxu0 0.0
        %7111 = vmatprep.subr.mxu0 0.0
        %7112 = vmatpush1.msra.mxu0 0.0
        %7113 = vmatprep.subr.mxu0 0.0
        %7114 = vmatpush1.msra.mxu0 0.0
        %7115 = vmatprep.subr.mxu0 0.0
        %7116 = vmatpush1.msra.mxu0 0.0
        %7117 = vmatprep.subr.mxu0 0.0
        %7118 = vmatpush1.msra.mxu0 0.0
        %7119 = vmatprep.subr.mxu0 0.0
        %7120 = vmatpush1.msra.mxu0 0.0
        %7121 = vmatprep.subr.mxu0 0.0
        %7122 = vmatpush1.msra.mxu0 0.0
        %7123 = vmatprep.subr.mxu0 0.0
        %7124 = vmatpush1.msra.mxu0 0.0
        %7125 = vmatprep.subr.mxu0 0.0
        %7126 = vmatpush1.msra.mxu0 0.0
        %7127 = vmatprep.subr.mxu0 0.0
        %7128 = vmatpush1.msra.mxu0 0.0
        %7129 = vmatprep.subr.mxu0 0.0
        %7130 = vmatpush1.msra.mxu0 0.0
        %7131 = vmatprep.subr.mxu0 0.0
        %7132 = vmatpush1.msra.mxu0 0.0
        %7133 = vmatprep.subr.mxu0 0.0
        %7134 = vmatpush1.msra.mxu0 0.0
        %7135 = vmatprep.mubr.f32.mxu0 0.0
        %7136 = vmatmul.mubr.f32.gmra.mrb[0].mxu0 %v6204
        %v7137 = vpop.f32.mrb[0].mxu0
        %v7138 = vadd.f32 0.0, %v7137
        %v7139 = vpop.f32.mrb[0].mxu0
        %7140 = vmatprep.mubr.f32.mxu0 0.0
        %7141 = vmatmul.mubr.f32.gmra.mrb[0].mxu0 %v6206
        %v7142 = vpop.f32.mrb[0].mxu0
        %v7143 = vadd.f32 0.0, %v7142
        %v7144 = vpop.f32.mrb[0].mxu0
        %7145 = vmatprep.mubr.f32.mxu0 0.0
        %7146 = vmatmul.mubr.f32.gmra.mrb[0].mxu0 %v6208
        %v7147 = vpop.f32.mrb[0].mxu0
        %v7148 = vadd.f32 0.0, %v7147
        %v7149 = vpop.f32.mrb[0].mxu0
        %7150 = vmatprep.mubr.f32.mxu0 0.0
        %7151 = vmatmul.mubr.f32.gmra.mrb[0].mxu0 %v6210
        %v7152 = vpop.f32.mrb[0].mxu0
        %v7153 = vadd.f32 0.0, %v7152
        %v7154 = vpop.f32.mrb[0].mxu0
        %7155 = vmatprep.mubr.f32.mxu0 0.0
        %7156 = vmatmul.mubr.f32.gmra.mrb[0].mxu0 %v6212
        %v7157 = vpop.f32.mrb[0].mxu0
        %v7158 = vadd.f32 0.0, %v7157
        %v7159 = vpop.f32.mrb[0].mxu0
        %7160 = vmatprep.mubr.f32.mxu0 0.0
        %7161 = vmatmul.mubr.f32.gmra.mrb[0].mxu0 %v6214
        %v7162 = vpop.f32.mrb[0].mxu0
        %v7163 = vadd.f32 0.0, %v7162
        %v7164 = vpop.f32.mrb[0].mxu0
        %7165 = vmatprep.mubr.f32.mxu0 0.0
        %7166 = vmatmul.mubr.f32.gmra.mrb[0].mxu0 %v6719
        %v7167 = vpop.f32.mrb[0].mxu0
        %v7168 = vadd.f32 0.0, %v7167
        %v7169 = vpop.f32.mrb[0].mxu0
        %7170 = vmatprep.mubr.f32.mxu0 0.0
        %7171 = vmatmul.mubr.f32.gmra.mrb[0].mxu0 %v6200
        %v7172 = vpop.f32.mrb[0].mxu0
        %v7173 = vadd.f32 0.0, %v7172
        %v7174 = vpop.f32.mrb[0].mxu0
        %7175 = vdwg.mxu0
        %v7176 = vadd.f32 %v7061, %v7138
        %v7177 = vadd.f32 %v7062, %v7143
        %v7178 = vadd.f32 %v7063, %v7148
        %v7179 = vadd.f32 %v7064, %v7153
        %v7180 = vadd.f32 %v7065, %v7158
        %v7181 = vadd.f32 %v7066, %v7163
        %v7182 = vadd.f32 %v7067, %v7168
        %v7183 = vadd.f32 %v7068, %v7173
        %s7184 = scalar_lea.vmem %s7, 64
        %v7185 = vld [vmem:[%s7184] sm:$0xff]
        %7186 = vmatprep.subr.mxu0 0.0
        %7187 = vmatpush1.msra.mxu0 %v7185
        %7188 = vmatprep.subr.mxu0 0.0
        %7189 = vmatpush1.msra.mxu0 0.0
        %7190 = vmatprep.subr.mxu0 0.0
        %7191 = vmatpush1.msra.mxu0 0.0
        %7192 = vmatprep.subr.mxu0 0.0
        %7193 = vmatpush1.msra.mxu0 0.0
        %7194 = vmatprep.subr.mxu0 0.0
        %7195 = vmatpush1.msra.mxu0 0.0
        %7196 = vmatprep.subr.mxu0 0.0
        %7197 = vmatpush1.msra.mxu0 0.0
        %7198 = vmatprep.subr.mxu0 0.0
        %7199 = vmatpush1.msra.mxu0 0.0
        %7200 = vmatprep.subr.mxu0 0.0
        %7201 = vmatpush1.msra.mxu0 0.0
        %7202 = vmatprep.subr.mxu0 0.0
        %7203 = vmatpush1.msra.mxu0 0.0
        %7204 = vmatprep.subr.mxu0 0.0
        %7205 = vmatpush1.msra.mxu0 0.0
        %7206 = vmatprep.subr.mxu0 0.0
        %7207 = vmatpush1.msra.mxu0 0.0
        %7208 = vmatprep.subr.mxu0 0.0
        %7209 = vmatpush1.msra.mxu0 0.0
        %7210 = vmatprep.subr.mxu0 0.0
        %7211 = vmatpush1.msra.mxu0 0.0
        %7212 = vmatprep.subr.mxu0 0.0
        %7213 = vmatpush1.msra.mxu0 0.0
        %7214 = vmatprep.subr.mxu0 0.0
        %7215 = vmatpush1.msra.mxu0 0.0
        %7216 = vmatprep.subr.mxu0 0.0
        %7217 = vmatpush1.msra.mxu0 0.0
        %7218 = vmatprep.subr.mxu0 0.0
        %7219 = vmatpush1.msra.mxu0 0.0
        %7220 = vmatprep.subr.mxu0 0.0
        %7221 = vmatpush1.msra.mxu0 0.0
        %7222 = vmatprep.subr.mxu0 0.0
        %7223 = vmatpush1.msra.mxu0 0.0
        %7224 = vmatprep.subr.mxu0 0.0
        %7225 = vmatpush1.msra.mxu0 0.0
        %7226 = vmatprep.subr.mxu0 0.0
        %7227 = vmatpush1.msra.mxu0 0.0
        %7228 = vmatprep.subr.mxu0 0.0
        %7229 = vmatpush1.msra.mxu0 0.0
        %7230 = vmatprep.subr.mxu0 0.0
        %7231 = vmatpush1.msra.mxu0 0.0
        %7232 = vmatprep.subr.mxu0 0.0
        %7233 = vmatpush1.msra.mxu0 0.0
        %7234 = vmatprep.subr.mxu0 0.0
        %7235 = vmatpush1.msra.mxu0 0.0
        %7236 = vmatprep.subr.mxu0 0.0
        %7237 = vmatpush1.msra.mxu0 0.0
        %7238 = vmatprep.subr.mxu0 0.0
        %7239 = vmatpush1.msra.mxu0 0.0
        %7240 = vmatprep.subr.mxu0 0.0
        %7241 = vmatpush1.msra.mxu0 0.0
        %7242 = vmatprep.subr.mxu0 0.0
        %7243 = vmatpush1.msra.mxu0 0.0
        %7244 = vmatprep.subr.mxu0 0.0
        %7245 = vmatpush1.msra.mxu0 0.0
        %7246 = vmatprep.subr.mxu0 0.0
        %7247 = vmatpush1.msra.mxu0 0.0
        %7248 = vmatprep.subr.mxu0 0.0
        %7249 = vmatpush1.msra.mxu0 0.0
        %7250 = vmatprep.mubr.f32.mxu0 0.0
        %7251 = vmatmul.mubr.f32.gmra.mrb[0].mxu0 %v6470
        %v7252 = vpop.f32.mrb[0].mxu0
        %v7253 = vadd.f32 0.0, %v7252
        %v7254 = vpop.f32.mrb[0].mxu0
        %7255 = vmatprep.mubr.f32.mxu0 0.0
        %7256 = vmatmul.mubr.f32.gmra.mrb[0].mxu0 %v6472
        %v7257 = vpop.f32.mrb[0].mxu0
        %v7258 = vadd.f32 0.0, %v7257
        %v7259 = vpop.f32.mrb[0].mxu0
        %7260 = vmatprep.mubr.f32.mxu0 0.0
        %7261 = vmatmul.mubr.f32.gmra.mrb[0].mxu0 %v6474
        %v7262 = vpop.f32.mrb[0].mxu0
        %v7263 = vadd.f32 0.0, %v7262
        %v7264 = vpop.f32.mrb[0].mxu0
        %7265 = vmatprep.mubr.f32.mxu0 0.0
        %7266 = vmatmul.mubr.f32.gmra.mrb[0].mxu0 %v6476
        %v7267 = vpop.f32.mrb[0].mxu0
        %v7268 = vadd.f32 0.0, %v7267
        %v7269 = vpop.f32.mrb[0].mxu0
        %7270 = vmatprep.mubr.f32.mxu0 0.0
        %7271 = vmatmul.mubr.f32.gmra.mrb[0].mxu0 %v6478
        %v7272 = vpop.f32.mrb[0].mxu0
        %v7273 = vadd.f32 0.0, %v7272
        %v7274 = vpop.f32.mrb[0].mxu0
        %7275 = vmatprep.mubr.f32.mxu0 0.0
        %7276 = vmatmul.mubr.f32.gmra.mrb[0].mxu0 %v6480
        %v7277 = vpop.f32.mrb[0].mxu0
        %v7278 = vadd.f32 0.0, %v7277
        %v7279 = vpop.f32.mrb[0].mxu0
        %7280 = vmatprep.mubr.f32.mxu0 0.0
        %7281 = vmatmul.mubr.f32.gmra.mrb[0].mxu0 %v6839
        %v7282 = vpop.f32.mrb[0].mxu0
        %v7283 = vadd.f32 0.0, %v7282
        %v7284 = vpop.f32.mrb[0].mxu0
        %7285 = vmatprep.mubr.f32.mxu0 0.0
        %7286 = vmatmul.mubr.f32.gmra.mrb[0].mxu0 %v6466
        %v7287 = vpop.f32.mrb[0].mxu0
        %v7288 = vadd.f32 0.0, %v7287
        %v7289 = vpop.f32.mrb[0].mxu0
        %7290 = vdwg.mxu0
        %v7291 = vadd.f32 %v7176, %v7253
        %v7292 = vadd.f32 %v7177, %v7258
        %v7293 = vadd.f32 %v7178, %v7263
        %v7294 = vadd.f32 %v7179, %v7268
        %v7295 = vadd.f32 %v7180, %v7273
        %v7296 = vadd.f32 %v7181, %v7278
        %v7297 = vadd.f32 %v7182, %v7283
        %v7298 = vadd.f32 %v7183, %v7288
        %v7300 = vlaneseq
        %v7301 = vshrl.u32 %v7300, 7
        %v7302 = vsub.s32 0, %v7301
        %v7303 = vrot.slane %v6119, %v7302
        %v7305 = vmul.f32 %v7291, %v7303
        %v7306 = vmul.f32 %v7292, %v7303
        %v7307 = vmul.f32 %v7293, %v7303
        %v7308 = vmul.f32 %v7294, %v7303
        %v7309 = vmul.f32 %v7295, %v7303
        %v7310 = vmul.f32 %v7296, %v7303
        %v7311 = vmul.f32 %v7297, %v7303
        %v7312 = vmul.f32 %v7298, %v7303
        %v7314 = vlaneseq
        %v7315 = vshrl.u32 %v7314, 7
        %v7316 = vsub.s32 0, %v7315
        %v7317 = vrot.slane %v6120, %v7316
        %v7319 = vadd.f32 %v7305, %v7317
        %v7320 = vadd.f32 %v7306, %v7317
        %v7321 = vadd.f32 %v7307, %v7317
        %v7322 = vadd.f32 %v7308, %v7317
        %v7323 = vadd.f32 %v7309, %v7317
        %v7324 = vadd.f32 %v7310, %v7317
        %v7325 = vadd.f32 %v7311, %v7317
        %v7326 = vadd.f32 %v7312, %v7317
        %v7327 = vmax.f32 %v7319, 0.0
        %v7328 = vmax.f32 %v7320, 0.0
        %v7329 = vmax.f32 %v7321, 0.0
        %v7330 = vmax.f32 %v7322, 0.0
        %v7331 = vmax.f32 %v7323, 0.0
        %v7332 = vmax.f32 %v7324, 0.0
        %v7333 = vmax.f32 %v7325, 0.0
        %v7334 = vmax.f32 %v7326, 0.0
        %v7335 = vmax.f32 %v7327, %v7328
        %v7336 = vmax.f32 %v7329, %v7330
        %v7337 = vmax.f32 %v7331, %v7332
        %v7338 = vmax.f32 %v7333, %v7334
        %vm7339 = vcmask 130048
        %7340 = vst.msk [vmem:[#allocation3] sm:$0xff] %vm7339, %v7335
        %7341 = vst.msk [vmem:[#allocation3 + $0x8] sm:$0xff] %vm7339, %v7336
        %7342 = vst.msk [vmem:[#allocation3 + $0x10] sm:$0xff] %vm7339, %v7337
        %7343 = vst.msk [vmem:[#allocation3 + $0x18] sm:$0xff] %vm7339, %v7338
        %v7344 = vld [vmem:[#allocation3] ss:$2 sm:$0xf]
        %s7345 = scalar_lea.vmem [#allocation3], 8
        %v7346 = vld [vmem:[%s7345] ss:$2 sm:$0xf]
        %s7347 = scalar_lea.vmem [#allocation3], 16
        %v7348 = vld [vmem:[%s7347] ss:$2 sm:$0xf]
        %s7349 = scalar_lea.vmem [#allocation3], 24
        %v7350 = vld [vmem:[%s7349] ss:$2 sm:$0xf]
        %s7351 = scalar_lea.vmem [#allocation3], 1
        %v7352 = vld [vmem:[%s7351] ss:$2 sm:$0xf]
        %s7353 = scalar_lea.vmem [#allocation3], 9
        %v7354 = vld [vmem:[%s7353] ss:$2 sm:$0xf]
        %s7355 = scalar_lea.vmem [#allocation3], 17
        %v7356 = vld [vmem:[%s7355] ss:$2 sm:$0xf]
        %s7357 = scalar_lea.vmem [#allocation3], 25
        %v7358 = vld [vmem:[%s7357] ss:$2 sm:$0xf]
        %v7359 = vmax.f32 %v7344, %v7352
        %v7360 = vmax.f32 %v7346, %v7354
        %v7361 = vmax.f32 %v7348, %v7356
        %v7362 = vmax.f32 %v7350, %v7358
        %vm7363 = vcmask 125952
        %v7364 = vsel %vm7363, %v7359, 0.0
        %v7365 = vsel %vm7363, %v7360, 0.0
        %v7366 = vadd.f32 %v7364, %v7365
        %v7367 = vsel %vm7363, %v7361, 0.0
        %v7368 = vadd.f32 %v7366, %v7367
        %v7369 = vsel %vm7363, %v7362, 0.0
        %v7370 = vadd.f32 %v7368, %v7369
        %v7371 = vsel %vm7363, %v7370, 0.0
        %v7372 = vrot.slane %v7371, 4
        %v7373 = vadd.f32 %v7371, %v7372
        %v7374 = vrot.slane %v7373, 2
        %v7375 = vadd.f32 %v7373, %v7374
        %v7376 = vrot.slane %v7375, 1
        %v7377 = vadd.f32 %v7375, %v7376
        %v7378 = vmul.f32 %v7377, 0.0625
        %v7379 = vld [vmem:[%s10] sm:$0xff]
        %v7380 = vld [vmem:[%s10 + $0x8] sm:$0xff]
        %v7381 = vld [vmem:[%s11] sm:$0x1]
        %v7383 = vsel %vm7339, %v7378, 0
        %7385 = vmatprep.subr.mxu0 0.0
        %7386 = vmatpush1.msra.mxu0 %v7379
        %7387 = vmatprep.subr.mxu0 0.0
        %7388 = vmatpush1.msra.mxu0 %v7380
        %7389 = vmatprep.subr.mxu0 0.0
        %7390 = vmatpush1.msra.mxu0 0.0
        %7391 = vmatprep.subr.mxu0 0.0
        %7392 = vmatpush1.msra.mxu0 0.0
        %7393 = vmatprep.subr.mxu0 0.0
        %7394 = vmatpush1.msra.mxu0 0.0
        %7395 = vmatprep.subr.mxu0 0.0
        %7396 = vmatpush1.msra.mxu0 0.0
        %7397 = vmatprep.subr.mxu0 0.0
        %7398 = vmatpush1.msra.mxu0 0.0
        %7399 = vmatprep.subr.mxu0 0.0
        %7400 = vmatpush1.msra.mxu0 0.0
        %7401 = vmatprep.subr.mxu0 0.0
        %7402 = vmatpush1.msra.mxu0 0.0
        %7403 = vmatprep.subr.mxu0 0.0
        %7404 = vmatpush1.msra.mxu0 0.0
        %7405 = vmatprep.subr.mxu0 0.0
        %7406 = vmatpush1.msra.mxu0 0.0
        %7407 = vmatprep.subr.mxu0 0.0
        %7408 = vmatpush1.msra.mxu0 0.0
        %7409 = vmatprep.subr.mxu0 0.0
        %7410 = vmatpush1.msra.mxu0 0.0
        %7411 = vmatprep.subr.mxu0 0.0
        %7412 = vmatpush1.msra.mxu0 0.0
        %7413 = vmatprep.subr.mxu0 0.0
        %7414 = vmatpush1.msra.mxu0 0.0
        %7415 = vmatprep.subr.mxu0 0.0
        %7416 = vmatpush1.msra.mxu0 0.0
        %7417 = vmatprep.subr.mxu0 0.0
        %7418 = vmatpush1.msra.mxu0 0.0
        %7419 = vmatprep.subr.mxu0 0.0
        %7420 = vmatpush1.msra.mxu0 0.0
        %7421 = vmatprep.subr.mxu0 0.0
        %7422 = vmatpush1.msra.mxu0 0.0
        %7423 = vmatprep.subr.mxu0 0.0
        %7424 = vmatpush1.msra.mxu0 0.0
        %7425 = vmatprep.subr.mxu0 0.0
        %7426 = vmatpush1.msra.mxu0 0.0
        %7427 = vmatprep.subr.mxu0 0.0
        %7428 = vmatpush1.msra.mxu0 0.0
        %7429 = vmatprep.subr.mxu0 0.0
        %7430 = vmatpush1.msra.mxu0 0.0
        %7431 = vmatprep.subr.mxu0 0.0
        %7432 = vmatpush1.msra.mxu0 0.0
        %7433 = vmatprep.subr.mxu0 0.0
        %7434 = vmatpush1.msra.mxu0 0.0
        %7435 = vmatprep.subr.mxu0 0.0
        %7436 = vmatpush1.msra.mxu0 0.0
        %7437 = vmatprep.subr.mxu0 0.0
        %7438 = vmatpush1.msra.mxu0 0.0
        %7439 = vmatprep.subr.mxu0 0.0
        %7440 = vmatpush1.msra.mxu0 0.0
        %7441 = vmatprep.subr.mxu0 0.0
        %7442 = vmatpush1.msra.mxu0 0.0
        %7443 = vmatprep.subr.mxu0 0.0
        %7444 = vmatpush1.msra.mxu0 0.0
        %7445 = vmatprep.subr.mxu0 0.0
        %7446 = vmatpush1.msra.mxu0 0.0
        %7447 = vmatprep.subr.mxu0 0.0
        %7448 = vmatpush1.msra.mxu0 0.0
        %7449 = vmatprep.mubr.f32.mxu0 0.0
        %7450 = vmatmul.mubr.f32.gmra.mrb[0].mxu0 %v7383
        %v7451 = vpop.f32.mrb[0].mxu0
        %v7452 = vadd.f32 %v7381, %v7451
        %v7453 = vpop.f32.mrb[0].mxu0
        %7454 = vdwg.mxu0
        %v7455 = vmax.f32 %v7452, 0.0
        %v7456 = vld [vmem:[%s12] sm:$0xff]
        %v7457 = vld [vmem:[%s12 + $0x8] sm:$0xff]
        %v7458 = vld [vmem:[%s12 + $0x10] sm:$0xff]
        %v7459 = vld [vmem:[%s12 + $0x18] sm:$0xff]
        %v7460 = vld [vmem:[%s13] sm:$0x1]
        %vm7461 = vcmask 261120
        %v7463 = vsel %vm7461, %v7455, 0
        %7465 = vmatprep.subr.mxu0 0.0
        %7466 = vmatpush1.msra.mxu0 %v7456
        %7467 = vmatprep.subr.mxu0 0.0
        %7468 = vmatpush1.msra.mxu0 %v7457
        %7469 = vmatprep.subr.mxu0 0.0
        %7470 = vmatpush1.msra.mxu0 %v7458
        %7471 = vmatprep.subr.mxu0 0.0
        %7472 = vmatpush1.msra.mxu0 %v7459
        %7473 = vmatprep.subr.mxu0 0.0
        %7474 = vmatpush1.msra.mxu0 0.0
        %7475 = vmatprep.subr.mxu0 0.0
        %7476 = vmatpush1.msra.mxu0 0.0
        %7477 = vmatprep.subr.mxu0 0.0
        %7478 = vmatpush1.msra.mxu0 0.0
        %7479 = vmatprep.subr.mxu0 0.0
        %7480 = vmatpush1.msra.mxu0 0.0
        %7481 = vmatprep.subr.mxu0 0.0
        %7482 = vmatpush1.msra.mxu0 0.0
        %7483 = vmatprep.subr.mxu0 0.0
        %7484 = vmatpush1.msra.mxu0 0.0
        %7485 = vmatprep.subr.mxu0 0.0
        %7486 = vmatpush1.msra.mxu0 0.0
        %7487 = vmatprep.subr.mxu0 0.0
        %7488 = vmatpush1.msra.mxu0 0.0
        %7489 = vmatprep.subr.mxu0 0.0
        %7490 = vmatpush1.msra.mxu0 0.0
        %7491 = vmatprep.subr.mxu0 0.0
        %7492 = vmatpush1.msra.mxu0 0.0
        %7493 = vmatprep.subr.mxu0 0.0
        %7494 = vmatpush1.msra.mxu0 0.0
        %7495 = vmatprep.subr.mxu0 0.0
        %7496 = vmatpush1.msra.mxu0 0.0
        %7497 = vmatprep.subr.mxu0 0.0
        %7498 = vmatpush1.msra.mxu0 0.0
        %7499 = vmatprep.subr.mxu0 0.0
        %7500 = vmatpush1.msra.mxu0 0.0
        %7501 = vmatprep.subr.mxu0 0.0
        %7502 = vmatpush1.msra.mxu0 0.0
        %7503 = vmatprep.subr.mxu0 0.0
        %7504 = vmatpush1.msra.mxu0 0.0
        %7505 = vmatprep.subr.mxu0 0.0
        %7506 = vmatpush1.msra.mxu0 0.0
        %7507 = vmatprep.subr.mxu0 0.0
        %7508 = vmatpush1.msra.mxu0 0.0
        %7509 = vmatprep.subr.mxu0 0.0
        %7510 = vmatpush1.msra.mxu0 0.0
        %7511 = vmatprep.subr.mxu0 0.0
        %7512 = vmatpush1.msra.mxu0 0.0
        %7513 = vmatprep.subr.mxu0 0.0
        %7514 = vmatpush1.msra.mxu0 0.0
        %7515 = vmatprep.subr.mxu0 0.0
        %7516 = vmatpush1.msra.mxu0 0.0
        %7517 = vmatprep.subr.mxu0 0.0
        %7518 = vmatpush1.msra.mxu0 0.0
        %7519 = vmatprep.subr.mxu0 0.0
        %7520 = vmatpush1.msra.mxu0 0.0
        %7521 = vmatprep.subr.mxu0 0.0
        %7522 = vmatpush1.msra.mxu0 0.0
        %7523 = vmatprep.subr.mxu0 0.0
        %7524 = vmatpush1.msra.mxu0 0.0
        %7525 = vmatprep.subr.mxu0 0.0
        %7526 = vmatpush1.msra.mxu0 0.0
        %7527 = vmatprep.subr.mxu0 0.0
        %7528 = vmatpush1.msra.mxu0 0.0
        %7529 = vmatprep.mubr.f32.mxu0 0.0
        %7530 = vmatmul.mubr.f32.gmra.mrb[0].mxu0 %v7463
        %v7531 = vpop.f32.mrb[0].mxu0
        %v7532 = vadd.f32 %v7460, %v7531
        %v7533 = vpop.f32.mrb[0].mxu0
        %7534 = vdwg.mxu0
        %7535 = vst [vmem:[%s459] sm:$0x1] %v7532
        %s7536 = sand.u32 %s335, 1
        %s7537 = scalar_lea.sflag [#allocation5], %s7536
        %s7538 = sand.u32 %s335, 1
        %s7539 = scalar_lea.vmem [#allocation4], %s7538
        // Predicated region
        $region77: #{tpu_custom_call.1} parent=75 // pred_check
          %p7540 = pneg %p345
        $region78: #{tpu_custom_call.1} parent=75 // pred_check_branch
          %7542 = sbr.rel (%p7540) target = $region80
        $region79: #{tpu_custom_call.1} parent=75 // pred_region
          %s7544 = ssub.s32 16, 16
          %7545 = vsyncadd %s7537, %s7544
          %s7546 = smul.addr %s28, 16
          %s7547 = scalar_lea.hbm %s14, %s7546
          %s7549 = sshll.u32 %s7539, 4
          %s7550 = int_to_ptr.vmem [resolvable:$true] %s7549
          %7552 = dma.vmem_to_hbm [thread:$0]  %s7550, 16, %s7547, %s7537
        $region80: #{tpu_custom_call.1} parent=75 // pred_fallthru
          _
      $region76: #{tpu_custom_call.1} parent=5 // pred_fallthru
        _
      %p7553 = scmp.le.s32.totalorder 2, %s23
      // Predicated region
      $region81: #{tpu_custom_call.1} parent=5 // pred_check
        %p7554 = pneg %p7553
      $region82: #{tpu_custom_call.1} parent=5 // pred_check_branch
        %7556 = sbr.rel (%p7554) target = $region84
      $region83: #{tpu_custom_call.1} parent=5 // pred_region
        %s7557 = ssub.s32 %s23, 2
        // Predicated region
        $region85: #{tpu_custom_call.1} parent=83 // pred_check
          %p7558 = pneg %p351
        $region86: #{tpu_custom_call.1} parent=83 // pred_check_branch
          %7560 = sbr.rel (%p7558) target = $region88
        $region87: #{tpu_custom_call.1} parent=83 // pred_region
          %s7561 = sand.u32 %s336, 1
          %s7562 = scalar_lea.sflag [#allocation5], %s7561
          %s7563 = sand.u32 %s336, 1
          %s7564 = scalar_lea.vmem [#allocation4], %s7563
          %7565 = dma.done %s7562, 16
        $region88: #{tpu_custom_call.1} parent=83 // pred_fallthru
          _
      $region84: #{tpu_custom_call.1} parent=5 // pred_fallthru
        _
    $region6: #{tpu_custom_call.1} parent=1 // loop_footer
      %s27 = sadd.s32 1, %s23
    $region7: #{tpu_custom_call.1} parent=1 // loop_footer_branch
      %22 = sbr.rel target = $region3
    $region8: #{tpu_custom_call.1} parent=1 // loop_exit
      _
    %7566 = vsyncpa [#allocation5], 1
    %s7567 = scalar_lea.sflag [#allocation5], 1
    %7568 = vsyncpa %s7567, 1

</llo_original>
